<compile_context>
chip_gen: v5e
topology: v5e:2x2
jax: 0.10.0
libtpu: 0.0.40
codegen_flags: <defaults>
</compile_context>

<pallas_src>
import functools

import jax
import jax.numpy as jnp
from jax import lax
from jax.experimental import pallas as pl
from jax.experimental.pallas import tpu as pltpu


_CP = pltpu.CompilerParams(vmem_limit_bytes=32 * 1024 * 1024)


# ---------------------------------------------------------------------------
# Small host-side constant builders (all tiny compared to activations)
# ---------------------------------------------------------------------------
def interior_mask(B, H, W):
    """(1, B*(H+2)*(W+2)) f32: 1 at real pixels of the padded-flat grid."""
    ym = jnp.pad(jnp.ones((H,), jnp.float32), (1, 1))
    xm = jnp.pad(jnp.ones((W,), jnp.float32), (1, 1))
    m = jnp.tile((ym[:, None] * xm[None, :]).reshape(-1), B)
    return m.reshape(1, -1)


def batch_selector(B, Hp, Wp):
    """(B, B*Hp*Wp) f32: row b is 1 on the columns belonging to sample b."""
    return jnp.repeat(jnp.eye(B, dtype=jnp.float32), Hp * Wp, axis=1)


def width_dup_matrix(W):
    """(W, 2W+2) 0/1 matrix duplicating each element into two adjacent lanes
    of the padded big row (columns 0 and 2W+1 stay zero = pad columns)."""
    Wpb = 2 * W + 2
    d = jnp.zeros((W, Wpb), jnp.float32)
    idx = jnp.arange(W)
    d = d.at[idx, 1 + 2 * idx].set(1.0)
    d = d.at[idx, 2 + 2 * idx].set(1.0)
    return d


def pack_conv3x3(w):
    """(Cout, Cin, 3, 3) -> (3, Cout, 3*Cin) bf16; K index = dw*Cin + cin."""
    cout, cin = w.shape[0], w.shape[1]
    arr = w.transpose(2, 3, 1, 0)                     # (dh, dw, cin, cout)
    rows = [arr[dh].reshape(3 * cin, cout).T for dh in range(3)]
    return jnp.stack(rows, axis=0).astype(jnp.bfloat16)


# ---------------------------------------------------------------------------
# Pallas kernels
# ---------------------------------------------------------------------------
def _gen_linear_kernel(z_ref, w_ref, b_ref, o_ref):
    """generator.linear with bsa scale/bias folded; bf16 operands, f32 out."""
    o_ref[...] = (jnp.dot(z_ref[...], w_ref[...],
                          preferred_element_type=jnp.float32) + b_ref[...])


def _gblock_kernel(x_ref, ysT_ref, fwT_ref, fb_ref,
                   w1p_ref, w2p_ref, wsc_ref, cb_ref,
                   dup_ref, selS_ref, selB_ref, mask_ref,
                   o_ref, up_buf, st2_buf, *, dims, eps):
    """One whole GBlock, activation resident in VMEM.

    x_ref   : (cin, ns)  bf16 padded-flat block input, exact zeros at pads
    ysT     : (in_size, B) f32;  fwT/fb: fused 8-way parameter generator
    w1p/w2p : (3, cout, 3*cin|3*cout) bf16 packed conv taps; wsc (cout, cin)
    cb_ref  : (cout, 3) f32 columns [conv1_b, conv2_b, convsc_b]
    dup     : (W, Wpb) width-duplication matrix
    selS/selB: (B, ns)/(B, npb) batch selectors (selB has interior mask folded)
    mask    : (1, npb) interior mask of the big grid
    o_ref   : (cout, npb) bf16 padded-flat block output (zeros at pads)
    """
    B, cin, cout, H, W = dims
    Hp, Wp = H + 2, W + 2
    Hb, Wb = 2 * H, 2 * W
    Hpb, Wpb = Hb + 2, Wb + 2
    ns = B * Hp * Wp
    npb = B * Hpb * Wpb
    sb = Wpb + 1                       # margin columns each side of conv bufs
    ntot = npb + 2 * sb
    nvalid_s = float(B * H * W)
    nvalid_b = float(B * Hb * Wb)
    call = cin + cout

    # ---- fused per-sample parameter generator: one tiny matmul yields the
    #      CBN gains/biases and the generated conv1x1 scale/shift (rowsum+1).
    lin = (jnp.dot(fwT_ref[...], ysT_ref[...],
                   preferred_element_type=jnp.float32) + fb_ref[...])
    gain1 = lin[0 * cin:1 * cin, :]
    bias1 = lin[1 * cin:2 * cin, :]
    ds1 = lin[2 * cin:3 * cin, :]
    db1 = lin[3 * cin:4 * cin, :]
    o0 = 4 * cin
    gain2 = lin[o0 + 0 * cout:o0 + 1 * cout, :]
    bias2 = lin[o0 + 1 * cout:o0 + 2 * cout, :]
    ds2 = lin[o0 + 2 * cout:o0 + 3 * cout, :]
    db2 = lin[o0 + 3 * cout:o0 + 4 * cout, :]
    s1, t1 = gain1 * ds1, bias1 * ds1 + db1            # (cin, B)
    s2, t2 = gain2 * ds2, bias2 * ds2 + db2            # (cout, B)

    x_bf = x_ref[...]                                  # (cin, ns) bf16
    x32 = x_bf.astype(jnp.float32)

    # ---- stage 1: CBN (batch stats; pads are zero so plain row sums work),
    #      composed with the generated per-sample scale/shift, then ReLU.
    mean1 = jnp.sum(x32, axis=1, keepdims=True) / nvalid_s
    var1 = jnp.maximum(jnp.sum(x32 * x32, axis=1, keepdims=True) / nvalid_s
                       - mean1 * mean1, 0.0)
    inv1 = lax.rsqrt(var1 + eps)
    # broadcast per-(channel, sample) affine over the lane axis with a tiny
    # (C, B)@(B, ns) selector matmul (no host-side lane expansion / HBM trip).
    a1 = jnp.dot(inv1 * s1, selS_ref[...], preferred_element_type=jnp.float32)
    c1 = jnp.dot(t1 - mean1 * inv1 * s1, selS_ref[...],
                 preferred_element_type=jnp.float32)
    h1 = jnp.maximum(x32 * a1 + c1, 0.0)   # pad columns: garbage, never read

    # ---- skip path: 1x1 conv on the pre-BN input (commutes with upsample).
    sk_small = jnp.dot(wsc_ref[...], x_bf, preferred_element_type=jnp.float32)

    # ---- nearest 2x upsample of [h1 ; skip] into the bf16 conv1 buffer.
    # Zero only what the row loop does not write: margins + pad rows.
    up_buf[:, 0:sb + Wpb] = jnp.zeros((call, sb + Wpb), jnp.bfloat16)
    for b in range(1, B):
        a = sb + (b * Hpb - 1) * Wpb
        up_buf[:, a:a + 2 * Wpb] = jnp.zeros((call, 2 * Wpb), jnp.bfloat16)
    a = sb + (B * Hpb - 1) * Wpb
    up_buf[:, a:ntot] = jnp.zeros((call, sb + Wpb), jnp.bfloat16)

    dup = dup_ref[...]                                 # (W, Wpb)
    src_all = jnp.concatenate([h1, sk_small], axis=0)  # (cin+cout, ns) f32
    for b in range(B):
        for y in range(1, H + 1):
            qs = (b * Hp + y) * Wp
            seg = src_all[:, qs + 1:qs + 1 + W]        # interior of small row
            wide = jnp.dot(seg, dup,
                           preferred_element_type=jnp.float32
                           ).astype(jnp.bfloat16)      # (cin+cout, Wpb)
            for yb in (2 * y - 1, 2 * y):
                q = sb + (b * Hpb + yb) * Wpb
                up_buf[:, q:q + Wpb] = wide

    # ---- conv1 3x3: taps stacked along K, one bf16 matmul per kernel row.
    acc1 = jnp.zeros((cout, npb), jnp.float32)
    for dh in range(3):
        off = sb + (dh - 1) * Wpb
        stacked = jnp.concatenate(
            [up_buf[0:cin, off + dw - 1:off + dw - 1 + npb] for dw in range(3)],
            axis=0)                                    # (3*cin, npb) bf16
        acc1 = acc1 + jnp.dot(w1p_ref[dh], stacked,
                              preferred_element_type=jnp.float32)
    mask = mask_ref[...]
    conv1 = (acc1 + cb_ref[:, 0:1]) * mask             # exact zeros at pads

    # ---- stage 2: CBN (batch stats) + generated scale/shift + ReLU.
    mean2 = jnp.sum(conv1, axis=1, keepdims=True) / nvalid_b
    var2 = jnp.maximum(jnp.sum(conv1 * conv1, axis=1, keepdims=True) / nvalid_b
                       - mean2 * mean2, 0.0)
    inv2 = lax.rsqrt(var2 + eps)
    # selB has the interior mask folded in, so h2 is exactly zero at pads.
    a2 = jnp.dot(inv2 * s2, selB_ref[...], preferred_element_type=jnp.float32)
    c2 = jnp.dot(t2 - mean2 * inv2 * s2, selB_ref[...],
                 preferred_element_type=jnp.float32)
    h2 = jnp.maximum(conv1 * a2 + c2, 0.0)

    # conv2 input buffer: interior fully written, only margins need zeroing.
    st2_buf[:, 0:sb] = jnp.zeros((cout, sb), jnp.bfloat16)
    st2_buf[:, sb + npb:ntot] = jnp.zeros((cout, sb), jnp.bfloat16)
    st2_buf[:, sb:sb + npb] = h2.astype(jnp.bfloat16)

    # ---- conv2 3x3 (same stacked-K scheme)
    acc2 = jnp.zeros((cout, npb), jnp.float32)
    for dh in range(3):
        off = sb + (dh - 1) * Wpb
        stacked = jnp.concatenate(
            [st2_buf[:, off + dw - 1:off + dw - 1 + npb] for dw in range(3)],
            axis=0)                                    # (3*cout, npb) bf16
        acc2 = acc2 + jnp.dot(w2p_ref[dh], stacked,
                              preferred_element_type=jnp.float32)

    sk_big = up_buf[cin:cin + cout, sb:sb + npb].astype(jnp.float32)
    out = (acc2 + cb_ref[:, 1:2] + sk_big + cb_ref[:, 2:3]) * mask
    o_ref[...] = out.astype(jnp.bfloat16)


def _output_layer_kernel(x_ref, gamma_ref, beta_ref, w_ref, b_ref, mask_ref,
                         o_ref, buf, *, dims, eps):
    """output_layer: BN(batch stats) + ReLU + conv3x3, fused tanh."""
    B, C, H, W, cimg = dims
    Wp = W + 2
    npl = B * (H + 2) * Wp
    sl = Wp + 1
    ntot = npl + 2 * sl
    nvalid = float(B * H * W)
    x32 = x_ref[...].astype(jnp.float32)
    mean = jnp.sum(x32, axis=1, keepdims=True) / nvalid
    var = jnp.maximum(jnp.sum(x32 * x32, axis=1, keepdims=True) / nvalid
                      - mean * mean, 0.0)
    inv = lax.rsqrt(var + eps)
    hh = jnp.maximum((x32 - mean) * inv * gamma_ref[...] + beta_ref[...], 0.0)
    hh = hh * mask_ref[...]
    buf[:, 0:sl] = jnp.zeros((C, sl), jnp.bfloat16)
    buf[:, sl + npl:ntot] = jnp.zeros((C, sl), jnp.bfloat16)
    buf[:, sl:sl + npl] = hh.astype(jnp.bfloat16)
    acc = jnp.zeros((cimg, npl), jnp.float32)
    for dh in range(3):
        off = sl + (dh - 1) * Wp
        stacked = jnp.concatenate(
            [buf[:, off + dw - 1:off + dw - 1 + npl] for dw in range(3)],
            axis=0)
        acc = acc + jnp.dot(w_ref[dh], stacked, preferred_element_type=jnp.float32)
    o_ref[...] = jnp.tanh(acc + b_ref[...])


# ---------------------------------------------------------------------------
# pallas_call wrappers
# ---------------------------------------------------------------------------
def gen_linear_apply(z, w, b):
    B = z.shape[0]
    n = w.shape[1]
    return pl.pallas_call(
        _gen_linear_kernel,
        out_shape=jax.ShapeDtypeStruct((B, n), jnp.float32),
        compiler_params=_CP,
    )(z, w, b)


def gblock_apply(x, ys_t, blk, dims):
    B, cin, cout, H, W = dims
    Wpb = 2 * W + 2
    npb = B * (2 * H + 2) * Wpb
    ntot = npb + 2 * (Wpb + 1)
    return pl.pallas_call(
        functools.partial(_gblock_kernel, dims=dims, eps=1e-5),
        out_shape=jax.ShapeDtypeStruct((cout, npb), jnp.bfloat16),
        scratch_shapes=[pltpu.VMEM((cin + cout, ntot), jnp.bfloat16),
                        pltpu.VMEM((cout, ntot), jnp.bfloat16)],
        compiler_params=_CP,
    )(x, ys_t, blk["fused_wT"], blk["fused_b"], blk["w1p"], blk["w2p"],
      blk["wsc"], blk["cbias"], blk["dup"], blk["selS"], blk["selB"],
      blk["mask"])


def output_layer_apply(x, out_p, dims):
    B, C, H, W, cimg = dims
    Wp = W + 2
    npl = B * (H + 2) * Wp
    ntot = npl + 2 * (Wp + 1)
    return pl.pallas_call(
        functools.partial(_output_layer_kernel, dims=dims, eps=1e-5),
        out_shape=jax.ShapeDtypeStruct((cimg, npl), jnp.float32),
        scratch_shapes=[pltpu.VMEM((C, ntot), jnp.bfloat16)],
        compiler_params=_CP,
    )(x, out_p["gamma"], out_p["beta"], out_p["w"], out_p["b"], out_p["mask"])


# ---------------------------------------------------------------------------
# Parameters (deterministic synthetic init; shapes follow the module __init__)
# ---------------------------------------------------------------------------
def _normal(key, shape, scale):
    return scale * jax.random.normal(key, shape, dtype=jnp.float32)


def init_params(key, cfg):
    sed = cfg["shared_embed_dim"]
    zc = cfg["z_chunk_size"]
    in_size = sed + zc
    bw = cfg["bottom_width"]
    blocks_ch = cfg["block_channels"]
    ch0 = blocks_ch[0][0]

    keys = iter(jax.random.split(key, 256))
    nk = lambda: next(keys)
    p = {}
    p["linear_w"] = _normal(nk(), (sed, 1), 0.2)          # Linear(1, sed), no bias
    p["gen_linear_w"] = _normal(nk(), (ch0 * bw * bw, zc), 0.1)
    p["gen_linear_b"] = jnp.zeros((ch0 * bw * bw,), jnp.float32)
    p["bsa_scale"] = jnp.ones((ch0,), jnp.float32)
    p["bsa_bias"] = jnp.zeros((ch0,), jnp.float32)
    pg_channels = []
    for cin, cout in blocks_ch:
        pg_channels += [cin, cout]
    p["paramG"] = []
    for ch in pg_channels:
        p["paramG"].append(dict(
            w_weight=_normal(nk(), (ch * ch, in_size), 0.01),
            w_bias=jnp.zeros((ch * ch,), jnp.float32),
            b_weight=_normal(nk(), (ch, in_size), 0.01),
            b_bias=jnp.zeros((ch,), jnp.float32)))
    p["blocks"] = []
    for cin, cout in blocks_ch:
        p["blocks"].append(dict(
            bn1_gain_w=_normal(nk(), (cin, in_size), 0.02),
            bn1_bias_w=_normal(nk(), (cin, in_size), 0.02),
            conv1_w=_normal(nk(), (cout, cin, 3, 3), 0.05),
            conv1_b=jnp.zeros((cout,), jnp.float32),
            bn2_gain_w=_normal(nk(), (cout, in_size), 0.02),
            bn2_bias_w=_normal(nk(), (cout, in_size), 0.02),
            conv2_w=_normal(nk(), (cout, cout, 3, 3), 0.05),
            conv2_b=jnp.zeros((cout,), jnp.float32),
            convsc_w=_normal(nk(), (cout, cin, 1, 1), 0.05),
            convsc_b=jnp.zeros((cout,), jnp.float32)))
    clast = blocks_ch[-1][1]
    p["out_bn_gamma"] = jnp.ones((clast,), jnp.float32)
    p["out_bn_beta"] = jnp.zeros((clast,), jnp.float32)
    p["out_conv_w"] = _normal(nk(), (cfg["out_image_channels"], clast, 3, 3), 0.1)
    p["out_conv_b"] = jnp.zeros((cfg["out_image_channels"],), jnp.float32)
    # NOTE: self.embeddings, self.conv1x1 ModuleList and conv1x1_first* are
    # defined in __init__ but never used in forward(), so they are omitted.
    return p


def prepare_params(p, cfg):
    """One-time folding / packing into the layouts the kernels consume."""
    B = cfg["batch"]
    bw = cfg["bottom_width"]
    blocks_ch = cfg["block_channels"]
    cimg = cfg["out_image_channels"]

    prep = {"linear_w": p["linear_w"]}

    # generator.linear with bsa channel affine folded; bf16 operands.
    s_cols = jnp.repeat(p["bsa_scale"], bw * bw)
    t_cols = jnp.repeat(p["bsa_bias"], bw * bw)
    prep["gen_w"] = (p["gen_linear_w"].T * s_cols[None, :]).astype(jnp.bfloat16)
    prep["gen_b"] = (p["gen_linear_b"] * s_cols + t_cols).reshape(1, -1)

    prep["blocks"] = []
    i = 0
    for idx, (cin, cout) in enumerate(blocks_ch):
        blk = p["blocks"][idx]
        pg1, pg2 = p["paramG"][i], p["paramG"][i + 1]
        # fused weight rows: [gain1 | bias1 | ds1 | db1 | gain2 | bias2 | ds2 | db2]
        w_rows = [
            blk["bn1_gain_w"], blk["bn1_bias_w"],
            pg1["w_weight"].reshape(cin, cin, -1).sum(axis=1),   # rowsum(Gw)
            pg1["b_weight"],
            blk["bn2_gain_w"], blk["bn2_bias_w"],
            pg2["w_weight"].reshape(cout, cout, -1).sum(axis=1),
            pg2["b_weight"],
        ]
        b_rows = [
            jnp.ones((cin,), jnp.float32),                       # "+1" of CBN gain
            jnp.zeros((cin,), jnp.float32),
            1.0 + pg1["w_bias"].reshape(cin, cin).sum(axis=1),   # identity init
            pg1["b_bias"],
            jnp.ones((cout,), jnp.float32),
            jnp.zeros((cout,), jnp.float32),
            1.0 + pg2["w_bias"].reshape(cout, cout).sum(axis=1),
            pg2["b_bias"],
        ]
        H = bw * (2 ** idx)
        Hb = 2 * H
        mask_big = interior_mask(B, Hb, Hb)
        prep["blocks"].append(dict(
            fused_wT=jnp.concatenate(w_rows, axis=0),
            fused_b=jnp.concatenate(b_rows).reshape(-1, 1),
            w1p=pack_conv3x3(blk["conv1_w"]),
            w2p=pack_conv3x3(blk["conv2_w"]),
            wsc=blk["convsc_w"].reshape(cout, cin).astype(jnp.bfloat16),
            cbias=jnp.stack([blk["conv1_b"], blk["conv2_b"], blk["convsc_b"]],
                            axis=1),
            dup=width_dup_matrix(H),
            selS=batch_selector(B, H + 2, H + 2),
            selB=batch_selector(B, Hb + 2, Hb + 2) * mask_big,
            mask=mask_big,
        ))
        i += 2

    clast = blocks_ch[-1][1]
    Hl = bw * (2 ** len(blocks_ch))
    prep["out"] = dict(
        gamma=p["out_bn_gamma"].reshape(clast, 1),
        beta=p["out_bn_beta"].reshape(clast, 1),
        w=pack_conv3x3(p["out_conv_w"]),
        b=p["out_conv_b"].reshape(cimg, 1),
        mask=interior_mask(B, Hl, Hl),
    )
    return prep


# ---------------------------------------------------------------------------
# Forward pass (mirrors AdaBIGGAN.forward)
# ---------------------------------------------------------------------------
def adabiggan_forward(prep, z, cfg):
    B = z.shape[0]
    zc = cfg["z_chunk_size"]
    bw = cfg["bottom_width"]
    sed = cfg["shared_embed_dim"]
    ch0 = cfg["block_channels"][0][0]
    cimg = cfg["out_image_channels"]

    # y = self.linear(ones(B, 1)) with a bias-free Linear(1, sed): broadcast.
    yT = jnp.broadcast_to(prep["linear_w"], (sed, B))          # (sed, B)

    # hierarchical z split: zs[0] -> generator.linear, zs[1:] -> per-block ys
    n_chunks = z.shape[1] // zc
    zs = [z[:, k * zc:(k + 1) * zc] for k in range(n_chunks)]
    ys_t = [jnp.concatenate([yT, item.T], axis=0) for item in zs[1:]]

    # first linear (bsa folded into weight/bias), then a tiny host-side
    # pad/transpose (ch0*bw*bw*B elements) into the padded-flat bf16 layout.
    # TODO(synk): at full size fold this relayout into block 0's kernel.
    h_lin = gen_linear_apply(zs[0].astype(jnp.bfloat16),
                             prep["gen_w"], prep["gen_b"])     # (B, ch0*bw*bw)
    t = h_lin.reshape(B, ch0, bw, bw)
    t = jnp.pad(t, ((0, 0), (0, 0), (1, 1), (1, 1))).transpose(1, 0, 2, 3)
    h = t.reshape(ch0, B * (bw + 2) * (bw + 2)).astype(jnp.bfloat16)

    for idx, blk in enumerate(prep["blocks"]):
        cin, cout = cfg["block_channels"][idx]
        H = bw * (2 ** idx)
        h = gblock_apply(h, ys_t[idx], blk, (B, cin, cout, H, H))

    clast = cfg["block_channels"][-1][1]
    Hl = bw * (2 ** len(cfg["block_channels"]))
    of = output_layer_apply(h, prep["out"], (B, clast, Hl, Hl, cimg))
    Hpl = Hl + 2
    img = (of.reshape(cimg, B, Hpl, Hpl)[:, :, 1:Hl + 1, 1:Hl + 1]
           .transpose(1, 0, 2, 3))
    return img


# ---------------------------------------------------------------------------
if __name__ == "__main__":
    cfg = dict(
        batch=2,
        shared_embed_dim=16,
        z_chunk_size=8,
        bottom_width=4,
        block_channels=[(64, 32), (32, 16)],
        out_image_channels=3,
    )
    key = jax.random.PRNGKey(0)
    kp, kz = jax.random.split(key)
    raw_params = init_params(kp, cfg)
    prep = prepare_params(raw_params, cfg)

    dim_z = cfg["z_chunk_size"] * (len(cfg["block_channels"]) + 1)   # = 24
    z = jax.random.normal(kz, (cfg["batch"], dim_z), dtype=jnp.float32)

    fwd = jax.jit(functools.partial(adabiggan_forward, cfg=cfg))
    out = fwd(prep, z)
    out = jax.block_until_ready(out)

    final_hw = cfg["bottom_width"] * (2 ** len(cfg["block_channels"]))
    assert out.shape == (cfg["batch"], cfg["out_image_channels"],
                         final_hw, final_hw)
    assert bool(jnp.all(jnp.isfinite(out)))
    print("KERNEL_OK")
</pallas_src>

<mosaic_0001>
module attributes {stable_mosaic.version = 11 : i64} {
  func.func @_gen_linear_kernel(%arg0: memref<2x8xbf16, #tpu.memory_space<vmem>>, %arg1: memref<8x1024xbf16, #tpu.memory_space<vmem>>, %arg2: memref<1x1024xf32, #tpu.memory_space<vmem>>, %arg3: memref<2x1024xf32, #tpu.memory_space<vmem>>) attributes {dimension_semantics = [], scalar_prefetch = 0 : i64, scratch_operands = 0 : i64, tpu.core_type = #tpu.core_type<tc>} {
    %c0 = arith.constant 0 : index
    %c0_0 = arith.constant 0 : index
    %0 = vector.load %arg0[%c0, %c0_0] : memref<2x8xbf16, #tpu.memory_space<vmem>>, vector<2x8xbf16>
    %c0_1 = arith.constant 0 : index
    %c0_2 = arith.constant 0 : index
    %1 = vector.load %arg1[%c0_1, %c0_2] : memref<8x1024xbf16, #tpu.memory_space<vmem>>, vector<8x1024xbf16>
    %cst = arith.constant dense<0.000000e+00> : vector<2x1024xf32>
    %2 = tpu.matmul %0, %1, %cst {dimension_numbers = #tpu.dot_dimension_numbers<[1], [0], [0], [1], [0, 0, 1, 1], [], []>} : vector<2x8xbf16>, vector<8x1024xbf16>, vector<2x1024xf32> -> vector<2x1024xf32>
    %c0_3 = arith.constant 0 : index
    %c0_4 = arith.constant 0 : index
    %3 = vector.load %arg2[%c0_3, %c0_4] : memref<1x1024xf32, #tpu.memory_space<vmem>>, vector<1x1024xf32>
    %4 = vector.broadcast %3 : vector<1x1024xf32> to vector<2x1024xf32>
    %5 = arith.addf %2, %4 : vector<2x1024xf32>
    %c0_5 = arith.constant 0 : index
    %c0_6 = arith.constant 0 : index
    %6 = vector.load %arg3[%c0_5, %c0_6] : memref<2x1024xf32, #tpu.memory_space<vmem>>, vector<2x1024xf32>
    tpu.vector_store %arg3[%c0_5, %c0_6], %5 {strides = array<i32>} : memref<2x1024xf32, #tpu.memory_space<vmem>>, vector<2x1024xf32>,
    return
  }
}

module attributes {stable_mosaic.version = 11 : i64} {
  func.func @_gblock_kernel(%arg0: memref<64x72xbf16, #tpu.memory_space<vmem>>, %arg1: memref<24x2xf32, #tpu.memory_space<vmem>>, %arg2: memref<384x24xf32, #tpu.memory_space<vmem>>, %arg3: memref<384x1xf32, #tpu.memory_space<vmem>>, %arg4: memref<3x32x192xbf16, #tpu.memory_space<vmem>>, %arg5: memref<3x32x96xbf16, #tpu.memory_space<vmem>>, %arg6: memref<32x64xbf16, #tpu.memory_space<vmem>>, %arg7: memref<32x3xf32, #tpu.memory_space<vmem>>, %arg8: memref<4x10xf32, #tpu.memory_space<vmem>>, %arg9: memref<2x72xf32, #tpu.memory_space<vmem>>, %arg10: memref<2x200xf32, #tpu.memory_space<vmem>>, %arg11: memref<1x200xf32, #tpu.memory_space<vmem>>, %arg12: memref<32x200xbf16, #tpu.memory_space<vmem>>, %arg13: memref<96x222xbf16, #tpu.memory_space<vmem>>, %arg14: memref<32x222xbf16, #tpu.memory_space<vmem>>) attributes {dimension_semantics = [], scalar_prefetch = 0 : i64, scratch_operands = 2 : i64, tpu.core_type = #tpu.core_type<tc>} {
    %c0 = arith.constant 0 : index
    %c0_0 = arith.constant 0 : index
    %0 = vector.load %arg2[%c0, %c0_0] : memref<384x24xf32, #tpu.memory_space<vmem>>, vector<384x24xf32>
    %c0_1 = arith.constant 0 : index
    %c0_2 = arith.constant 0 : index
    %1 = vector.load %arg1[%c0_1, %c0_2] : memref<24x2xf32, #tpu.memory_space<vmem>>, vector<24x2xf32>
    %cst = arith.constant dense<0.000000e+00> : vector<384x2xf32>
    %2 = tpu.matmul %0, %1, %cst {dimension_numbers = #tpu.dot_dimension_numbers<[1], [0], [0], [1], [0, 0, 1, 1], [], []>} : vector<384x24xf32>, vector<24x2xf32>, vector<384x2xf32> -> vector<384x2xf32>
    %c0_3 = arith.constant 0 : index
    %c0_4 = arith.constant 0 : index
    %3 = vector.load %arg3[%c0_3, %c0_4] : memref<384x1xf32, #tpu.memory_space<vmem>>, vector<384x1xf32>
    %4 = vector.broadcast %3 : vector<384x1xf32> to vector<384x2xf32>
    %5 = arith.addf %2, %4 : vector<384x2xf32>
    %6 = vector.extract_strided_slice %5 {offsets = [0, 0], sizes = [64, 2], strides = [1, 1]} : vector<384x2xf32> to vector<64x2xf32>
    %7 = vector.extract_strided_slice %5 {offsets = [64, 0], sizes = [64, 2], strides = [1, 1]} : vector<384x2xf32> to vector<64x2xf32>
    %8 = vector.extract_strided_slice %5 {offsets = [128, 0], sizes = [64, 2], strides = [1, 1]} : vector<384x2xf32> to vector<64x2xf32>
    %9 = vector.extract_strided_slice %5 {offsets = [192, 0], sizes = [64, 2], strides = [1, 1]} : vector<384x2xf32> to vector<64x2xf32>
    %10 = vector.extract_strided_slice %5 {offsets = [256, 0], sizes = [32, 2], strides = [1, 1]} : vector<384x2xf32> to vector<32x2xf32>
    %11 = vector.extract_strided_slice %5 {offsets = [288, 0], sizes = [32, 2], strides = [1, 1]} : vector<384x2xf32> to vector<32x2xf32>
    %12 = vector.extract_strided_slice %5 {offsets = [320, 0], sizes = [32, 2], strides = [1, 1]} : vector<384x2xf32> to vector<32x2xf32>
    %13 = vector.extract_strided_slice %5 {offsets = [352, 0], sizes = [32, 2], strides = [1, 1]} : vector<384x2xf32> to vector<32x2xf32>
    %14 = arith.mulf %6, %8 : vector<64x2xf32>
    %15 = arith.mulf %7, %8 : vector<64x2xf32>
    %16 = arith.addf %15, %9 : vector<64x2xf32>
    %17 = arith.mulf %10, %12 : vector<32x2xf32>
    %18 = arith.mulf %11, %12 : vector<32x2xf32>
    %19 = arith.addf %18, %13 : vector<32x2xf32>
    %c0_5 = arith.constant 0 : index
    %c0_6 = arith.constant 0 : index
    %20 = vector.load %arg0[%c0_5, %c0_6] : memref<64x72xbf16, #tpu.memory_space<vmem>>, vector<64x72xbf16>
    %21 = arith.extf %20 : vector<64x72xbf16> to vector<64x72xf32>
    %cst_7 = arith.constant dense<0.000000e+00> : vector<64xf32>
    %22 = vector.multi_reduction <add>, %21, %cst_7 [1] : vector<64x72xf32> to vector<64xf32>
    %23 = vector.shape_cast %22 : vector<64xf32> to vector<64x1xf32>
    %cst_8 = arith.constant 3.200000e+01 : f32
    %24 = vector.broadcast %cst_8 : f32 to vector<64x1xf32>
    %25 = arith.divf %23, %24 : vector<64x1xf32>
    %26 = arith.mulf %21, %21 : vector<64x72xf32>
    %cst_9 = arith.constant dense<0.000000e+00> : vector<64xf32>
    %27 = vector.multi_reduction <add>, %26, %cst_9 [1] : vector<64x72xf32> to vector<64xf32>
    %28 = vector.shape_cast %27 : vector<64xf32> to vector<64x1xf32>
    %cst_10 = arith.constant 3.200000e+01 : f32
    %29 = vector.broadcast %cst_10 : f32 to vector<64x1xf32>
    %30 = arith.divf %28, %29 : vector<64x1xf32>
    %31 = arith.mulf %25, %25 : vector<64x1xf32>
    %32 = arith.subf %30, %31 : vector<64x1xf32>
    %cst_11 = arith.constant 0.000000e+00 : f32
    %33 = vector.broadcast %cst_11 : f32 to vector<64x1xf32>
    %34 = arith.maximumf %32, %33 : vector<64x1xf32>
    %cst_12 = arith.constant 9.99999974E-6 : f32
    %35 = vector.broadcast %cst_12 : f32 to vector<64x1xf32>
    %36 = arith.addf %34, %35 : vector<64x1xf32>
    %37 = math.rsqrt %36 : vector<64x1xf32>
    %38 = vector.broadcast %37 : vector<64x1xf32> to vector<64x2xf32>
    %39 = arith.mulf %38, %14 : vector<64x2xf32>
    %c0_13 = arith.constant 0 : index
    %c0_14 = arith.constant 0 : index
    %40 = vector.load %arg9[%c0_13, %c0_14] : memref<2x72xf32, #tpu.memory_space<vmem>>, vector<2x72xf32>
    %cst_15 = arith.constant dense<0.000000e+00> : vector<64x72xf32>
    %41 = tpu.matmul %39, %40, %cst_15 {dimension_numbers = #tpu.dot_dimension_numbers<[1], [0], [0], [1], [0, 0, 1, 1], [], []>} : vector<64x2xf32>, vector<2x72xf32>, vector<64x72xf32> -> vector<64x72xf32>
    %42 = arith.mulf %25, %37 : vector<64x1xf32>
    %43 = vector.broadcast %42 : vector<64x1xf32> to vector<64x2xf32>
    %44 = arith.mulf %43, %14 : vector<64x2xf32>
    %45 = arith.subf %16, %44 : vector<64x2xf32>
    %c0_16 = arith.constant 0 : index
    %c0_17 = arith.constant 0 : index
    %46 = vector.load %arg9[%c0_16, %c0_17] : memref<2x72xf32, #tpu.memory_space<vmem>>, vector<2x72xf32>
    %cst_18 = arith.constant dense<0.000000e+00> : vector<64x72xf32>
    %47 = tpu.matmul %45, %46, %cst_18 {dimension_numbers = #tpu.dot_dimension_numbers<[1], [0], [0], [1], [0, 0, 1, 1], [], []>} : vector<64x2xf32>, vector<2x72xf32>, vector<64x72xf32> -> vector<64x72xf32>
    %48 = arith.mulf %21, %41 : vector<64x72xf32>
    %49 = arith.addf %48, %47 : vector<64x72xf32>
    %cst_19 = arith.constant 0.000000e+00 : f32
    %50 = vector.broadcast %cst_19 : f32 to vector<64x72xf32>
    %51 = arith.maximumf %49, %50 : vector<64x72xf32>
    %c0_20 = arith.constant 0 : index
    %c0_21 = arith.constant 0 : index
    %52 = vector.load %arg6[%c0_20, %c0_21] : memref<32x64xbf16, #tpu.memory_space<vmem>>, vector<32x64xbf16>
    %cst_22 = arith.constant dense<0.000000e+00> : vector<32x72xf32>
    %53 = tpu.matmul %52, %20, %cst_22 {dimension_numbers = #tpu.dot_dimension_numbers<[1], [0], [0], [1], [0, 0, 1, 1], [], []>} : vector<32x64xbf16>, vector<64x72xbf16>, vector<32x72xf32> -> vector<32x72xf32>
    %cst_23 = arith.constant 0.000000e+00 : bf16
    %54 = vector.broadcast %cst_23 : bf16 to vector<96x21xbf16>
    %c0_24 = arith.constant 0 : index
    %c0_25 = arith.constant 0 : index
    %55 = vector.load %arg13[%c0_24, %c0_25] : memref<96x222xbf16, #tpu.memory_space<vmem>>, vector<96x21xbf16>
    tpu.vector_store %arg13[%c0_24, %c0_25], %54 {strides = array<i32>} : memref<96x222xbf16, #tpu.memory_space<vmem>>, vector<96x21xbf16>,
    %cst_26 = arith.constant 0.000000e+00 : bf16
    %56 = vector.broadcast %cst_26 : bf16 to vector<96x20xbf16>
    %c0_27 = arith.constant 0 : index
    %c101 = arith.constant 101 : index
    %57 = vector.load %arg13[%c0_27, %c101] : memref<96x222xbf16, #tpu.memory_space<vmem>>, vector<96x20xbf16>
    tpu.vector_store %arg13[%c0_27, %c101], %56 {strides = array<i32>} : memref<96x222xbf16, #tpu.memory_space<vmem>>, vector<96x20xbf16>,
    %cst_28 = arith.constant 0.000000e+00 : bf16
    %58 = vector.broadcast %cst_28 : bf16 to vector<96x21xbf16>
    %c0_29 = arith.constant 0 : index
    %c201 = arith.constant 201 : index
    %59 = vector.load %arg13[%c0_29, %c201] : memref<96x222xbf16, #tpu.memory_space<vmem>>, vector<96x21xbf16>
    tpu.vector_store %arg13[%c0_29, %c201], %58 {strides = array<i32>} : memref<96x222xbf16, #tpu.memory_space<vmem>>, vector<96x21xbf16>,
    %c0_30 = arith.constant 0 : index
    %c0_31 = arith.constant 0 : index
    %60 = vector.load %arg8[%c0_30, %c0_31] : memref<4x10xf32, #tpu.memory_space<vmem>>, vector<4x10xf32>
    %61 = tpu.concatenate %51, %53 in 0 : vector<64x72xf32>, vector<32x72xf32> -> vector<96x72xf32>
    %62 = vector.extract_strided_slice %61 {offsets = [0, 7], sizes = [96, 4], strides = [1, 1]} : vector<96x72xf32> to vector<96x4xf32>
    %cst_32 = arith.constant dense<0.000000e+00> : vector<96x10xf32>
    %63 = tpu.matmul %62, %60, %cst_32 {dimension_numbers = #tpu.dot_dimension_numbers<[1], [0], [0], [1], [0, 0, 1, 1], [], []>} : vector<96x4xf32>, vector<4x10xf32>, vector<96x10xf32> -> vector<96x10xf32>
    %64 = arith.truncf %63 : vector<96x10xf32> to vector<96x10xbf16>
    %c0_33 = arith.constant 0 : index
    %c21 = arith.constant 21 : index
    %65 = vector.load %arg13[%c0_33, %c21] : memref<96x222xbf16, #tpu.memory_space<vmem>>, vector<96x10xbf16>
    tpu.vector_store %arg13[%c0_33, %c21], %64 {strides = array<i32>} : memref<96x222xbf16, #tpu.memory_space<vmem>>, vector<96x10xbf16>,
    %c0_34 = arith.constant 0 : index
    %c31 = arith.constant 31 : index
    %66 = vector.load %arg13[%c0_34, %c31] : memref<96x222xbf16, #tpu.memory_space<vmem>>, vector<96x10xbf16>
    tpu.vector_store %arg13[%c0_34, %c31], %64 {strides = array<i32>} : memref<96x222xbf16, #tpu.memory_space<vmem>>, vector<96x10xbf16>,
    %67 = vector.extract_strided_slice %61 {offsets = [0, 13], sizes = [96, 4], strides = [1, 1]} : vector<96x72xf32> to vector<96x4xf32>
    %cst_35 = arith.constant dense<0.000000e+00> : vector<96x10xf32>
    %68 = tpu.matmul %67, %60, %cst_35 {dimension_numbers = #tpu.dot_dimension_numbers<[1], [0], [0], [1], [0, 0, 1, 1], [], []>} : vector<96x4xf32>, vector<4x10xf32>, vector<96x10xf32> -> vector<96x10xf32>
    %69 = arith.truncf %68 : vector<96x10xf32> to vector<96x10xbf16>
    %c0_36 = arith.constant 0 : index
    %c41 = arith.constant 41 : index
    %70 = vector.load %arg13[%c0_36, %c41] : memref<96x222xbf16, #tpu.memory_space<vmem>>, vector<96x10xbf16>
    tpu.vector_store %arg13[%c0_36, %c41], %69 {strides = array<i32>} : memref<96x222xbf16, #tpu.memory_space<vmem>>, vector<96x10xbf16>,
    %c0_37 = arith.constant 0 : index
    %c51 = arith.constant 51 : index
    %71 = vector.load %arg13[%c0_37, %c51] : memref<96x222xbf16, #tpu.memory_space<vmem>>, vector<96x10xbf16>
    tpu.vector_store %arg13[%c0_37, %c51], %69 {strides = array<i32>} : memref<96x222xbf16, #tpu.memory_space<vmem>>, vector<96x10xbf16>,
    %72 = vector.extract_strided_slice %61 {offsets = [0, 19], sizes = [96, 4], strides = [1, 1]} : vector<96x72xf32> to vector<96x4xf32>
    %cst_38 = arith.constant dense<0.000000e+00> : vector<96x10xf32>
    %73 = tpu.matmul %72, %60, %cst_38 {dimension_numbers = #tpu.dot_dimension_numbers<[1], [0], [0], [1], [0, 0, 1, 1], [], []>} : vector<96x4xf32>, vector<4x10xf32>, vector<96x10xf32> -> vector<96x10xf32>
    %74 = arith.truncf %73 : vector<96x10xf32> to vector<96x10xbf16>
    %c0_39 = arith.constant 0 : index
    %c61 = arith.constant 61 : index
    %75 = vector.load %arg13[%c0_39, %c61] : memref<96x222xbf16, #tpu.memory_space<vmem>>, vector<96x10xbf16>
    tpu.vector_store %arg13[%c0_39, %c61], %74 {strides = array<i32>} : memref<96x222xbf16, #tpu.memory_space<vmem>>, vector<96x10xbf16>,
    %c0_40 = arith.constant 0 : index
    %c71 = arith.constant 71 : index
    %76 = vector.load %arg13[%c0_40, %c71] : memref<96x222xbf16, #tpu.memory_space<vmem>>, vector<96x10xbf16>
    tpu.vector_store %arg13[%c0_40, %c71], %74 {strides = array<i32>} : memref<96x222xbf16, #tpu.memory_space<vmem>>, vector<96x10xbf16>,
    %77 = vector.extract_strided_slice %61 {offsets = [0, 25], sizes = [96, 4], strides = [1, 1]} : vector<96x72xf32> to vector<96x4xf32>
    %cst_41 = arith.constant dense<0.000000e+00> : vector<96x10xf32>
    %78 = tpu.matmul %77, %60, %cst_41 {dimension_numbers = #tpu.dot_dimension_numbers<[1], [0], [0], [1], [0, 0, 1, 1], [], []>} : vector<96x4xf32>, vector<4x10xf32>, vector<96x10xf32> -> vector<96x10xf32>
    %79 = arith.truncf %78 : vector<96x10xf32> to vector<96x10xbf16>
    %c0_42 = arith.constant 0 : index
    %c81 = arith.constant 81 : index
    %80 = vector.load %arg13[%c0_42, %c81] : memref<96x222xbf16, #tpu.memory_space<vmem>>, vector<96x10xbf16>
    tpu.vector_store %arg13[%c0_42, %c81], %79 {strides = array<i32>} : memref<96x222xbf16, #tpu.memory_space<vmem>>, vector<96x10xbf16>,
    %c0_43 = arith.constant 0 : index
    %c91 = arith.constant 91 : index
    %81 = vector.load %arg13[%c0_43, %c91] : memref<96x222xbf16, #tpu.memory_space<vmem>>, vector<96x10xbf16>
    tpu.vector_store %arg13[%c0_43, %c91], %79 {strides = array<i32>} : memref<96x222xbf16, #tpu.memory_space<vmem>>, vector<96x10xbf16>,
    %82 = vector.extract_strided_slice %61 {offsets = [0, 43], sizes = [96, 4], strides = [1, 1]} : vector<96x72xf32> to vector<96x4xf32>
    %cst_44 = arith.constant dense<0.000000e+00> : vector<96x10xf32>
    %83 = tpu.matmul %82, %60, %cst_44 {dimension_numbers = #tpu.dot_dimension_numbers<[1], [0], [0], [1], [0, 0, 1, 1], [], []>} : vector<96x4xf32>, vector<4x10xf32>, vector<96x10xf32> -> vector<96x10xf32>
    %84 = arith.truncf %83 : vector<96x10xf32> to vector<96x10xbf16>
    %c0_45 = arith.constant 0 : index
    %c121 = arith.constant 121 : index
    %85 = vector.load %arg13[%c0_45, %c121] : memref<96x222xbf16, #tpu.memory_space<vmem>>, vector<96x10xbf16>
    tpu.vector_store %arg13[%c0_45, %c121], %84 {strides = array<i32>} : memref<96x222xbf16, #tpu.memory_space<vmem>>, vector<96x10xbf16>,
    %c0_46 = arith.constant 0 : index
    %c131 = arith.constant 131 : index
    %86 = vector.load %arg13[%c0_46, %c131] : memref<96x222xbf16, #tpu.memory_space<vmem>>, vector<96x10xbf16>
    tpu.vector_store %arg13[%c0_46, %c131], %84 {strides = array<i32>} : memref<96x222xbf16, #tpu.memory_space<vmem>>, vector<96x10xbf16>,
    %87 = vector.extract_strided_slice %61 {offsets = [0, 49], sizes = [96, 4], strides = [1, 1]} : vector<96x72xf32> to vector<96x4xf32>
    %cst_47 = arith.constant dense<0.000000e+00> : vector<96x10xf32>
    %88 = tpu.matmul %87, %60, %cst_47 {dimension_numbers = #tpu.dot_dimension_numbers<[1], [0], [0], [1], [0, 0, 1, 1], [], []>} : vector<96x4xf32>, vector<4x10xf32>, vector<96x10xf32> -> vector<96x10xf32>
    %89 = arith.truncf %88 : vector<96x10xf32> to vector<96x10xbf16>
    %c0_48 = arith.constant 0 : index
    %c141 = arith.constant 141 : index
    %90 = vector.load %arg13[%c0_48, %c141] : memref<96x222xbf16, #tpu.memory_space<vmem>>, vector<96x10xbf16>
    tpu.vector_store %arg13[%c0_48, %c141], %89 {strides = array<i32>} : memref<96x222xbf16, #tpu.memory_space<vmem>>, vector<96x10xbf16>,
    %c0_49 = arith.constant 0 : index
    %c151 = arith.constant 151 : index
    %91 = vector.load %arg13[%c0_49, %c151] : memref<96x222xbf16, #tpu.memory_space<vmem>>, vector<96x10xbf16>
    tpu.vector_store %arg13[%c0_49, %c151], %89 {strides = array<i32>} : memref<96x222xbf16, #tpu.memory_space<vmem>>, vector<96x10xbf16>,
    %92 = vector.extract_strided_slice %61 {offsets = [0, 55], sizes = [96, 4], strides = [1, 1]} : vector<96x72xf32> to vector<96x4xf32>
    %cst_50 = arith.constant dense<0.000000e+00> : vector<96x10xf32>
    %93 = tpu.matmul %92, %60, %cst_50 {dimension_numbers = #tpu.dot_dimension_numbers<[1], [0], [0], [1], [0, 0, 1, 1], [], []>} : vector<96x4xf32>, vector<4x10xf32>, vector<96x10xf32> -> vector<96x10xf32>
    %94 = arith.truncf %93 : vector<96x10xf32> to vector<96x10xbf16>
    %c0_51 = arith.constant 0 : index
    %c161 = arith.constant 161 : index
    %95 = vector.load %arg13[%c0_51, %c161] : memref<96x222xbf16, #tpu.memory_space<vmem>>, vector<96x10xbf16>
    tpu.vector_store %arg13[%c0_51, %c161], %94 {strides = array<i32>} : memref<96x222xbf16, #tpu.memory_space<vmem>>, vector<96x10xbf16>,
    %c0_52 = arith.constant 0 : index
    %c171 = arith.constant 171 : index
    %96 = vector.load %arg13[%c0_52, %c171] : memref<96x222xbf16, #tpu.memory_space<vmem>>, vector<96x10xbf16>
    tpu.vector_store %arg13[%c0_52, %c171], %94 {strides = array<i32>} : memref<96x222xbf16, #tpu.memory_space<vmem>>, vector<96x10xbf16>,
    %97 = vector.extract_strided_slice %61 {offsets = [0, 61], sizes = [96, 4], strides = [1, 1]} : vector<96x72xf32> to vector<96x4xf32>
    %cst_53 = arith.constant dense<0.000000e+00> : vector<96x10xf32>
    %98 = tpu.matmul %97, %60, %cst_53 {dimension_numbers = #tpu.dot_dimension_numbers<[1], [0], [0], [1], [0, 0, 1, 1], [], []>} : vector<96x4xf32>, vector<4x10xf32>, vector<96x10xf32> -> vector<96x10xf32>
    %99 = arith.truncf %98 : vector<96x10xf32> to vector<96x10xbf16>
    %c0_54 = arith.constant 0 : index
    %c181 = arith.constant 181 : index
    %100 = vector.load %arg13[%c0_54, %c181] : memref<96x222xbf16, #tpu.memory_space<vmem>>, vector<96x10xbf16>
    tpu.vector_store %arg13[%c0_54, %c181], %99 {strides = array<i32>} : memref<96x222xbf16, #tpu.memory_space<vmem>>, vector<96x10xbf16>,
    %c0_55 = arith.constant 0 : index
    %c191 = arith.constant 191 : index
    %101 = vector.load %arg13[%c0_55, %c191] : memref<96x222xbf16, #tpu.memory_space<vmem>>, vector<96x10xbf16>
    tpu.vector_store %arg13[%c0_55, %c191], %99 {strides = array<i32>} : memref<96x222xbf16, #tpu.memory_space<vmem>>, vector<96x10xbf16>,
    %cst_56 = arith.constant 0.000000e+00 : f32
    %102 = vector.broadcast %cst_56 : f32 to vector<32x200xf32>
    %c0_57 = arith.constant 0 : index
    %c0_58 = arith.constant 0 : index
    %103 = vector.load %arg13[%c0_57, %c0_58] : memref<96x222xbf16, #tpu.memory_space<vmem>>, vector<64x200xbf16>
    %c0_59 = arith.constant 0 : index
    %c1 = arith.constant 1 : index
    %104 = vector.load %arg13[%c0_59, %c1] : memref<96x222xbf16, #tpu.memory_space<vmem>>, vector<64x200xbf16>
    %c0_60 = arith.constant 0 : index
    %c2 = arith.constant 2 : index
    %105 = vector.load %arg13[%c0_60, %c2] : memref<96x222xbf16, #tpu.memory_space<vmem>>, vector<64x200xbf16>
    %106 = tpu.concatenate %103, %104, %105 in 0 : vector<64x200xbf16>, vector<64x200xbf16>, vector<64x200xbf16> -> vector<192x200xbf16>
    %c0_61 = arith.constant 0 : index
    %c0_62 = arith.constant 0 : index
    %c0_63 = arith.constant 0 : index
    %107 = vector.load %arg4[%c0_61, %c0_62, %c0_63] : memref<3x32x192xbf16, #tpu.memory_space<vmem>>, vector<1x32x192xbf16>
    %108 = vector.shape_cast %107 : vector<1x32x192xbf16> to vector<32x192xbf16>
    %cst_64 = arith.constant dense<0.000000e+00> : vector<32x200xf32>
    %109 = tpu.matmul %108, %106, %cst_64 {dimension_numbers = #tpu.dot_dimension_numbers<[1], [0], [0], [1], [0, 0, 1, 1], [], []>} : vector<32x192xbf16>, vector<192x200xbf16>, vector<32x200xf32> -> vector<32x200xf32>
    %110 = arith.addf %102, %109 : vector<32x200xf32>
    %c0_65 = arith.constant 0 : index
    %c10 = arith.constant 10 : index
    %111 = vector.load %arg13[%c0_65, %c10] : memref<96x222xbf16, #tpu.memory_space<vmem>>, vector<64x200xbf16>
    %c0_66 = arith.constant 0 : index
    %c11 = arith.constant 11 : index
    %112 = vector.load %arg13[%c0_66, %c11] : memref<96x222xbf16, #tpu.memory_space<vmem>>, vector<64x200xbf16>
    %c0_67 = arith.constant 0 : index
    %c12 = arith.constant 12 : index
    %113 = vector.load %arg13[%c0_67, %c12] : memref<96x222xbf16, #tpu.memory_space<vmem>>, vector<64x200xbf16>
    %114 = tpu.concatenate %111, %112, %113 in 0 : vector<64x200xbf16>, vector<64x200xbf16>, vector<64x200xbf16> -> vector<192x200xbf16>
    %c1_68 = arith.constant 1 : index
    %c0_69 = arith.constant 0 : index
    %c0_70 = arith.constant 0 : index
    %115 = vector.load %arg4[%c1_68, %c0_69, %c0_70] : memref<3x32x192xbf16, #tpu.memory_space<vmem>>, vector<1x32x192xbf16>
    %116 = vector.shape_cast %115 : vector<1x32x192xbf16> to vector<32x192xbf16>
    %cst_71 = arith.constant dense<0.000000e+00> : vector<32x200xf32>
    %117 = tpu.matmul %116, %114, %cst_71 {dimension_numbers = #tpu.dot_dimension_numbers<[1], [0], [0], [1], [0, 0, 1, 1], [], []>} : vector<32x192xbf16>, vector<192x200xbf16>, vector<32x200xf32> -> vector<32x200xf32>
    %118 = arith.addf %110, %117 : vector<32x200xf32>
    %c0_72 = arith.constant 0 : index
    %c20 = arith.constant 20 : index
    %119 = vector.load %arg13[%c0_72, %c20] : memref<96x222xbf16, #tpu.memory_space<vmem>>, vector<64x200xbf16>
    %c0_73 = arith.constant 0 : index
    %c21_74 = arith.constant 21 : index
    %120 = vector.load %arg13[%c0_73, %c21_74] : memref<96x222xbf16, #tpu.memory_space<vmem>>, vector<64x200xbf16>
    %c0_75 = arith.constant 0 : index
    %c22 = arith.constant 22 : index
    %121 = vector.load %arg13[%c0_75, %c22] : memref<96x222xbf16, #tpu.memory_space<vmem>>, vector<64x200xbf16>
    %122 = tpu.concatenate %119, %120, %121 in 0 : vector<64x200xbf16>, vector<64x200xbf16>, vector<64x200xbf16> -> vector<192x200xbf16>
    %c2_76 = arith.constant 2 : index
    %c0_77 = arith.constant 0 : index
    %c0_78 = arith.constant 0 : index
    %123 = vector.load %arg4[%c2_76, %c0_77, %c0_78] : memref<3x32x192xbf16, #tpu.memory_space<vmem>>, vector<1x32x192xbf16>
    %124 = vector.shape_cast %123 : vector<1x32x192xbf16> to vector<32x192xbf16>
    %cst_79 = arith.constant dense<0.000000e+00> : vector<32x200xf32>
    %125 = tpu.matmul %124, %122, %cst_79 {dimension_numbers = #tpu.dot_dimension_numbers<[1], [0], [0], [1], [0, 0, 1, 1], [], []>} : vector<32x192xbf16>, vector<192x200xbf16>, vector<32x200xf32> -> vector<32x200xf32>
    %126 = arith.addf %118, %125 : vector<32x200xf32>
    %c0_80 = arith.constant 0 : index
    %c0_81 = arith.constant 0 : index
    %127 = vector.load %arg11[%c0_80, %c0_81] : memref<1x200xf32, #tpu.memory_space<vmem>>, vector<1x200xf32>
    %c0_82 = arith.constant 0 : index
    %c0_83 = arith.constant 0 : index
    %128 = vector.load %arg7[%c0_82, %c0_83] : memref<32x3xf32, #tpu.memory_space<vmem>>, vector<32x1xf32>
    %129 = vector.broadcast %128 : vector<32x1xf32> to vector<32x200xf32>
    %130 = arith.addf %126, %129 : vector<32x200xf32>
    %131 = vector.broadcast %127 : vector<1x200xf32> to vector<32x200xf32>
    %132 = arith.mulf %130, %131 : vector<32x200xf32>
    %cst_84 = arith.constant dense<0.000000e+00> : vector<32xf32>
    %133 = vector.multi_reduction <add>, %132, %cst_84 [1] : vector<32x200xf32> to vector<32xf32>
    %134 = vector.shape_cast %133 : vector<32xf32> to vector<32x1xf32>
    %cst_85 = arith.constant 1.280000e+02 : f32
    %135 = vector.broadcast %cst_85 : f32 to vector<32x1xf32>
    %136 = arith.divf %134, %135 : vector<32x1xf32>
    %137 = arith.mulf %132, %132 : vector<32x200xf32>
    %cst_86 = arith.constant dense<0.000000e+00> : vector<32xf32>
    %138 = vector.multi_reduction <add>, %137, %cst_86 [1] : vector<32x200xf32> to vector<32xf32>
    %139 = vector.shape_cast %138 : vector<32xf32> to vector<32x1xf32>
    %cst_87 = arith.constant 1.280000e+02 : f32
    %140 = vector.broadcast %cst_87 : f32 to vector<32x1xf32>
    %141 = arith.divf %139, %140 : vector<32x1xf32>
    %142 = arith.mulf %136, %136 : vector<32x1xf32>
    %143 = arith.subf %141, %142 : vector<32x1xf32>
    %cst_88 = arith.constant 0.000000e+00 : f32
    %144 = vector.broadcast %cst_88 : f32 to vector<32x1xf32>
    %145 = arith.maximumf %143, %144 : vector<32x1xf32>
    %cst_89 = arith.constant 9.99999974E-6 : f32
    %146 = vector.broadcast %cst_89 : f32 to vector<32x1xf32>
    %147 = arith.addf %145, %146 : vector<32x1xf32>
    %148 = math.rsqrt %147 : vector<32x1xf32>
    %149 = vector.broadcast %148 : vector<32x1xf32> to vector<32x2xf32>
    %150 = arith.mulf %149, %17 : vector<32x2xf32>
    %c0_90 = arith.constant 0 : index
    %c0_91 = arith.constant 0 : index
    %151 = vector.load %arg10[%c0_90, %c0_91] : memref<2x200xf32, #tpu.memory_space<vmem>>, vector<2x200xf32>
    %cst_92 = arith.constant dense<0.000000e+00> : vector<32x200xf32>
    %152 = tpu.matmul %150, %151, %cst_92 {dimension_numbers = #tpu.dot_dimension_numbers<[1], [0], [0], [1], [0, 0, 1, 1], [], []>} : vector<32x2xf32>, vector<2x200xf32>, vector<32x200xf32> -> vector<32x200xf32>
    %153 = arith.mulf %136, %148 : vector<32x1xf32>
    %154 = vector.broadcast %153 : vector<32x1xf32> to vector<32x2xf32>
    %155 = arith.mulf %154, %17 : vector<32x2xf32>
    %156 = arith.subf %19, %155 : vector<32x2xf32>
    %c0_93 = arith.constant 0 : index
    %c0_94 = arith.constant 0 : index
    %157 = vector.load %arg10[%c0_93, %c0_94] : memref<2x200xf32, #tpu.memory_space<vmem>>, vector<2x200xf32>
    %cst_95 = arith.constant dense<0.000000e+00> : vector<32x200xf32>
    %158 = tpu.matmul %156, %157, %cst_95 {dimension_numbers = #tpu.dot_dimension_numbers<[1], [0], [0], [1], [0, 0, 1, 1], [], []>} : vector<32x2xf32>, vector<2x200xf32>, vector<32x200xf32> -> vector<32x200xf32>
    %159 = arith.mulf %132, %152 : vector<32x200xf32>
    %160 = arith.addf %159, %158 : vector<32x200xf32>
    %cst_96 = arith.constant 0.000000e+00 : f32
    %161 = vector.broadcast %cst_96 : f32 to vector<32x200xf32>
    %162 = arith.maximumf %160, %161 : vector<32x200xf32>
    %cst_97 = arith.constant 0.000000e+00 : bf16
    %163 = vector.broadcast %cst_97 : bf16 to vector<32x11xbf16>
    %c0_98 = arith.constant 0 : index
    %c0_99 = arith.constant 0 : index
    %164 = vector.load %arg14[%c0_98, %c0_99] : memref<32x222xbf16, #tpu.memory_space<vmem>>, vector<32x11xbf16>
    tpu.vector_store %arg14[%c0_98, %c0_99], %163 {strides = array<i32>} : memref<32x222xbf16, #tpu.memory_space<vmem>>, vector<32x11xbf16>,
    %cst_100 = arith.constant 0.000000e+00 : bf16
    %165 = vector.broadcast %cst_100 : bf16 to vector<32x11xbf16>
    %c0_101 = arith.constant 0 : index
    %c211 = arith.constant 211 : index
    %166 = vector.load %arg14[%c0_101, %c211] : memref<32x222xbf16, #tpu.memory_space<vmem>>, vector<32x11xbf16>
    tpu.vector_store %arg14[%c0_101, %c211], %165 {strides = array<i32>} : memref<32x222xbf16, #tpu.memory_space<vmem>>, vector<32x11xbf16>,
    %167 = arith.truncf %162 : vector<32x200xf32> to vector<32x200xbf16>
    %c0_102 = arith.constant 0 : index
    %c11_103 = arith.constant 11 : index
    %168 = vector.load %arg14[%c0_102, %c11_103] : memref<32x222xbf16, #tpu.memory_space<vmem>>, vector<32x200xbf16>
    tpu.vector_store %arg14[%c0_102, %c11_103], %167 {strides = array<i32>} : memref<32x222xbf16, #tpu.memory_space<vmem>>, vector<32x200xbf16>,
    %cst_104 = arith.constant 0.000000e+00 : f32
    %169 = vector.broadcast %cst_104 : f32 to vector<32x200xf32>
    %c0_105 = arith.constant 0 : index
    %c0_106 = arith.constant 0 : index
    %170 = vector.load %arg14[%c0_105, %c0_106] : memref<32x222xbf16, #tpu.memory_space<vmem>>, vector<32x200xbf16>
    %c0_107 = arith.constant 0 : index
    %c1_108 = arith.constant 1 : index
    %171 = vector.load %arg14[%c0_107, %c1_108] : memref<32x222xbf16, #tpu.memory_space<vmem>>, vector<32x200xbf16>
    %c0_109 = arith.constant 0 : index
    %c2_110 = arith.constant 2 : index
    %172 = vector.load %arg14[%c0_109, %c2_110] : memref<32x222xbf16, #tpu.memory_space<vmem>>, vector<32x200xbf16>
    %173 = tpu.concatenate %170, %171, %172 in 0 : vector<32x200xbf16>, vector<32x200xbf16>, vector<32x200xbf16> -> vector<96x200xbf16>
    %c0_111 = arith.constant 0 : index
    %c0_112 = arith.constant 0 : index
    %c0_113 = arith.constant 0 : index
    %174 = vector.load %arg5[%c0_111, %c0_112, %c0_113] : memref<3x32x96xbf16, #tpu.memory_space<vmem>>, vector<1x32x96xbf16>
    %175 = vector.shape_cast %174 : vector<1x32x96xbf16> to vector<32x96xbf16>
    %cst_114 = arith.constant dense<0.000000e+00> : vector<32x200xf32>
    %176 = tpu.matmul %175, %173, %cst_114 {dimension_numbers = #tpu.dot_dimension_numbers<[1], [0], [0], [1], [0, 0, 1, 1], [], []>} : vector<32x96xbf16>, vector<96x200xbf16>, vector<32x200xf32> -> vector<32x200xf32>
    %177 = arith.addf %169, %176 : vector<32x200xf32>
    %c0_115 = arith.constant 0 : index
    %c10_116 = arith.constant 10 : index
    %178 = vector.load %arg14[%c0_115, %c10_116] : memref<32x222xbf16, #tpu.memory_space<vmem>>, vector<32x200xbf16>
    %c0_117 = arith.constant 0 : index
    %c11_118 = arith.constant 11 : index
    %179 = vector.load %arg14[%c0_117, %c11_118] : memref<32x222xbf16, #tpu.memory_space<vmem>>, vector<32x200xbf16>
    %c0_119 = arith.constant 0 : index
    %c12_120 = arith.constant 12 : index
    %180 = vector.load %arg14[%c0_119, %c12_120] : memref<32x222xbf16, #tpu.memory_space<vmem>>, vector<32x200xbf16>
    %181 = tpu.concatenate %178, %179, %180 in 0 : vector<32x200xbf16>, vector<32x200xbf16>, vector<32x200xbf16> -> vector<96x200xbf16>
    %c1_121 = arith.constant 1 : index
    %c0_122 = arith.constant 0 : index
    %c0_123 = arith.constant 0 : index
    %182 = vector.load %arg5[%c1_121, %c0_122, %c0_123] : memref<3x32x96xbf16, #tpu.memory_space<vmem>>, vector<1x32x96xbf16>
    %183 = vector.shape_cast %182 : vector<1x32x96xbf16> to vector<32x96xbf16>
    %cst_124 = arith.constant dense<0.000000e+00> : vector<32x200xf32>
    %184 = tpu.matmul %183, %181, %cst_124 {dimension_numbers = #tpu.dot_dimension_numbers<[1], [0], [0], [1], [0, 0, 1, 1], [], []>} : vector<32x96xbf16>, vector<96x200xbf16>, vector<32x200xf32> -> vector<32x200xf32>
    %185 = arith.addf %177, %184 : vector<32x200xf32>
    %c0_125 = arith.constant 0 : index
    %c20_126 = arith.constant 20 : index
    %186 = vector.load %arg14[%c0_125, %c20_126] : memref<32x222xbf16, #tpu.memory_space<vmem>>, vector<32x200xbf16>
    %c0_127 = arith.constant 0 : index
    %c21_128 = arith.constant 21 : index
    %187 = vector.load %arg14[%c0_127, %c21_128] : memref<32x222xbf16, #tpu.memory_space<vmem>>, vector<32x200xbf16>
    %c0_129 = arith.constant 0 : index
    %c22_130 = arith.constant 22 : index
    %188 = vector.load %arg14[%c0_129, %c22_130] : memref<32x222xbf16, #tpu.memory_space<vmem>>, vector<32x200xbf16>
    %189 = tpu.concatenate %186, %187, %188 in 0 : vector<32x200xbf16>, vector<32x200xbf16>, vector<32x200xbf16> -> vector<96x200xbf16>
    %c2_131 = arith.constant 2 : index
    %c0_132 = arith.constant 0 : index
    %c0_133 = arith.constant 0 : index
    %190 = vector.load %arg5[%c2_131, %c0_132, %c0_133] : memref<3x32x96xbf16, #tpu.memory_space<vmem>>, vector<1x32x96xbf16>
    %191 = vector.shape_cast %190 : vector<1x32x96xbf16> to vector<32x96xbf16>
    %cst_134 = arith.constant dense<0.000000e+00> : vector<32x200xf32>
    %192 = tpu.matmul %191, %189, %cst_134 {dimension_numbers = #tpu.dot_dimension_numbers<[1], [0], [0], [1], [0, 0, 1, 1], [], []>} : vector<32x96xbf16>, vector<96x200xbf16>, vector<32x200xf32> -> vector<32x200xf32>
    %193 = arith.addf %185, %192 : vector<32x200xf32>
    %c64 = arith.constant 64 : index
    %c11_135 = arith.constant 11 : index
    %194 = vector.load %arg13[%c64, %c11_135] : memref<96x222xbf16, #tpu.memory_space<vmem>>, vector<32x200xbf16>
    %195 = arith.extf %194 : vector<32x200xbf16> to vector<32x200xf32>
    %c0_136 = arith.constant 0 : index
    %c1_137 = arith.constant 1 : index
    %196 = vector.load %arg7[%c0_136, %c1_137] : memref<32x3xf32, #tpu.memory_space<vmem>>, vector<32x1xf32>
    %197 = vector.broadcast %196 : vector<32x1xf32> to vector<32x200xf32>
    %198 = arith.addf %193, %197 : vector<32x200xf32>
    %199 = arith.addf %198, %195 : vector<32x200xf32>
    %c0_138 = arith.constant 0 : index
    %c2_139 = arith.constant 2 : index
    %200 = vector.load %arg7[%c0_138, %c2_139] : memref<32x3xf32, #tpu.memory_space<vmem>>, vector<32x1xf32>
    %201 = vector.broadcast %200 : vector<32x1xf32> to vector<32x200xf32>
    %202 = arith.addf %199, %201 : vector<32x200xf32>
    %203 = vector.broadcast %127 : vector<1x200xf32> to vector<32x200xf32>
    %204 = arith.mulf %202, %203 : vector<32x200xf32>
    %205 = arith.truncf %204 : vector<32x200xf32> to vector<32x200xbf16>
    %c0_140 = arith.constant 0 : index
    %c0_141 = arith.constant 0 : index
    %206 = vector.load %arg12[%c0_140, %c0_141] : memref<32x200xbf16, #tpu.memory_space<vmem>>, vector<32x200xbf16>
    tpu.vector_store %arg12[%c0_140, %c0_141], %205 {strides = array<i32>} : memref<32x200xbf16, #tpu.memory_space<vmem>>, vector<32x200xbf16>,
    return
  }
}

module attributes {stable_mosaic.version = 11 : i64} {
  func.func @_gblock_kernel(%arg0: memref<32x200xbf16, #tpu.memory_space<vmem>>, %arg1: memref<24x2xf32, #tpu.memory_space<vmem>>, %arg2: memref<192x24xf32, #tpu.memory_space<vmem>>, %arg3: memref<192x1xf32, #tpu.memory_space<vmem>>, %arg4: memref<3x16x96xbf16, #tpu.memory_space<vmem>>, %arg5: memref<3x16x48xbf16, #tpu.memory_space<vmem>>, %arg6: memref<16x32xbf16, #tpu.memory_space<vmem>>, %arg7: memref<16x3xf32, #tpu.memory_space<vmem>>, %arg8: memref<8x18xf32, #tpu.memory_space<vmem>>, %arg9: memref<2x200xf32, #tpu.memory_space<vmem>>, %arg10: memref<2x648xf32, #tpu.memory_space<vmem>>, %arg11: memref<1x648xf32, #tpu.memory_space<vmem>>, %arg12: memref<16x648xbf16, #tpu.memory_space<vmem>>, %arg13: memref<48x686xbf16, #tpu.memory_space<vmem>>, %arg14: memref<16x686xbf16, #tpu.memory_space<vmem>>) attributes {dimension_semantics = [], scalar_prefetch = 0 : i64, scratch_operands = 2 : i64, tpu.core_type = #tpu.core_type<tc>} {
    %c0 = arith.constant 0 : index
    %c0_0 = arith.constant 0 : index
    %0 = vector.load %arg2[%c0, %c0_0] : memref<192x24xf32, #tpu.memory_space<vmem>>, vector<192x24xf32>
    %c0_1 = arith.constant 0 : index
    %c0_2 = arith.constant 0 : index
    %1 = vector.load %arg1[%c0_1, %c0_2] : memref<24x2xf32, #tpu.memory_space<vmem>>, vector<24x2xf32>
    %cst = arith.constant dense<0.000000e+00> : vector<192x2xf32>
    %2 = tpu.matmul %0, %1, %cst {dimension_numbers = #tpu.dot_dimension_numbers<[1], [0], [0], [1], [0, 0, 1, 1], [], []>} : vector<192x24xf32>, vector<24x2xf32>, vector<192x2xf32> -> vector<192x2xf32>
    %c0_3 = arith.constant 0 : index
    %c0_4 = arith.constant 0 : index
    %3 = vector.load %arg3[%c0_3, %c0_4] : memref<192x1xf32, #tpu.memory_space<vmem>>, vector<192x1xf32>
    %4 = vector.broadcast %3 : vector<192x1xf32> to vector<192x2xf32>
    %5 = arith.addf %2, %4 : vector<192x2xf32>
    %6 = vector.extract_strided_slice %5 {offsets = [0, 0], sizes = [32, 2], strides = [1, 1]} : vector<192x2xf32> to vector<32x2xf32>
    %7 = vector.extract_strided_slice %5 {offsets = [32, 0], sizes = [32, 2], strides = [1, 1]} : vector<192x2xf32> to vector<32x2xf32>
    %8 = vector.extract_strided_slice %5 {offsets = [64, 0], sizes = [32, 2], strides = [1, 1]} : vector<192x2xf32> to vector<32x2xf32>
    %9 = vector.extract_strided_slice %5 {offsets = [96, 0], sizes = [32, 2], strides = [1, 1]} : vector<192x2xf32> to vector<32x2xf32>
    %10 = vector.extract_strided_slice %5 {offsets = [128, 0], sizes = [16, 2], strides = [1, 1]} : vector<192x2xf32> to vector<16x2xf32>
    %11 = vector.extract_strided_slice %5 {offsets = [144, 0], sizes = [16, 2], strides = [1, 1]} : vector<192x2xf32> to vector<16x2xf32>
    %12 = vector.extract_strided_slice %5 {offsets = [160, 0], sizes = [16, 2], strides = [1, 1]} : vector<192x2xf32> to vector<16x2xf32>
    %13 = vector.extract_strided_slice %5 {offsets = [176, 0], sizes = [16, 2], strides = [1, 1]} : vector<192x2xf32> to vector<16x2xf32>
    %14 = arith.mulf %6, %8 : vector<32x2xf32>
    %15 = arith.mulf %7, %8 : vector<32x2xf32>
    %16 = arith.addf %15, %9 : vector<32x2xf32>
    %17 = arith.mulf %10, %12 : vector<16x2xf32>
    %18 = arith.mulf %11, %12 : vector<16x2xf32>
    %19 = arith.addf %18, %13 : vector<16x2xf32>
    %c0_5 = arith.constant 0 : index
    %c0_6 = arith.constant 0 : index
    %20 = vector.load %arg0[%c0_5, %c0_6] : memref<32x200xbf16, #tpu.memory_space<vmem>>, vector<32x200xbf16>
    %21 = arith.extf %20 : vector<32x200xbf16> to vector<32x200xf32>
    %cst_7 = arith.constant dense<0.000000e+00> : vector<32xf32>
    %22 = vector.multi_reduction <add>, %21, %cst_7 [1] : vector<32x200xf32> to vector<32xf32>
    %23 = vector.shape_cast %22 : vector<32xf32> to vector<32x1xf32>
    %cst_8 = arith.constant 1.280000e+02 : f32
    %24 = vector.broadcast %cst_8 : f32 to vector<32x1xf32>
    %25 = arith.divf %23, %24 : vector<32x1xf32>
    %26 = arith.mulf %21, %21 : vector<32x200xf32>
    %cst_9 = arith.constant dense<0.000000e+00> : vector<32xf32>
    %27 = vector.multi_reduction <add>, %26, %cst_9 [1] : vector<32x200xf32> to vector<32xf32>
    %28 = vector.shape_cast %27 : vector<32xf32> to vector<32x1xf32>
    %cst_10 = arith.constant 1.280000e+02 : f32
    %29 = vector.broadcast %cst_10 : f32 to vector<32x1xf32>
    %30 = arith.divf %28, %29 : vector<32x1xf32>
    %31 = arith.mulf %25, %25 : vector<32x1xf32>
    %32 = arith.subf %30, %31 : vector<32x1xf32>
    %cst_11 = arith.constant 0.000000e+00 : f32
    %33 = vector.broadcast %cst_11 : f32 to vector<32x1xf32>
    %34 = arith.maximumf %32, %33 : vector<32x1xf32>
    %cst_12 = arith.constant 9.99999974E-6 : f32
    %35 = vector.broadcast %cst_12 : f32 to vector<32x1xf32>
    %36 = arith.addf %34, %35 : vector<32x1xf32>
    %37 = math.rsqrt %36 : vector<32x1xf32>
    %38 = vector.broadcast %37 : vector<32x1xf32> to vector<32x2xf32>
    %39 = arith.mulf %38, %14 : vector<32x2xf32>
    %c0_13 = arith.constant 0 : index
    %c0_14 = arith.constant 0 : index
    %40 = vector.load %arg9[%c0_13, %c0_14] : memref<2x200xf32, #tpu.memory_space<vmem>>, vector<2x200xf32>
    %cst_15 = arith.constant dense<0.000000e+00> : vector<32x200xf32>
    %41 = tpu.matmul %39, %40, %cst_15 {dimension_numbers = #tpu.dot_dimension_numbers<[1], [0], [0], [1], [0, 0, 1, 1], [], []>} : vector<32x2xf32>, vector<2x200xf32>, vector<32x200xf32> -> vector<32x200xf32>
    %42 = arith.mulf %25, %37 : vector<32x1xf32>
    %43 = vector.broadcast %42 : vector<32x1xf32> to vector<32x2xf32>
    %44 = arith.mulf %43, %14 : vector<32x2xf32>
    %45 = arith.subf %16, %44 : vector<32x2xf32>
    %c0_16 = arith.constant 0 : index
    %c0_17 = arith.constant 0 : index
    %46 = vector.load %arg9[%c0_16, %c0_17] : memref<2x200xf32, #tpu.memory_space<vmem>>, vector<2x200xf32>
    %cst_18 = arith.constant dense<0.000000e+00> : vector<32x200xf32>
    %47 = tpu.matmul %45, %46, %cst_18 {dimension_numbers = #tpu.dot_dimension_numbers<[1], [0], [0], [1], [0, 0, 1, 1], [], []>} : vector<32x2xf32>, vector<2x200xf32>, vector<32x200xf32> -> vector<32x200xf32>
    %48 = arith.mulf %21, %41 : vector<32x200xf32>
    %49 = arith.addf %48, %47 : vector<32x200xf32>
    %cst_19 = arith.constant 0.000000e+00 : f32
    %50 = vector.broadcast %cst_19 : f32 to vector<32x200xf32>
    %51 = arith.maximumf %49, %50 : vector<32x200xf32>
    %c0_20 = arith.constant 0 : index
    %c0_21 = arith.constant 0 : index
    %52 = vector.load %arg6[%c0_20, %c0_21] : memref<16x32xbf16, #tpu.memory_space<vmem>>, vector<16x32xbf16>
    %cst_22 = arith.constant dense<0.000000e+00> : vector<16x200xf32>
    %53 = tpu.matmul %52, %20, %cst_22 {dimension_numbers = #tpu.dot_dimension_numbers<[1], [0], [0], [1], [0, 0, 1, 1], [], []>} : vector<16x32xbf16>, vector<32x200xbf16>, vector<16x200xf32> -> vector<16x200xf32>
    %cst_23 = arith.constant 0.000000e+00 : bf16
    %54 = vector.broadcast %cst_23 : bf16 to vector<48x37xbf16>
    %c0_24 = arith.constant 0 : index
    %c0_25 = arith.constant 0 : index
    %55 = vector.load %arg13[%c0_24, %c0_25] : memref<48x686xbf16, #tpu.memory_space<vmem>>, vector<48x37xbf16>
    tpu.vector_store %arg13[%c0_24, %c0_25], %54 {strides = array<i32>} : memref<48x686xbf16, #tpu.memory_space<vmem>>, vector<48x37xbf16>,
    %cst_26 = arith.constant 0.000000e+00 : bf16
    %56 = vector.broadcast %cst_26 : bf16 to vector<48x36xbf16>
    %c0_27 = arith.constant 0 : index
    %c325 = arith.constant 325 : index
    %57 = vector.load %arg13[%c0_27, %c325] : memref<48x686xbf16, #tpu.memory_space<vmem>>, vector<48x36xbf16>
    tpu.vector_store %arg13[%c0_27, %c325], %56 {strides = array<i32>} : memref<48x686xbf16, #tpu.memory_space<vmem>>, vector<48x36xbf16>,
    %cst_28 = arith.constant 0.000000e+00 : bf16
    %58 = vector.broadcast %cst_28 : bf16 to vector<48x37xbf16>
    %c0_29 = arith.constant 0 : index
    %c649 = arith.constant 649 : index
    %59 = vector.load %arg13[%c0_29, %c649] : memref<48x686xbf16, #tpu.memory_space<vmem>>, vector<48x37xbf16>
    tpu.vector_store %arg13[%c0_29, %c649], %58 {strides = array<i32>} : memref<48x686xbf16, #tpu.memory_space<vmem>>, vector<48x37xbf16>,
    %c0_30 = arith.constant 0 : index
    %c0_31 = arith.constant 0 : index
    %60 = vector.load %arg8[%c0_30, %c0_31] : memref<8x18xf32, #tpu.memory_space<vmem>>, vector<8x18xf32>
    %61 = tpu.concatenate %51, %53 in 0 : vector<32x200xf32>, vector<16x200xf32> -> vector<48x200xf32>
    %62 = vector.extract_strided_slice %61 {offsets = [0, 11], sizes = [48, 8], strides = [1, 1]} : vector<48x200xf32> to vector<48x8xf32>
    %cst_32 = arith.constant dense<0.000000e+00> : vector<48x18xf32>
    %63 = tpu.matmul %62, %60, %cst_32 {dimension_numbers = #tpu.dot_dimension_numbers<[1], [0], [0], [1], [0, 0, 1, 1], [], []>} : vector<48x8xf32>, vector<8x18xf32>, vector<48x18xf32> -> vector<48x18xf32>
    %64 = arith.truncf %63 : vector<48x18xf32> to vector<48x18xbf16>
    %c0_33 = arith.constant 0 : index
    %c37 = arith.constant 37 : index
    %65 = vector.load %arg13[%c0_33, %c37] : memref<48x686xbf16, #tpu.memory_space<vmem>>, vector<48x18xbf16>
    tpu.vector_store %arg13[%c0_33, %c37], %64 {strides = array<i32>} : memref<48x686xbf16, #tpu.memory_space<vmem>>, vector<48x18xbf16>,
    %c0_34 = arith.constant 0 : index
    %c55 = arith.constant 55 : index
    %66 = vector.load %arg13[%c0_34, %c55] : memref<48x686xbf16, #tpu.memory_space<vmem>>, vector<48x18xbf16>
    tpu.vector_store %arg13[%c0_34, %c55], %64 {strides = array<i32>} : memref<48x686xbf16, #tpu.memory_space<vmem>>, vector<48x18xbf16>,
    %67 = vector.extract_strided_slice %61 {offsets = [0, 21], sizes = [48, 8], strides = [1, 1]} : vector<48x200xf32> to vector<48x8xf32>
    %cst_35 = arith.constant dense<0.000000e+00> : vector<48x18xf32>
    %68 = tpu.matmul %67, %60, %cst_35 {dimension_numbers = #tpu.dot_dimension_numbers<[1], [0], [0], [1], [0, 0, 1, 1], [], []>} : vector<48x8xf32>, vector<8x18xf32>, vector<48x18xf32> -> vector<48x18xf32>
    %69 = arith.truncf %68 : vector<48x18xf32> to vector<48x18xbf16>
    %c0_36 = arith.constant 0 : index
    %c73 = arith.constant 73 : index
    %70 = vector.load %arg13[%c0_36, %c73] : memref<48x686xbf16, #tpu.memory_space<vmem>>, vector<48x18xbf16>
    tpu.vector_store %arg13[%c0_36, %c73], %69 {strides = array<i32>} : memref<48x686xbf16, #tpu.memory_space<vmem>>, vector<48x18xbf16>,
    %c0_37 = arith.constant 0 : index
    %c91 = arith.constant 91 : index
    %71 = vector.load %arg13[%c0_37, %c91] : memref<48x686xbf16, #tpu.memory_space<vmem>>, vector<48x18xbf16>
    tpu.vector_store %arg13[%c0_37, %c91], %69 {strides = array<i32>} : memref<48x686xbf16, #tpu.memory_space<vmem>>, vector<48x18xbf16>,
    %72 = vector.extract_strided_slice %61 {offsets = [0, 31], sizes = [48, 8], strides = [1, 1]} : vector<48x200xf32> to vector<48x8xf32>
    %cst_38 = arith.constant dense<0.000000e+00> : vector<48x18xf32>
    %73 = tpu.matmul %72, %60, %cst_38 {dimension_numbers = #tpu.dot_dimension_numbers<[1], [0], [0], [1], [0, 0, 1, 1], [], []>} : vector<48x8xf32>, vector<8x18xf32>, vector<48x18xf32> -> vector<48x18xf32>
    %74 = arith.truncf %73 : vector<48x18xf32> to vector<48x18xbf16>
    %c0_39 = arith.constant 0 : index
    %c109 = arith.constant 109 : index
    %75 = vector.load %arg13[%c0_39, %c109] : memref<48x686xbf16, #tpu.memory_space<vmem>>, vector<48x18xbf16>
    tpu.vector_store %arg13[%c0_39, %c109], %74 {strides = array<i32>} : memref<48x686xbf16, #tpu.memory_space<vmem>>, vector<48x18xbf16>,
    %c0_40 = arith.constant 0 : index
    %c127 = arith.constant 127 : index
    %76 = vector.load %arg13[%c0_40, %c127] : memref<48x686xbf16, #tpu.memory_space<vmem>>, vector<48x18xbf16>
    tpu.vector_store %arg13[%c0_40, %c127], %74 {strides = array<i32>} : memref<48x686xbf16, #tpu.memory_space<vmem>>, vector<48x18xbf16>,
    %77 = vector.extract_strided_slice %61 {offsets = [0, 41], sizes = [48, 8], strides = [1, 1]} : vector<48x200xf32> to vector<48x8xf32>
    %cst_41 = arith.constant dense<0.000000e+00> : vector<48x18xf32>
    %78 = tpu.matmul %77, %60, %cst_41 {dimension_numbers = #tpu.dot_dimension_numbers<[1], [0], [0], [1], [0, 0, 1, 1], [], []>} : vector<48x8xf32>, vector<8x18xf32>, vector<48x18xf32> -> vector<48x18xf32>
    %79 = arith.truncf %78 : vector<48x18xf32> to vector<48x18xbf16>
    %c0_42 = arith.constant 0 : index
    %c145 = arith.constant 145 : index
    %80 = vector.load %arg13[%c0_42, %c145] : memref<48x686xbf16, #tpu.memory_space<vmem>>, vector<48x18xbf16>
    tpu.vector_store %arg13[%c0_42, %c145], %79 {strides = array<i32>} : memref<48x686xbf16, #tpu.memory_space<vmem>>, vector<48x18xbf16>,
    %c0_43 = arith.constant 0 : index
    %c163 = arith.constant 163 : index
    %81 = vector.load %arg13[%c0_43, %c163] : memref<48x686xbf16, #tpu.memory_space<vmem>>, vector<48x18xbf16>
    tpu.vector_store %arg13[%c0_43, %c163], %79 {strides = array<i32>} : memref<48x686xbf16, #tpu.memory_space<vmem>>, vector<48x18xbf16>,
    %82 = vector.extract_strided_slice %61 {offsets = [0, 51], sizes = [48, 8], strides = [1, 1]} : vector<48x200xf32> to vector<48x8xf32>
    %cst_44 = arith.constant dense<0.000000e+00> : vector<48x18xf32>
    %83 = tpu.matmul %82, %60, %cst_44 {dimension_numbers = #tpu.dot_dimension_numbers<[1], [0], [0], [1], [0, 0, 1, 1], [], []>} : vector<48x8xf32>, vector<8x18xf32>, vector<48x18xf32> -> vector<48x18xf32>
    %84 = arith.truncf %83 : vector<48x18xf32> to vector<48x18xbf16>
    %c0_45 = arith.constant 0 : index
    %c181 = arith.constant 181 : index
    %85 = vector.load %arg13[%c0_45, %c181] : memref<48x686xbf16, #tpu.memory_space<vmem>>, vector<48x18xbf16>
    tpu.vector_store %arg13[%c0_45, %c181], %84 {strides = array<i32>} : memref<48x686xbf16, #tpu.memory_space<vmem>>, vector<48x18xbf16>,
    %c0_46 = arith.constant 0 : index
    %c199 = arith.constant 199 : index
    %86 = vector.load %arg13[%c0_46, %c199] : memref<48x686xbf16, #tpu.memory_space<vmem>>, vector<48x18xbf16>
    tpu.vector_store %arg13[%c0_46, %c199], %84 {strides = array<i32>} : memref<48x686xbf16, #tpu.memory_space<vmem>>, vector<48x18xbf16>,
    %87 = vector.extract_strided_slice %61 {offsets = [0, 61], sizes = [48, 8], strides = [1, 1]} : vector<48x200xf32> to vector<48x8xf32>
    %cst_47 = arith.constant dense<0.000000e+00> : vector<48x18xf32>
    %88 = tpu.matmul %87, %60, %cst_47 {dimension_numbers = #tpu.dot_dimension_numbers<[1], [0], [0], [1], [0, 0, 1, 1], [], []>} : vector<48x8xf32>, vector<8x18xf32>, vector<48x18xf32> -> vector<48x18xf32>
    %89 = arith.truncf %88 : vector<48x18xf32> to vector<48x18xbf16>
    %c0_48 = arith.constant 0 : index
    %c217 = arith.constant 217 : index
    %90 = vector.load %arg13[%c0_48, %c217] : memref<48x686xbf16, #tpu.memory_space<vmem>>, vector<48x18xbf16>
    tpu.vector_store %arg13[%c0_48, %c217], %89 {strides = array<i32>} : memref<48x686xbf16, #tpu.memory_space<vmem>>, vector<48x18xbf16>,
    %c0_49 = arith.constant 0 : index
    %c235 = arith.constant 235 : index
    %91 = vector.load %arg13[%c0_49, %c235] : memref<48x686xbf16, #tpu.memory_space<vmem>>, vector<48x18xbf16>
    tpu.vector_store %arg13[%c0_49, %c235], %89 {strides = array<i32>} : memref<48x686xbf16, #tpu.memory_space<vmem>>, vector<48x18xbf16>,
    %92 = vector.extract_strided_slice %61 {offsets = [0, 71], sizes = [48, 8], strides = [1, 1]} : vector<48x200xf32> to vector<48x8xf32>
    %cst_50 = arith.constant dense<0.000000e+00> : vector<48x18xf32>
    %93 = tpu.matmul %92, %60, %cst_50 {dimension_numbers = #tpu.dot_dimension_numbers<[1], [0], [0], [1], [0, 0, 1, 1], [], []>} : vector<48x8xf32>, vector<8x18xf32>, vector<48x18xf32> -> vector<48x18xf32>
    %94 = arith.truncf %93 : vector<48x18xf32> to vector<48x18xbf16>
    %c0_51 = arith.constant 0 : index
    %c253 = arith.constant 253 : index
    %95 = vector.load %arg13[%c0_51, %c253] : memref<48x686xbf16, #tpu.memory_space<vmem>>, vector<48x18xbf16>
    tpu.vector_store %arg13[%c0_51, %c253], %94 {strides = array<i32>} : memref<48x686xbf16, #tpu.memory_space<vmem>>, vector<48x18xbf16>,
    %c0_52 = arith.constant 0 : index
    %c271 = arith.constant 271 : index
    %96 = vector.load %arg13[%c0_52, %c271] : memref<48x686xbf16, #tpu.memory_space<vmem>>, vector<48x18xbf16>
    tpu.vector_store %arg13[%c0_52, %c271], %94 {strides = array<i32>} : memref<48x686xbf16, #tpu.memory_space<vmem>>, vector<48x18xbf16>,
    %97 = vector.extract_strided_slice %61 {offsets = [0, 81], sizes = [48, 8], strides = [1, 1]} : vector<48x200xf32> to vector<48x8xf32>
    %cst_53 = arith.constant dense<0.000000e+00> : vector<48x18xf32>
    %98 = tpu.matmul %97, %60, %cst_53 {dimension_numbers = #tpu.dot_dimension_numbers<[1], [0], [0], [1], [0, 0, 1, 1], [], []>} : vector<48x8xf32>, vector<8x18xf32>, vector<48x18xf32> -> vector<48x18xf32>
    %99 = arith.truncf %98 : vector<48x18xf32> to vector<48x18xbf16>
    %c0_54 = arith.constant 0 : index
    %c289 = arith.constant 289 : index
    %100 = vector.load %arg13[%c0_54, %c289] : memref<48x686xbf16, #tpu.memory_space<vmem>>, vector<48x18xbf16>
    tpu.vector_store %arg13[%c0_54, %c289], %99 {strides = array<i32>} : memref<48x686xbf16, #tpu.memory_space<vmem>>, vector<48x18xbf16>,
    %c0_55 = arith.constant 0 : index
    %c307 = arith.constant 307 : index
    %101 = vector.load %arg13[%c0_55, %c307] : memref<48x686xbf16, #tpu.memory_space<vmem>>, vector<48x18xbf16>
    tpu.vector_store %arg13[%c0_55, %c307], %99 {strides = array<i32>} : memref<48x686xbf16, #tpu.memory_space<vmem>>, vector<48x18xbf16>,
    %102 = vector.extract_strided_slice %61 {offsets = [0, 111], sizes = [48, 8], strides = [1, 1]} : vector<48x200xf32> to vector<48x8xf32>
    %cst_56 = arith.constant dense<0.000000e+00> : vector<48x18xf32>
    %103 = tpu.matmul %102, %60, %cst_56 {dimension_numbers = #tpu.dot_dimension_numbers<[1], [0], [0], [1], [0, 0, 1, 1], [], []>} : vector<48x8xf32>, vector<8x18xf32>, vector<48x18xf32> -> vector<48x18xf32>
    %104 = arith.truncf %103 : vector<48x18xf32> to vector<48x18xbf16>
    %c0_57 = arith.constant 0 : index
    %c361 = arith.constant 361 : index
    %105 = vector.load %arg13[%c0_57, %c361] : memref<48x686xbf16, #tpu.memory_space<vmem>>, vector<48x18xbf16>
    tpu.vector_store %arg13[%c0_57, %c361], %104 {strides = array<i32>} : memref<48x686xbf16, #tpu.memory_space<vmem>>, vector<48x18xbf16>,
    %c0_58 = arith.constant 0 : index
    %c379 = arith.constant 379 : index
    %106 = vector.load %arg13[%c0_58, %c379] : memref<48x686xbf16, #tpu.memory_space<vmem>>, vector<48x18xbf16>
    tpu.vector_store %arg13[%c0_58, %c379], %104 {strides = array<i32>} : memref<48x686xbf16, #tpu.memory_space<vmem>>, vector<48x18xbf16>,
    %107 = vector.extract_strided_slice %61 {offsets = [0, 121], sizes = [48, 8], strides = [1, 1]} : vector<48x200xf32> to vector<48x8xf32>
    %cst_59 = arith.constant dense<0.000000e+00> : vector<48x18xf32>
    %108 = tpu.matmul %107, %60, %cst_59 {dimension_numbers = #tpu.dot_dimension_numbers<[1], [0], [0], [1], [0, 0, 1, 1], [], []>} : vector<48x8xf32>, vector<8x18xf32>, vector<48x18xf32> -> vector<48x18xf32>
    %109 = arith.truncf %108 : vector<48x18xf32> to vector<48x18xbf16>
    %c0_60 = arith.constant 0 : index
    %c397 = arith.constant 397 : index
    %110 = vector.load %arg13[%c0_60, %c397] : memref<48x686xbf16, #tpu.memory_space<vmem>>, vector<48x18xbf16>
    tpu.vector_store %arg13[%c0_60, %c397], %109 {strides = array<i32>} : memref<48x686xbf16, #tpu.memory_space<vmem>>, vector<48x18xbf16>,
    %c0_61 = arith.constant 0 : index
    %c415 = arith.constant 415 : index
    %111 = vector.load %arg13[%c0_61, %c415] : memref<48x686xbf16, #tpu.memory_space<vmem>>, vector<48x18xbf16>
    tpu.vector_store %arg13[%c0_61, %c415], %109 {strides = array<i32>} : memref<48x686xbf16, #tpu.memory_space<vmem>>, vector<48x18xbf16>,
    %112 = vector.extract_strided_slice %61 {offsets = [0, 131], sizes = [48, 8], strides = [1, 1]} : vector<48x200xf32> to vector<48x8xf32>
    %cst_62 = arith.constant dense<0.000000e+00> : vector<48x18xf32>
    %113 = tpu.matmul %112, %60, %cst_62 {dimension_numbers = #tpu.dot_dimension_numbers<[1], [0], [0], [1], [0, 0, 1, 1], [], []>} : vector<48x8xf32>, vector<8x18xf32>, vector<48x18xf32> -> vector<48x18xf32>
    %114 = arith.truncf %113 : vector<48x18xf32> to vector<48x18xbf16>
    %c0_63 = arith.constant 0 : index
    %c433 = arith.constant 433 : index
    %115 = vector.load %arg13[%c0_63, %c433] : memref<48x686xbf16, #tpu.memory_space<vmem>>, vector<48x18xbf16>
    tpu.vector_store %arg13[%c0_63, %c433], %114 {strides = array<i32>} : memref<48x686xbf16, #tpu.memory_space<vmem>>, vector<48x18xbf16>,
    %c0_64 = arith.constant 0 : index
    %c451 = arith.constant 451 : index
    %116 = vector.load %arg13[%c0_64, %c451] : memref<48x686xbf16, #tpu.memory_space<vmem>>, vector<48x18xbf16>
    tpu.vector_store %arg13[%c0_64, %c451], %114 {strides = array<i32>} : memref<48x686xbf16, #tpu.memory_space<vmem>>, vector<48x18xbf16>,
    %117 = vector.extract_strided_slice %61 {offsets = [0, 141], sizes = [48, 8], strides = [1, 1]} : vector<48x200xf32> to vector<48x8xf32>
    %cst_65 = arith.constant dense<0.000000e+00> : vector<48x18xf32>
    %118 = tpu.matmul %117, %60, %cst_65 {dimension_numbers = #tpu.dot_dimension_numbers<[1], [0], [0], [1], [0, 0, 1, 1], [], []>} : vector<48x8xf32>, vector<8x18xf32>, vector<48x18xf32> -> vector<48x18xf32>
    %119 = arith.truncf %118 : vector<48x18xf32> to vector<48x18xbf16>
    %c0_66 = arith.constant 0 : index
    %c469 = arith.constant 469 : index
    %120 = vector.load %arg13[%c0_66, %c469] : memref<48x686xbf16, #tpu.memory_space<vmem>>, vector<48x18xbf16>
    tpu.vector_store %arg13[%c0_66, %c469], %119 {strides = array<i32>} : memref<48x686xbf16, #tpu.memory_space<vmem>>, vector<48x18xbf16>,
    %c0_67 = arith.constant 0 : index
    %c487 = arith.constant 487 : index
    %121 = vector.load %arg13[%c0_67, %c487] : memref<48x686xbf16, #tpu.memory_space<vmem>>, vector<48x18xbf16>
    tpu.vector_store %arg13[%c0_67, %c487], %119 {strides = array<i32>} : memref<48x686xbf16, #tpu.memory_space<vmem>>, vector<48x18xbf16>,
    %122 = vector.extract_strided_slice %61 {offsets = [0, 151], sizes = [48, 8], strides = [1, 1]} : vector<48x200xf32> to vector<48x8xf32>
    %cst_68 = arith.constant dense<0.000000e+00> : vector<48x18xf32>
    %123 = tpu.matmul %122, %60, %cst_68 {dimension_numbers = #tpu.dot_dimension_numbers<[1], [0], [0], [1], [0, 0, 1, 1], [], []>} : vector<48x8xf32>, vector<8x18xf32>, vector<48x18xf32> -> vector<48x18xf32>
    %124 = arith.truncf %123 : vector<48x18xf32> to vector<48x18xbf16>
    %c0_69 = arith.constant 0 : index
    %c505 = arith.constant 505 : index
    %125 = vector.load %arg13[%c0_69, %c505] : memref<48x686xbf16, #tpu.memory_space<vmem>>, vector<48x18xbf16>
    tpu.vector_store %arg13[%c0_69, %c505], %124 {strides = array<i32>} : memref<48x686xbf16, #tpu.memory_space<vmem>>, vector<48x18xbf16>,
    %c0_70 = arith.constant 0 : index
    %c523 = arith.constant 523 : index
    %126 = vector.load %arg13[%c0_70, %c523] : memref<48x686xbf16, #tpu.memory_space<vmem>>, vector<48x18xbf16>
    tpu.vector_store %arg13[%c0_70, %c523], %124 {strides = array<i32>} : memref<48x686xbf16, #tpu.memory_space<vmem>>, vector<48x18xbf16>,
    %127 = vector.extract_strided_slice %61 {offsets = [0, 161], sizes = [48, 8], strides = [1, 1]} : vector<48x200xf32> to vector<48x8xf32>
    %cst_71 = arith.constant dense<0.000000e+00> : vector<48x18xf32>
    %128 = tpu.matmul %127, %60, %cst_71 {dimension_numbers = #tpu.dot_dimension_numbers<[1], [0], [0], [1], [0, 0, 1, 1], [], []>} : vector<48x8xf32>, vector<8x18xf32>, vector<48x18xf32> -> vector<48x18xf32>
    %129 = arith.truncf %128 : vector<48x18xf32> to vector<48x18xbf16>
    %c0_72 = arith.constant 0 : index
    %c541 = arith.constant 541 : index
    %130 = vector.load %arg13[%c0_72, %c541] : memref<48x686xbf16, #tpu.memory_space<vmem>>, vector<48x18xbf16>
    tpu.vector_store %arg13[%c0_72, %c541], %129 {strides = array<i32>} : memref<48x686xbf16, #tpu.memory_space<vmem>>, vector<48x18xbf16>,
    %c0_73 = arith.constant 0 : index
    %c559 = arith.constant 559 : index
    %131 = vector.load %arg13[%c0_73, %c559] : memref<48x686xbf16, #tpu.memory_space<vmem>>, vector<48x18xbf16>
    tpu.vector_store %arg13[%c0_73, %c559], %129 {strides = array<i32>} : memref<48x686xbf16, #tpu.memory_space<vmem>>, vector<48x18xbf16>,
    %132 = vector.extract_strided_slice %61 {offsets = [0, 171], sizes = [48, 8], strides = [1, 1]} : vector<48x200xf32> to vector<48x8xf32>
    %cst_74 = arith.constant dense<0.000000e+00> : vector<48x18xf32>
    %133 = tpu.matmul %132, %60, %cst_74 {dimension_numbers = #tpu.dot_dimension_numbers<[1], [0], [0], [1], [0, 0, 1, 1], [], []>} : vector<48x8xf32>, vector<8x18xf32>, vector<48x18xf32> -> vector<48x18xf32>
    %134 = arith.truncf %133 : vector<48x18xf32> to vector<48x18xbf16>
    %c0_75 = arith.constant 0 : index
    %c577 = arith.constant 577 : index
    %135 = vector.load %arg13[%c0_75, %c577] : memref<48x686xbf16, #tpu.memory_space<vmem>>, vector<48x18xbf16>
    tpu.vector_store %arg13[%c0_75, %c577], %134 {strides = array<i32>} : memref<48x686xbf16, #tpu.memory_space<vmem>>, vector<48x18xbf16>,
    %c0_76 = arith.constant 0 : index
    %c595 = arith.constant 595 : index
    %136 = vector.load %arg13[%c0_76, %c595] : memref<48x686xbf16, #tpu.memory_space<vmem>>, vector<48x18xbf16>
    tpu.vector_store %arg13[%c0_76, %c595], %134 {strides = array<i32>} : memref<48x686xbf16, #tpu.memory_space<vmem>>, vector<48x18xbf16>,
    %137 = vector.extract_strided_slice %61 {offsets = [0, 181], sizes = [48, 8], strides = [1, 1]} : vector<48x200xf32> to vector<48x8xf32>
    %cst_77 = arith.constant dense<0.000000e+00> : vector<48x18xf32>
    %138 = tpu.matmul %137, %60, %cst_77 {dimension_numbers = #tpu.dot_dimension_numbers<[1], [0], [0], [1], [0, 0, 1, 1], [], []>} : vector<48x8xf32>, vector<8x18xf32>, vector<48x18xf32> -> vector<48x18xf32>
    %139 = arith.truncf %138 : vector<48x18xf32> to vector<48x18xbf16>
    %c0_78 = arith.constant 0 : index
    %c613 = arith.constant 613 : index
    %140 = vector.load %arg13[%c0_78, %c613] : memref<48x686xbf16, #tpu.memory_space<vmem>>, vector<48x18xbf16>
    tpu.vector_store %arg13[%c0_78, %c613], %139 {strides = array<i32>} : memref<48x686xbf16, #tpu.memory_space<vmem>>, vector<48x18xbf16>,
    %c0_79 = arith.constant 0 : index
    %c631 = arith.constant 631 : index
    %141 = vector.load %arg13[%c0_79, %c631] : memref<48x686xbf16, #tpu.memory_space<vmem>>, vector<48x18xbf16>
    tpu.vector_store %arg13[%c0_79, %c631], %139 {strides = array<i32>} : memref<48x686xbf16, #tpu.memory_space<vmem>>, vector<48x18xbf16>,
    %cst_80 = arith.constant 0.000000e+00 : f32
    %142 = vector.broadcast %cst_80 : f32 to vector<16x648xf32>
    %c0_81 = arith.constant 0 : index
    %c0_82 = arith.constant 0 : index
    %143 = vector.load %arg13[%c0_81, %c0_82] : memref<48x686xbf16, #tpu.memory_space<vmem>>, vector<32x648xbf16>
    %c0_83 = arith.constant 0 : index
    %c1 = arith.constant 1 : index
    %144 = vector.load %arg13[%c0_83, %c1] : memref<48x686xbf16, #tpu.memory_space<vmem>>, vector<32x648xbf16>
    %c0_84 = arith.constant 0 : index
    %c2 = arith.constant 2 : index
    %145 = vector.load %arg13[%c0_84, %c2] : memref<48x686xbf16, #tpu.memory_space<vmem>>, vector<32x648xbf16>
    %146 = tpu.concatenate %143, %144, %145 in 0 : vector<32x648xbf16>, vector<32x648xbf16>, vector<32x648xbf16> -> vector<96x648xbf16>
    %c0_85 = arith.constant 0 : index
    %c0_86 = arith.constant 0 : index
    %c0_87 = arith.constant 0 : index
    %147 = vector.load %arg4[%c0_85, %c0_86, %c0_87] : memref<3x16x96xbf16, #tpu.memory_space<vmem>>, vector<1x16x96xbf16>
    %148 = vector.shape_cast %147 : vector<1x16x96xbf16> to vector<16x96xbf16>
    %cst_88 = arith.constant dense<0.000000e+00> : vector<16x648xf32>
    %149 = tpu.matmul %148, %146, %cst_88 {dimension_numbers = #tpu.dot_dimension_numbers<[1], [0], [0], [1], [0, 0, 1, 1], [], []>} : vector<16x96xbf16>, vector<96x648xbf16>, vector<16x648xf32> -> vector<16x648xf32>
    %150 = arith.addf %142, %149 : vector<16x648xf32>
    %c0_89 = arith.constant 0 : index
    %c18 = arith.constant 18 : index
    %151 = vector.load %arg13[%c0_89, %c18] : memref<48x686xbf16, #tpu.memory_space<vmem>>, vector<32x648xbf16>
    %c0_90 = arith.constant 0 : index
    %c19 = arith.constant 19 : index
    %152 = vector.load %arg13[%c0_90, %c19] : memref<48x686xbf16, #tpu.memory_space<vmem>>, vector<32x648xbf16>
    %c0_91 = arith.constant 0 : index
    %c20 = arith.constant 20 : index
    %153 = vector.load %arg13[%c0_91, %c20] : memref<48x686xbf16, #tpu.memory_space<vmem>>, vector<32x648xbf16>
    %154 = tpu.concatenate %151, %152, %153 in 0 : vector<32x648xbf16>, vector<32x648xbf16>, vector<32x648xbf16> -> vector<96x648xbf16>
    %c1_92 = arith.constant 1 : index
    %c0_93 = arith.constant 0 : index
    %c0_94 = arith.constant 0 : index
    %155 = vector.load %arg4[%c1_92, %c0_93, %c0_94] : memref<3x16x96xbf16, #tpu.memory_space<vmem>>, vector<1x16x96xbf16>
    %156 = vector.shape_cast %155 : vector<1x16x96xbf16> to vector<16x96xbf16>
    %cst_95 = arith.constant dense<0.000000e+00> : vector<16x648xf32>
    %157 = tpu.matmul %156, %154, %cst_95 {dimension_numbers = #tpu.dot_dimension_numbers<[1], [0], [0], [1], [0, 0, 1, 1], [], []>} : vector<16x96xbf16>, vector<96x648xbf16>, vector<16x648xf32> -> vector<16x648xf32>
    %158 = arith.addf %150, %157 : vector<16x648xf32>
    %c0_96 = arith.constant 0 : index
    %c36 = arith.constant 36 : index
    %159 = vector.load %arg13[%c0_96, %c36] : memref<48x686xbf16, #tpu.memory_space<vmem>>, vector<32x648xbf16>
    %c0_97 = arith.constant 0 : index
    %c37_98 = arith.constant 37 : index
    %160 = vector.load %arg13[%c0_97, %c37_98] : memref<48x686xbf16, #tpu.memory_space<vmem>>, vector<32x648xbf16>
    %c0_99 = arith.constant 0 : index
    %c38 = arith.constant 38 : index
    %161 = vector.load %arg13[%c0_99, %c38] : memref<48x686xbf16, #tpu.memory_space<vmem>>, vector<32x648xbf16>
    %162 = tpu.concatenate %159, %160, %161 in 0 : vector<32x648xbf16>, vector<32x648xbf16>, vector<32x648xbf16> -> vector<96x648xbf16>
    %c2_100 = arith.constant 2 : index
    %c0_101 = arith.constant 0 : index
    %c0_102 = arith.constant 0 : index
    %163 = vector.load %arg4[%c2_100, %c0_101, %c0_102] : memref<3x16x96xbf16, #tpu.memory_space<vmem>>, vector<1x16x96xbf16>
    %164 = vector.shape_cast %163 : vector<1x16x96xbf16> to vector<16x96xbf16>
    %cst_103 = arith.constant dense<0.000000e+00> : vector<16x648xf32>
    %165 = tpu.matmul %164, %162, %cst_103 {dimension_numbers = #tpu.dot_dimension_numbers<[1], [0], [0], [1], [0, 0, 1, 1], [], []>} : vector<16x96xbf16>, vector<96x648xbf16>, vector<16x648xf32> -> vector<16x648xf32>
    %166 = arith.addf %158, %165 : vector<16x648xf32>
    %c0_104 = arith.constant 0 : index
    %c0_105 = arith.constant 0 : index
    %167 = vector.load %arg11[%c0_104, %c0_105] : memref<1x648xf32, #tpu.memory_space<vmem>>, vector<1x648xf32>
    %c0_106 = arith.constant 0 : index
    %c0_107 = arith.constant 0 : index
    %168 = vector.load %arg7[%c0_106, %c0_107] : memref<16x3xf32, #tpu.memory_space<vmem>>, vector<16x1xf32>
    %169 = vector.broadcast %168 : vector<16x1xf32> to vector<16x648xf32>
    %170 = arith.addf %166, %169 : vector<16x648xf32>
    %171 = vector.broadcast %167 : vector<1x648xf32> to vector<16x648xf32>
    %172 = arith.mulf %170, %171 : vector<16x648xf32>
    %cst_108 = arith.constant dense<0.000000e+00> : vector<16xf32>
    %173 = vector.multi_reduction <add>, %172, %cst_108 [1] : vector<16x648xf32> to vector<16xf32>
    %174 = vector.shape_cast %173 : vector<16xf32> to vector<16x1xf32>
    %cst_109 = arith.constant 5.120000e+02 : f32
    %175 = vector.broadcast %cst_109 : f32 to vector<16x1xf32>
    %176 = arith.divf %174, %175 : vector<16x1xf32>
    %177 = arith.mulf %172, %172 : vector<16x648xf32>
    %cst_110 = arith.constant dense<0.000000e+00> : vector<16xf32>
    %178 = vector.multi_reduction <add>, %177, %cst_110 [1] : vector<16x648xf32> to vector<16xf32>
    %179 = vector.shape_cast %178 : vector<16xf32> to vector<16x1xf32>
    %cst_111 = arith.constant 5.120000e+02 : f32
    %180 = vector.broadcast %cst_111 : f32 to vector<16x1xf32>
    %181 = arith.divf %179, %180 : vector<16x1xf32>
    %182 = arith.mulf %176, %176 : vector<16x1xf32>
    %183 = arith.subf %181, %182 : vector<16x1xf32>
    %cst_112 = arith.constant 0.000000e+00 : f32
    %184 = vector.broadcast %cst_112 : f32 to vector<16x1xf32>
    %185 = arith.maximumf %183, %184 : vector<16x1xf32>
    %cst_113 = arith.constant 9.99999974E-6 : f32
    %186 = vector.broadcast %cst_113 : f32 to vector<16x1xf32>
    %187 = arith.addf %185, %186 : vector<16x1xf32>
    %188 = math.rsqrt %187 : vector<16x1xf32>
    %189 = vector.broadcast %188 : vector<16x1xf32> to vector<16x2xf32>
    %190 = arith.mulf %189, %17 : vector<16x2xf32>
    %c0_114 = arith.constant 0 : index
    %c0_115 = arith.constant 0 : index
    %191 = vector.load %arg10[%c0_114, %c0_115] : memref<2x648xf32, #tpu.memory_space<vmem>>, vector<2x648xf32>
    %cst_116 = arith.constant dense<0.000000e+00> : vector<16x648xf32>
    %192 = tpu.matmul %190, %191, %cst_116 {dimension_numbers = #tpu.dot_dimension_numbers<[1], [0], [0], [1], [0, 0, 1, 1], [], []>} : vector<16x2xf32>, vector<2x648xf32>, vector<16x648xf32> -> vector<16x648xf32>
    %193 = arith.mulf %176, %188 : vector<16x1xf32>
    %194 = vector.broadcast %193 : vector<16x1xf32> to vector<16x2xf32>
    %195 = arith.mulf %194, %17 : vector<16x2xf32>
    %196 = arith.subf %19, %195 : vector<16x2xf32>
    %c0_117 = arith.constant 0 : index
    %c0_118 = arith.constant 0 : index
    %197 = vector.load %arg10[%c0_117, %c0_118] : memref<2x648xf32, #tpu.memory_space<vmem>>, vector<2x648xf32>
    %cst_119 = arith.constant dense<0.000000e+00> : vector<16x648xf32>
    %198 = tpu.matmul %196, %197, %cst_119 {dimension_numbers = #tpu.dot_dimension_numbers<[1], [0], [0], [1], [0, 0, 1, 1], [], []>} : vector<16x2xf32>, vector<2x648xf32>, vector<16x648xf32> -> vector<16x648xf32>
    %199 = arith.mulf %172, %192 : vector<16x648xf32>
    %200 = arith.addf %199, %198 : vector<16x648xf32>
    %cst_120 = arith.constant 0.000000e+00 : f32
    %201 = vector.broadcast %cst_120 : f32 to vector<16x648xf32>
    %202 = arith.maximumf %200, %201 : vector<16x648xf32>
    %cst_121 = arith.constant 0.000000e+00 : bf16
    %203 = vector.broadcast %cst_121 : bf16 to vector<16x19xbf16>
    %c0_122 = arith.constant 0 : index
    %c0_123 = arith.constant 0 : index
    %204 = vector.load %arg14[%c0_122, %c0_123] : memref<16x686xbf16, #tpu.memory_space<vmem>>, vector<16x19xbf16>
    tpu.vector_store %arg14[%c0_122, %c0_123], %203 {strides = array<i32>} : memref<16x686xbf16, #tpu.memory_space<vmem>>, vector<16x19xbf16>,
    %cst_124 = arith.constant 0.000000e+00 : bf16
    %205 = vector.broadcast %cst_124 : bf16 to vector<16x19xbf16>
    %c0_125 = arith.constant 0 : index
    %c667 = arith.constant 667 : index
    %206 = vector.load %arg14[%c0_125, %c667] : memref<16x686xbf16, #tpu.memory_space<vmem>>, vector<16x19xbf16>
    tpu.vector_store %arg14[%c0_125, %c667], %205 {strides = array<i32>} : memref<16x686xbf16, #tpu.memory_space<vmem>>, vector<16x19xbf16>,
    %207 = arith.truncf %202 : vector<16x648xf32> to vector<16x648xbf16>
    %c0_126 = arith.constant 0 : index
    %c19_127 = arith.constant 19 : index
    %208 = vector.load %arg14[%c0_126, %c19_127] : memref<16x686xbf16, #tpu.memory_space<vmem>>, vector<16x648xbf16>
    tpu.vector_store %arg14[%c0_126, %c19_127], %207 {strides = array<i32>} : memref<16x686xbf16, #tpu.memory_space<vmem>>, vector<16x648xbf16>,
    %cst_128 = arith.constant 0.000000e+00 : f32
    %209 = vector.broadcast %cst_128 : f32 to vector<16x648xf32>
    %c0_129 = arith.constant 0 : index
    %c0_130 = arith.constant 0 : index
    %210 = vector.load %arg14[%c0_129, %c0_130] : memref<16x686xbf16, #tpu.memory_space<vmem>>, vector<16x648xbf16>
    %c0_131 = arith.constant 0 : index
    %c1_132 = arith.constant 1 : index
    %211 = vector.load %arg14[%c0_131, %c1_132] : memref<16x686xbf16, #tpu.memory_space<vmem>>, vector<16x648xbf16>
    %c0_133 = arith.constant 0 : index
    %c2_134 = arith.constant 2 : index
    %212 = vector.load %arg14[%c0_133, %c2_134] : memref<16x686xbf16, #tpu.memory_space<vmem>>, vector<16x648xbf16>
    %213 = tpu.concatenate %210, %211, %212 in 0 : vector<16x648xbf16>, vector<16x648xbf16>, vector<16x648xbf16> -> vector<48x648xbf16>
    %c0_135 = arith.constant 0 : index
    %c0_136 = arith.constant 0 : index
    %c0_137 = arith.constant 0 : index
    %214 = vector.load %arg5[%c0_135, %c0_136, %c0_137] : memref<3x16x48xbf16, #tpu.memory_space<vmem>>, vector<1x16x48xbf16>
    %215 = vector.shape_cast %214 : vector<1x16x48xbf16> to vector<16x48xbf16>
    %cst_138 = arith.constant dense<0.000000e+00> : vector<16x648xf32>
    %216 = tpu.matmul %215, %213, %cst_138 {dimension_numbers = #tpu.dot_dimension_numbers<[1], [0], [0], [1], [0, 0, 1, 1], [], []>} : vector<16x48xbf16>, vector<48x648xbf16>, vector<16x648xf32> -> vector<16x648xf32>
    %217 = arith.addf %209, %216 : vector<16x648xf32>
    %c0_139 = arith.constant 0 : index
    %c18_140 = arith.constant 18 : index
    %218 = vector.load %arg14[%c0_139, %c18_140] : memref<16x686xbf16, #tpu.memory_space<vmem>>, vector<16x648xbf16>
    %c0_141 = arith.constant 0 : index
    %c19_142 = arith.constant 19 : index
    %219 = vector.load %arg14[%c0_141, %c19_142] : memref<16x686xbf16, #tpu.memory_space<vmem>>, vector<16x648xbf16>
    %c0_143 = arith.constant 0 : index
    %c20_144 = arith.constant 20 : index
    %220 = vector.load %arg14[%c0_143, %c20_144] : memref<16x686xbf16, #tpu.memory_space<vmem>>, vector<16x648xbf16>
    %221 = tpu.concatenate %218, %219, %220 in 0 : vector<16x648xbf16>, vector<16x648xbf16>, vector<16x648xbf16> -> vector<48x648xbf16>
    %c1_145 = arith.constant 1 : index
    %c0_146 = arith.constant 0 : index
    %c0_147 = arith.constant 0 : index
    %222 = vector.load %arg5[%c1_145, %c0_146, %c0_147] : memref<3x16x48xbf16, #tpu.memory_space<vmem>>, vector<1x16x48xbf16>
    %223 = vector.shape_cast %222 : vector<1x16x48xbf16> to vector<16x48xbf16>
    %cst_148 = arith.constant dense<0.000000e+00> : vector<16x648xf32>
    %224 = tpu.matmul %223, %221, %cst_148 {dimension_numbers = #tpu.dot_dimension_numbers<[1], [0], [0], [1], [0, 0, 1, 1], [], []>} : vector<16x48xbf16>, vector<48x648xbf16>, vector<16x648xf32> -> vector<16x648xf32>
    %225 = arith.addf %217, %224 : vector<16x648xf32>
    %c0_149 = arith.constant 0 : index
    %c36_150 = arith.constant 36 : index
    %226 = vector.load %arg14[%c0_149, %c36_150] : memref<16x686xbf16, #tpu.memory_space<vmem>>, vector<16x648xbf16>
    %c0_151 = arith.constant 0 : index
    %c37_152 = arith.constant 37 : index
    %227 = vector.load %arg14[%c0_151, %c37_152] : memref<16x686xbf16, #tpu.memory_space<vmem>>, vector<16x648xbf16>
    %c0_153 = arith.constant 0 : index
    %c38_154 = arith.constant 38 : index
    %228 = vector.load %arg14[%c0_153, %c38_154] : memref<16x686xbf16, #tpu.memory_space<vmem>>, vector<16x648xbf16>
    %229 = tpu.concatenate %226, %227, %228 in 0 : vector<16x648xbf16>, vector<16x648xbf16>, vector<16x648xbf16> -> vector<48x648xbf16>
    %c2_155 = arith.constant 2 : index
    %c0_156 = arith.constant 0 : index
    %c0_157 = arith.constant 0 : index
    %230 = vector.load %arg5[%c2_155, %c0_156, %c0_157] : memref<3x16x48xbf16, #tpu.memory_space<vmem>>, vector<1x16x48xbf16>
    %231 = vector.shape_cast %230 : vector<1x16x48xbf16> to vector<16x48xbf16>
    %cst_158 = arith.constant dense<0.000000e+00> : vector<16x648xf32>
    %232 = tpu.matmul %231, %229, %cst_158 {dimension_numbers = #tpu.dot_dimension_numbers<[1], [0], [0], [1], [0, 0, 1, 1], [], []>} : vector<16x48xbf16>, vector<48x648xbf16>, vector<16x648xf32> -> vector<16x648xf32>
    %233 = arith.addf %225, %232 : vector<16x648xf32>
    %c32 = arith.constant 32 : index
    %c19_159 = arith.constant 19 : index
    %234 = vector.load %arg13[%c32, %c19_159] : memref<48x686xbf16, #tpu.memory_space<vmem>>, vector<16x648xbf16>
    %235 = arith.extf %234 : vector<16x648xbf16> to vector<16x648xf32>
    %c0_160 = arith.constant 0 : index
    %c1_161 = arith.constant 1 : index
    %236 = vector.load %arg7[%c0_160, %c1_161] : memref<16x3xf32, #tpu.memory_space<vmem>>, vector<16x1xf32>
    %237 = vector.broadcast %236 : vector<16x1xf32> to vector<16x648xf32>
    %238 = arith.addf %233, %237 : vector<16x648xf32>
    %239 = arith.addf %238, %235 : vector<16x648xf32>
    %c0_162 = arith.constant 0 : index
    %c2_163 = arith.constant 2 : index
    %240 = vector.load %arg7[%c0_162, %c2_163] : memref<16x3xf32, #tpu.memory_space<vmem>>, vector<16x1xf32>
    %241 = vector.broadcast %240 : vector<16x1xf32> to vector<16x648xf32>
    %242 = arith.addf %239, %241 : vector<16x648xf32>
    %243 = vector.broadcast %167 : vector<1x648xf32> to vector<16x648xf32>
    %244 = arith.mulf %242, %243 : vector<16x648xf32>
    %245 = arith.truncf %244 : vector<16x648xf32> to vector<16x648xbf16>
    %c0_164 = arith.constant 0 : index
    %c0_165 = arith.constant 0 : index
    %246 = vector.load %arg12[%c0_164, %c0_165] : memref<16x648xbf16, #tpu.memory_space<vmem>>, vector<16x648xbf16>
    tpu.vector_store %arg12[%c0_164, %c0_165], %245 {strides = array<i32>} : memref<16x648xbf16, #tpu.memory_space<vmem>>, vector<16x648xbf16>,
    return
  }
}

module attributes {stable_mosaic.version = 11 : i64} {
  func.func @_output_layer_kernel(%arg0: memref<16x648xbf16, #tpu.memory_space<vmem>>, %arg1: memref<16x1xf32, #tpu.memory_space<vmem>>, %arg2: memref<16x1xf32, #tpu.memory_space<vmem>>, %arg3: memref<3x3x48xbf16, #tpu.memory_space<vmem>>, %arg4: memref<3x1xf32, #tpu.memory_space<vmem>>, %arg5: memref<1x648xf32, #tpu.memory_space<vmem>>, %arg6: memref<3x648xf32, #tpu.memory_space<vmem>>, %arg7: memref<16x686xbf16, #tpu.memory_space<vmem>>) attributes {dimension_semantics = [], scalar_prefetch = 0 : i64, scratch_operands = 1 : i64, tpu.core_type = #tpu.core_type<tc>} {
    %c0 = arith.constant 0 : index
    %c0_0 = arith.constant 0 : index
    %0 = vector.load %arg0[%c0, %c0_0] : memref<16x648xbf16, #tpu.memory_space<vmem>>, vector<16x648xbf16>
    %1 = arith.extf %0 : vector<16x648xbf16> to vector<16x648xf32>
    %cst = arith.constant dense<0.000000e+00> : vector<16xf32>
    %2 = vector.multi_reduction <add>, %1, %cst [1] : vector<16x648xf32> to vector<16xf32>
    %3 = vector.shape_cast %2 : vector<16xf32> to vector<16x1xf32>
    %cst_1 = arith.constant 5.120000e+02 : f32
    %4 = vector.broadcast %cst_1 : f32 to vector<16x1xf32>
    %5 = arith.divf %3, %4 : vector<16x1xf32>
    %6 = arith.mulf %1, %1 : vector<16x648xf32>
    %cst_2 = arith.constant dense<0.000000e+00> : vector<16xf32>
    %7 = vector.multi_reduction <add>, %6, %cst_2 [1] : vector<16x648xf32> to vector<16xf32>
    %8 = vector.shape_cast %7 : vector<16xf32> to vector<16x1xf32>
    %cst_3 = arith.constant 5.120000e+02 : f32
    %9 = vector.broadcast %cst_3 : f32 to vector<16x1xf32>
    %10 = arith.divf %8, %9 : vector<16x1xf32>
    %11 = arith.mulf %5, %5 : vector<16x1xf32>
    %12 = arith.subf %10, %11 : vector<16x1xf32>
    %cst_4 = arith.constant 0.000000e+00 : f32
    %13 = vector.broadcast %cst_4 : f32 to vector<16x1xf32>
    %14 = arith.maximumf %12, %13 : vector<16x1xf32>
    %cst_5 = arith.constant 9.99999974E-6 : f32
    %15 = vector.broadcast %cst_5 : f32 to vector<16x1xf32>
    %16 = arith.addf %14, %15 : vector<16x1xf32>
    %17 = math.rsqrt %16 : vector<16x1xf32>
    %18 = vector.broadcast %5 : vector<16x1xf32> to vector<16x648xf32>
    %19 = arith.subf %1, %18 : vector<16x648xf32>
    %20 = vector.broadcast %17 : vector<16x1xf32> to vector<16x648xf32>
    %21 = arith.mulf %19, %20 : vector<16x648xf32>
    %c0_6 = arith.constant 0 : index
    %c0_7 = arith.constant 0 : index
    %22 = vector.load %arg1[%c0_6, %c0_7] : memref<16x1xf32, #tpu.memory_space<vmem>>, vector<16x1xf32>
    %23 = vector.broadcast %22 : vector<16x1xf32> to vector<16x648xf32>
    %24 = arith.mulf %21, %23 : vector<16x648xf32>
    %c0_8 = arith.constant 0 : index
    %c0_9 = arith.constant 0 : index
    %25 = vector.load %arg2[%c0_8, %c0_9] : memref<16x1xf32, #tpu.memory_space<vmem>>, vector<16x1xf32>
    %26 = vector.broadcast %25 : vector<16x1xf32> to vector<16x648xf32>
    %27 = arith.addf %24, %26 : vector<16x648xf32>
    %cst_10 = arith.constant 0.000000e+00 : f32
    %28 = vector.broadcast %cst_10 : f32 to vector<16x648xf32>
    %29 = arith.maximumf %27, %28 : vector<16x648xf32>
    %c0_11 = arith.constant 0 : index
    %c0_12 = arith.constant 0 : index
    %30 = vector.load %arg5[%c0_11, %c0_12] : memref<1x648xf32, #tpu.memory_space<vmem>>, vector<1x648xf32>
    %31 = vector.broadcast %30 : vector<1x648xf32> to vector<16x648xf32>
    %32 = arith.mulf %29, %31 : vector<16x648xf32>
    %cst_13 = arith.constant 0.000000e+00 : bf16
    %33 = vector.broadcast %cst_13 : bf16 to vector<16x19xbf16>
    %c0_14 = arith.constant 0 : index
    %c0_15 = arith.constant 0 : index
    %34 = vector.load %arg7[%c0_14, %c0_15] : memref<16x686xbf16, #tpu.memory_space<vmem>>, vector<16x19xbf16>
    tpu.vector_store %arg7[%c0_14, %c0_15], %33 {strides = array<i32>} : memref<16x686xbf16, #tpu.memory_space<vmem>>, vector<16x19xbf16>,
    %cst_16 = arith.constant 0.000000e+00 : bf16
    %35 = vector.broadcast %cst_16 : bf16 to vector<16x19xbf16>
    %c0_17 = arith.constant 0 : index
    %c667 = arith.constant 667 : index
    %36 = vector.load %arg7[%c0_17, %c667] : memref<16x686xbf16, #tpu.memory_space<vmem>>, vector<16x19xbf16>
    tpu.vector_store %arg7[%c0_17, %c667], %35 {strides = array<i32>} : memref<16x686xbf16, #tpu.memory_space<vmem>>, vector<16x19xbf16>,
    %37 = arith.truncf %32 : vector<16x648xf32> to vector<16x648xbf16>
    %c0_18 = arith.constant 0 : index
    %c19 = arith.constant 19 : index
    %38 = vector.load %arg7[%c0_18, %c19] : memref<16x686xbf16, #tpu.memory_space<vmem>>, vector<16x648xbf16>
    tpu.vector_store %arg7[%c0_18, %c19], %37 {strides = array<i32>} : memref<16x686xbf16, #tpu.memory_space<vmem>>, vector<16x648xbf16>,
    %cst_19 = arith.constant 0.000000e+00 : f32
    %39 = vector.broadcast %cst_19 : f32 to vector<3x648xf32>
    %c0_20 = arith.constant 0 : index
    %c0_21 = arith.constant 0 : index
    %40 = vector.load %arg7[%c0_20, %c0_21] : memref<16x686xbf16, #tpu.memory_space<vmem>>, vector<16x648xbf16>
    %c0_22 = arith.constant 0 : index
    %c1 = arith.constant 1 : index
    %41 = vector.load %arg7[%c0_22, %c1] : memref<16x686xbf16, #tpu.memory_space<vmem>>, vector<16x648xbf16>
    %c0_23 = arith.constant 0 : index
    %c2 = arith.constant 2 : index
    %42 = vector.load %arg7[%c0_23, %c2] : memref<16x686xbf16, #tpu.memory_space<vmem>>, vector<16x648xbf16>
    %43 = tpu.concatenate %40, %41, %42 in 0 : vector<16x648xbf16>, vector<16x648xbf16>, vector<16x648xbf16> -> vector<48x648xbf16>
    %c0_24 = arith.constant 0 : index
    %c0_25 = arith.constant 0 : index
    %c0_26 = arith.constant 0 : index
    %44 = vector.load %arg3[%c0_24, %c0_25, %c0_26] : memref<3x3x48xbf16, #tpu.memory_space<vmem>>, vector<1x3x48xbf16>
    %45 = vector.shape_cast %44 : vector<1x3x48xbf16> to vector<3x48xbf16>
    %cst_27 = arith.constant dense<0.000000e+00> : vector<3x648xf32>
    %46 = tpu.matmul %45, %43, %cst_27 {dimension_numbers = #tpu.dot_dimension_numbers<[1], [0], [0], [1], [0, 0, 1, 1], [], []>} : vector<3x48xbf16>, vector<48x648xbf16>, vector<3x648xf32> -> vector<3x648xf32>
    %47 = arith.addf %39, %46 : vector<3x648xf32>
    %c0_28 = arith.constant 0 : index
    %c18 = arith.constant 18 : index
    %48 = vector.load %arg7[%c0_28, %c18] : memref<16x686xbf16, #tpu.memory_space<vmem>>, vector<16x648xbf16>
    %c0_29 = arith.constant 0 : index
    %c19_30 = arith.constant 19 : index
    %49 = vector.load %arg7[%c0_29, %c19_30] : memref<16x686xbf16, #tpu.memory_space<vmem>>, vector<16x648xbf16>
    %c0_31 = arith.constant 0 : index
    %c20 = arith.constant 20 : index
    %50 = vector.load %arg7[%c0_31, %c20] : memref<16x686xbf16, #tpu.memory_space<vmem>>, vector<16x648xbf16>
    %51 = tpu.concatenate %48, %49, %50 in 0 : vector<16x648xbf16>, vector<16x648xbf16>, vector<16x648xbf16> -> vector<48x648xbf16>
    %c1_32 = arith.constant 1 : index
    %c0_33 = arith.constant 0 : index
    %c0_34 = arith.constant 0 : index
    %52 = vector.load %arg3[%c1_32, %c0_33, %c0_34] : memref<3x3x48xbf16, #tpu.memory_space<vmem>>, vector<1x3x48xbf16>
    %53 = vector.shape_cast %52 : vector<1x3x48xbf16> to vector<3x48xbf16>
    %cst_35 = arith.constant dense<0.000000e+00> : vector<3x648xf32>
    %54 = tpu.matmul %53, %51, %cst_35 {dimension_numbers = #tpu.dot_dimension_numbers<[1], [0], [0], [1], [0, 0, 1, 1], [], []>} : vector<3x48xbf16>, vector<48x648xbf16>, vector<3x648xf32> -> vector<3x648xf32>
    %55 = arith.addf %47, %54 : vector<3x648xf32>
    %c0_36 = arith.constant 0 : index
    %c36 = arith.constant 36 : index
    %56 = vector.load %arg7[%c0_36, %c36] : memref<16x686xbf16, #tpu.memory_space<vmem>>, vector<16x648xbf16>
    %c0_37 = arith.constant 0 : index
    %c37 = arith.constant 37 : index
    %57 = vector.load %arg7[%c0_37, %c37] : memref<16x686xbf16, #tpu.memory_space<vmem>>, vector<16x648xbf16>
    %c0_38 = arith.constant 0 : index
    %c38 = arith.constant 38 : index
    %58 = vector.load %arg7[%c0_38, %c38] : memref<16x686xbf16, #tpu.memory_space<vmem>>, vector<16x648xbf16>
    %59 = tpu.concatenate %56, %57, %58 in 0 : vector<16x648xbf16>, vector<16x648xbf16>, vector<16x648xbf16> -> vector<48x648xbf16>
    %c2_39 = arith.constant 2 : index
    %c0_40 = arith.constant 0 : index
    %c0_41 = arith.constant 0 : index
    %60 = vector.load %arg3[%c2_39, %c0_40, %c0_41] : memref<3x3x48xbf16, #tpu.memory_space<vmem>>, vector<1x3x48xbf16>
    %61 = vector.shape_cast %60 : vector<1x3x48xbf16> to vector<3x48xbf16>
    %cst_42 = arith.constant dense<0.000000e+00> : vector<3x648xf32>
    %62 = tpu.matmul %61, %59, %cst_42 {dimension_numbers = #tpu.dot_dimension_numbers<[1], [0], [0], [1], [0, 0, 1, 1], [], []>} : vector<3x48xbf16>, vector<48x648xbf16>, vector<3x648xf32> -> vector<3x648xf32>
    %63 = arith.addf %55, %62 : vector<3x648xf32>
    %c0_43 = arith.constant 0 : index
    %c0_44 = arith.constant 0 : index
    %64 = vector.load %arg4[%c0_43, %c0_44] : memref<3x1xf32, #tpu.memory_space<vmem>>, vector<3x1xf32>
    %65 = vector.broadcast %64 : vector<3x1xf32> to vector<3x648xf32>
    %66 = arith.addf %63, %65 : vector<3x648xf32>
    %67 = math.tanh %66 : vector<3x648xf32>
    %c0_45 = arith.constant 0 : index
    %c0_46 = arith.constant 0 : index
    %68 = vector.load %arg6[%c0_45, %c0_46] : memref<3x648xf32, #tpu.memory_space<vmem>>, vector<3x648xf32>
    tpu.vector_store %arg6[%c0_45, %c0_46], %67 {strides = array<i32>} : memref<3x648xf32, #tpu.memory_space<vmem>>, vector<3x648xf32>,
    return
  }
}

</mosaic_0001>

<llo_original>
// kernel: adabiggan_forward.4
$region0: #{adabiggan_forward.4}
  #allocation0 [shape = 'u32[]', space=smem, size = 0x4, offset = 0x4, fixed_abs, tag = 'smem constant byte address 0x4 - core index']
  #allocation1 [shape = 'u32[72,128]{1,0:T(1,128)}', space=vmem, size = 0x9000, scoped, tag = 'internal scratch']
  %s0 = inlined_call_operand.vmem [shape: bf16[2,8], index: 0, kind: input, shape index: {}]
  %s1 = inlined_call_operand.vmem [shape: bf16[8,1024], index: 1, kind: input, shape index: {}]
  %s2 = inlined_call_operand.vmem [shape: f32[1,1024], index: 2, kind: input, shape index: {}]
  %s3 = inlined_call_operand.vmem [shape: f32[2,1024], index: 3, kind: output, shape index: {}]
  %s4 = sld [smem:[#allocation0]]
  $region22: #{adabiggan_forward.4} parent=0
    _
  %s6 = ssub.s32 1, %s4
  %s7 = scalar_select 0, %s6, %s4
  // Predicated region
  $region2: #{adabiggan_forward.4} parent=0 // pred_check
    _
  $region3: #{adabiggan_forward.4} parent=0 // pred_check_branch
    %9 = sbr.rel (0) target = $region5
  $region4: #{adabiggan_forward.4} parent=0 // pred_region
    _
  $region5: #{adabiggan_forward.4} parent=0 // pred_fallthru
    _
  // Predicated region
  $region6: #{adabiggan_forward.4} parent=0 // pred_check
    _
  $region7: #{adabiggan_forward.4} parent=0 // pred_check_branch
    %11 = sbr.rel (0) target = $region9
  $region8: #{adabiggan_forward.4} parent=0 // pred_region
    _
  $region9: #{adabiggan_forward.4} parent=0 // pred_fallthru
    _
  // Predicated region
  $region10: #{adabiggan_forward.4} parent=0 // pred_check
    _
  $region11: #{adabiggan_forward.4} parent=0 // pred_check_branch
    %13 = sbr.rel (0) target = $region13
  $region12: #{adabiggan_forward.4} parent=0 // pred_region
    _
  $region13: #{adabiggan_forward.4} parent=0 // pred_fallthru
    _
  %v15 = vld [vmem:[%s0] sm:$0x1]
  %v16 = vld [vmem:[%s1] sm:$0xff]
  %v17 = vld [vmem:[%s1 + $0x8] sm:$0xff]
  %v18 = vld [vmem:[%s1 + $0x10] sm:$0xff]
  %v19 = vld [vmem:[%s1 + $0x18] sm:$0xff]
  %v20 = vld [vmem:[%s2] sm:$0xff]
  %v22 = vperm.slane %v20, 0
  %v23 = vperm.slane %v20, 1
  %v24 = vperm.slane %v20, 2
  %v25 = vperm.slane %v20, 3
  %v26 = vperm.slane %v20, 4
  %v27 = vperm.slane %v20, 5
  %v28 = vperm.slane %v20, 6
  %v29 = vperm.slane %v20, 7
  %v42 = vunpack.c.l.b16 %v16
  %v43 = vunpack.c.h.b16 %v16
  %v44 = vunpack.c.l.b16 %v17
  %v45 = vunpack.c.h.b16 %v17
  %v46 = vunpack.c.l.b16 %v18
  %v47 = vunpack.c.h.b16 %v18
  %v48 = vunpack.c.l.b16 %v19
  %v49 = vunpack.c.h.b16 %v19
  %v50 = vpack.c.b16 %v42, %v42
  %v51 = vpack.c.b16 %v43, %v43
  %v52 = vpack.c.b16 %v44, %v44
  %v53 = vpack.c.b16 %v45, %v45
  %v54 = vpack.c.b16 %v46, %v46
  %v55 = vpack.c.b16 %v47, %v47
  %v56 = vpack.c.b16 %v48, %v48
  %v57 = vpack.c.b16 %v49, %v49
  %vm58 = vcmask 64512
  %v60 = vsel %vm58, %v15, 0
  %vm62 = vcmask 1043456
  %v64 = vsel %vm62, %v50, 0
  %v67 = vsel %vm62, %v51, 0
  %v70 = vsel %vm62, %v52, 0
  %v73 = vsel %vm62, %v53, 0
  %v76 = vsel %vm62, %v54, 0
  %v79 = vsel %vm62, %v55, 0
  %v82 = vsel %vm62, %v56, 0
  %v85 = vsel %vm62, %v57, 0
  %87 = vmatpush.bf16.msra.mxu0 0
  %88 = vmatpush.bf16.msra.mxu0 0
  %89 = vmatpush.bf16.msra.mxu0 0
  %90 = vmatpush.bf16.msra.mxu0 0
  %91 = vmatpush.bf16.msra.mxu0 0
  %92 = vmatpush.bf16.msra.mxu0 0
  %93 = vmatpush.bf16.msra.mxu0 0
  %94 = vmatpush.bf16.msra.mxu0 %v64
  %95 = vmatmul.bf16.gmra.mxu0 %v60
  %v96 = vpop.f32.mrf.mxu0
  %v97 = vadd.f32 %v22, %v96
  %v98 = vpop.f32.mrf.mxu0
  %99 = vdwg.mxu0
  %100 = vmatpush.bf16.msra.mxu0 0
  %101 = vmatpush.bf16.msra.mxu0 0
  %102 = vmatpush.bf16.msra.mxu0 0
  %103 = vmatpush.bf16.msra.mxu0 0
  %104 = vmatpush.bf16.msra.mxu0 0
  %105 = vmatpush.bf16.msra.mxu0 0
  %106 = vmatpush.bf16.msra.mxu0 0
  %107 = vmatpush.bf16.msra.mxu0 %v67
  %108 = vmatmul.bf16.gmra.mxu0 %v60
  %v109 = vpop.f32.mrf.mxu0
  %v110 = vadd.f32 %v23, %v109
  %v111 = vpop.f32.mrf.mxu0
  %112 = vdwg.mxu0
  %113 = vmatpush.bf16.msra.mxu0 0
  %114 = vmatpush.bf16.msra.mxu0 0
  %115 = vmatpush.bf16.msra.mxu0 0
  %116 = vmatpush.bf16.msra.mxu0 0
  %117 = vmatpush.bf16.msra.mxu0 0
  %118 = vmatpush.bf16.msra.mxu0 0
  %119 = vmatpush.bf16.msra.mxu0 0
  %120 = vmatpush.bf16.msra.mxu0 %v70
  %121 = vmatmul.bf16.gmra.mxu0 %v60
  %v122 = vpop.f32.mrf.mxu0
  %v123 = vadd.f32 %v24, %v122
  %v124 = vpop.f32.mrf.mxu0
  %125 = vdwg.mxu0
  %126 = vmatpush.bf16.msra.mxu0 0
  %127 = vmatpush.bf16.msra.mxu0 0
  %128 = vmatpush.bf16.msra.mxu0 0
  %129 = vmatpush.bf16.msra.mxu0 0
  %130 = vmatpush.bf16.msra.mxu0 0
  %131 = vmatpush.bf16.msra.mxu0 0
  %132 = vmatpush.bf16.msra.mxu0 0
  %133 = vmatpush.bf16.msra.mxu0 %v73
  %134 = vmatmul.bf16.gmra.mxu0 %v60
  %v135 = vpop.f32.mrf.mxu0
  %v136 = vadd.f32 %v25, %v135
  %v137 = vpop.f32.mrf.mxu0
  %138 = vdwg.mxu0
  %139 = vmatpush.bf16.msra.mxu0 0
  %140 = vmatpush.bf16.msra.mxu0 0
  %141 = vmatpush.bf16.msra.mxu0 0
  %142 = vmatpush.bf16.msra.mxu0 0
  %143 = vmatpush.bf16.msra.mxu0 0
  %144 = vmatpush.bf16.msra.mxu0 0
  %145 = vmatpush.bf16.msra.mxu0 0
  %146 = vmatpush.bf16.msra.mxu0 %v76
  %147 = vmatmul.bf16.gmra.mxu0 %v60
  %v148 = vpop.f32.mrf.mxu0
  %v149 = vadd.f32 %v26, %v148
  %v150 = vpop.f32.mrf.mxu0
  %151 = vdwg.mxu0
  %152 = vmatpush.bf16.msra.mxu0 0
  %153 = vmatpush.bf16.msra.mxu0 0
  %154 = vmatpush.bf16.msra.mxu0 0
  %155 = vmatpush.bf16.msra.mxu0 0
  %156 = vmatpush.bf16.msra.mxu0 0
  %157 = vmatpush.bf16.msra.mxu0 0
  %158 = vmatpush.bf16.msra.mxu0 0
  %159 = vmatpush.bf16.msra.mxu0 %v79
  %160 = vmatmul.bf16.gmra.mxu0 %v60
  %v161 = vpop.f32.mrf.mxu0
  %v162 = vadd.f32 %v27, %v161
  %v163 = vpop.f32.mrf.mxu0
  %164 = vdwg.mxu0
  %165 = vmatpush.bf16.msra.mxu0 0
  %166 = vmatpush.bf16.msra.mxu0 0
  %167 = vmatpush.bf16.msra.mxu0 0
  %168 = vmatpush.bf16.msra.mxu0 0
  %169 = vmatpush.bf16.msra.mxu0 0
  %170 = vmatpush.bf16.msra.mxu0 0
  %171 = vmatpush.bf16.msra.mxu0 0
  %172 = vmatpush.bf16.msra.mxu0 %v82
  %173 = vmatmul.bf16.gmra.mxu0 %v60
  %v174 = vpop.f32.mrf.mxu0
  %v175 = vadd.f32 %v28, %v174
  %v176 = vpop.f32.mrf.mxu0
  %177 = vdwg.mxu0
  %178 = vmatpush.bf16.msra.mxu0 0
  %179 = vmatpush.bf16.msra.mxu0 0
  %180 = vmatpush.bf16.msra.mxu0 0
  %181 = vmatpush.bf16.msra.mxu0 0
  %182 = vmatpush.bf16.msra.mxu0 0
  %183 = vmatpush.bf16.msra.mxu0 0
  %184 = vmatpush.bf16.msra.mxu0 0
  %185 = vmatpush.bf16.msra.mxu0 %v85
  %186 = vmatmul.bf16.gmra.mxu0 %v60
  %v187 = vpop.f32.mrf.mxu0
  %v188 = vadd.f32 %v29, %v187
  %v189 = vpop.f32.mrf.mxu0
  %190 = vdwg.mxu0
  %v199 = vrot.slane %v110, 6
  %v200 = vrot.slane %v123, 4
  %v201 = vrot.slane %v136, 2
  %v202 = vrot.slane %v162, 6
  %v203 = vrot.slane %v175, 4
  %v204 = vrot.slane %v188, 2
  %vm205 = vcmask 1041408
  %v206 = vsel %vm205, %v97, %v199
  %vm207 = vcmask 1045508
  %v208 = vsel %vm207, %v200, %v201
  %v209 = vsel %vm62, %v206, %v208
  %v210 = vsel %vm205, %v149, %v202
  %v211 = vsel %vm207, %v203, %v204
  %v212 = vsel %vm62, %v210, %v211
  %215 = vst [vmem:[%s3] sm:$0xff] %v209
  %216 = vst [vmem:[%s3 + $0x8] sm:$0xff] %v212
  // Predicated region
  $region14: #{adabiggan_forward.4} parent=0 // pred_check
    _
  $region15: #{adabiggan_forward.4} parent=0 // pred_check_branch
    %218 = sbr.rel (0) target = $region17
  $region16: #{adabiggan_forward.4} parent=0 // pred_region
    _
  $region17: #{adabiggan_forward.4} parent=0 // pred_fallthru
    _
  // Predicated region
  $region18: #{adabiggan_forward.4} parent=0 // pred_check
    _
  $region19: #{adabiggan_forward.4} parent=0 // pred_check_branch
    %220 = sbr.rel (0) target = $region21
  $region20: #{adabiggan_forward.4} parent=0 // pred_region
    _
  $region21: #{adabiggan_forward.4} parent=0 // pred_fallthru
    _

// kernel: adabiggan_forward.7
$region0: #{adabiggan_forward.7}
  #allocation0 [shape = 'u32[]', space=smem, size = 0x4, offset = 0x4, fixed_abs, tag = 'smem constant byte address 0x4 - core index']
  #allocation1 [shape = 'u32[72,128]{1,0:T(1,128)}', space=vmem, size = 0x9000, scoped, tag = 'internal scratch']
  #allocation2 [shape = 'bf16[16,686]{1,0:T(8,128)(2,1)}', space=vmem, size = 0x6000, scoped, tag = 'scratch operand']
  %s0 = inlined_call_operand.vmem [shape: bf16[16,648], index: 0, kind: input, shape index: {}]
  %s1 = inlined_call_operand.vmem [shape: f32[16,1], index: 1, kind: input, shape index: {}]
  %s2 = inlined_call_operand.vmem [shape: f32[16,1], index: 2, kind: input, shape index: {}]
  %s3 = inlined_call_operand.vmem [shape: bf16[3,3,48], index: 3, kind: input, shape index: {}]
  %s4 = inlined_call_operand.vmem [shape: f32[3,1], index: 4, kind: input, shape index: {}]
  %s5 = inlined_call_operand.vmem [shape: f32[1,648], index: 5, kind: input, shape index: {}]
  %s6 = inlined_call_operand.vmem [shape: f32[3,648], index: 6, kind: output, shape index: {}]
  %s7 = sld [smem:[#allocation0]]
  $region34: #{adabiggan_forward.7} parent=0
    _
  %s9 = ssub.s32 1, %s7
  %s10 = scalar_select 0, %s9, %s7
  // Predicated region
  $region2: #{adabiggan_forward.7} parent=0 // pred_check
    _
  $region3: #{adabiggan_forward.7} parent=0 // pred_check_branch
    %12 = sbr.rel (0) target = $region5
  $region4: #{adabiggan_forward.7} parent=0 // pred_region
    _
  $region5: #{adabiggan_forward.7} parent=0 // pred_fallthru
    _
  // Predicated region
  $region6: #{adabiggan_forward.7} parent=0 // pred_check
    _
  $region7: #{adabiggan_forward.7} parent=0 // pred_check_branch
    %14 = sbr.rel (0) target = $region9
  $region8: #{adabiggan_forward.7} parent=0 // pred_region
    _
  $region9: #{adabiggan_forward.7} parent=0 // pred_fallthru
    _
  // Predicated region
  $region10: #{adabiggan_forward.7} parent=0 // pred_check
    _
  $region11: #{adabiggan_forward.7} parent=0 // pred_check_branch
    %16 = sbr.rel (0) target = $region13
  $region12: #{adabiggan_forward.7} parent=0 // pred_region
    _
  $region13: #{adabiggan_forward.7} parent=0 // pred_fallthru
    _
  // Predicated region
  $region14: #{adabiggan_forward.7} parent=0 // pred_check
    _
  $region15: #{adabiggan_forward.7} parent=0 // pred_check_branch
    %18 = sbr.rel (0) target = $region17
  $region16: #{adabiggan_forward.7} parent=0 // pred_region
    _
  $region17: #{adabiggan_forward.7} parent=0 // pred_fallthru
    _
  // Predicated region
  $region18: #{adabiggan_forward.7} parent=0 // pred_check
    _
  $region19: #{adabiggan_forward.7} parent=0 // pred_check_branch
    %20 = sbr.rel (0) target = $region21
  $region20: #{adabiggan_forward.7} parent=0 // pred_region
    _
  $region21: #{adabiggan_forward.7} parent=0 // pred_fallthru
    _
  // Predicated region
  $region22: #{adabiggan_forward.7} parent=0 // pred_check
    _
  $region23: #{adabiggan_forward.7} parent=0 // pred_check_branch
    %22 = sbr.rel (0) target = $region25
  $region24: #{adabiggan_forward.7} parent=0 // pred_region
    _
  $region25: #{adabiggan_forward.7} parent=0 // pred_fallthru
    _
  %v24 = vld [vmem:[%s0] sm:$0xff]
  %v25 = vld [vmem:[%s0 + $0x8] sm:$0xff]
  %v26 = vld [vmem:[%s0 + $0x10] sm:$0xff]
  %v27 = vld [vmem:[%s0 + $0x18] sm:$0xff]
  %v28 = vld [vmem:[%s0 + $0x20] sm:$0xff]
  %v29 = vld [vmem:[%s0 + $0x28] sm:$0xff]
  %v30 = vunpack.c.l.bf16 %v24
  %v31 = vunpack.c.h.bf16 %v24
  %v32 = vunpack.c.l.bf16 %v25
  %v33 = vunpack.c.h.bf16 %v25
  %v34 = vunpack.c.l.bf16 %v26
  %v35 = vunpack.c.h.bf16 %v26
  %v36 = vunpack.c.l.bf16 %v27
  %v37 = vunpack.c.h.bf16 %v27
  %v38 = vunpack.c.l.bf16 %v28
  %v39 = vunpack.c.h.bf16 %v28
  %v40 = vunpack.c.l.bf16 %v29
  %v41 = vunpack.c.h.bf16 %v29
  %v42 = vadd.f32 %v30, %v31
  %v43 = vadd.f32 %v42, %v32
  %v44 = vadd.f32 %v43, %v33
  %v45 = vadd.f32 %v44, %v34
  %vm46 = vcmask 64512
  %v47 = vsel %vm46, %v35, 0.0
  %v48 = vadd.f32 %v45, %v47
  %49 = vadd.xlane.f32.xlu0 %v48
  %v50 = vpop.xlane.xlu0 %49
  %v51 = vadd.f32 %v36, %v37
  %v52 = vadd.f32 %v51, %v38
  %v53 = vadd.f32 %v52, %v39
  %v54 = vadd.f32 %v53, %v40
  %v55 = vsel %vm46, %v41, 0.0
  %v56 = vadd.f32 %v54, %v55
  %57 = vadd.xlane.f32.xlu0 %v56
  %v58 = vpop.xlane.xlu0 %57
  %v59 = vrcp.pop 512.0
  %v60 = vmul.f32 512.0, %v59
  %v61 = vsub.f32 1.0, %v60
  %v62 = vmul.f32 %v59, %v61
  %v63 = vadd.f32 %v59, %v62
  %vm64 = vweird.f32 %v59
  %v65 = vsel %vm64, %v59, %v63
  %v66 = vmul.f32 %v50, %v65
  %v67 = vmul.f32 %v58, %v65
  %v68 = vmul.f32 %v30, %v30
  %v69 = vmul.f32 %v31, %v31
  %v70 = vmul.f32 %v32, %v32
  %v71 = vmul.f32 %v33, %v33
  %v72 = vmul.f32 %v34, %v34
  %v73 = vmul.f32 %v35, %v35
  %v74 = vmul.f32 %v36, %v36
  %v75 = vmul.f32 %v37, %v37
  %v76 = vmul.f32 %v38, %v38
  %v77 = vmul.f32 %v39, %v39
  %v78 = vmul.f32 %v40, %v40
  %v79 = vmul.f32 %v41, %v41
  %v80 = vadd.f32 %v68, %v69
  %v81 = vadd.f32 %v80, %v70
  %v82 = vadd.f32 %v81, %v71
  %v83 = vadd.f32 %v82, %v72
  %v84 = vsel %vm46, %v73, 0.0
  %v85 = vadd.f32 %v83, %v84
  %86 = vadd.xlane.f32.xlu0 %v85
  %v87 = vpop.xlane.xlu0 %86
  %v88 = vadd.f32 %v74, %v75
  %v89 = vadd.f32 %v88, %v76
  %v90 = vadd.f32 %v89, %v77
  %v91 = vadd.f32 %v90, %v78
  %v92 = vsel %vm46, %v79, 0.0
  %v93 = vadd.f32 %v91, %v92
  %94 = vadd.xlane.f32.xlu0 %v93
  %v95 = vpop.xlane.xlu0 %94
  %v96 = vmul.f32 %v87, %v65
  %v97 = vmul.f32 %v95, %v65
  %v98 = vmul.f32 %v66, %v66
  %v99 = vmul.f32 %v67, %v67
  %v100 = vsub.f32 %v96, %v98
  %v101 = vsub.f32 %v97, %v99
  %v102 = vmax.f32 %v100, 0.0
  %v103 = vmax.f32 %v101, 0.0
  %v104 = vadd.f32 %v102, 1e-05
  %v105 = vadd.f32 %v103, 1e-05
  %v106 = vrsqrt.pop %v104
  %v107 = vmul.f32 %v106, %v104
  %v108 = vmul.f32 %v107, %v106
  %v109 = vmul.f32 0.5, %v108
  %v110 = vsub.f32 1.5, %v109
  %v111 = vmul.f32 %v106, %v110
  %vm112 = vweird.f32 %v104
  %vm113 = vweird.f32 %v106
  %vm114 = vmor %vm112, %vm113
  %v115 = vsel %vm114, %v106, %v111
  %v116 = vrsqrt.pop %v105
  %v117 = vmul.f32 %v116, %v105
  %v118 = vmul.f32 %v117, %v116
  %v119 = vmul.f32 0.5, %v118
  %v120 = vsub.f32 1.5, %v119
  %v121 = vmul.f32 %v116, %v120
  %vm122 = vweird.f32 %v105
  %vm123 = vweird.f32 %v116
  %vm124 = vmor %vm122, %vm123
  %v125 = vsel %vm124, %v116, %v121
  %v126 = vsub.f32 %v30, %v66
  %v127 = vsub.f32 %v31, %v66
  %v128 = vsub.f32 %v32, %v66
  %v129 = vsub.f32 %v33, %v66
  %v130 = vsub.f32 %v34, %v66
  %v131 = vsub.f32 %v35, %v66
  %v132 = vsub.f32 %v36, %v67
  %v133 = vsub.f32 %v37, %v67
  %v134 = vsub.f32 %v38, %v67
  %v135 = vsub.f32 %v39, %v67
  %v136 = vsub.f32 %v40, %v67
  %v137 = vsub.f32 %v41, %v67
  %v138 = vmul.f32 %v126, %v115
  %v139 = vmul.f32 %v127, %v115
  %v140 = vmul.f32 %v128, %v115
  %v141 = vmul.f32 %v129, %v115
  %v142 = vmul.f32 %v130, %v115
  %v143 = vmul.f32 %v131, %v115
  %v144 = vmul.f32 %v132, %v125
  %v145 = vmul.f32 %v133, %v125
  %v146 = vmul.f32 %v134, %v125
  %v147 = vmul.f32 %v135, %v125
  %v148 = vmul.f32 %v136, %v125
  %v149 = vmul.f32 %v137, %v125
  %v150 = vld [vmem:[%s1] sm:$0xff]
  %v151 = vld [vmem:[%s1 + $0x8] sm:$0xff]
  %153 = vset.pattern.permute.xlu0 0
  %154 = vperm.xlu0 %153, %v150
  %v155 = vpop.permute.xlu0 %154
  %158 = vset.pattern.permute.xlu0 0
  %159 = vperm.xlu0 %158, %v151
  %v160 = vpop.permute.xlu0 %159
  %v162 = vmul.f32 %v138, %v155
  %v163 = vmul.f32 %v139, %v155
  %v164 = vmul.f32 %v140, %v155
  %v165 = vmul.f32 %v141, %v155
  %v166 = vmul.f32 %v142, %v155
  %v167 = vmul.f32 %v143, %v155
  %v168 = vmul.f32 %v144, %v160
  %v169 = vmul.f32 %v145, %v160
  %v170 = vmul.f32 %v146, %v160
  %v171 = vmul.f32 %v147, %v160
  %v172 = vmul.f32 %v148, %v160
  %v173 = vmul.f32 %v149, %v160
  %v174 = vld [vmem:[%s2] sm:$0xff]
  %v175 = vld [vmem:[%s2 + $0x8] sm:$0xff]
  %177 = vset.pattern.permute.xlu0 0
  %178 = vperm.xlu0 %177, %v174
  %v179 = vpop.permute.xlu0 %178
  %182 = vset.pattern.permute.xlu0 0
  %183 = vperm.xlu0 %182, %v175
  %v184 = vpop.permute.xlu0 %183
  %v186 = vadd.f32 %v162, %v179
  %v187 = vadd.f32 %v163, %v179
  %v188 = vadd.f32 %v164, %v179
  %v189 = vadd.f32 %v165, %v179
  %v190 = vadd.f32 %v166, %v179
  %v191 = vadd.f32 %v167, %v179
  %v192 = vadd.f32 %v168, %v184
  %v193 = vadd.f32 %v169, %v184
  %v194 = vadd.f32 %v170, %v184
  %v195 = vadd.f32 %v171, %v184
  %v196 = vadd.f32 %v172, %v184
  %v197 = vadd.f32 %v173, %v184
  %v198 = vmax.f32 %v186, 0.0
  %v199 = vmax.f32 %v187, 0.0
  %v200 = vmax.f32 %v188, 0.0
  %v201 = vmax.f32 %v189, 0.0
  %v202 = vmax.f32 %v190, 0.0
  %v203 = vmax.f32 %v191, 0.0
  %v204 = vmax.f32 %v192, 0.0
  %v205 = vmax.f32 %v193, 0.0
  %v206 = vmax.f32 %v194, 0.0
  %v207 = vmax.f32 %v195, 0.0
  %v208 = vmax.f32 %v196, 0.0
  %v209 = vmax.f32 %v197, 0.0
  %v210 = vld [vmem:[%s5] sm:$0x3f]
  %v212 = vperm.slane %v210, 0
  %v213 = vperm.slane %v210, 1
  %v214 = vperm.slane %v210, 2
  %v215 = vperm.slane %v210, 3
  %v216 = vperm.slane %v210, 4
  %v217 = vperm.slane %v210, 5
  %v224 = vmul.f32 %v198, %v212
  %v225 = vmul.f32 %v199, %v213
  %v226 = vmul.f32 %v200, %v214
  %v227 = vmul.f32 %v201, %v215
  %v228 = vmul.f32 %v202, %v216
  %v229 = vmul.f32 %v203, %v217
  %v230 = vmul.f32 %v204, %v212
  %v231 = vmul.f32 %v205, %v213
  %v232 = vmul.f32 %v206, %v214
  %v233 = vmul.f32 %v207, %v215
  %v234 = vmul.f32 %v208, %v216
  %v235 = vmul.f32 %v209, %v217
  %vm236 = vcmask 150528
  %237 = vst.msk [vmem:[#allocation2] sm:$0xf] %vm236, 0
  %238 = vst.msk [vmem:[#allocation2 + $0x18] sm:$0xf] %vm236, 0
  %vm239 = vcmask 371928
  %240 = vst.msk [vmem:[#allocation2 + $0x14] sm:$0xf] %vm239, 0
  %241 = vst.msk [vmem:[#allocation2 + $0x2c] sm:$0xf] %vm239, 0
  %v242 = vpack.c.bf16 %v225, %v224
  %v243 = vpack.c.bf16 %v227, %v226
  %v244 = vpack.c.bf16 %v229, %v228
  %v245 = vpack.c.bf16 %v231, %v230
  %v246 = vpack.c.bf16 %v233, %v232
  %v247 = vpack.c.bf16 %v235, %v234
  %254 = vrot.lane.b32.xlu0 %v242, 19
  %v255 = vpop.permute.xlu0 %254
  %256 = vrot.lane.b32.xlu0 %v243, 19
  %v257 = vpop.permute.xlu0 %256
  %258 = vrot.lane.b32.xlu0 %v244, 19
  %v259 = vpop.permute.xlu0 %258
  %260 = vrot.lane.b32.xlu0 %v245, 19
  %v261 = vpop.permute.xlu0 %260
  %262 = vrot.lane.b32.xlu0 %v246, 19
  %v263 = vpop.permute.xlu0 %262
  %264 = vrot.lane.b32.xlu0 %v247, 19
  %v265 = vpop.permute.xlu0 %264
  %v266 = vrot.slane %v255, 4
  %v267 = vrot.slane %v257, 4
  %v268 = vrot.slane %v259, 4
  %v269 = vrot.slane %v261, 4
  %v270 = vrot.slane %v263, 4
  %v271 = vrot.slane %v265, 4
  %vm272 = vcmask 154624
  %v273 = vsel %vm272, %v266, %v255
  %vm274 = vcmask 1043456
  %v275 = vsel %vm274, %v266, %v267
  %v276 = vsel %vm272, %v275, %v257
  %v277 = vsel %vm274, %v267, %v268
  %v278 = vsel %vm272, %v277, %v259
  %v279 = vsel %vm272, %v269, %v261
  %v280 = vsel %vm274, %v269, %v270
  %v281 = vsel %vm272, %v280, %v263
  %v282 = vsel %vm274, %v270, %v271
  %v283 = vsel %vm272, %v282, %v265
  %vm290 = vcmask 1043608
  %vm291 = vcmask 1047556
  %vm292 = vmor %vm291, %vm290
  %293 = vst.msk [vmem:[#allocation2] sm:$0xff] %vm292, %v273
  %294 = vst [vmem:[#allocation2 + $0x8] sm:$0xff] %v276
  %vm295 = vcmask 1043456
  %vm296 = vcmask 220164
  %vm297 = vmor %vm296, %vm295
  %298 = vst.msk [vmem:[#allocation2 + $0x10] sm:$0xff] %vm297, %v278
  %299 = vst.msk [vmem:[#allocation2 + $0x18] sm:$0xff] %vm292, %v279
  %300 = vst [vmem:[#allocation2 + $0x20] sm:$0xff] %v281
  %301 = vst.msk [vmem:[#allocation2 + $0x28] sm:$0xff] %vm297, %v283
  %v302 = vld [vmem:[#allocation2] sm:$0xff]
  %v303 = vld [vmem:[#allocation2 + $0x8] sm:$0xff]
  %v304 = vld [vmem:[#allocation2 + $0x10] sm:$0xff]
  %v305 = vld [vmem:[#allocation2 + $0x18] sm:$0xff]
  %v306 = vld [vmem:[#allocation2 + $0x20] sm:$0xff]
  %v307 = vld [vmem:[#allocation2 + $0x28] sm:$0xff]
  %v314 = vunpack.c.l.b16 %v302
  %v315 = vunpack.c.h.b16 %v302
  %v316 = vunpack.c.l.b16 %v303
  %v317 = vunpack.c.h.b16 %v303
  %v318 = vunpack.c.l.b16 %v304
  %v319 = vunpack.c.h.b16 %v304
  %v320 = vunpack.c.l.b16 %v305
  %v321 = vunpack.c.h.b16 %v305
  %v322 = vunpack.c.l.b16 %v306
  %v323 = vunpack.c.h.b16 %v306
  %v324 = vunpack.c.l.b16 %v307
  %v325 = vunpack.c.h.b16 %v307
  %v326 = vpack.c.b16 %v320, %v314
  %v327 = vpack.c.b16 %v321, %v315
  %v328 = vpack.c.b16 %v322, %v316
  %v329 = vpack.c.b16 %v323, %v317
  %v330 = vpack.c.b16 %v324, %v318
  %v331 = vpack.c.b16 %v325, %v319
  %338 = vrot.lane.b32.xlu0 %v326, 127
  %v339 = vpop.permute.xlu0 %338
  %340 = vrot.lane.b32.xlu0 %v327, 127
  %v341 = vpop.permute.xlu0 %340
  %342 = vrot.lane.b32.xlu0 %v328, 127
  %v343 = vpop.permute.xlu0 %342
  %344 = vrot.lane.b32.xlu0 %v329, 127
  %v345 = vpop.permute.xlu0 %344
  %346 = vrot.lane.b32.xlu0 %v330, 127
  %v347 = vpop.permute.xlu0 %346
  %348 = vrot.lane.b32.xlu0 %v331, 127
  %v349 = vpop.permute.xlu0 %348
  %vm350 = vcmask 1039360
  %v351 = vsel %vm350, %v339, %v341
  %v352 = vsel %vm350, %v341, %v343
  %v353 = vsel %vm350, %v343, %v345
  %v354 = vsel %vm350, %v345, %v347
  %v355 = vsel %vm350, %v347, %v349
  %362 = vrot.lane.b32.xlu0 %v326, 126
  %v363 = vpop.permute.xlu0 %362
  %364 = vrot.lane.b32.xlu0 %v327, 126
  %v365 = vpop.permute.xlu0 %364
  %366 = vrot.lane.b32.xlu0 %v328, 126
  %v367 = vpop.permute.xlu0 %366
  %368 = vrot.lane.b32.xlu0 %v329, 126
  %v369 = vpop.permute.xlu0 %368
  %370 = vrot.lane.b32.xlu0 %v330, 126
  %v371 = vpop.permute.xlu0 %370
  %372 = vrot.lane.b32.xlu0 %v331, 126
  %v373 = vpop.permute.xlu0 %372
  %vm374 = vcmask 1031168
  %v375 = vsel %vm374, %v363, %v365
  %v376 = vsel %vm374, %v365, %v367
  %v377 = vsel %vm374, %v367, %v369
  %v378 = vsel %vm374, %v369, %v371
  %v379 = vsel %vm374, %v371, %v373
  %v386 = vld [vmem:[%s3] sm:$0x3]
  %s387 = scalar_lea.vmem %s3, 2
  %v388 = vld [vmem:[%s387] sm:$0x3]
  %389 = vrot.lane.b32.xlu0 %v326, 110
  %v390 = vpop.permute.xlu0 %389
  %391 = vrot.lane.b32.xlu0 %v327, 110
  %v392 = vpop.permute.xlu0 %391
  %393 = vrot.lane.b32.xlu0 %v328, 110
  %v394 = vpop.permute.xlu0 %393
  %395 = vrot.lane.b32.xlu0 %v329, 110
  %v396 = vpop.permute.xlu0 %395
  %397 = vrot.lane.b32.xlu0 %v330, 110
  %v398 = vpop.permute.xlu0 %397
  %399 = vrot.lane.b32.xlu0 %v331, 110
  %v400 = vpop.permute.xlu0 %399
  %401 = vrot.lane.b32.xlu0 %v351, 110
  %v402 = vpop.permute.xlu0 %401
  %403 = vrot.lane.b32.xlu0 %v352, 110
  %v404 = vpop.permute.xlu0 %403
  %405 = vrot.lane.b32.xlu0 %v353, 110
  %v406 = vpop.permute.xlu0 %405
  %407 = vrot.lane.b32.xlu0 %v354, 110
  %v408 = vpop.permute.xlu0 %407
  %409 = vrot.lane.b32.xlu0 %v355, 110
  %v410 = vpop.permute.xlu0 %409
  %411 = vrot.lane.b32.xlu0 %v349, 110
  %v412 = vpop.permute.xlu0 %411
  %413 = vrot.lane.b32.xlu0 %v375, 110
  %v414 = vpop.permute.xlu0 %413
  %415 = vrot.lane.b32.xlu0 %v376, 110
  %v416 = vpop.permute.xlu0 %415
  %417 = vrot.lane.b32.xlu0 %v377, 110
  %v418 = vpop.permute.xlu0 %417
  %419 = vrot.lane.b32.xlu0 %v378, 110
  %v420 = vpop.permute.xlu0 %419
  %421 = vrot.lane.b32.xlu0 %v379, 110
  %v422 = vpop.permute.xlu0 %421
  %423 = vrot.lane.b32.xlu0 %v373, 110
  %v424 = vpop.permute.xlu0 %423
  %vm425 = vcmask 900096
  %v426 = vsel %vm425, %v390, %v392
  %v427 = vsel %vm425, %v392, %v394
  %v428 = vsel %vm425, %v394, %v396
  %v429 = vsel %vm425, %v396, %v398
  %v430 = vsel %vm425, %v398, %v400
  %v431 = vsel %vm425, %v402, %v404
  %v432 = vsel %vm425, %v404, %v406
  %v433 = vsel %vm425, %v406, %v408
  %v434 = vsel %vm425, %v408, %v410
  %v435 = vsel %vm425, %v410, %v412
  %v436 = vsel %vm425, %v414, %v416
  %v437 = vsel %vm425, %v416, %v418
  %v438 = vsel %vm425, %v418, %v420
  %v439 = vsel %vm425, %v420, %v422
  %v440 = vsel %vm425, %v422, %v424
  %vm459 = vcmask 392192
  %v461 = vsel %vm459, %v388, 0
  %463 = vmatpush.bf16.msra.mxu0 0
  %464 = vmatpush.bf16.msra.mxu0 0
  %465 = vmatpush.bf16.msra.mxu0 0
  %466 = vmatpush.bf16.msra.mxu0 0
  %467 = vmatpush.bf16.msra.mxu0 0
  %468 = vmatpush.bf16.msra.mxu0 %v436
  %469 = vmatpush.bf16.msra.mxu0 %v431
  %470 = vmatpush.bf16.msra.mxu0 %v426
  %471 = vmatmul.bf16.gmra.mxu0 %v461
  %v472 = vpop.f32.mrf.mxu0
  %v473 = vadd.f32 0.0, %v472
  %v474 = vpop.f32.mrf.mxu0
  %475 = vdwg.mxu0
  %476 = vmatpush.bf16.msra.mxu0 0
  %477 = vmatpush.bf16.msra.mxu0 0
  %478 = vmatpush.bf16.msra.mxu0 0
  %479 = vmatpush.bf16.msra.mxu0 0
  %480 = vmatpush.bf16.msra.mxu0 0
  %481 = vmatpush.bf16.msra.mxu0 %v437
  %482 = vmatpush.bf16.msra.mxu0 %v432
  %483 = vmatpush.bf16.msra.mxu0 %v427
  %484 = vmatmul.bf16.gmra.mxu0 %v461
  %v485 = vpop.f32.mrf.mxu0
  %v486 = vadd.f32 0.0, %v485
  %v487 = vpop.f32.mrf.mxu0
  %488 = vdwg.mxu0
  %489 = vmatpush.bf16.msra.mxu0 0
  %490 = vmatpush.bf16.msra.mxu0 0
  %491 = vmatpush.bf16.msra.mxu0 0
  %492 = vmatpush.bf16.msra.mxu0 0
  %493 = vmatpush.bf16.msra.mxu0 0
  %494 = vmatpush.bf16.msra.mxu0 %v438
  %495 = vmatpush.bf16.msra.mxu0 %v433
  %496 = vmatpush.bf16.msra.mxu0 %v428
  %497 = vmatmul.bf16.gmra.mxu0 %v461
  %v498 = vpop.f32.mrf.mxu0
  %v499 = vadd.f32 0.0, %v498
  %v500 = vpop.f32.mrf.mxu0
  %501 = vdwg.mxu0
  %502 = vmatpush.bf16.msra.mxu0 0
  %503 = vmatpush.bf16.msra.mxu0 0
  %504 = vmatpush.bf16.msra.mxu0 0
  %505 = vmatpush.bf16.msra.mxu0 0
  %506 = vmatpush.bf16.msra.mxu0 0
  %507 = vmatpush.bf16.msra.mxu0 %v439
  %508 = vmatpush.bf16.msra.mxu0 %v434
  %509 = vmatpush.bf16.msra.mxu0 %v429
  %510 = vmatmul.bf16.gmra.mxu0 %v461
  %v511 = vpop.f32.mrf.mxu0
  %v512 = vadd.f32 0.0, %v511
  %v513 = vpop.f32.mrf.mxu0
  %514 = vdwg.mxu0
  %515 = vmatpush.bf16.msra.mxu0 0
  %516 = vmatpush.bf16.msra.mxu0 0
  %517 = vmatpush.bf16.msra.mxu0 0
  %518 = vmatpush.bf16.msra.mxu0 0
  %519 = vmatpush.bf16.msra.mxu0 0
  %520 = vmatpush.bf16.msra.mxu0 %v440
  %521 = vmatpush.bf16.msra.mxu0 %v435
  %522 = vmatpush.bf16.msra.mxu0 %v430
  %523 = vmatmul.bf16.gmra.mxu0 %v461
  %v524 = vpop.f32.mrf.mxu0
  %v525 = vadd.f32 0.0, %v524
  %v526 = vpop.f32.mrf.mxu0
  %527 = vdwg.mxu0
  %528 = vmatpush.bf16.msra.mxu0 0
  %529 = vmatpush.bf16.msra.mxu0 0
  %530 = vmatpush.bf16.msra.mxu0 0
  %531 = vmatpush.bf16.msra.mxu0 0
  %532 = vmatpush.bf16.msra.mxu0 0
  %533 = vmatpush.bf16.msra.mxu0 %v424
  %534 = vmatpush.bf16.msra.mxu0 %v412
  %535 = vmatpush.bf16.msra.mxu0 %v400
  %536 = vmatmul.bf16.gmra.mxu0 %v461
  %v537 = vpop.f32.mrf.mxu0
  %v538 = vadd.f32 0.0, %v537
  %v539 = vpop.f32.mrf.mxu0
  %540 = vdwg.mxu0
  %v542 = vsel %vm459, %v386, 0
  %544 = vmatpush.bf16.msra.mxu0 0
  %545 = vmatpush.bf16.msra.mxu0 0
  %546 = vmatpush.bf16.msra.mxu0 0
  %547 = vmatpush.bf16.msra.mxu0 0
  %548 = vmatpush.bf16.msra.mxu0 0
  %549 = vmatpush.bf16.msra.mxu0 %v375
  %550 = vmatpush.bf16.msra.mxu0 %v351
  %551 = vmatpush.bf16.msra.mxu0 %v326
  %552 = vmatmul.bf16.gmra.mxu0 %v542
  %v553 = vpop.f32.mrf.mxu0
  %v554 = vadd.f32 %v473, %v553
  %v555 = vpop.f32.mrf.mxu0
  %556 = vdwg.mxu0
  %557 = vmatpush.bf16.msra.mxu0 0
  %558 = vmatpush.bf16.msra.mxu0 0
  %559 = vmatpush.bf16.msra.mxu0 0
  %560 = vmatpush.bf16.msra.mxu0 0
  %561 = vmatpush.bf16.msra.mxu0 0
  %562 = vmatpush.bf16.msra.mxu0 %v376
  %563 = vmatpush.bf16.msra.mxu0 %v352
  %564 = vmatpush.bf16.msra.mxu0 %v327
  %565 = vmatmul.bf16.gmra.mxu0 %v542
  %v566 = vpop.f32.mrf.mxu0
  %v567 = vadd.f32 %v486, %v566
  %v568 = vpop.f32.mrf.mxu0
  %569 = vdwg.mxu0
  %570 = vmatpush.bf16.msra.mxu0 0
  %571 = vmatpush.bf16.msra.mxu0 0
  %572 = vmatpush.bf16.msra.mxu0 0
  %573 = vmatpush.bf16.msra.mxu0 0
  %574 = vmatpush.bf16.msra.mxu0 0
  %575 = vmatpush.bf16.msra.mxu0 %v377
  %576 = vmatpush.bf16.msra.mxu0 %v353
  %577 = vmatpush.bf16.msra.mxu0 %v328
  %578 = vmatmul.bf16.gmra.mxu0 %v542
  %v579 = vpop.f32.mrf.mxu0
  %v580 = vadd.f32 %v499, %v579
  %v581 = vpop.f32.mrf.mxu0
  %582 = vdwg.mxu0
  %583 = vmatpush.bf16.msra.mxu0 0
  %584 = vmatpush.bf16.msra.mxu0 0
  %585 = vmatpush.bf16.msra.mxu0 0
  %586 = vmatpush.bf16.msra.mxu0 0
  %587 = vmatpush.bf16.msra.mxu0 0
  %588 = vmatpush.bf16.msra.mxu0 %v378
  %589 = vmatpush.bf16.msra.mxu0 %v354
  %590 = vmatpush.bf16.msra.mxu0 %v329
  %591 = vmatmul.bf16.gmra.mxu0 %v542
  %v592 = vpop.f32.mrf.mxu0
  %v593 = vadd.f32 %v512, %v592
  %v594 = vpop.f32.mrf.mxu0
  %595 = vdwg.mxu0
  %596 = vmatpush.bf16.msra.mxu0 0
  %597 = vmatpush.bf16.msra.mxu0 0
  %598 = vmatpush.bf16.msra.mxu0 0
  %599 = vmatpush.bf16.msra.mxu0 0
  %600 = vmatpush.bf16.msra.mxu0 0
  %601 = vmatpush.bf16.msra.mxu0 %v379
  %602 = vmatpush.bf16.msra.mxu0 %v355
  %603 = vmatpush.bf16.msra.mxu0 %v330
  %604 = vmatmul.bf16.gmra.mxu0 %v542
  %v605 = vpop.f32.mrf.mxu0
  %v606 = vadd.f32 %v525, %v605
  %v607 = vpop.f32.mrf.mxu0
  %608 = vdwg.mxu0
  %609 = vmatpush.bf16.msra.mxu0 0
  %610 = vmatpush.bf16.msra.mxu0 0
  %611 = vmatpush.bf16.msra.mxu0 0
  %612 = vmatpush.bf16.msra.mxu0 0
  %613 = vmatpush.bf16.msra.mxu0 0
  %614 = vmatpush.bf16.msra.mxu0 %v373
  %615 = vmatpush.bf16.msra.mxu0 %v349
  %616 = vmatpush.bf16.msra.mxu0 %v331
  %617 = vmatmul.bf16.gmra.mxu0 %v542
  %v618 = vpop.f32.mrf.mxu0
  %v619 = vadd.f32 %v538, %v618
  %v620 = vpop.f32.mrf.mxu0
  %621 = vdwg.mxu0
  %s622 = scalar_lea.vmem %s3, 4
  %v623 = vld [vmem:[%s622] sm:$0x3]
  %624 = vrot.lane.b32.xlu0 %v326, 92
  %v625 = vpop.permute.xlu0 %624
  %626 = vrot.lane.b32.xlu0 %v327, 92
  %v627 = vpop.permute.xlu0 %626
  %628 = vrot.lane.b32.xlu0 %v328, 92
  %v629 = vpop.permute.xlu0 %628
  %630 = vrot.lane.b32.xlu0 %v329, 92
  %v631 = vpop.permute.xlu0 %630
  %632 = vrot.lane.b32.xlu0 %v330, 92
  %v633 = vpop.permute.xlu0 %632
  %634 = vrot.lane.b32.xlu0 %v331, 92
  %v635 = vpop.permute.xlu0 %634
  %636 = vrot.lane.b32.xlu0 %v351, 92
  %v637 = vpop.permute.xlu0 %636
  %638 = vrot.lane.b32.xlu0 %v352, 92
  %v639 = vpop.permute.xlu0 %638
  %640 = vrot.lane.b32.xlu0 %v353, 92
  %v641 = vpop.permute.xlu0 %640
  %642 = vrot.lane.b32.xlu0 %v354, 92
  %v643 = vpop.permute.xlu0 %642
  %644 = vrot.lane.b32.xlu0 %v355, 92
  %v645 = vpop.permute.xlu0 %644
  %646 = vrot.lane.b32.xlu0 %v349, 92
  %v647 = vpop.permute.xlu0 %646
  %648 = vrot.lane.b32.xlu0 %v375, 92
  %v649 = vpop.permute.xlu0 %648
  %650 = vrot.lane.b32.xlu0 %v376, 92
  %v651 = vpop.permute.xlu0 %650
  %652 = vrot.lane.b32.xlu0 %v377, 92
  %v653 = vpop.permute.xlu0 %652
  %654 = vrot.lane.b32.xlu0 %v378, 92
  %v655 = vpop.permute.xlu0 %654
  %656 = vrot.lane.b32.xlu0 %v379, 92
  %v657 = vpop.permute.xlu0 %656
  %658 = vrot.lane.b32.xlu0 %v373, 92
  %v659 = vpop.permute.xlu0 %658
  %vm660 = vcmask 752640
  %v661 = vsel %vm660, %v625, %v627
  %v662 = vsel %vm660, %v627, %v629
  %v663 = vsel %vm660, %v629, %v631
  %v664 = vsel %vm660, %v631, %v633
  %v665 = vsel %vm660, %v633, %v635
  %v666 = vsel %vm660, %v637, %v639
  %v667 = vsel %vm660, %v639, %v641
  %v668 = vsel %vm660, %v641, %v643
  %v669 = vsel %vm660, %v643, %v645
  %v670 = vsel %vm660, %v645, %v647
  %v671 = vsel %vm660, %v649, %v651
  %v672 = vsel %vm660, %v651, %v653
  %v673 = vsel %vm660, %v653, %v655
  %v674 = vsel %vm660, %v655, %v657
  %v675 = vsel %vm660, %v657, %v659
  %v695 = vsel %vm459, %v623, 0
  %697 = vmatpush.bf16.msra.mxu0 0
  %698 = vmatpush.bf16.msra.mxu0 0
  %699 = vmatpush.bf16.msra.mxu0 0
  %700 = vmatpush.bf16.msra.mxu0 0
  %701 = vmatpush.bf16.msra.mxu0 0
  %702 = vmatpush.bf16.msra.mxu0 %v671
  %703 = vmatpush.bf16.msra.mxu0 %v666
  %704 = vmatpush.bf16.msra.mxu0 %v661
  %705 = vmatmul.bf16.gmra.mxu0 %v695
  %v706 = vpop.f32.mrf.mxu0
  %v707 = vadd.f32 0.0, %v706
  %v708 = vpop.f32.mrf.mxu0
  %709 = vdwg.mxu0
  %710 = vmatpush.bf16.msra.mxu0 0
  %711 = vmatpush.bf16.msra.mxu0 0
  %712 = vmatpush.bf16.msra.mxu0 0
  %713 = vmatpush.bf16.msra.mxu0 0
  %714 = vmatpush.bf16.msra.mxu0 0
  %715 = vmatpush.bf16.msra.mxu0 %v672
  %716 = vmatpush.bf16.msra.mxu0 %v667
  %717 = vmatpush.bf16.msra.mxu0 %v662
  %718 = vmatmul.bf16.gmra.mxu0 %v695
  %v719 = vpop.f32.mrf.mxu0
  %v720 = vadd.f32 0.0, %v719
  %v721 = vpop.f32.mrf.mxu0
  %722 = vdwg.mxu0
  %723 = vmatpush.bf16.msra.mxu0 0
  %724 = vmatpush.bf16.msra.mxu0 0
  %725 = vmatpush.bf16.msra.mxu0 0
  %726 = vmatpush.bf16.msra.mxu0 0
  %727 = vmatpush.bf16.msra.mxu0 0
  %728 = vmatpush.bf16.msra.mxu0 %v673
  %729 = vmatpush.bf16.msra.mxu0 %v668
  %730 = vmatpush.bf16.msra.mxu0 %v663
  %731 = vmatmul.bf16.gmra.mxu0 %v695
  %v732 = vpop.f32.mrf.mxu0
  %v733 = vadd.f32 0.0, %v732
  %v734 = vpop.f32.mrf.mxu0
  %735 = vdwg.mxu0
  %736 = vmatpush.bf16.msra.mxu0 0
  %737 = vmatpush.bf16.msra.mxu0 0
  %738 = vmatpush.bf16.msra.mxu0 0
  %739 = vmatpush.bf16.msra.mxu0 0
  %740 = vmatpush.bf16.msra.mxu0 0
  %741 = vmatpush.bf16.msra.mxu0 %v674
  %742 = vmatpush.bf16.msra.mxu0 %v669
  %743 = vmatpush.bf16.msra.mxu0 %v664
  %744 = vmatmul.bf16.gmra.mxu0 %v695
  %v745 = vpop.f32.mrf.mxu0
  %v746 = vadd.f32 0.0, %v745
  %v747 = vpop.f32.mrf.mxu0
  %748 = vdwg.mxu0
  %749 = vmatpush.bf16.msra.mxu0 0
  %750 = vmatpush.bf16.msra.mxu0 0
  %751 = vmatpush.bf16.msra.mxu0 0
  %752 = vmatpush.bf16.msra.mxu0 0
  %753 = vmatpush.bf16.msra.mxu0 0
  %754 = vmatpush.bf16.msra.mxu0 %v675
  %755 = vmatpush.bf16.msra.mxu0 %v670
  %756 = vmatpush.bf16.msra.mxu0 %v665
  %757 = vmatmul.bf16.gmra.mxu0 %v695
  %v758 = vpop.f32.mrf.mxu0
  %v759 = vadd.f32 0.0, %v758
  %v760 = vpop.f32.mrf.mxu0
  %761 = vdwg.mxu0
  %762 = vmatpush.bf16.msra.mxu0 0
  %763 = vmatpush.bf16.msra.mxu0 0
  %764 = vmatpush.bf16.msra.mxu0 0
  %765 = vmatpush.bf16.msra.mxu0 0
  %766 = vmatpush.bf16.msra.mxu0 0
  %767 = vmatpush.bf16.msra.mxu0 %v659
  %768 = vmatpush.bf16.msra.mxu0 %v647
  %769 = vmatpush.bf16.msra.mxu0 %v635
  %770 = vmatmul.bf16.gmra.mxu0 %v695
  %v771 = vpop.f32.mrf.mxu0
  %v772 = vadd.f32 0.0, %v771
  %v773 = vpop.f32.mrf.mxu0
  %774 = vdwg.mxu0
  %v775 = vadd.f32 %v554, %v707
  %v776 = vadd.f32 %v567, %v720
  %v777 = vadd.f32 %v580, %v733
  %v778 = vadd.f32 %v593, %v746
  %v779 = vadd.f32 %v606, %v759
  %v780 = vadd.f32 %v619, %v772
  %v781 = vld [vmem:[%s4] sm:$0x7]
  %783 = vset.pattern.permute.xlu0 0
  %784 = vperm.xlu0 %783, %v781
  %v785 = vpop.permute.xlu0 %784
  %v787 = vadd.f32 %v775, %v785
  %v788 = vadd.f32 %v776, %v785
  %v789 = vadd.f32 %v777, %v785
  %v790 = vadd.f32 %v778, %v785
  %v791 = vadd.f32 %v779, %v785
  %v792 = vadd.f32 %v780, %v785
  %v793 = vtanh.pop %v787
  %v794 = vtanh.pop %v788
  %v795 = vtanh.pop %v789
  %v796 = vtanh.pop %v790
  %v797 = vtanh.pop %v791
  %v798 = vtanh.pop %v792
  %v805 = vrot.slane %v794, 4
  %v806 = vrot.slane %v796, 4
  %v807 = vrot.slane %v798, 4
  %v808 = vsel %vm295, %v793, %v805
  %v809 = vsel %vm295, %v795, %v806
  %v810 = vsel %vm295, %v797, %v807
  %814 = vst [vmem:[%s6] sm:$0x77] %v808
  %815 = vst [vmem:[%s6 + $0x8] sm:$0x77] %v809
  %vm816 = vcmask 1042432
  %vm817 = vcmask 63492
  %vm818 = vmor %vm817, %vm816
  %819 = vst.msk [vmem:[%s6 + $0x10] sm:$0x77] %vm818, %v810
  // Predicated region
  $region26: #{adabiggan_forward.7} parent=0 // pred_check
    _
  $region27: #{adabiggan_forward.7} parent=0 // pred_check_branch
    %821 = sbr.rel (0) target = $region29
  $region28: #{adabiggan_forward.7} parent=0 // pred_region
    _
  $region29: #{adabiggan_forward.7} parent=0 // pred_fallthru
    _
  // Predicated region
  $region30: #{adabiggan_forward.7} parent=0 // pred_check
    _
  $region31: #{adabiggan_forward.7} parent=0 // pred_check_branch
    %823 = sbr.rel (0) target = $region33
  $region32: #{adabiggan_forward.7} parent=0 // pred_region
    _
  $region33: #{adabiggan_forward.7} parent=0 // pred_fallthru
    _

// kernel: adabiggan_forward.6
$region0: #{adabiggan_forward.6}
  #allocation0 [shape = 'u32[]', space=smem, size = 0x4, offset = 0x4, fixed_abs, tag = 'smem constant byte address 0x4 - core index']
  #allocation1 [shape = 'u32[72,128]{1,0:T(1,128)}', space=vmem, size = 0x9000, scoped, tag = 'internal scratch']
  #allocation2 [shape = 'bf16[48,686]{1,0:T(8,128)(2,1)}', space=vmem, size = 0x12000, scoped, tag = 'scratch operand']
  #allocation3 [shape = 'bf16[16,686]{1,0:T(8,128)(2,1)}', space=vmem, size = 0x6000, scoped, tag = 'scratch operand']
  %s0 = inlined_call_operand.vmem [shape: bf16[32,200], index: 0, kind: input, shape index: {}]
  %s1 = inlined_call_operand.vmem [shape: f32[24,2], index: 1, kind: input, shape index: {}]
  %s2 = inlined_call_operand.vmem [shape: f32[192,24], index: 2, kind: input, shape index: {}]
  %s3 = inlined_call_operand.vmem [shape: f32[192,1], index: 3, kind: input, shape index: {}]
  %s4 = inlined_call_operand.vmem [shape: bf16[3,16,96], index: 4, kind: input, shape index: {}]
  %s5 = inlined_call_operand.vmem [shape: bf16[3,16,48], index: 5, kind: input, shape index: {}]
  %s6 = inlined_call_operand.vmem [shape: bf16[16,32], index: 6, kind: input, shape index: {}]
  %s7 = inlined_call_operand.vmem [shape: f32[16,3], index: 7, kind: input, shape index: {}]
  %s8 = inlined_call_operand.vmem [shape: f32[8,18], index: 8, kind: input, shape index: {}]
  %s9 = inlined_call_operand.vmem [shape: f32[2,200], index: 9, kind: input, shape index: {}]
  %s10 = inlined_call_operand.vmem [shape: f32[2,648], index: 10, kind: input, shape index: {}]
  %s11 = inlined_call_operand.vmem [shape: f32[1,648], index: 11, kind: input, shape index: {}]
  %s12 = inlined_call_operand.vmem [shape: bf16[16,648], index: 12, kind: output, shape index: {}]
  %s13 = sld [smem:[#allocation0]]
  $region58: #{adabiggan_forward.6} parent=0
    _
  %s15 = ssub.s32 1, %s13
  %s16 = scalar_select 0, %s15, %s13
  // Predicated region
  $region2: #{adabiggan_forward.6} parent=0 // pred_check
    _
  $region3: #{adabiggan_forward.6} parent=0 // pred_check_branch
    %18 = sbr.rel (0) target = $region5
  $region4: #{adabiggan_forward.6} parent=0 // pred_region
    _
  $region5: #{adabiggan_forward.6} parent=0 // pred_fallthru
    _
  // Predicated region
  $region6: #{adabiggan_forward.6} parent=0 // pred_check
    _
  $region7: #{adabiggan_forward.6} parent=0 // pred_check_branch
    %20 = sbr.rel (0) target = $region9
  $region8: #{adabiggan_forward.6} parent=0 // pred_region
    _
  $region9: #{adabiggan_forward.6} parent=0 // pred_fallthru
    _
  // Predicated region
  $region10: #{adabiggan_forward.6} parent=0 // pred_check
    _
  $region11: #{adabiggan_forward.6} parent=0 // pred_check_branch
    %22 = sbr.rel (0) target = $region13
  $region12: #{adabiggan_forward.6} parent=0 // pred_region
    _
  $region13: #{adabiggan_forward.6} parent=0 // pred_fallthru
    _
  // Predicated region
  $region14: #{adabiggan_forward.6} parent=0 // pred_check
    _
  $region15: #{adabiggan_forward.6} parent=0 // pred_check_branch
    %24 = sbr.rel (0) target = $region17
  $region16: #{adabiggan_forward.6} parent=0 // pred_region
    _
  $region17: #{adabiggan_forward.6} parent=0 // pred_fallthru
    _
  // Predicated region
  $region18: #{adabiggan_forward.6} parent=0 // pred_check
    _
  $region19: #{adabiggan_forward.6} parent=0 // pred_check_branch
    %26 = sbr.rel (0) target = $region21
  $region20: #{adabiggan_forward.6} parent=0 // pred_region
    _
  $region21: #{adabiggan_forward.6} parent=0 // pred_fallthru
    _
  // Predicated region
  $region22: #{adabiggan_forward.6} parent=0 // pred_check
    _
  $region23: #{adabiggan_forward.6} parent=0 // pred_check_branch
    %28 = sbr.rel (0) target = $region25
  $region24: #{adabiggan_forward.6} parent=0 // pred_region
    _
  $region25: #{adabiggan_forward.6} parent=0 // pred_fallthru
    _
  // Predicated region
  $region26: #{adabiggan_forward.6} parent=0 // pred_check
    _
  $region27: #{adabiggan_forward.6} parent=0 // pred_check_branch
    %30 = sbr.rel (0) target = $region29
  $region28: #{adabiggan_forward.6} parent=0 // pred_region
    _
  $region29: #{adabiggan_forward.6} parent=0 // pred_fallthru
    _
  // Predicated region
  $region30: #{adabiggan_forward.6} parent=0 // pred_check
    _
  $region31: #{adabiggan_forward.6} parent=0 // pred_check_branch
    %32 = sbr.rel (0) target = $region33
  $region32: #{adabiggan_forward.6} parent=0 // pred_region
    _
  $region33: #{adabiggan_forward.6} parent=0 // pred_fallthru
    _
  // Predicated region
  $region34: #{adabiggan_forward.6} parent=0 // pred_check
    _
  $region35: #{adabiggan_forward.6} parent=0 // pred_check_branch
    %34 = sbr.rel (0) target = $region37
  $region36: #{adabiggan_forward.6} parent=0 // pred_region
    _
  $region37: #{adabiggan_forward.6} parent=0 // pred_fallthru
    _
  // Predicated region
  $region38: #{adabiggan_forward.6} parent=0 // pred_check
    _
  $region39: #{adabiggan_forward.6} parent=0 // pred_check_branch
    %36 = sbr.rel (0) target = $region41
  $region40: #{adabiggan_forward.6} parent=0 // pred_region
    _
  $region41: #{adabiggan_forward.6} parent=0 // pred_fallthru
    _
  // Predicated region
  $region42: #{adabiggan_forward.6} parent=0 // pred_check
    _
  $region43: #{adabiggan_forward.6} parent=0 // pred_check_branch
    %38 = sbr.rel (0) target = $region45
  $region44: #{adabiggan_forward.6} parent=0 // pred_region
    _
  $region45: #{adabiggan_forward.6} parent=0 // pred_fallthru
    _
  // Predicated region
  $region46: #{adabiggan_forward.6} parent=0 // pred_check
    _
  $region47: #{adabiggan_forward.6} parent=0 // pred_check_branch
    %40 = sbr.rel (0) target = $region49
  $region48: #{adabiggan_forward.6} parent=0 // pred_region
    _
  $region49: #{adabiggan_forward.6} parent=0 // pred_fallthru
    _
  %v42 = vld [vmem:[%s2] sm:$0xff]
  %v43 = vld [vmem:[%s2 + $0x8] sm:$0xff]
  %v44 = vld [vmem:[%s2 + $0x10] sm:$0xff]
  %v45 = vld [vmem:[%s2 + $0x18] sm:$0xff]
  %v46 = vld [vmem:[%s2 + $0x20] sm:$0xff]
  %v47 = vld [vmem:[%s2 + $0x28] sm:$0xff]
  %v48 = vld [vmem:[%s2 + $0x30] sm:$0xff]
  %v49 = vld [vmem:[%s2 + $0x38] sm:$0xff]
  %v50 = vld [vmem:[%s2 + $0x40] sm:$0xff]
  %v51 = vld [vmem:[%s2 + $0x48] sm:$0xff]
  %v52 = vld [vmem:[%s2 + $0x50] sm:$0xff]
  %v53 = vld [vmem:[%s2 + $0x58] sm:$0xff]
  %v54 = vld [vmem:[%s2 + $0x60] sm:$0xff]
  %v55 = vld [vmem:[%s2 + $0x68] sm:$0xff]
  %v56 = vld [vmem:[%s2 + $0x70] sm:$0xff]
  %v57 = vld [vmem:[%s2 + $0x78] sm:$0xff]
  %v58 = vld [vmem:[%s2 + $0x80] sm:$0xff]
  %v59 = vld [vmem:[%s2 + $0x88] sm:$0xff]
  %v60 = vld [vmem:[%s2 + $0x90] sm:$0xff]
  %v61 = vld [vmem:[%s2 + $0x98] sm:$0xff]
  %v62 = vld [vmem:[%s2 + $0xa0] sm:$0xff]
  %v63 = vld [vmem:[%s2 + $0xa8] sm:$0xff]
  %v64 = vld [vmem:[%s2 + $0xb0] sm:$0xff]
  %v65 = vld [vmem:[%s2 + $0xb8] sm:$0xff]
  %v66 = vld [vmem:[%s1] sm:$0xff]
  %v67 = vld [vmem:[%s1 + $0x8] sm:$0xff]
  %v68 = vld [vmem:[%s1 + $0x10] sm:$0xff]
  %v69 = vld [vmem:[%s3] sm:$0xff]
  %v70 = vld [vmem:[%s3 + $0x8] sm:$0xff]
  %v71 = vld [vmem:[%s3 + $0x10] sm:$0xff]
  %v72 = vld [vmem:[%s3 + $0x18] sm:$0xff]
  %v73 = vld [vmem:[%s3 + $0x20] sm:$0xff]
  %v74 = vld [vmem:[%s3 + $0x28] sm:$0xff]
  %v75 = vld [vmem:[%s3 + $0x30] sm:$0xff]
  %v76 = vld [vmem:[%s3 + $0x38] sm:$0xff]
  %v77 = vld [vmem:[%s3 + $0x40] sm:$0xff]
  %v78 = vld [vmem:[%s3 + $0x48] sm:$0xff]
  %v79 = vld [vmem:[%s3 + $0x50] sm:$0xff]
  %v80 = vld [vmem:[%s3 + $0x58] sm:$0xff]
  %v81 = vld [vmem:[%s3 + $0x60] sm:$0xff]
  %v82 = vld [vmem:[%s3 + $0x68] sm:$0xff]
  %v83 = vld [vmem:[%s3 + $0x70] sm:$0xff]
  %v84 = vld [vmem:[%s3 + $0x78] sm:$0xff]
  %v85 = vld [vmem:[%s3 + $0x80] sm:$0xff]
  %v86 = vld [vmem:[%s3 + $0x88] sm:$0xff]
  %v87 = vld [vmem:[%s3 + $0x90] sm:$0xff]
  %v88 = vld [vmem:[%s3 + $0x98] sm:$0xff]
  %v89 = vld [vmem:[%s3 + $0xa0] sm:$0xff]
  %v90 = vld [vmem:[%s3 + $0xa8] sm:$0xff]
  %v91 = vld [vmem:[%s3 + $0xb0] sm:$0xff]
  %v92 = vld [vmem:[%s3 + $0xb8] sm:$0xff]
  %94 = vset.pattern.permute.xlu0 0
  %95 = vperm.xlu0 %94, %v69
  %v96 = vpop.permute.xlu0 %95
  %99 = vset.pattern.permute.xlu0 0
  %100 = vperm.xlu0 %99, %v70
  %v101 = vpop.permute.xlu0 %100
  %104 = vset.pattern.permute.xlu0 0
  %105 = vperm.xlu0 %104, %v71
  %v106 = vpop.permute.xlu0 %105
  %109 = vset.pattern.permute.xlu0 0
  %110 = vperm.xlu0 %109, %v72
  %v111 = vpop.permute.xlu0 %110
  %114 = vset.pattern.permute.xlu0 0
  %115 = vperm.xlu0 %114, %v73
  %v116 = vpop.permute.xlu0 %115
  %119 = vset.pattern.permute.xlu0 0
  %120 = vperm.xlu0 %119, %v74
  %v121 = vpop.permute.xlu0 %120
  %124 = vset.pattern.permute.xlu0 0
  %125 = vperm.xlu0 %124, %v75
  %v126 = vpop.permute.xlu0 %125
  %129 = vset.pattern.permute.xlu0 0
  %130 = vperm.xlu0 %129, %v76
  %v131 = vpop.permute.xlu0 %130
  %134 = vset.pattern.permute.xlu0 0
  %135 = vperm.xlu0 %134, %v77
  %v136 = vpop.permute.xlu0 %135
  %139 = vset.pattern.permute.xlu0 0
  %140 = vperm.xlu0 %139, %v78
  %v141 = vpop.permute.xlu0 %140
  %144 = vset.pattern.permute.xlu0 0
  %145 = vperm.xlu0 %144, %v79
  %v146 = vpop.permute.xlu0 %145
  %149 = vset.pattern.permute.xlu0 0
  %150 = vperm.xlu0 %149, %v80
  %v151 = vpop.permute.xlu0 %150
  %154 = vset.pattern.permute.xlu0 0
  %155 = vperm.xlu0 %154, %v81
  %v156 = vpop.permute.xlu0 %155
  %159 = vset.pattern.permute.xlu0 0
  %160 = vperm.xlu0 %159, %v82
  %v161 = vpop.permute.xlu0 %160
  %164 = vset.pattern.permute.xlu0 0
  %165 = vperm.xlu0 %164, %v83
  %v166 = vpop.permute.xlu0 %165
  %169 = vset.pattern.permute.xlu0 0
  %170 = vperm.xlu0 %169, %v84
  %v171 = vpop.permute.xlu0 %170
  %174 = vset.pattern.permute.xlu0 0
  %175 = vperm.xlu0 %174, %v85
  %v176 = vpop.permute.xlu0 %175
  %179 = vset.pattern.permute.xlu0 0
  %180 = vperm.xlu0 %179, %v86
  %v181 = vpop.permute.xlu0 %180
  %184 = vset.pattern.permute.xlu0 0
  %185 = vperm.xlu0 %184, %v87
  %v186 = vpop.permute.xlu0 %185
  %189 = vset.pattern.permute.xlu0 0
  %190 = vperm.xlu0 %189, %v88
  %v191 = vpop.permute.xlu0 %190
  %194 = vset.pattern.permute.xlu0 0
  %195 = vperm.xlu0 %194, %v89
  %v196 = vpop.permute.xlu0 %195
  %199 = vset.pattern.permute.xlu0 0
  %200 = vperm.xlu0 %199, %v90
  %v201 = vpop.permute.xlu0 %200
  %204 = vset.pattern.permute.xlu0 0
  %205 = vperm.xlu0 %204, %v91
  %v206 = vpop.permute.xlu0 %205
  %209 = vset.pattern.permute.xlu0 0
  %210 = vperm.xlu0 %209, %v92
  %v211 = vpop.permute.xlu0 %210
  %vm213 = vcmask 195584
  %v215 = vsel %vm213, %v42, 0
  %v218 = vsel %vm213, %v43, 0
  %v221 = vsel %vm213, %v44, 0
  %v224 = vsel %vm213, %v45, 0
  %v227 = vsel %vm213, %v46, 0
  %v230 = vsel %vm213, %v47, 0
  %v233 = vsel %vm213, %v48, 0
  %v236 = vsel %vm213, %v49, 0
  %v239 = vsel %vm213, %v50, 0
  %v242 = vsel %vm213, %v51, 0
  %v245 = vsel %vm213, %v52, 0
  %v248 = vsel %vm213, %v53, 0
  %v251 = vsel %vm213, %v54, 0
  %v254 = vsel %vm213, %v55, 0
  %v257 = vsel %vm213, %v56, 0
  %v260 = vsel %vm213, %v57, 0
  %v263 = vsel %vm213, %v58, 0
  %v266 = vsel %vm213, %v59, 0
  %v269 = vsel %vm213, %v60, 0
  %v272 = vsel %vm213, %v61, 0
  %v275 = vsel %vm213, %v62, 0
  %v278 = vsel %vm213, %v63, 0
  %v281 = vsel %vm213, %v64, 0
  %v284 = vsel %vm213, %v65, 0
  %286 = vmatpush.msra.mxu0 0.0
  %287 = vmatpush.msra.mxu0 0.0
  %288 = vmatpush.msra.mxu0 0.0
  %289 = vmatpush.msra.mxu0 0.0
  %290 = vmatpush.msra.mxu0 0.0
  %291 = vmatpush.msra.mxu0 0.0
  %292 = vmatpush.msra.mxu0 0.0
  %293 = vmatpush.msra.mxu0 0.0
  %294 = vmatpush.msra.mxu0 0.0
  %295 = vmatpush.msra.mxu0 0.0
  %296 = vmatpush.msra.mxu0 0.0
  %297 = vmatpush.msra.mxu0 0.0
  %298 = vmatpush.msra.mxu0 0.0
  %299 = vmatpush.msra.mxu0 %v68
  %300 = vmatpush.msra.mxu0 %v67
  %301 = vmatpush.msra.mxu0 %v66
  %302 = vmatmul.f32.gmra.mxu0 %v215
  %v303 = vpop.f32.mrf.mxu0
  %v304 = vadd.f32 %v96, %v303
  %305 = vmatmul.f32.gmra.mxu0 %v218
  %v306 = vpop.f32.mrf.mxu0
  %v307 = vadd.f32 %v101, %v306
  %308 = vmatmul.f32.gmra.mxu0 %v221
  %v309 = vpop.f32.mrf.mxu0
  %v310 = vadd.f32 %v106, %v309
  %311 = vmatmul.f32.gmra.mxu0 %v224
  %v312 = vpop.f32.mrf.mxu0
  %v313 = vadd.f32 %v111, %v312
  %314 = vmatmul.f32.gmra.mxu0 %v227
  %v315 = vpop.f32.mrf.mxu0
  %v316 = vadd.f32 %v116, %v315
  %317 = vmatmul.f32.gmra.mxu0 %v230
  %v318 = vpop.f32.mrf.mxu0
  %v319 = vadd.f32 %v121, %v318
  %320 = vmatmul.f32.gmra.mxu0 %v233
  %v321 = vpop.f32.mrf.mxu0
  %v322 = vadd.f32 %v126, %v321
  %323 = vmatmul.f32.gmra.mxu0 %v236
  %v324 = vpop.f32.mrf.mxu0
  %v325 = vadd.f32 %v131, %v324
  %326 = vmatmul.f32.gmra.mxu0 %v239
  %v327 = vpop.f32.mrf.mxu0
  %v328 = vadd.f32 %v136, %v327
  %329 = vmatmul.f32.gmra.mxu0 %v242
  %v330 = vpop.f32.mrf.mxu0
  %v331 = vadd.f32 %v141, %v330
  %332 = vmatmul.f32.gmra.mxu0 %v245
  %v333 = vpop.f32.mrf.mxu0
  %v334 = vadd.f32 %v146, %v333
  %335 = vmatmul.f32.gmra.mxu0 %v248
  %v336 = vpop.f32.mrf.mxu0
  %v337 = vadd.f32 %v151, %v336
  %338 = vmatmul.f32.gmra.mxu0 %v251
  %v339 = vpop.f32.mrf.mxu0
  %v340 = vadd.f32 %v156, %v339
  %341 = vmatmul.f32.gmra.mxu0 %v254
  %v342 = vpop.f32.mrf.mxu0
  %v343 = vadd.f32 %v161, %v342
  %344 = vmatmul.f32.gmra.mxu0 %v257
  %v345 = vpop.f32.mrf.mxu0
  %v346 = vadd.f32 %v166, %v345
  %347 = vmatmul.f32.gmra.mxu0 %v260
  %v348 = vpop.f32.mrf.mxu0
  %v349 = vadd.f32 %v171, %v348
  %350 = vmatmul.f32.gmra.mxu0 %v263
  %v351 = vpop.f32.mrf.mxu0
  %v352 = vadd.f32 %v176, %v351
  %353 = vmatmul.f32.gmra.mxu0 %v266
  %v354 = vpop.f32.mrf.mxu0
  %v355 = vadd.f32 %v181, %v354
  %356 = vmatmul.f32.gmra.mxu0 %v269
  %v357 = vpop.f32.mrf.mxu0
  %v358 = vadd.f32 %v186, %v357
  %359 = vmatmul.f32.gmra.mxu0 %v272
  %v360 = vpop.f32.mrf.mxu0
  %v361 = vadd.f32 %v191, %v360
  %362 = vmatmul.f32.gmra.mxu0 %v275
  %v363 = vpop.f32.mrf.mxu0
  %v364 = vadd.f32 %v196, %v363
  %365 = vmatmul.f32.gmra.mxu0 %v278
  %v366 = vpop.f32.mrf.mxu0
  %v367 = vadd.f32 %v201, %v366
  %368 = vmatmul.f32.gmra.mxu0 %v281
  %v369 = vpop.f32.mrf.mxu0
  %v370 = vadd.f32 %v206, %v369
  %371 = vmatmul.f32.gmra.mxu0 %v284
  %v372 = vpop.f32.mrf.mxu0
  %v373 = vadd.f32 %v211, %v372
  %374 = vdwg.mxu0
  %v375 = vmul.f32 %v304, %v328
  %v376 = vmul.f32 %v307, %v331
  %v377 = vmul.f32 %v310, %v334
  %v378 = vmul.f32 %v313, %v337
  %v379 = vmul.f32 %v316, %v328
  %v380 = vmul.f32 %v319, %v331
  %v381 = vmul.f32 %v322, %v334
  %v382 = vmul.f32 %v325, %v337
  %v383 = vadd.f32 %v379, %v340
  %v384 = vadd.f32 %v380, %v343
  %v385 = vadd.f32 %v381, %v346
  %v386 = vadd.f32 %v382, %v349
  %v387 = vmul.f32 %v352, %v364
  %v388 = vmul.f32 %v355, %v367
  %v389 = vmul.f32 %v358, %v364
  %v390 = vmul.f32 %v361, %v367
  %v391 = vadd.f32 %v389, %v370
  %v392 = vadd.f32 %v390, %v373
  %v393 = vld [vmem:[%s0] sm:$0xff]
  %v394 = vld [vmem:[%s0 + $0x8] sm:$0xff]
  %v395 = vld [vmem:[%s0 + $0x10] sm:$0xff]
  %v396 = vld [vmem:[%s0 + $0x18] sm:$0xff]
  %v397 = vunpack.c.l.bf16 %v393
  %v398 = vunpack.c.h.bf16 %v393
  %v399 = vunpack.c.l.bf16 %v394
  %v400 = vunpack.c.h.bf16 %v394
  %v401 = vunpack.c.l.bf16 %v395
  %v402 = vunpack.c.h.bf16 %v395
  %v403 = vunpack.c.l.bf16 %v396
  %v404 = vunpack.c.h.bf16 %v396
  %vm405 = vcmask 588800
  %v406 = vsel %vm405, %v398, 0.0
  %v407 = vadd.f32 %v397, %v406
  %408 = vadd.xlane.f32.xlu0 %v407
  %v409 = vpop.xlane.xlu0 %408
  %v410 = vsel %vm405, %v400, 0.0
  %v411 = vadd.f32 %v399, %v410
  %412 = vadd.xlane.f32.xlu0 %v411
  %v413 = vpop.xlane.xlu0 %412
  %v414 = vsel %vm405, %v402, 0.0
  %v415 = vadd.f32 %v401, %v414
  %416 = vadd.xlane.f32.xlu0 %v415
  %v417 = vpop.xlane.xlu0 %416
  %v418 = vsel %vm405, %v404, 0.0
  %v419 = vadd.f32 %v403, %v418
  %420 = vadd.xlane.f32.xlu0 %v419
  %v421 = vpop.xlane.xlu0 %420
  %v422 = vrcp.pop 128.0
  %v423 = vmul.f32 128.0, %v422
  %v424 = vsub.f32 1.0, %v423
  %v425 = vmul.f32 %v422, %v424
  %v426 = vadd.f32 %v422, %v425
  %vm427 = vweird.f32 %v422
  %v428 = vsel %vm427, %v422, %v426
  %v429 = vmul.f32 %v409, %v428
  %v430 = vmul.f32 %v413, %v428
  %v431 = vmul.f32 %v417, %v428
  %v432 = vmul.f32 %v421, %v428
  %v433 = vmul.f32 %v397, %v397
  %v434 = vmul.f32 %v398, %v398
  %v435 = vmul.f32 %v399, %v399
  %v436 = vmul.f32 %v400, %v400
  %v437 = vmul.f32 %v401, %v401
  %v438 = vmul.f32 %v402, %v402
  %v439 = vmul.f32 %v403, %v403
  %v440 = vmul.f32 %v404, %v404
  %v441 = vsel %vm405, %v434, 0.0
  %v442 = vadd.f32 %v433, %v441
  %443 = vadd.xlane.f32.xlu0 %v442
  %v444 = vpop.xlane.xlu0 %443
  %v445 = vsel %vm405, %v436, 0.0
  %v446 = vadd.f32 %v435, %v445
  %447 = vadd.xlane.f32.xlu0 %v446
  %v448 = vpop.xlane.xlu0 %447
  %v449 = vsel %vm405, %v438, 0.0
  %v450 = vadd.f32 %v437, %v449
  %451 = vadd.xlane.f32.xlu0 %v450
  %v452 = vpop.xlane.xlu0 %451
  %v453 = vsel %vm405, %v440, 0.0
  %v454 = vadd.f32 %v439, %v453
  %455 = vadd.xlane.f32.xlu0 %v454
  %v456 = vpop.xlane.xlu0 %455
  %v457 = vmul.f32 %v444, %v428
  %v458 = vmul.f32 %v448, %v428
  %v459 = vmul.f32 %v452, %v428
  %v460 = vmul.f32 %v456, %v428
  %v461 = vmul.f32 %v429, %v429
  %v462 = vmul.f32 %v430, %v430
  %v463 = vmul.f32 %v431, %v431
  %v464 = vmul.f32 %v432, %v432
  %v465 = vsub.f32 %v457, %v461
  %v466 = vsub.f32 %v458, %v462
  %v467 = vsub.f32 %v459, %v463
  %v468 = vsub.f32 %v460, %v464
  %v469 = vmax.f32 %v465, 0.0
  %v470 = vmax.f32 %v466, 0.0
  %v471 = vmax.f32 %v467, 0.0
  %v472 = vmax.f32 %v468, 0.0
  %v473 = vadd.f32 %v469, 1e-05
  %v474 = vadd.f32 %v470, 1e-05
  %v475 = vadd.f32 %v471, 1e-05
  %v476 = vadd.f32 %v472, 1e-05
  %v477 = vrsqrt.pop %v473
  %v478 = vmul.f32 %v477, %v473
  %v479 = vmul.f32 %v478, %v477
  %v480 = vmul.f32 0.5, %v479
  %v481 = vsub.f32 1.5, %v480
  %v482 = vmul.f32 %v477, %v481
  %vm483 = vweird.f32 %v473
  %vm484 = vweird.f32 %v477
  %vm485 = vmor %vm483, %vm484
  %v486 = vsel %vm485, %v477, %v482
  %v487 = vrsqrt.pop %v474
  %v488 = vmul.f32 %v487, %v474
  %v489 = vmul.f32 %v488, %v487
  %v490 = vmul.f32 0.5, %v489
  %v491 = vsub.f32 1.5, %v490
  %v492 = vmul.f32 %v487, %v491
  %vm493 = vweird.f32 %v474
  %vm494 = vweird.f32 %v487
  %vm495 = vmor %vm493, %vm494
  %v496 = vsel %vm495, %v487, %v492
  %v497 = vrsqrt.pop %v475
  %v498 = vmul.f32 %v497, %v475
  %v499 = vmul.f32 %v498, %v497
  %v500 = vmul.f32 0.5, %v499
  %v501 = vsub.f32 1.5, %v500
  %v502 = vmul.f32 %v497, %v501
  %vm503 = vweird.f32 %v475
  %vm504 = vweird.f32 %v497
  %vm505 = vmor %vm503, %vm504
  %v506 = vsel %vm505, %v497, %v502
  %v507 = vrsqrt.pop %v476
  %v508 = vmul.f32 %v507, %v476
  %v509 = vmul.f32 %v508, %v507
  %v510 = vmul.f32 0.5, %v509
  %v511 = vsub.f32 1.5, %v510
  %v512 = vmul.f32 %v507, %v511
  %vm513 = vweird.f32 %v476
  %vm514 = vweird.f32 %v507
  %vm515 = vmor %vm513, %vm514
  %v516 = vsel %vm515, %v507, %v512
  %v517 = vmul.f32 %v486, %v375
  %v518 = vmul.f32 %v496, %v376
  %v519 = vmul.f32 %v506, %v377
  %v520 = vmul.f32 %v516, %v378
  %v521 = vld [vmem:[%s9] sm:$0xf]
  %523 = vst [vmem:[#allocation1] ss:$4 sm:$0xff] %v521
  %v524 = vld.sshfl [vmem:[#allocation1] sm:$0xff pattern:$0x73625140]
  %v525 = vld.sshfl [vmem:[#allocation1 + $0x8] sm:$0xff pattern:$0x73625140]
  %vm526 = vcmask 15360
  %v528 = vsel %vm526, %v517, 0
  %v531 = vsel %vm526, %v518, 0
  %v534 = vsel %vm526, %v519, 0
  %v537 = vsel %vm526, %v520, 0
  %vm539 = vcmask 1041408
  %v540 = vsel %vm539, %v524, 0
  %v542 = vsel %vm539, %v525, 0
  %544 = vmatpush.msra.mxu0 0.0
  %545 = vmatpush.msra.mxu0 0.0
  %546 = vmatpush.msra.mxu0 0.0
  %547 = vmatpush.msra.mxu0 0.0
  %548 = vmatpush.msra.mxu0 0.0
  %549 = vmatpush.msra.mxu0 0.0
  %550 = vmatpush.msra.mxu0 0.0
  %551 = vmatpush.msra.mxu0 0.0
  %552 = vmatpush.msra.mxu0 0.0
  %553 = vmatpush.msra.mxu0 0.0
  %554 = vmatpush.msra.mxu0 0.0
  %555 = vmatpush.msra.mxu0 0.0
  %556 = vmatpush.msra.mxu0 0.0
  %557 = vmatpush.msra.mxu0 0.0
  %558 = vmatpush.msra.mxu0 0.0
  %559 = vmatpush.msra.mxu0 %v540
  %560 = vmatmul.f32.gmra.mxu0 %v528
  %v561 = vpop.f32.mrf.mxu0
  %v562 = vadd.f32 0.0, %v561
  %563 = vmatmul.f32.gmra.mxu0 %v531
  %v564 = vpop.f32.mrf.mxu0
  %v565 = vadd.f32 0.0, %v564
  %566 = vmatmul.f32.gmra.mxu0 %v534
  %v567 = vpop.f32.mrf.mxu0
  %v568 = vadd.f32 0.0, %v567
  %569 = vmatmul.f32.gmra.mxu0 %v537
  %v570 = vpop.f32.mrf.mxu0
  %v571 = vadd.f32 0.0, %v570
  %572 = vdwg.mxu0
  %573 = vmatpush.msra.mxu0 0.0
  %574 = vmatpush.msra.mxu0 0.0
  %575 = vmatpush.msra.mxu0 0.0
  %576 = vmatpush.msra.mxu0 0.0
  %577 = vmatpush.msra.mxu0 0.0
  %578 = vmatpush.msra.mxu0 0.0
  %579 = vmatpush.msra.mxu0 0.0
  %580 = vmatpush.msra.mxu0 0.0
  %581 = vmatpush.msra.mxu0 0.0
  %582 = vmatpush.msra.mxu0 0.0
  %583 = vmatpush.msra.mxu0 0.0
  %584 = vmatpush.msra.mxu0 0.0
  %585 = vmatpush.msra.mxu0 0.0
  %586 = vmatpush.msra.mxu0 0.0
  %587 = vmatpush.msra.mxu0 0.0
  %588 = vmatpush.msra.mxu0 %v542
  %589 = vmatmul.f32.gmra.mxu0 %v528
  %v590 = vpop.f32.mrf.mxu0
  %v591 = vadd.f32 0.0, %v590
  %592 = vmatmul.f32.gmra.mxu0 %v531
  %v593 = vpop.f32.mrf.mxu0
  %v594 = vadd.f32 0.0, %v593
  %595 = vmatmul.f32.gmra.mxu0 %v534
  %v596 = vpop.f32.mrf.mxu0
  %v597 = vadd.f32 0.0, %v596
  %598 = vmatmul.f32.gmra.mxu0 %v537
  %v599 = vpop.f32.mrf.mxu0
  %v600 = vadd.f32 0.0, %v599
  %601 = vdwg.mxu0
  %v602 = vmul.f32 %v429, %v486
  %v603 = vmul.f32 %v430, %v496
  %v604 = vmul.f32 %v431, %v506
  %v605 = vmul.f32 %v432, %v516
  %v606 = vmul.f32 %v602, %v375
  %v607 = vmul.f32 %v603, %v376
  %v608 = vmul.f32 %v604, %v377
  %v609 = vmul.f32 %v605, %v378
  %v610 = vsub.f32 %v383, %v606
  %v611 = vsub.f32 %v384, %v607
  %v612 = vsub.f32 %v385, %v608
  %v613 = vsub.f32 %v386, %v609
  %614 = vst [vmem:[#allocation1] ss:$4 sm:$0xff] %v521
  %v615 = vld.sshfl [vmem:[#allocation1] sm:$0xff pattern:$0x73625140]
  %v616 = vld.sshfl [vmem:[#allocation1 + $0x8] sm:$0xff pattern:$0x73625140]
  %v618 = vsel %vm526, %v610, 0
  %v621 = vsel %vm526, %v611, 0
  %v624 = vsel %vm526, %v612, 0
  %v627 = vsel %vm526, %v613, 0
  %v629 = vsel %vm539, %v615, 0
  %v631 = vsel %vm539, %v616, 0
  %633 = vmatpush.msra.mxu0 0.0
  %634 = vmatpush.msra.mxu0 0.0
  %635 = vmatpush.msra.mxu0 0.0
  %636 = vmatpush.msra.mxu0 0.0
  %637 = vmatpush.msra.mxu0 0.0
  %638 = vmatpush.msra.mxu0 0.0
  %639 = vmatpush.msra.mxu0 0.0
  %640 = vmatpush.msra.mxu0 0.0
  %641 = vmatpush.msra.mxu0 0.0
  %642 = vmatpush.msra.mxu0 0.0
  %643 = vmatpush.msra.mxu0 0.0
  %644 = vmatpush.msra.mxu0 0.0
  %645 = vmatpush.msra.mxu0 0.0
  %646 = vmatpush.msra.mxu0 0.0
  %647 = vmatpush.msra.mxu0 0.0
  %648 = vmatpush.msra.mxu0 %v629
  %649 = vmatmul.f32.gmra.mxu0 %v618
  %v650 = vpop.f32.mrf.mxu0
  %v651 = vadd.f32 0.0, %v650
  %652 = vmatmul.f32.gmra.mxu0 %v621
  %v653 = vpop.f32.mrf.mxu0
  %v654 = vadd.f32 0.0, %v653
  %655 = vmatmul.f32.gmra.mxu0 %v624
  %v656 = vpop.f32.mrf.mxu0
  %v657 = vadd.f32 0.0, %v656
  %658 = vmatmul.f32.gmra.mxu0 %v627
  %v659 = vpop.f32.mrf.mxu0
  %v660 = vadd.f32 0.0, %v659
  %661 = vdwg.mxu0
  %662 = vmatpush.msra.mxu0 0.0
  %663 = vmatpush.msra.mxu0 0.0
  %664 = vmatpush.msra.mxu0 0.0
  %665 = vmatpush.msra.mxu0 0.0
  %666 = vmatpush.msra.mxu0 0.0
  %667 = vmatpush.msra.mxu0 0.0
  %668 = vmatpush.msra.mxu0 0.0
  %669 = vmatpush.msra.mxu0 0.0
  %670 = vmatpush.msra.mxu0 0.0
  %671 = vmatpush.msra.mxu0 0.0
  %672 = vmatpush.msra.mxu0 0.0
  %673 = vmatpush.msra.mxu0 0.0
  %674 = vmatpush.msra.mxu0 0.0
  %675 = vmatpush.msra.mxu0 0.0
  %676 = vmatpush.msra.mxu0 0.0
  %677 = vmatpush.msra.mxu0 %v631
  %678 = vmatmul.f32.gmra.mxu0 %v618
  %v679 = vpop.f32.mrf.mxu0
  %v680 = vadd.f32 0.0, %v679
  %681 = vmatmul.f32.gmra.mxu0 %v621
  %v682 = vpop.f32.mrf.mxu0
  %v683 = vadd.f32 0.0, %v682
  %684 = vmatmul.f32.gmra.mxu0 %v624
  %v685 = vpop.f32.mrf.mxu0
  %v686 = vadd.f32 0.0, %v685
  %687 = vmatmul.f32.gmra.mxu0 %v627
  %v688 = vpop.f32.mrf.mxu0
  %v689 = vadd.f32 0.0, %v688
  %690 = vdwg.mxu0
  %v691 = vmul.f32 %v397, %v562
  %v692 = vmul.f32 %v398, %v591
  %v693 = vmul.f32 %v399, %v565
  %v694 = vmul.f32 %v400, %v594
  %v695 = vmul.f32 %v401, %v568
  %v696 = vmul.f32 %v402, %v597
  %v697 = vmul.f32 %v403, %v571
  %v698 = vmul.f32 %v404, %v600
  %v699 = vadd.f32 %v691, %v651
  %v700 = vadd.f32 %v692, %v680
  %v701 = vadd.f32 %v693, %v654
  %v702 = vadd.f32 %v694, %v683
  %v703 = vadd.f32 %v695, %v657
  %v704 = vadd.f32 %v696, %v686
  %v705 = vadd.f32 %v697, %v660
  %v706 = vadd.f32 %v698, %v689
  %v707 = vmax.f32 %v699, 0.0
  %v708 = vmax.f32 %v700, 0.0
  %v709 = vmax.f32 %v701, 0.0
  %v710 = vmax.f32 %v702, 0.0
  %v711 = vmax.f32 %v703, 0.0
  %v712 = vmax.f32 %v704, 0.0
  %v713 = vmax.f32 %v705, 0.0
  %v714 = vmax.f32 %v706, 0.0
  %v715 = vld [vmem:[%s6] sm:$0xf]
  %v716 = vld [vmem:[%s6 + $0x4] sm:$0xf]
  %v719 = vunpack.c.l.b16 %v715
  %v720 = vunpack.c.l.b16 %v716
  %v721 = vpack.c.b16 %v720, %v719
  %v726 = vunpack.c.l.b16 %v393
  %v727 = vunpack.c.h.b16 %v393
  %v728 = vunpack.c.l.b16 %v394
  %v729 = vunpack.c.h.b16 %v394
  %v730 = vunpack.c.l.b16 %v395
  %v731 = vunpack.c.h.b16 %v395
  %v732 = vunpack.c.l.b16 %v396
  %v733 = vunpack.c.h.b16 %v396
  %v734 = vpack.c.b16 %v728, %v726
  %v735 = vpack.c.b16 %v729, %v727
  %v736 = vpack.c.b16 %v732, %v730
  %v737 = vpack.c.b16 %v733, %v731
  %vm742 = vcmask 261120
  %v744 = vsel %vm742, %v721, 0
  %746 = vmatpush.bf16.msra.mxu0 0
  %747 = vmatpush.bf16.msra.mxu0 0
  %748 = vmatpush.bf16.msra.mxu0 0
  %749 = vmatpush.bf16.msra.mxu0 0
  %750 = vmatpush.bf16.msra.mxu0 0
  %751 = vmatpush.bf16.msra.mxu0 0
  %752 = vmatpush.bf16.msra.mxu0 %v736
  %753 = vmatpush.bf16.msra.mxu0 %v734
  %754 = vmatmul.bf16.gmra.mxu0 %v744
  %v755 = vpop.f32.mrf.mxu0
  %v756 = vadd.f32 0.0, %v755
  %v757 = vpop.f32.mrf.mxu0
  %v758 = vadd.f32 0.0, %v757
  %759 = vdwg.mxu0
  %760 = vmatpush.bf16.msra.mxu0 0
  %761 = vmatpush.bf16.msra.mxu0 0
  %762 = vmatpush.bf16.msra.mxu0 0
  %763 = vmatpush.bf16.msra.mxu0 0
  %764 = vmatpush.bf16.msra.mxu0 0
  %765 = vmatpush.bf16.msra.mxu0 0
  %766 = vmatpush.bf16.msra.mxu0 %v737
  %767 = vmatpush.bf16.msra.mxu0 %v735
  %768 = vmatmul.bf16.gmra.mxu0 %v744
  %v769 = vpop.f32.mrf.mxu0
  %v770 = vadd.f32 0.0, %v769
  %v771 = vpop.f32.mrf.mxu0
  %v772 = vadd.f32 0.0, %v771
  %773 = vdwg.mxu0
  %vm774 = vcmask 297984
  %775 = vst.msk [vmem:[#allocation2] sm:$0xf] %vm774, 0
  %776 = vst.msk [vmem:[#allocation2 + $0x18] sm:$0xf] %vm774, 0
  %777 = vst.msk [vmem:[#allocation2 + $0x30] sm:$0xf] %vm774, 0
  %778 = vst.msk [vmem:[#allocation2 + $0x48] sm:$0xf] %vm774, 0
  %779 = vst.msk [vmem:[#allocation2 + $0x60] sm:$0xf] %vm774, 0
  %780 = vst.msk [vmem:[#allocation2 + $0x78] sm:$0xf] %vm774, 0
  %vm781 = vcmask 855592
  %782 = vst.msk [vmem:[#allocation2 + $0x8] sm:$0xf] %vm781, 0
  %783 = vst.msk [vmem:[#allocation2 + $0x20] sm:$0xf] %vm781, 0
  %784 = vst.msk [vmem:[#allocation2 + $0x38] sm:$0xf] %vm781, 0
  %785 = vst.msk [vmem:[#allocation2 + $0x50] sm:$0xf] %vm781, 0
  %786 = vst.msk [vmem:[#allocation2 + $0x68] sm:$0xf] %vm781, 0
  %787 = vst.msk [vmem:[#allocation2 + $0x80] sm:$0xf] %vm781, 0
  %vm788 = vcmask 371784
  %789 = vst.msk [vmem:[#allocation2 + $0x14] sm:$0xf] %vm788, 0
  %790 = vst.msk [vmem:[#allocation2 + $0x2c] sm:$0xf] %vm788, 0
  %791 = vst.msk [vmem:[#allocation2 + $0x44] sm:$0xf] %vm788, 0
  %792 = vst.msk [vmem:[#allocation2 + $0x5c] sm:$0xf] %vm788, 0
  %793 = vst.msk [vmem:[#allocation2 + $0x74] sm:$0xf] %vm788, 0
  %794 = vst.msk [vmem:[#allocation2 + $0x8c] sm:$0xf] %vm788, 0
  %v795 = vld [vmem:[%s8] sm:$0xff]
  %802 = vrot.lane.b32.xlu0 %v707, 117
  %v803 = vpop.permute.xlu0 %802
  %804 = vrot.lane.b32.xlu0 %v709, 117
  %v805 = vpop.permute.xlu0 %804
  %806 = vrot.lane.b32.xlu0 %v711, 117
  %v807 = vpop.permute.xlu0 %806
  %808 = vrot.lane.b32.xlu0 %v713, 117
  %v809 = vpop.permute.xlu0 %808
  %810 = vrot.lane.b32.xlu0 %v756, 117
  %v811 = vpop.permute.xlu0 %810
  %812 = vrot.lane.b32.xlu0 %v758, 117
  %v813 = vpop.permute.xlu0 %812
  %vm814 = vcmask 64512
  %v815 = vsel %vm814, %v803, 0
  %v817 = vsel %vm814, %v805, 0
  %v819 = vsel %vm814, %v807, 0
  %v821 = vsel %vm814, %v809, 0
  %v823 = vsel %vm814, %v811, 0
  %v825 = vsel %vm814, %v813, 0
  %827 = vmatpush.msra.mxu0 0.0
  %828 = vmatpush.msra.mxu0 0.0
  %829 = vmatpush.msra.mxu0 0.0
  %830 = vmatpush.msra.mxu0 0.0
  %831 = vmatpush.msra.mxu0 0.0
  %832 = vmatpush.msra.mxu0 0.0
  %833 = vmatpush.msra.mxu0 0.0
  %834 = vmatpush.msra.mxu0 0.0
  %835 = vmatpush.msra.mxu0 0.0
  %836 = vmatpush.msra.mxu0 0.0
  %837 = vmatpush.msra.mxu0 0.0
  %838 = vmatpush.msra.mxu0 0.0
  %839 = vmatpush.msra.mxu0 0.0
  %840 = vmatpush.msra.mxu0 0.0
  %841 = vmatpush.msra.mxu0 0.0
  %842 = vmatpush.msra.mxu0 %v795
  %843 = vmatmul.f32.gmra.mxu0 %v815
  %v844 = vpop.f32.mrf.mxu0
  %v845 = vadd.f32 0.0, %v844
  %846 = vmatmul.f32.gmra.mxu0 %v817
  %v847 = vpop.f32.mrf.mxu0
  %v848 = vadd.f32 0.0, %v847
  %849 = vmatmul.f32.gmra.mxu0 %v819
  %v850 = vpop.f32.mrf.mxu0
  %v851 = vadd.f32 0.0, %v850
  %852 = vmatmul.f32.gmra.mxu0 %v821
  %v853 = vpop.f32.mrf.mxu0
  %v854 = vadd.f32 0.0, %v853
  %855 = vmatmul.f32.gmra.mxu0 %v823
  %v856 = vpop.f32.mrf.mxu0
  %v857 = vadd.f32 0.0, %v856
  %858 = vmatmul.f32.gmra.mxu0 %v825
  %v859 = vpop.f32.mrf.mxu0
  %v860 = vadd.f32 0.0, %v859
  %861 = vdwg.mxu0
  %v862 = vpack.c.bf16 %v845, %v845
  %v863 = vpack.c.bf16 %v848, %v848
  %v864 = vpack.c.bf16 %v851, %v851
  %v865 = vpack.c.bf16 %v854, %v854
  %v866 = vpack.c.bf16 %v857, %v857
  %v867 = vpack.c.bf16 %v860, %v860
  %874 = vrot.lane.b32.xlu0 %v862, 37
  %v875 = vpop.permute.xlu0 %874
  %876 = vrot.lane.b32.xlu0 %v863, 37
  %v877 = vpop.permute.xlu0 %876
  %878 = vrot.lane.b32.xlu0 %v864, 37
  %v879 = vpop.permute.xlu0 %878
  %880 = vrot.lane.b32.xlu0 %v865, 37
  %v881 = vpop.permute.xlu0 %880
  %882 = vrot.lane.b32.xlu0 %v866, 37
  %v883 = vpop.permute.xlu0 %882
  %884 = vrot.lane.b32.xlu0 %v867, 37
  %v885 = vpop.permute.xlu0 %884
  %vm892 = vcmask 445736
  %893 = vst.msk [vmem:[#allocation2] sm:$0xf] %vm892, %v875
  %894 = vst.msk [vmem:[#allocation2 + $0x18] sm:$0xf] %vm892, %v877
  %895 = vst.msk [vmem:[#allocation2 + $0x30] sm:$0xf] %vm892, %v879
  %896 = vst.msk [vmem:[#allocation2 + $0x48] sm:$0xf] %vm892, %v881
  %897 = vst.msk [vmem:[#allocation2 + $0x60] sm:$0xf] %vm892, %v883
  %898 = vst.msk [vmem:[#allocation2 + $0x78] sm:$0xf] %vm892, %v885
  %899 = vrot.lane.b32.xlu0 %v862, 55
  %v900 = vpop.permute.xlu0 %899
  %901 = vrot.lane.b32.xlu0 %v863, 55
  %v902 = vpop.permute.xlu0 %901
  %903 = vrot.lane.b32.xlu0 %v864, 55
  %v904 = vpop.permute.xlu0 %903
  %905 = vrot.lane.b32.xlu0 %v865, 55
  %v906 = vpop.permute.xlu0 %905
  %907 = vrot.lane.b32.xlu0 %v866, 55
  %v908 = vpop.permute.xlu0 %907
  %909 = vrot.lane.b32.xlu0 %v867, 55
  %v910 = vpop.permute.xlu0 %909
  %vm917 = vcmask 593336
  %918 = vst.msk [vmem:[#allocation2] sm:$0xf] %vm917, %v900
  %919 = vst.msk [vmem:[#allocation2 + $0x18] sm:$0xf] %vm917, %v902
  %920 = vst.msk [vmem:[#allocation2 + $0x30] sm:$0xf] %vm917, %v904
  %921 = vst.msk [vmem:[#allocation2 + $0x48] sm:$0xf] %vm917, %v906
  %922 = vst.msk [vmem:[#allocation2 + $0x60] sm:$0xf] %vm917, %v908
  %923 = vst.msk [vmem:[#allocation2 + $0x78] sm:$0xf] %vm917, %v910
  %924 = vrot.lane.b32.xlu0 %v707, 107
  %v925 = vpop.permute.xlu0 %924
  %926 = vrot.lane.b32.xlu0 %v709, 107
  %v927 = vpop.permute.xlu0 %926
  %928 = vrot.lane.b32.xlu0 %v711, 107
  %v929 = vpop.permute.xlu0 %928
  %930 = vrot.lane.b32.xlu0 %v713, 107
  %v931 = vpop.permute.xlu0 %930
  %932 = vrot.lane.b32.xlu0 %v756, 107
  %v933 = vpop.permute.xlu0 %932
  %934 = vrot.lane.b32.xlu0 %v758, 107
  %v935 = vpop.permute.xlu0 %934
  %v936 = vsel %vm814, %v925, 0
  %v938 = vsel %vm814, %v927, 0
  %v940 = vsel %vm814, %v929, 0
  %v942 = vsel %vm814, %v931, 0
  %v944 = vsel %vm814, %v933, 0
  %v946 = vsel %vm814, %v935, 0
  %948 = vmatpush.msra.mxu0 0.0
  %949 = vmatpush.msra.mxu0 0.0
  %950 = vmatpush.msra.mxu0 0.0
  %951 = vmatpush.msra.mxu0 0.0
  %952 = vmatpush.msra.mxu0 0.0
  %953 = vmatpush.msra.mxu0 0.0
  %954 = vmatpush.msra.mxu0 0.0
  %955 = vmatpush.msra.mxu0 0.0
  %956 = vmatpush.msra.mxu0 0.0
  %957 = vmatpush.msra.mxu0 0.0
  %958 = vmatpush.msra.mxu0 0.0
  %959 = vmatpush.msra.mxu0 0.0
  %960 = vmatpush.msra.mxu0 0.0
  %961 = vmatpush.msra.mxu0 0.0
  %962 = vmatpush.msra.mxu0 0.0
  %963 = vmatpush.msra.mxu0 %v795
  %964 = vmatmul.f32.gmra.mxu0 %v936
  %v965 = vpop.f32.mrf.mxu0
  %v966 = vadd.f32 0.0, %v965
  %967 = vmatmul.f32.gmra.mxu0 %v938
  %v968 = vpop.f32.mrf.mxu0
  %v969 = vadd.f32 0.0, %v968
  %970 = vmatmul.f32.gmra.mxu0 %v940
  %v971 = vpop.f32.mrf.mxu0
  %v972 = vadd.f32 0.0, %v971
  %973 = vmatmul.f32.gmra.mxu0 %v942
  %v974 = vpop.f32.mrf.mxu0
  %v975 = vadd.f32 0.0, %v974
  %976 = vmatmul.f32.gmra.mxu0 %v944
  %v977 = vpop.f32.mrf.mxu0
  %v978 = vadd.f32 0.0, %v977
  %979 = vmatmul.f32.gmra.mxu0 %v946
  %v980 = vpop.f32.mrf.mxu0
  %v981 = vadd.f32 0.0, %v980
  %982 = vdwg.mxu0
  %v983 = vpack.c.bf16 %v966, %v966
  %v984 = vpack.c.bf16 %v969, %v969
  %v985 = vpack.c.bf16 %v972, %v972
  %v986 = vpack.c.bf16 %v975, %v975
  %v987 = vpack.c.bf16 %v978, %v978
  %v988 = vpack.c.bf16 %v981, %v981
  %995 = vrot.lane.b32.xlu0 %v983, 73
  %v996 = vpop.permute.xlu0 %995
  %997 = vrot.lane.b32.xlu0 %v984, 73
  %v998 = vpop.permute.xlu0 %997
  %999 = vrot.lane.b32.xlu0 %v985, 73
  %v1000 = vpop.permute.xlu0 %999
  %1001 = vrot.lane.b32.xlu0 %v986, 73
  %v1002 = vpop.permute.xlu0 %1001
  %1003 = vrot.lane.b32.xlu0 %v987, 73
  %v1004 = vpop.permute.xlu0 %1003
  %1005 = vrot.lane.b32.xlu0 %v988, 73
  %v1006 = vpop.permute.xlu0 %1005
  %vm1013 = vcmask 740936
  %1014 = vst.msk [vmem:[#allocation2] sm:$0xf] %vm1013, %v996
  %1015 = vst.msk [vmem:[#allocation2 + $0x18] sm:$0xf] %vm1013, %v998
  %1016 = vst.msk [vmem:[#allocation2 + $0x30] sm:$0xf] %vm1013, %v1000
  %1017 = vst.msk [vmem:[#allocation2 + $0x48] sm:$0xf] %vm1013, %v1002
  %1018 = vst.msk [vmem:[#allocation2 + $0x60] sm:$0xf] %vm1013, %v1004
  %1019 = vst.msk [vmem:[#allocation2 + $0x78] sm:$0xf] %vm1013, %v1006
  %1020 = vrot.lane.b32.xlu0 %v983, 91
  %v1021 = vpop.permute.xlu0 %1020
  %1022 = vrot.lane.b32.xlu0 %v984, 91
  %v1023 = vpop.permute.xlu0 %1022
  %1024 = vrot.lane.b32.xlu0 %v985, 91
  %v1025 = vpop.permute.xlu0 %1024
  %1026 = vrot.lane.b32.xlu0 %v986, 91
  %v1027 = vpop.permute.xlu0 %1026
  %1028 = vrot.lane.b32.xlu0 %v987, 91
  %v1029 = vpop.permute.xlu0 %1028
  %1030 = vrot.lane.b32.xlu0 %v988, 91
  %v1031 = vpop.permute.xlu0 %1030
  %vm1038 = vcmask 888536
  %1039 = vst.msk [vmem:[#allocation2] sm:$0xf] %vm1038, %v1021
  %1040 = vst.msk [vmem:[#allocation2 + $0x18] sm:$0xf] %vm1038, %v1023
  %1041 = vst.msk [vmem:[#allocation2 + $0x30] sm:$0xf] %vm1038, %v1025
  %1042 = vst.msk [vmem:[#allocation2 + $0x48] sm:$0xf] %vm1038, %v1027
  %1043 = vst.msk [vmem:[#allocation2 + $0x60] sm:$0xf] %vm1038, %v1029
  %1044 = vst.msk [vmem:[#allocation2 + $0x78] sm:$0xf] %vm1038, %v1031
  %1045 = vrot.lane.b32.xlu0 %v707, 97
  %v1046 = vpop.permute.xlu0 %1045
  %1047 = vrot.lane.b32.xlu0 %v709, 97
  %v1048 = vpop.permute.xlu0 %1047
  %1049 = vrot.lane.b32.xlu0 %v711, 97
  %v1050 = vpop.permute.xlu0 %1049
  %1051 = vrot.lane.b32.xlu0 %v713, 97
  %v1052 = vpop.permute.xlu0 %1051
  %1053 = vrot.lane.b32.xlu0 %v756, 97
  %v1054 = vpop.permute.xlu0 %1053
  %1055 = vrot.lane.b32.xlu0 %v758, 97
  %v1056 = vpop.permute.xlu0 %1055
  %v1057 = vsel %vm814, %v1046, 0
  %v1059 = vsel %vm814, %v1048, 0
  %v1061 = vsel %vm814, %v1050, 0
  %v1063 = vsel %vm814, %v1052, 0
  %v1065 = vsel %vm814, %v1054, 0
  %v1067 = vsel %vm814, %v1056, 0
  %1069 = vmatpush.msra.mxu0 0.0
  %1070 = vmatpush.msra.mxu0 0.0
  %1071 = vmatpush.msra.mxu0 0.0
  %1072 = vmatpush.msra.mxu0 0.0
  %1073 = vmatpush.msra.mxu0 0.0
  %1074 = vmatpush.msra.mxu0 0.0
  %1075 = vmatpush.msra.mxu0 0.0
  %1076 = vmatpush.msra.mxu0 0.0
  %1077 = vmatpush.msra.mxu0 0.0
  %1078 = vmatpush.msra.mxu0 0.0
  %1079 = vmatpush.msra.mxu0 0.0
  %1080 = vmatpush.msra.mxu0 0.0
  %1081 = vmatpush.msra.mxu0 0.0
  %1082 = vmatpush.msra.mxu0 0.0
  %1083 = vmatpush.msra.mxu0 0.0
  %1084 = vmatpush.msra.mxu0 %v795
  %1085 = vmatmul.f32.gmra.mxu0 %v1057
  %v1086 = vpop.f32.mrf.mxu0
  %v1087 = vadd.f32 0.0, %v1086
  %1088 = vmatmul.f32.gmra.mxu0 %v1059
  %v1089 = vpop.f32.mrf.mxu0
  %v1090 = vadd.f32 0.0, %v1089
  %1091 = vmatmul.f32.gmra.mxu0 %v1061
  %v1092 = vpop.f32.mrf.mxu0
  %v1093 = vadd.f32 0.0, %v1092
  %1094 = vmatmul.f32.gmra.mxu0 %v1063
  %v1095 = vpop.f32.mrf.mxu0
  %v1096 = vadd.f32 0.0, %v1095
  %1097 = vmatmul.f32.gmra.mxu0 %v1065
  %v1098 = vpop.f32.mrf.mxu0
  %v1099 = vadd.f32 0.0, %v1098
  %1100 = vmatmul.f32.gmra.mxu0 %v1067
  %v1101 = vpop.f32.mrf.mxu0
  %v1102 = vadd.f32 0.0, %v1101
  %1103 = vdwg.mxu0
  %v1104 = vpack.c.bf16 %v1087, %v1087
  %v1105 = vpack.c.bf16 %v1090, %v1090
  %v1106 = vpack.c.bf16 %v1093, %v1093
  %v1107 = vpack.c.bf16 %v1096, %v1096
  %v1108 = vpack.c.bf16 %v1099, %v1099
  %v1109 = vpack.c.bf16 %v1102, %v1102
  %1116 = vrot.lane.b32.xlu0 %v1104, 109
  %v1117 = vpop.permute.xlu0 %1116
  %1118 = vrot.lane.b32.xlu0 %v1105, 109
  %v1119 = vpop.permute.xlu0 %1118
  %1120 = vrot.lane.b32.xlu0 %v1106, 109
  %v1121 = vpop.permute.xlu0 %1120
  %1122 = vrot.lane.b32.xlu0 %v1107, 109
  %v1123 = vpop.permute.xlu0 %1122
  %1124 = vrot.lane.b32.xlu0 %v1108, 109
  %v1125 = vpop.permute.xlu0 %1124
  %1126 = vrot.lane.b32.xlu0 %v1109, 109
  %v1127 = vpop.permute.xlu0 %1126
  %vm1134 = vcmask 1036136
  %1135 = vst.msk [vmem:[#allocation2] sm:$0xf] %vm1134, %v1117
  %1136 = vst.msk [vmem:[#allocation2 + $0x18] sm:$0xf] %vm1134, %v1119
  %1137 = vst.msk [vmem:[#allocation2 + $0x30] sm:$0xf] %vm1134, %v1121
  %1138 = vst.msk [vmem:[#allocation2 + $0x48] sm:$0xf] %vm1134, %v1123
  %1139 = vst.msk [vmem:[#allocation2 + $0x60] sm:$0xf] %vm1134, %v1125
  %1140 = vst.msk [vmem:[#allocation2 + $0x78] sm:$0xf] %vm1134, %v1127
  %1141 = vrot.lane.b32.xlu0 %v1104, 127
  %v1142 = vpop.permute.xlu0 %1141
  %1143 = vrot.lane.b32.xlu0 %v1105, 127
  %v1144 = vpop.permute.xlu0 %1143
  %1145 = vrot.lane.b32.xlu0 %v1106, 127
  %v1146 = vpop.permute.xlu0 %1145
  %1147 = vrot.lane.b32.xlu0 %v1107, 127
  %v1148 = vpop.permute.xlu0 %1147
  %1149 = vrot.lane.b32.xlu0 %v1108, 127
  %v1150 = vpop.permute.xlu0 %1149
  %1151 = vrot.lane.b32.xlu0 %v1109, 127
  %v1152 = vpop.permute.xlu0 %1151
  %v1153 = vrot.slane %v1142, 4
  %v1154 = vrot.slane %v1144, 4
  %v1155 = vrot.slane %v1146, 4
  %v1156 = vrot.slane %v1148, 4
  %v1157 = vrot.slane %v1150, 4
  %v1158 = vrot.slane %v1152, 4
  %vm1159 = vcmask 1039360
  %v1160 = vsel %vm1159, %v1153, %v1142
  %v1161 = vsel %vm1159, %v1154, %v1144
  %v1162 = vsel %vm1159, %v1155, %v1146
  %v1163 = vsel %vm1159, %v1156, %v1148
  %v1164 = vsel %vm1159, %v1157, %v1150
  %v1165 = vsel %vm1159, %v1158, %v1152
  %vm1172 = vcmask 1044472
  %vm1173 = vcmask 138244
  %vm1174 = vmor %vm1173, %vm1172
  %1175 = vst.msk [vmem:[#allocation2] sm:$0xff] %vm1174, %v1160
  %1176 = vst.msk [vmem:[#allocation2 + $0x18] sm:$0xff] %vm1174, %v1161
  %1177 = vst.msk [vmem:[#allocation2 + $0x30] sm:$0xff] %vm1174, %v1162
  %1178 = vst.msk [vmem:[#allocation2 + $0x48] sm:$0xff] %vm1174, %v1163
  %1179 = vst.msk [vmem:[#allocation2 + $0x60] sm:$0xff] %vm1174, %v1164
  %1180 = vst.msk [vmem:[#allocation2 + $0x78] sm:$0xff] %vm1174, %v1165
  %1181 = vrot.lane.b32.xlu0 %v707, 87
  %v1182 = vpop.permute.xlu0 %1181
  %1183 = vrot.lane.b32.xlu0 %v709, 87
  %v1184 = vpop.permute.xlu0 %1183
  %1185 = vrot.lane.b32.xlu0 %v711, 87
  %v1186 = vpop.permute.xlu0 %1185
  %1187 = vrot.lane.b32.xlu0 %v713, 87
  %v1188 = vpop.permute.xlu0 %1187
  %1189 = vrot.lane.b32.xlu0 %v756, 87
  %v1190 = vpop.permute.xlu0 %1189
  %1191 = vrot.lane.b32.xlu0 %v758, 87
  %v1192 = vpop.permute.xlu0 %1191
  %v1193 = vsel %vm814, %v1182, 0
  %v1195 = vsel %vm814, %v1184, 0
  %v1197 = vsel %vm814, %v1186, 0
  %v1199 = vsel %vm814, %v1188, 0
  %v1201 = vsel %vm814, %v1190, 0
  %v1203 = vsel %vm814, %v1192, 0
  %1205 = vmatpush.msra.mxu0 0.0
  %1206 = vmatpush.msra.mxu0 0.0
  %1207 = vmatpush.msra.mxu0 0.0
  %1208 = vmatpush.msra.mxu0 0.0
  %1209 = vmatpush.msra.mxu0 0.0
  %1210 = vmatpush.msra.mxu0 0.0
  %1211 = vmatpush.msra.mxu0 0.0
  %1212 = vmatpush.msra.mxu0 0.0
  %1213 = vmatpush.msra.mxu0 0.0
  %1214 = vmatpush.msra.mxu0 0.0
  %1215 = vmatpush.msra.mxu0 0.0
  %1216 = vmatpush.msra.mxu0 0.0
  %1217 = vmatpush.msra.mxu0 0.0
  %1218 = vmatpush.msra.mxu0 0.0
  %1219 = vmatpush.msra.mxu0 0.0
  %1220 = vmatpush.msra.mxu0 %v795
  %1221 = vmatmul.f32.gmra.mxu0 %v1193
  %v1222 = vpop.f32.mrf.mxu0
  %v1223 = vadd.f32 0.0, %v1222
  %1224 = vmatmul.f32.gmra.mxu0 %v1195
  %v1225 = vpop.f32.mrf.mxu0
  %v1226 = vadd.f32 0.0, %v1225
  %1227 = vmatmul.f32.gmra.mxu0 %v1197
  %v1228 = vpop.f32.mrf.mxu0
  %v1229 = vadd.f32 0.0, %v1228
  %1230 = vmatmul.f32.gmra.mxu0 %v1199
  %v1231 = vpop.f32.mrf.mxu0
  %v1232 = vadd.f32 0.0, %v1231
  %1233 = vmatmul.f32.gmra.mxu0 %v1201
  %v1234 = vpop.f32.mrf.mxu0
  %v1235 = vadd.f32 0.0, %v1234
  %1236 = vmatmul.f32.gmra.mxu0 %v1203
  %v1237 = vpop.f32.mrf.mxu0
  %v1238 = vadd.f32 0.0, %v1237
  %1239 = vdwg.mxu0
  %v1240 = vpack.c.bf16 %v1223, %v1223
  %v1241 = vpack.c.bf16 %v1226, %v1226
  %v1242 = vpack.c.bf16 %v1229, %v1229
  %v1243 = vpack.c.bf16 %v1232, %v1232
  %v1244 = vpack.c.bf16 %v1235, %v1235
  %v1245 = vpack.c.bf16 %v1238, %v1238
  %1252 = vrot.lane.b32.xlu0 %v1240, 17
  %v1253 = vpop.permute.xlu0 %1252
  %1254 = vrot.lane.b32.xlu0 %v1241, 17
  %v1255 = vpop.permute.xlu0 %1254
  %1256 = vrot.lane.b32.xlu0 %v1242, 17
  %v1257 = vpop.permute.xlu0 %1256
  %1258 = vrot.lane.b32.xlu0 %v1243, 17
  %v1259 = vpop.permute.xlu0 %1258
  %1260 = vrot.lane.b32.xlu0 %v1244, 17
  %v1261 = vpop.permute.xlu0 %1260
  %1262 = vrot.lane.b32.xlu0 %v1245, 17
  %v1263 = vpop.permute.xlu0 %1262
  %vm1270 = vcmask 281736
  %1271 = vst.msk [vmem:[#allocation2 + $0x4] sm:$0xf] %vm1270, %v1253
  %1272 = vst.msk [vmem:[#allocation2 + $0x1c] sm:$0xf] %vm1270, %v1255
  %1273 = vst.msk [vmem:[#allocation2 + $0x34] sm:$0xf] %vm1270, %v1257
  %1274 = vst.msk [vmem:[#allocation2 + $0x4c] sm:$0xf] %vm1270, %v1259
  %1275 = vst.msk [vmem:[#allocation2 + $0x64] sm:$0xf] %vm1270, %v1261
  %1276 = vst.msk [vmem:[#allocation2 + $0x7c] sm:$0xf] %vm1270, %v1263
  %1277 = vrot.lane.b32.xlu0 %v1240, 35
  %v1278 = vpop.permute.xlu0 %1277
  %1279 = vrot.lane.b32.xlu0 %v1241, 35
  %v1280 = vpop.permute.xlu0 %1279
  %1281 = vrot.lane.b32.xlu0 %v1242, 35
  %v1282 = vpop.permute.xlu0 %1281
  %1283 = vrot.lane.b32.xlu0 %v1243, 35
  %v1284 = vpop.permute.xlu0 %1283
  %1285 = vrot.lane.b32.xlu0 %v1244, 35
  %v1286 = vpop.permute.xlu0 %1285
  %1287 = vrot.lane.b32.xlu0 %v1245, 35
  %v1288 = vpop.permute.xlu0 %1287
  %vm1295 = vcmask 429336
  %1296 = vst.msk [vmem:[#allocation2 + $0x4] sm:$0xf] %vm1295, %v1278
  %1297 = vst.msk [vmem:[#allocation2 + $0x1c] sm:$0xf] %vm1295, %v1280
  %1298 = vst.msk [vmem:[#allocation2 + $0x34] sm:$0xf] %vm1295, %v1282
  %1299 = vst.msk [vmem:[#allocation2 + $0x4c] sm:$0xf] %vm1295, %v1284
  %1300 = vst.msk [vmem:[#allocation2 + $0x64] sm:$0xf] %vm1295, %v1286
  %1301 = vst.msk [vmem:[#allocation2 + $0x7c] sm:$0xf] %vm1295, %v1288
  %1302 = vrot.lane.b32.xlu0 %v707, 77
  %v1303 = vpop.permute.xlu0 %1302
  %1304 = vrot.lane.b32.xlu0 %v709, 77
  %v1305 = vpop.permute.xlu0 %1304
  %1306 = vrot.lane.b32.xlu0 %v711, 77
  %v1307 = vpop.permute.xlu0 %1306
  %1308 = vrot.lane.b32.xlu0 %v713, 77
  %v1309 = vpop.permute.xlu0 %1308
  %1310 = vrot.lane.b32.xlu0 %v756, 77
  %v1311 = vpop.permute.xlu0 %1310
  %1312 = vrot.lane.b32.xlu0 %v758, 77
  %v1313 = vpop.permute.xlu0 %1312
  %v1314 = vsel %vm814, %v1303, 0
  %v1316 = vsel %vm814, %v1305, 0
  %v1318 = vsel %vm814, %v1307, 0
  %v1320 = vsel %vm814, %v1309, 0
  %v1322 = vsel %vm814, %v1311, 0
  %v1324 = vsel %vm814, %v1313, 0
  %1326 = vmatpush.msra.mxu0 0.0
  %1327 = vmatpush.msra.mxu0 0.0
  %1328 = vmatpush.msra.mxu0 0.0
  %1329 = vmatpush.msra.mxu0 0.0
  %1330 = vmatpush.msra.mxu0 0.0
  %1331 = vmatpush.msra.mxu0 0.0
  %1332 = vmatpush.msra.mxu0 0.0
  %1333 = vmatpush.msra.mxu0 0.0
  %1334 = vmatpush.msra.mxu0 0.0
  %1335 = vmatpush.msra.mxu0 0.0
  %1336 = vmatpush.msra.mxu0 0.0
  %1337 = vmatpush.msra.mxu0 0.0
  %1338 = vmatpush.msra.mxu0 0.0
  %1339 = vmatpush.msra.mxu0 0.0
  %1340 = vmatpush.msra.mxu0 0.0
  %1341 = vmatpush.msra.mxu0 %v795
  %1342 = vmatmul.f32.gmra.mxu0 %v1314
  %v1343 = vpop.f32.mrf.mxu0
  %v1344 = vadd.f32 0.0, %v1343
  %1345 = vmatmul.f32.gmra.mxu0 %v1316
  %v1346 = vpop.f32.mrf.mxu0
  %v1347 = vadd.f32 0.0, %v1346
  %1348 = vmatmul.f32.gmra.mxu0 %v1318
  %v1349 = vpop.f32.mrf.mxu0
  %v1350 = vadd.f32 0.0, %v1349
  %1351 = vmatmul.f32.gmra.mxu0 %v1320
  %v1352 = vpop.f32.mrf.mxu0
  %v1353 = vadd.f32 0.0, %v1352
  %1354 = vmatmul.f32.gmra.mxu0 %v1322
  %v1355 = vpop.f32.mrf.mxu0
  %v1356 = vadd.f32 0.0, %v1355
  %1357 = vmatmul.f32.gmra.mxu0 %v1324
  %v1358 = vpop.f32.mrf.mxu0
  %v1359 = vadd.f32 0.0, %v1358
  %1360 = vdwg.mxu0
  %v1361 = vpack.c.bf16 %v1344, %v1344
  %v1362 = vpack.c.bf16 %v1347, %v1347
  %v1363 = vpack.c.bf16 %v1350, %v1350
  %v1364 = vpack.c.bf16 %v1353, %v1353
  %v1365 = vpack.c.bf16 %v1356, %v1356
  %v1366 = vpack.c.bf16 %v1359, %v1359
  %1373 = vrot.lane.b32.xlu0 %v1361, 53
  %v1374 = vpop.permute.xlu0 %1373
  %1375 = vrot.lane.b32.xlu0 %v1362, 53
  %v1376 = vpop.permute.xlu0 %1375
  %1377 = vrot.lane.b32.xlu0 %v1363, 53
  %v1378 = vpop.permute.xlu0 %1377
  %1379 = vrot.lane.b32.xlu0 %v1364, 53
  %v1380 = vpop.permute.xlu0 %1379
  %1381 = vrot.lane.b32.xlu0 %v1365, 53
  %v1382 = vpop.permute.xlu0 %1381
  %1383 = vrot.lane.b32.xlu0 %v1366, 53
  %v1384 = vpop.permute.xlu0 %1383
  %vm1391 = vcmask 576936
  %1392 = vst.msk [vmem:[#allocation2 + $0x4] sm:$0xf] %vm1391, %v1374
  %1393 = vst.msk [vmem:[#allocation2 + $0x1c] sm:$0xf] %vm1391, %v1376
  %1394 = vst.msk [vmem:[#allocation2 + $0x34] sm:$0xf] %vm1391, %v1378
  %1395 = vst.msk [vmem:[#allocation2 + $0x4c] sm:$0xf] %vm1391, %v1380
  %1396 = vst.msk [vmem:[#allocation2 + $0x64] sm:$0xf] %vm1391, %v1382
  %1397 = vst.msk [vmem:[#allocation2 + $0x7c] sm:$0xf] %vm1391, %v1384
  %1398 = vrot.lane.b32.xlu0 %v1361, 71
  %v1399 = vpop.permute.xlu0 %1398
  %1400 = vrot.lane.b32.xlu0 %v1362, 71
  %v1401 = vpop.permute.xlu0 %1400
  %1402 = vrot.lane.b32.xlu0 %v1363, 71
  %v1403 = vpop.permute.xlu0 %1402
  %1404 = vrot.lane.b32.xlu0 %v1364, 71
  %v1405 = vpop.permute.xlu0 %1404
  %1406 = vrot.lane.b32.xlu0 %v1365, 71
  %v1407 = vpop.permute.xlu0 %1406
  %1408 = vrot.lane.b32.xlu0 %v1366, 71
  %v1409 = vpop.permute.xlu0 %1408
  %vm1416 = vcmask 724536
  %1417 = vst.msk [vmem:[#allocation2 + $0x4] sm:$0xf] %vm1416, %v1399
  %1418 = vst.msk [vmem:[#allocation2 + $0x1c] sm:$0xf] %vm1416, %v1401
  %1419 = vst.msk [vmem:[#allocation2 + $0x34] sm:$0xf] %vm1416, %v1403
  %1420 = vst.msk [vmem:[#allocation2 + $0x4c] sm:$0xf] %vm1416, %v1405
  %1421 = vst.msk [vmem:[#allocation2 + $0x64] sm:$0xf] %vm1416, %v1407
  %1422 = vst.msk [vmem:[#allocation2 + $0x7c] sm:$0xf] %vm1416, %v1409
  %1423 = vrot.lane.b32.xlu0 %v707, 67
  %v1424 = vpop.permute.xlu0 %1423
  %1425 = vrot.lane.b32.xlu0 %v709, 67
  %v1426 = vpop.permute.xlu0 %1425
  %1427 = vrot.lane.b32.xlu0 %v711, 67
  %v1428 = vpop.permute.xlu0 %1427
  %1429 = vrot.lane.b32.xlu0 %v713, 67
  %v1430 = vpop.permute.xlu0 %1429
  %1431 = vrot.lane.b32.xlu0 %v756, 67
  %v1432 = vpop.permute.xlu0 %1431
  %1433 = vrot.lane.b32.xlu0 %v758, 67
  %v1434 = vpop.permute.xlu0 %1433
  %v1435 = vsel %vm814, %v1424, 0
  %v1437 = vsel %vm814, %v1426, 0
  %v1439 = vsel %vm814, %v1428, 0
  %v1441 = vsel %vm814, %v1430, 0
  %v1443 = vsel %vm814, %v1432, 0
  %v1445 = vsel %vm814, %v1434, 0
  %1447 = vmatpush.msra.mxu0 0.0
  %1448 = vmatpush.msra.mxu0 0.0
  %1449 = vmatpush.msra.mxu0 0.0
  %1450 = vmatpush.msra.mxu0 0.0
  %1451 = vmatpush.msra.mxu0 0.0
  %1452 = vmatpush.msra.mxu0 0.0
  %1453 = vmatpush.msra.mxu0 0.0
  %1454 = vmatpush.msra.mxu0 0.0
  %1455 = vmatpush.msra.mxu0 0.0
  %1456 = vmatpush.msra.mxu0 0.0
  %1457 = vmatpush.msra.mxu0 0.0
  %1458 = vmatpush.msra.mxu0 0.0
  %1459 = vmatpush.msra.mxu0 0.0
  %1460 = vmatpush.msra.mxu0 0.0
  %1461 = vmatpush.msra.mxu0 0.0
  %1462 = vmatpush.msra.mxu0 %v795
  %1463 = vmatmul.f32.gmra.mxu0 %v1435
  %v1464 = vpop.f32.mrf.mxu0
  %v1465 = vadd.f32 0.0, %v1464
  %1466 = vmatmul.f32.gmra.mxu0 %v1437
  %v1467 = vpop.f32.mrf.mxu0
  %v1468 = vadd.f32 0.0, %v1467
  %1469 = vmatmul.f32.gmra.mxu0 %v1439
  %v1470 = vpop.f32.mrf.mxu0
  %v1471 = vadd.f32 0.0, %v1470
  %1472 = vmatmul.f32.gmra.mxu0 %v1441
  %v1473 = vpop.f32.mrf.mxu0
  %v1474 = vadd.f32 0.0, %v1473
  %1475 = vmatmul.f32.gmra.mxu0 %v1443
  %v1476 = vpop.f32.mrf.mxu0
  %v1477 = vadd.f32 0.0, %v1476
  %1478 = vmatmul.f32.gmra.mxu0 %v1445
  %v1479 = vpop.f32.mrf.mxu0
  %v1480 = vadd.f32 0.0, %v1479
  %1481 = vdwg.mxu0
  %v1482 = vpack.c.bf16 %v1465, %v1465
  %v1483 = vpack.c.bf16 %v1468, %v1468
  %v1484 = vpack.c.bf16 %v1471, %v1471
  %v1485 = vpack.c.bf16 %v1474, %v1474
  %v1486 = vpack.c.bf16 %v1477, %v1477
  %v1487 = vpack.c.bf16 %v1480, %v1480
  %1494 = vrot.lane.b32.xlu0 %v1482, 89
  %v1495 = vpop.permute.xlu0 %1494
  %1496 = vrot.lane.b32.xlu0 %v1483, 89
  %v1497 = vpop.permute.xlu0 %1496
  %1498 = vrot.lane.b32.xlu0 %v1484, 89
  %v1499 = vpop.permute.xlu0 %1498
  %1500 = vrot.lane.b32.xlu0 %v1485, 89
  %v1501 = vpop.permute.xlu0 %1500
  %1502 = vrot.lane.b32.xlu0 %v1486, 89
  %v1503 = vpop.permute.xlu0 %1502
  %1504 = vrot.lane.b32.xlu0 %v1487, 89
  %v1505 = vpop.permute.xlu0 %1504
  %vm1512 = vcmask 872136
  %1513 = vst.msk [vmem:[#allocation2 + $0x4] sm:$0xf] %vm1512, %v1495
  %1514 = vst.msk [vmem:[#allocation2 + $0x1c] sm:$0xf] %vm1512, %v1497
  %1515 = vst.msk [vmem:[#allocation2 + $0x34] sm:$0xf] %vm1512, %v1499
  %1516 = vst.msk [vmem:[#allocation2 + $0x4c] sm:$0xf] %vm1512, %v1501
  %1517 = vst.msk [vmem:[#allocation2 + $0x64] sm:$0xf] %vm1512, %v1503
  %1518 = vst.msk [vmem:[#allocation2 + $0x7c] sm:$0xf] %vm1512, %v1505
  %1519 = vrot.lane.b32.xlu0 %v1482, 107
  %v1520 = vpop.permute.xlu0 %1519
  %1521 = vrot.lane.b32.xlu0 %v1483, 107
  %v1522 = vpop.permute.xlu0 %1521
  %1523 = vrot.lane.b32.xlu0 %v1484, 107
  %v1524 = vpop.permute.xlu0 %1523
  %1525 = vrot.lane.b32.xlu0 %v1485, 107
  %v1526 = vpop.permute.xlu0 %1525
  %1527 = vrot.lane.b32.xlu0 %v1486, 107
  %v1528 = vpop.permute.xlu0 %1527
  %1529 = vrot.lane.b32.xlu0 %v1487, 107
  %v1530 = vpop.permute.xlu0 %1529
  %vm1537 = vcmask 1019736
  %1538 = vst.msk [vmem:[#allocation2 + $0x4] sm:$0xf] %vm1537, %v1520
  %1539 = vst.msk [vmem:[#allocation2 + $0x1c] sm:$0xf] %vm1537, %v1522
  %1540 = vst.msk [vmem:[#allocation2 + $0x34] sm:$0xf] %vm1537, %v1524
  %1541 = vst.msk [vmem:[#allocation2 + $0x4c] sm:$0xf] %vm1537, %v1526
  %1542 = vst.msk [vmem:[#allocation2 + $0x64] sm:$0xf] %vm1537, %v1528
  %1543 = vst.msk [vmem:[#allocation2 + $0x7c] sm:$0xf] %vm1537, %v1530
  %1544 = vrot.lane.b32.xlu0 %v707, 57
  %v1545 = vpop.permute.xlu0 %1544
  %1546 = vrot.lane.b32.xlu0 %v709, 57
  %v1547 = vpop.permute.xlu0 %1546
  %1548 = vrot.lane.b32.xlu0 %v711, 57
  %v1549 = vpop.permute.xlu0 %1548
  %1550 = vrot.lane.b32.xlu0 %v713, 57
  %v1551 = vpop.permute.xlu0 %1550
  %1552 = vrot.lane.b32.xlu0 %v756, 57
  %v1553 = vpop.permute.xlu0 %1552
  %1554 = vrot.lane.b32.xlu0 %v758, 57
  %v1555 = vpop.permute.xlu0 %1554
  %v1556 = vsel %vm814, %v1545, 0
  %v1558 = vsel %vm814, %v1547, 0
  %v1560 = vsel %vm814, %v1549, 0
  %v1562 = vsel %vm814, %v1551, 0
  %v1564 = vsel %vm814, %v1553, 0
  %v1566 = vsel %vm814, %v1555, 0
  %1568 = vmatpush.msra.mxu0 0.0
  %1569 = vmatpush.msra.mxu0 0.0
  %1570 = vmatpush.msra.mxu0 0.0
  %1571 = vmatpush.msra.mxu0 0.0
  %1572 = vmatpush.msra.mxu0 0.0
  %1573 = vmatpush.msra.mxu0 0.0
  %1574 = vmatpush.msra.mxu0 0.0
  %1575 = vmatpush.msra.mxu0 0.0
  %1576 = vmatpush.msra.mxu0 0.0
  %1577 = vmatpush.msra.mxu0 0.0
  %1578 = vmatpush.msra.mxu0 0.0
  %1579 = vmatpush.msra.mxu0 0.0
  %1580 = vmatpush.msra.mxu0 0.0
  %1581 = vmatpush.msra.mxu0 0.0
  %1582 = vmatpush.msra.mxu0 0.0
  %1583 = vmatpush.msra.mxu0 %v795
  %1584 = vmatmul.f32.gmra.mxu0 %v1556
  %v1585 = vpop.f32.mrf.mxu0
  %v1586 = vadd.f32 0.0, %v1585
  %1587 = vmatmul.f32.gmra.mxu0 %v1558
  %v1588 = vpop.f32.mrf.mxu0
  %v1589 = vadd.f32 0.0, %v1588
  %1590 = vmatmul.f32.gmra.mxu0 %v1560
  %v1591 = vpop.f32.mrf.mxu0
  %v1592 = vadd.f32 0.0, %v1591
  %1593 = vmatmul.f32.gmra.mxu0 %v1562
  %v1594 = vpop.f32.mrf.mxu0
  %v1595 = vadd.f32 0.0, %v1594
  %1596 = vmatmul.f32.gmra.mxu0 %v1564
  %v1597 = vpop.f32.mrf.mxu0
  %v1598 = vadd.f32 0.0, %v1597
  %1599 = vmatmul.f32.gmra.mxu0 %v1566
  %v1600 = vpop.f32.mrf.mxu0
  %v1601 = vadd.f32 0.0, %v1600
  %1602 = vdwg.mxu0
  %v1603 = vpack.c.bf16 %v1586, %v1586
  %v1604 = vpack.c.bf16 %v1589, %v1589
  %v1605 = vpack.c.bf16 %v1592, %v1592
  %v1606 = vpack.c.bf16 %v1595, %v1595
  %v1607 = vpack.c.bf16 %v1598, %v1598
  %v1608 = vpack.c.bf16 %v1601, %v1601
  %1615 = vrot.lane.b32.xlu0 %v1603, 125
  %v1616 = vpop.permute.xlu0 %1615
  %1617 = vrot.lane.b32.xlu0 %v1604, 125
  %v1618 = vpop.permute.xlu0 %1617
  %1619 = vrot.lane.b32.xlu0 %v1605, 125
  %v1620 = vpop.permute.xlu0 %1619
  %1621 = vrot.lane.b32.xlu0 %v1606, 125
  %v1622 = vpop.permute.xlu0 %1621
  %1623 = vrot.lane.b32.xlu0 %v1607, 125
  %v1624 = vpop.permute.xlu0 %1623
  %1625 = vrot.lane.b32.xlu0 %v1608, 125
  %v1626 = vpop.permute.xlu0 %1625
  %v1627 = vrot.slane %v1616, 4
  %v1628 = vrot.slane %v1618, 4
  %v1629 = vrot.slane %v1620, 4
  %v1630 = vrot.slane %v1622, 4
  %v1631 = vrot.slane %v1624, 4
  %v1632 = vrot.slane %v1626, 4
  %vm1633 = vcmask 1022976
  %v1634 = vsel %vm1633, %v1627, %v1616
  %v1635 = vsel %vm1633, %v1628, %v1618
  %v1636 = vsel %vm1633, %v1629, %v1620
  %v1637 = vsel %vm1633, %v1630, %v1622
  %v1638 = vsel %vm1633, %v1631, %v1624
  %v1639 = vsel %vm1633, %v1632, %v1626
  %vm1646 = vcmask 1044456
  %vm1647 = vcmask 121860
  %vm1648 = vmor %vm1647, %vm1646
  %1649 = vst.msk [vmem:[#allocation2 + $0x4] sm:$0xff] %vm1648, %v1634
  %1650 = vst.msk [vmem:[#allocation2 + $0x1c] sm:$0xff] %vm1648, %v1635
  %1651 = vst.msk [vmem:[#allocation2 + $0x34] sm:$0xff] %vm1648, %v1636
  %1652 = vst.msk [vmem:[#allocation2 + $0x4c] sm:$0xff] %vm1648, %v1637
  %1653 = vst.msk [vmem:[#allocation2 + $0x64] sm:$0xff] %vm1648, %v1638
  %1654 = vst.msk [vmem:[#allocation2 + $0x7c] sm:$0xff] %vm1648, %v1639
  %1655 = vrot.lane.b32.xlu0 %v1603, 15
  %v1656 = vpop.permute.xlu0 %1655
  %1657 = vrot.lane.b32.xlu0 %v1604, 15
  %v1658 = vpop.permute.xlu0 %1657
  %1659 = vrot.lane.b32.xlu0 %v1605, 15
  %v1660 = vpop.permute.xlu0 %1659
  %1661 = vrot.lane.b32.xlu0 %v1606, 15
  %v1662 = vpop.permute.xlu0 %1661
  %1663 = vrot.lane.b32.xlu0 %v1607, 15
  %v1664 = vpop.permute.xlu0 %1663
  %1665 = vrot.lane.b32.xlu0 %v1608, 15
  %v1666 = vpop.permute.xlu0 %1665
  %vm1673 = vcmask 265336
  %1674 = vst.msk [vmem:[#allocation2 + $0x8] sm:$0xf] %vm1673, %v1656
  %1675 = vst.msk [vmem:[#allocation2 + $0x20] sm:$0xf] %vm1673, %v1658
  %1676 = vst.msk [vmem:[#allocation2 + $0x38] sm:$0xf] %vm1673, %v1660
  %1677 = vst.msk [vmem:[#allocation2 + $0x50] sm:$0xf] %vm1673, %v1662
  %1678 = vst.msk [vmem:[#allocation2 + $0x68] sm:$0xf] %vm1673, %v1664
  %1679 = vst.msk [vmem:[#allocation2 + $0x80] sm:$0xf] %vm1673, %v1666
  %1680 = vrot.lane.b32.xlu0 %v707, 47
  %v1681 = vpop.permute.xlu0 %1680
  %1682 = vrot.lane.b32.xlu0 %v709, 47
  %v1683 = vpop.permute.xlu0 %1682
  %1684 = vrot.lane.b32.xlu0 %v711, 47
  %v1685 = vpop.permute.xlu0 %1684
  %1686 = vrot.lane.b32.xlu0 %v713, 47
  %v1687 = vpop.permute.xlu0 %1686
  %1688 = vrot.lane.b32.xlu0 %v756, 47
  %v1689 = vpop.permute.xlu0 %1688
  %1690 = vrot.lane.b32.xlu0 %v758, 47
  %v1691 = vpop.permute.xlu0 %1690
  %v1692 = vsel %vm814, %v1681, 0
  %v1694 = vsel %vm814, %v1683, 0
  %v1696 = vsel %vm814, %v1685, 0
  %v1698 = vsel %vm814, %v1687, 0
  %v1700 = vsel %vm814, %v1689, 0
  %v1702 = vsel %vm814, %v1691, 0
  %1704 = vmatpush.msra.mxu0 0.0
  %1705 = vmatpush.msra.mxu0 0.0
  %1706 = vmatpush.msra.mxu0 0.0
  %1707 = vmatpush.msra.mxu0 0.0
  %1708 = vmatpush.msra.mxu0 0.0
  %1709 = vmatpush.msra.mxu0 0.0
  %1710 = vmatpush.msra.mxu0 0.0
  %1711 = vmatpush.msra.mxu0 0.0
  %1712 = vmatpush.msra.mxu0 0.0
  %1713 = vmatpush.msra.mxu0 0.0
  %1714 = vmatpush.msra.mxu0 0.0
  %1715 = vmatpush.msra.mxu0 0.0
  %1716 = vmatpush.msra.mxu0 0.0
  %1717 = vmatpush.msra.mxu0 0.0
  %1718 = vmatpush.msra.mxu0 0.0
  %1719 = vmatpush.msra.mxu0 %v795
  %1720 = vmatmul.f32.gmra.mxu0 %v1692
  %v1721 = vpop.f32.mrf.mxu0
  %v1722 = vadd.f32 0.0, %v1721
  %1723 = vmatmul.f32.gmra.mxu0 %v1694
  %v1724 = vpop.f32.mrf.mxu0
  %v1725 = vadd.f32 0.0, %v1724
  %1726 = vmatmul.f32.gmra.mxu0 %v1696
  %v1727 = vpop.f32.mrf.mxu0
  %v1728 = vadd.f32 0.0, %v1727
  %1729 = vmatmul.f32.gmra.mxu0 %v1698
  %v1730 = vpop.f32.mrf.mxu0
  %v1731 = vadd.f32 0.0, %v1730
  %1732 = vmatmul.f32.gmra.mxu0 %v1700
  %v1733 = vpop.f32.mrf.mxu0
  %v1734 = vadd.f32 0.0, %v1733
  %1735 = vmatmul.f32.gmra.mxu0 %v1702
  %v1736 = vpop.f32.mrf.mxu0
  %v1737 = vadd.f32 0.0, %v1736
  %1738 = vdwg.mxu0
  %v1739 = vpack.c.bf16 %v1722, %v1722
  %v1740 = vpack.c.bf16 %v1725, %v1725
  %v1741 = vpack.c.bf16 %v1728, %v1728
  %v1742 = vpack.c.bf16 %v1731, %v1731
  %v1743 = vpack.c.bf16 %v1734, %v1734
  %v1744 = vpack.c.bf16 %v1737, %v1737
  %1751 = vrot.lane.b32.xlu0 %v1739, 33
  %v1752 = vpop.permute.xlu0 %1751
  %1753 = vrot.lane.b32.xlu0 %v1740, 33
  %v1754 = vpop.permute.xlu0 %1753
  %1755 = vrot.lane.b32.xlu0 %v1741, 33
  %v1756 = vpop.permute.xlu0 %1755
  %1757 = vrot.lane.b32.xlu0 %v1742, 33
  %v1758 = vpop.permute.xlu0 %1757
  %1759 = vrot.lane.b32.xlu0 %v1743, 33
  %v1760 = vpop.permute.xlu0 %1759
  %1761 = vrot.lane.b32.xlu0 %v1744, 33
  %v1762 = vpop.permute.xlu0 %1761
  %vm1769 = vcmask 412936
  %1770 = vst.msk [vmem:[#allocation2 + $0x8] sm:$0xf] %vm1769, %v1752
  %1771 = vst.msk [vmem:[#allocation2 + $0x20] sm:$0xf] %vm1769, %v1754
  %1772 = vst.msk [vmem:[#allocation2 + $0x38] sm:$0xf] %vm1769, %v1756
  %1773 = vst.msk [vmem:[#allocation2 + $0x50] sm:$0xf] %vm1769, %v1758
  %1774 = vst.msk [vmem:[#allocation2 + $0x68] sm:$0xf] %vm1769, %v1760
  %1775 = vst.msk [vmem:[#allocation2 + $0x80] sm:$0xf] %vm1769, %v1762
  %1776 = vrot.lane.b32.xlu0 %v1739, 51
  %v1777 = vpop.permute.xlu0 %1776
  %1778 = vrot.lane.b32.xlu0 %v1740, 51
  %v1779 = vpop.permute.xlu0 %1778
  %1780 = vrot.lane.b32.xlu0 %v1741, 51
  %v1781 = vpop.permute.xlu0 %1780
  %1782 = vrot.lane.b32.xlu0 %v1742, 51
  %v1783 = vpop.permute.xlu0 %1782
  %1784 = vrot.lane.b32.xlu0 %v1743, 51
  %v1785 = vpop.permute.xlu0 %1784
  %1786 = vrot.lane.b32.xlu0 %v1744, 51
  %v1787 = vpop.permute.xlu0 %1786
  %vm1794 = vcmask 560536
  %1795 = vst.msk [vmem:[#allocation2 + $0x8] sm:$0xf] %vm1794, %v1777
  %1796 = vst.msk [vmem:[#allocation2 + $0x20] sm:$0xf] %vm1794, %v1779
  %1797 = vst.msk [vmem:[#allocation2 + $0x38] sm:$0xf] %vm1794, %v1781
  %1798 = vst.msk [vmem:[#allocation2 + $0x50] sm:$0xf] %vm1794, %v1783
  %1799 = vst.msk [vmem:[#allocation2 + $0x68] sm:$0xf] %vm1794, %v1785
  %1800 = vst.msk [vmem:[#allocation2 + $0x80] sm:$0xf] %vm1794, %v1787
  %1801 = vrot.lane.b32.xlu0 %v707, 17
  %v1802 = vpop.permute.xlu0 %1801
  %1803 = vrot.lane.b32.xlu0 %v709, 17
  %v1804 = vpop.permute.xlu0 %1803
  %1805 = vrot.lane.b32.xlu0 %v711, 17
  %v1806 = vpop.permute.xlu0 %1805
  %1807 = vrot.lane.b32.xlu0 %v713, 17
  %v1808 = vpop.permute.xlu0 %1807
  %1809 = vrot.lane.b32.xlu0 %v756, 17
  %v1810 = vpop.permute.xlu0 %1809
  %1811 = vrot.lane.b32.xlu0 %v758, 17
  %v1812 = vpop.permute.xlu0 %1811
  %v1813 = vsel %vm814, %v1802, 0
  %v1815 = vsel %vm814, %v1804, 0
  %v1817 = vsel %vm814, %v1806, 0
  %v1819 = vsel %vm814, %v1808, 0
  %v1821 = vsel %vm814, %v1810, 0
  %v1823 = vsel %vm814, %v1812, 0
  %1825 = vmatpush.msra.mxu0 0.0
  %1826 = vmatpush.msra.mxu0 0.0
  %1827 = vmatpush.msra.mxu0 0.0
  %1828 = vmatpush.msra.mxu0 0.0
  %1829 = vmatpush.msra.mxu0 0.0
  %1830 = vmatpush.msra.mxu0 0.0
  %1831 = vmatpush.msra.mxu0 0.0
  %1832 = vmatpush.msra.mxu0 0.0
  %1833 = vmatpush.msra.mxu0 0.0
  %1834 = vmatpush.msra.mxu0 0.0
  %1835 = vmatpush.msra.mxu0 0.0
  %1836 = vmatpush.msra.mxu0 0.0
  %1837 = vmatpush.msra.mxu0 0.0
  %1838 = vmatpush.msra.mxu0 0.0
  %1839 = vmatpush.msra.mxu0 0.0
  %1840 = vmatpush.msra.mxu0 %v795
  %1841 = vmatmul.f32.gmra.mxu0 %v1813
  %v1842 = vpop.f32.mrf.mxu0
  %v1843 = vadd.f32 0.0, %v1842
  %1844 = vmatmul.f32.gmra.mxu0 %v1815
  %v1845 = vpop.f32.mrf.mxu0
  %v1846 = vadd.f32 0.0, %v1845
  %1847 = vmatmul.f32.gmra.mxu0 %v1817
  %v1848 = vpop.f32.mrf.mxu0
  %v1849 = vadd.f32 0.0, %v1848
  %1850 = vmatmul.f32.gmra.mxu0 %v1819
  %v1851 = vpop.f32.mrf.mxu0
  %v1852 = vadd.f32 0.0, %v1851
  %1853 = vmatmul.f32.gmra.mxu0 %v1821
  %v1854 = vpop.f32.mrf.mxu0
  %v1855 = vadd.f32 0.0, %v1854
  %1856 = vmatmul.f32.gmra.mxu0 %v1823
  %v1857 = vpop.f32.mrf.mxu0
  %v1858 = vadd.f32 0.0, %v1857
  %1859 = vdwg.mxu0
  %v1860 = vpack.c.bf16 %v1843, %v1843
  %v1861 = vpack.c.bf16 %v1846, %v1846
  %v1862 = vpack.c.bf16 %v1849, %v1849
  %v1863 = vpack.c.bf16 %v1852, %v1852
  %v1864 = vpack.c.bf16 %v1855, %v1855
  %v1865 = vpack.c.bf16 %v1858, %v1858
  %1872 = vrot.lane.b32.xlu0 %v1860, 105
  %v1873 = vpop.permute.xlu0 %1872
  %1874 = vrot.lane.b32.xlu0 %v1861, 105
  %v1875 = vpop.permute.xlu0 %1874
  %1876 = vrot.lane.b32.xlu0 %v1862, 105
  %v1877 = vpop.permute.xlu0 %1876
  %1878 = vrot.lane.b32.xlu0 %v1863, 105
  %v1879 = vpop.permute.xlu0 %1878
  %1880 = vrot.lane.b32.xlu0 %v1864, 105
  %v1881 = vpop.permute.xlu0 %1880
  %1882 = vrot.lane.b32.xlu0 %v1865, 105
  %v1883 = vpop.permute.xlu0 %1882
  %vm1890 = vcmask 1003336
  %1891 = vst.msk [vmem:[#allocation2 + $0x8] sm:$0xf] %vm1890, %v1873
  %1892 = vst.msk [vmem:[#allocation2 + $0x20] sm:$0xf] %vm1890, %v1875
  %1893 = vst.msk [vmem:[#allocation2 + $0x38] sm:$0xf] %vm1890, %v1877
  %1894 = vst.msk [vmem:[#allocation2 + $0x50] sm:$0xf] %vm1890, %v1879
  %1895 = vst.msk [vmem:[#allocation2 + $0x68] sm:$0xf] %vm1890, %v1881
  %1896 = vst.msk [vmem:[#allocation2 + $0x80] sm:$0xf] %vm1890, %v1883
  %1897 = vrot.lane.b32.xlu0 %v1860, 123
  %v1898 = vpop.permute.xlu0 %1897
  %1899 = vrot.lane.b32.xlu0 %v1861, 123
  %v1900 = vpop.permute.xlu0 %1899
  %1901 = vrot.lane.b32.xlu0 %v1862, 123
  %v1902 = vpop.permute.xlu0 %1901
  %1903 = vrot.lane.b32.xlu0 %v1863, 123
  %v1904 = vpop.permute.xlu0 %1903
  %1905 = vrot.lane.b32.xlu0 %v1864, 123
  %v1906 = vpop.permute.xlu0 %1905
  %1907 = vrot.lane.b32.xlu0 %v1865, 123
  %v1908 = vpop.permute.xlu0 %1907
  %v1909 = vrot.slane %v1898, 4
  %v1910 = vrot.slane %v1900, 4
  %v1911 = vrot.slane %v1902, 4
  %v1912 = vrot.slane %v1904, 4
  %v1913 = vrot.slane %v1906, 4
  %v1914 = vrot.slane %v1908, 4
  %vm1915 = vcmask 1006592
  %v1916 = vsel %vm1915, %v1909, %v1898
  %v1917 = vsel %vm1915, %v1910, %v1900
  %v1918 = vsel %vm1915, %v1911, %v1902
  %v1919 = vsel %vm1915, %v1912, %v1904
  %v1920 = vsel %vm1915, %v1913, %v1906
  %v1921 = vsel %vm1915, %v1914, %v1908
  %vm1928 = vcmask 1044440
  %vm1929 = vcmask 105476
  %vm1930 = vmor %vm1929, %vm1928
  %1931 = vst.msk [vmem:[#allocation2 + $0x8] sm:$0xff] %vm1930, %v1916
  %1932 = vst.msk [vmem:[#allocation2 + $0x20] sm:$0xff] %vm1930, %v1917
  %1933 = vst.msk [vmem:[#allocation2 + $0x38] sm:$0xff] %vm1930, %v1918
  %1934 = vst.msk [vmem:[#allocation2 + $0x50] sm:$0xff] %vm1930, %v1919
  %1935 = vst.msk [vmem:[#allocation2 + $0x68] sm:$0xff] %vm1930, %v1920
  %1936 = vst.msk [vmem:[#allocation2 + $0x80] sm:$0xff] %vm1930, %v1921
  %1943 = vrot.lane.b32.xlu0 %v707, 7
  %v1944 = vpop.permute.xlu0 %1943
  %1945 = vrot.lane.b32.xlu0 %v708, 7
  %v1946 = vpop.permute.xlu0 %1945
  %1947 = vrot.lane.b32.xlu0 %v709, 7
  %v1948 = vpop.permute.xlu0 %1947
  %1949 = vrot.lane.b32.xlu0 %v710, 7
  %v1950 = vpop.permute.xlu0 %1949
  %1951 = vrot.lane.b32.xlu0 %v711, 7
  %v1952 = vpop.permute.xlu0 %1951
  %1953 = vrot.lane.b32.xlu0 %v712, 7
  %v1954 = vpop.permute.xlu0 %1953
  %1955 = vrot.lane.b32.xlu0 %v713, 7
  %v1956 = vpop.permute.xlu0 %1955
  %1957 = vrot.lane.b32.xlu0 %v714, 7
  %v1958 = vpop.permute.xlu0 %1957
  %1959 = vrot.lane.b32.xlu0 %v756, 7
  %v1960 = vpop.permute.xlu0 %1959
  %1961 = vrot.lane.b32.xlu0 %v770, 7
  %v1962 = vpop.permute.xlu0 %1961
  %1963 = vrot.lane.b32.xlu0 %v758, 7
  %v1964 = vpop.permute.xlu0 %1963
  %1965 = vrot.lane.b32.xlu0 %v772, 7
  %v1966 = vpop.permute.xlu0 %1965
  %vm1967 = vcmask 56320
  %v1968 = vsel %vm1967, %v1944, %v1946
  %v1969 = vsel %vm1967, %v1948, %v1950
  %v1970 = vsel %vm1967, %v1952, %v1954
  %v1971 = vsel %vm1967, %v1956, %v1958
  %v1972 = vsel %vm1967, %v1960, %v1962
  %v1973 = vsel %vm1967, %v1964, %v1966
  %v1974 = vsel %vm814, %v1968, 0
  %v1976 = vsel %vm814, %v1969, 0
  %v1978 = vsel %vm814, %v1970, 0
  %v1980 = vsel %vm814, %v1971, 0
  %v1982 = vsel %vm814, %v1972, 0
  %v1984 = vsel %vm814, %v1973, 0
  %1986 = vmatpush.msra.mxu0 0.0
  %1987 = vmatpush.msra.mxu0 0.0
  %1988 = vmatpush.msra.mxu0 0.0
  %1989 = vmatpush.msra.mxu0 0.0
  %1990 = vmatpush.msra.mxu0 0.0
  %1991 = vmatpush.msra.mxu0 0.0
  %1992 = vmatpush.msra.mxu0 0.0
  %1993 = vmatpush.msra.mxu0 0.0
  %1994 = vmatpush.msra.mxu0 0.0
  %1995 = vmatpush.msra.mxu0 0.0
  %1996 = vmatpush.msra.mxu0 0.0
  %1997 = vmatpush.msra.mxu0 0.0
  %1998 = vmatpush.msra.mxu0 0.0
  %1999 = vmatpush.msra.mxu0 0.0
  %2000 = vmatpush.msra.mxu0 0.0
  %2001 = vmatpush.msra.mxu0 %v795
  %2002 = vmatmul.f32.gmra.mxu0 %v1974
  %v2003 = vpop.f32.mrf.mxu0
  %v2004 = vadd.f32 0.0, %v2003
  %2005 = vmatmul.f32.gmra.mxu0 %v1976
  %v2006 = vpop.f32.mrf.mxu0
  %v2007 = vadd.f32 0.0, %v2006
  %2008 = vmatmul.f32.gmra.mxu0 %v1978
  %v2009 = vpop.f32.mrf.mxu0
  %v2010 = vadd.f32 0.0, %v2009
  %2011 = vmatmul.f32.gmra.mxu0 %v1980
  %v2012 = vpop.f32.mrf.mxu0
  %v2013 = vadd.f32 0.0, %v2012
  %2014 = vmatmul.f32.gmra.mxu0 %v1982
  %v2015 = vpop.f32.mrf.mxu0
  %v2016 = vadd.f32 0.0, %v2015
  %2017 = vmatmul.f32.gmra.mxu0 %v1984
  %v2018 = vpop.f32.mrf.mxu0
  %v2019 = vadd.f32 0.0, %v2018
  %2020 = vdwg.mxu0
  %v2021 = vpack.c.bf16 %v2004, %v2004
  %v2022 = vpack.c.bf16 %v2007, %v2007
  %v2023 = vpack.c.bf16 %v2010, %v2010
  %v2024 = vpack.c.bf16 %v2013, %v2013
  %v2025 = vpack.c.bf16 %v2016, %v2016
  %v2026 = vpack.c.bf16 %v2019, %v2019
  %2033 = vrot.lane.b32.xlu0 %v2021, 13
  %v2034 = vpop.permute.xlu0 %2033
  %2035 = vrot.lane.b32.xlu0 %v2022, 13
  %v2036 = vpop.permute.xlu0 %2035
  %2037 = vrot.lane.b32.xlu0 %v2023, 13
  %v2038 = vpop.permute.xlu0 %2037
  %2039 = vrot.lane.b32.xlu0 %v2024, 13
  %v2040 = vpop.permute.xlu0 %2039
  %2041 = vrot.lane.b32.xlu0 %v2025, 13
  %v2042 = vpop.permute.xlu0 %2041
  %2043 = vrot.lane.b32.xlu0 %v2026, 13
  %v2044 = vpop.permute.xlu0 %2043
  %vm2051 = vcmask 248936
  %2052 = vst.msk [vmem:[#allocation2 + $0xc] sm:$0xf] %vm2051, %v2034
  %2053 = vst.msk [vmem:[#allocation2 + $0x24] sm:$0xf] %vm2051, %v2036
  %2054 = vst.msk [vmem:[#allocation2 + $0x3c] sm:$0xf] %vm2051, %v2038
  %2055 = vst.msk [vmem:[#allocation2 + $0x54] sm:$0xf] %vm2051, %v2040
  %2056 = vst.msk [vmem:[#allocation2 + $0x6c] sm:$0xf] %vm2051, %v2042
  %2057 = vst.msk [vmem:[#allocation2 + $0x84] sm:$0xf] %vm2051, %v2044
  %2058 = vrot.lane.b32.xlu0 %v2021, 31
  %v2059 = vpop.permute.xlu0 %2058
  %2060 = vrot.lane.b32.xlu0 %v2022, 31
  %v2061 = vpop.permute.xlu0 %2060
  %2062 = vrot.lane.b32.xlu0 %v2023, 31
  %v2063 = vpop.permute.xlu0 %2062
  %2064 = vrot.lane.b32.xlu0 %v2024, 31
  %v2065 = vpop.permute.xlu0 %2064
  %2066 = vrot.lane.b32.xlu0 %v2025, 31
  %v2067 = vpop.permute.xlu0 %2066
  %2068 = vrot.lane.b32.xlu0 %v2026, 31
  %v2069 = vpop.permute.xlu0 %2068
  %vm2076 = vcmask 396536
  %2077 = vst.msk [vmem:[#allocation2 + $0xc] sm:$0xf] %vm2076, %v2059
  %2078 = vst.msk [vmem:[#allocation2 + $0x24] sm:$0xf] %vm2076, %v2061
  %2079 = vst.msk [vmem:[#allocation2 + $0x3c] sm:$0xf] %vm2076, %v2063
  %2080 = vst.msk [vmem:[#allocation2 + $0x54] sm:$0xf] %vm2076, %v2065
  %2081 = vst.msk [vmem:[#allocation2 + $0x6c] sm:$0xf] %vm2076, %v2067
  %2082 = vst.msk [vmem:[#allocation2 + $0x84] sm:$0xf] %vm2076, %v2069
  %2083 = vrot.lane.b32.xlu0 %v708, 125
  %v2084 = vpop.permute.xlu0 %2083
  %2085 = vrot.lane.b32.xlu0 %v710, 125
  %v2086 = vpop.permute.xlu0 %2085
  %2087 = vrot.lane.b32.xlu0 %v712, 125
  %v2088 = vpop.permute.xlu0 %2087
  %2089 = vrot.lane.b32.xlu0 %v714, 125
  %v2090 = vpop.permute.xlu0 %2089
  %2091 = vrot.lane.b32.xlu0 %v770, 125
  %v2092 = vpop.permute.xlu0 %2091
  %2093 = vrot.lane.b32.xlu0 %v772, 125
  %v2094 = vpop.permute.xlu0 %2093
  %v2095 = vsel %vm814, %v2084, 0
  %v2097 = vsel %vm814, %v2086, 0
  %v2099 = vsel %vm814, %v2088, 0
  %v2101 = vsel %vm814, %v2090, 0
  %v2103 = vsel %vm814, %v2092, 0
  %v2105 = vsel %vm814, %v2094, 0
  %2107 = vmatpush.msra.mxu0 0.0
  %2108 = vmatpush.msra.mxu0 0.0
  %2109 = vmatpush.msra.mxu0 0.0
  %2110 = vmatpush.msra.mxu0 0.0
  %2111 = vmatpush.msra.mxu0 0.0
  %2112 = vmatpush.msra.mxu0 0.0
  %2113 = vmatpush.msra.mxu0 0.0
  %2114 = vmatpush.msra.mxu0 0.0
  %2115 = vmatpush.msra.mxu0 0.0
  %2116 = vmatpush.msra.mxu0 0.0
  %2117 = vmatpush.msra.mxu0 0.0
  %2118 = vmatpush.msra.mxu0 0.0
  %2119 = vmatpush.msra.mxu0 0.0
  %2120 = vmatpush.msra.mxu0 0.0
  %2121 = vmatpush.msra.mxu0 0.0
  %2122 = vmatpush.msra.mxu0 %v795
  %2123 = vmatmul.f32.gmra.mxu0 %v2095
  %v2124 = vpop.f32.mrf.mxu0
  %v2125 = vadd.f32 0.0, %v2124
  %2126 = vmatmul.f32.gmra.mxu0 %v2097
  %v2127 = vpop.f32.mrf.mxu0
  %v2128 = vadd.f32 0.0, %v2127
  %2129 = vmatmul.f32.gmra.mxu0 %v2099
  %v2130 = vpop.f32.mrf.mxu0
  %v2131 = vadd.f32 0.0, %v2130
  %2132 = vmatmul.f32.gmra.mxu0 %v2101
  %v2133 = vpop.f32.mrf.mxu0
  %v2134 = vadd.f32 0.0, %v2133
  %2135 = vmatmul.f32.gmra.mxu0 %v2103
  %v2136 = vpop.f32.mrf.mxu0
  %v2137 = vadd.f32 0.0, %v2136
  %2138 = vmatmul.f32.gmra.mxu0 %v2105
  %v2139 = vpop.f32.mrf.mxu0
  %v2140 = vadd.f32 0.0, %v2139
  %2141 = vdwg.mxu0
  %v2142 = vpack.c.bf16 %v2125, %v2125
  %v2143 = vpack.c.bf16 %v2128, %v2128
  %v2144 = vpack.c.bf16 %v2131, %v2131
  %v2145 = vpack.c.bf16 %v2134, %v2134
  %v2146 = vpack.c.bf16 %v2137, %v2137
  %v2147 = vpack.c.bf16 %v2140, %v2140
  %2154 = vrot.lane.b32.xlu0 %v2142, 49
  %v2155 = vpop.permute.xlu0 %2154
  %2156 = vrot.lane.b32.xlu0 %v2143, 49
  %v2157 = vpop.permute.xlu0 %2156
  %2158 = vrot.lane.b32.xlu0 %v2144, 49
  %v2159 = vpop.permute.xlu0 %2158
  %2160 = vrot.lane.b32.xlu0 %v2145, 49
  %v2161 = vpop.permute.xlu0 %2160
  %2162 = vrot.lane.b32.xlu0 %v2146, 49
  %v2163 = vpop.permute.xlu0 %2162
  %2164 = vrot.lane.b32.xlu0 %v2147, 49
  %v2165 = vpop.permute.xlu0 %2164
  %vm2172 = vcmask 544136
  %2173 = vst.msk [vmem:[#allocation2 + $0xc] sm:$0xf] %vm2172, %v2155
  %2174 = vst.msk [vmem:[#allocation2 + $0x24] sm:$0xf] %vm2172, %v2157
  %2175 = vst.msk [vmem:[#allocation2 + $0x3c] sm:$0xf] %vm2172, %v2159
  %2176 = vst.msk [vmem:[#allocation2 + $0x54] sm:$0xf] %vm2172, %v2161
  %2177 = vst.msk [vmem:[#allocation2 + $0x6c] sm:$0xf] %vm2172, %v2163
  %2178 = vst.msk [vmem:[#allocation2 + $0x84] sm:$0xf] %vm2172, %v2165
  %2179 = vrot.lane.b32.xlu0 %v2142, 67
  %v2180 = vpop.permute.xlu0 %2179
  %2181 = vrot.lane.b32.xlu0 %v2143, 67
  %v2182 = vpop.permute.xlu0 %2181
  %2183 = vrot.lane.b32.xlu0 %v2144, 67
  %v2184 = vpop.permute.xlu0 %2183
  %2185 = vrot.lane.b32.xlu0 %v2145, 67
  %v2186 = vpop.permute.xlu0 %2185
  %2187 = vrot.lane.b32.xlu0 %v2146, 67
  %v2188 = vpop.permute.xlu0 %2187
  %2189 = vrot.lane.b32.xlu0 %v2147, 67
  %v2190 = vpop.permute.xlu0 %2189
  %vm2197 = vcmask 691736
  %2198 = vst.msk [vmem:[#allocation2 + $0xc] sm:$0xf] %vm2197, %v2180
  %2199 = vst.msk [vmem:[#allocation2 + $0x24] sm:$0xf] %vm2197, %v2182
  %2200 = vst.msk [vmem:[#allocation2 + $0x3c] sm:$0xf] %vm2197, %v2184
  %2201 = vst.msk [vmem:[#allocation2 + $0x54] sm:$0xf] %vm2197, %v2186
  %2202 = vst.msk [vmem:[#allocation2 + $0x6c] sm:$0xf] %vm2197, %v2188
  %2203 = vst.msk [vmem:[#allocation2 + $0x84] sm:$0xf] %vm2197, %v2190
  %2204 = vrot.lane.b32.xlu0 %v708, 115
  %v2205 = vpop.permute.xlu0 %2204
  %2206 = vrot.lane.b32.xlu0 %v710, 115
  %v2207 = vpop.permute.xlu0 %2206
  %2208 = vrot.lane.b32.xlu0 %v712, 115
  %v2209 = vpop.permute.xlu0 %2208
  %2210 = vrot.lane.b32.xlu0 %v714, 115
  %v2211 = vpop.permute.xlu0 %2210
  %2212 = vrot.lane.b32.xlu0 %v770, 115
  %v2213 = vpop.permute.xlu0 %2212
  %2214 = vrot.lane.b32.xlu0 %v772, 115
  %v2215 = vpop.permute.xlu0 %2214
  %v2216 = vsel %vm814, %v2205, 0
  %v2218 = vsel %vm814, %v2207, 0
  %v2220 = vsel %vm814, %v2209, 0
  %v2222 = vsel %vm814, %v2211, 0
  %v2224 = vsel %vm814, %v2213, 0
  %v2226 = vsel %vm814, %v2215, 0
  %2228 = vmatpush.msra.mxu0 0.0
  %2229 = vmatpush.msra.mxu0 0.0
  %2230 = vmatpush.msra.mxu0 0.0
  %2231 = vmatpush.msra.mxu0 0.0
  %2232 = vmatpush.msra.mxu0 0.0
  %2233 = vmatpush.msra.mxu0 0.0
  %2234 = vmatpush.msra.mxu0 0.0
  %2235 = vmatpush.msra.mxu0 0.0
  %2236 = vmatpush.msra.mxu0 0.0
  %2237 = vmatpush.msra.mxu0 0.0
  %2238 = vmatpush.msra.mxu0 0.0
  %2239 = vmatpush.msra.mxu0 0.0
  %2240 = vmatpush.msra.mxu0 0.0
  %2241 = vmatpush.msra.mxu0 0.0
  %2242 = vmatpush.msra.mxu0 0.0
  %2243 = vmatpush.msra.mxu0 %v795
  %2244 = vmatmul.f32.gmra.mxu0 %v2216
  %v2245 = vpop.f32.mrf.mxu0
  %v2246 = vadd.f32 0.0, %v2245
  %2247 = vmatmul.f32.gmra.mxu0 %v2218
  %v2248 = vpop.f32.mrf.mxu0
  %v2249 = vadd.f32 0.0, %v2248
  %2250 = vmatmul.f32.gmra.mxu0 %v2220
  %v2251 = vpop.f32.mrf.mxu0
  %v2252 = vadd.f32 0.0, %v2251
  %2253 = vmatmul.f32.gmra.mxu0 %v2222
  %v2254 = vpop.f32.mrf.mxu0
  %v2255 = vadd.f32 0.0, %v2254
  %2256 = vmatmul.f32.gmra.mxu0 %v2224
  %v2257 = vpop.f32.mrf.mxu0
  %v2258 = vadd.f32 0.0, %v2257
  %2259 = vmatmul.f32.gmra.mxu0 %v2226
  %v2260 = vpop.f32.mrf.mxu0
  %v2261 = vadd.f32 0.0, %v2260
  %2262 = vdwg.mxu0
  %v2263 = vpack.c.bf16 %v2246, %v2246
  %v2264 = vpack.c.bf16 %v2249, %v2249
  %v2265 = vpack.c.bf16 %v2252, %v2252
  %v2266 = vpack.c.bf16 %v2255, %v2255
  %v2267 = vpack.c.bf16 %v2258, %v2258
  %v2268 = vpack.c.bf16 %v2261, %v2261
  %2275 = vrot.lane.b32.xlu0 %v2263, 85
  %v2276 = vpop.permute.xlu0 %2275
  %2277 = vrot.lane.b32.xlu0 %v2264, 85
  %v2278 = vpop.permute.xlu0 %2277
  %2279 = vrot.lane.b32.xlu0 %v2265, 85
  %v2280 = vpop.permute.xlu0 %2279
  %2281 = vrot.lane.b32.xlu0 %v2266, 85
  %v2282 = vpop.permute.xlu0 %2281
  %2283 = vrot.lane.b32.xlu0 %v2267, 85
  %v2284 = vpop.permute.xlu0 %2283
  %2285 = vrot.lane.b32.xlu0 %v2268, 85
  %v2286 = vpop.permute.xlu0 %2285
  %vm2293 = vcmask 839336
  %2294 = vst.msk [vmem:[#allocation2 + $0xc] sm:$0xf] %vm2293, %v2276
  %2295 = vst.msk [vmem:[#allocation2 + $0x24] sm:$0xf] %vm2293, %v2278
  %2296 = vst.msk [vmem:[#allocation2 + $0x3c] sm:$0xf] %vm2293, %v2280
  %2297 = vst.msk [vmem:[#allocation2 + $0x54] sm:$0xf] %vm2293, %v2282
  %2298 = vst.msk [vmem:[#allocation2 + $0x6c] sm:$0xf] %vm2293, %v2284
  %2299 = vst.msk [vmem:[#allocation2 + $0x84] sm:$0xf] %vm2293, %v2286
  %2300 = vrot.lane.b32.xlu0 %v2263, 103
  %v2301 = vpop.permute.xlu0 %2300
  %2302 = vrot.lane.b32.xlu0 %v2264, 103
  %v2303 = vpop.permute.xlu0 %2302
  %2304 = vrot.lane.b32.xlu0 %v2265, 103
  %v2305 = vpop.permute.xlu0 %2304
  %2306 = vrot.lane.b32.xlu0 %v2266, 103
  %v2307 = vpop.permute.xlu0 %2306
  %2308 = vrot.lane.b32.xlu0 %v2267, 103
  %v2309 = vpop.permute.xlu0 %2308
  %2310 = vrot.lane.b32.xlu0 %v2268, 103
  %v2311 = vpop.permute.xlu0 %2310
  %vm2318 = vcmask 986936
  %2319 = vst.msk [vmem:[#allocation2 + $0xc] sm:$0xf] %vm2318, %v2301
  %2320 = vst.msk [vmem:[#allocation2 + $0x24] sm:$0xf] %vm2318, %v2303
  %2321 = vst.msk [vmem:[#allocation2 + $0x3c] sm:$0xf] %vm2318, %v2305
  %2322 = vst.msk [vmem:[#allocation2 + $0x54] sm:$0xf] %vm2318, %v2307
  %2323 = vst.msk [vmem:[#allocation2 + $0x6c] sm:$0xf] %vm2318, %v2309
  %2324 = vst.msk [vmem:[#allocation2 + $0x84] sm:$0xf] %vm2318, %v2311
  %2325 = vrot.lane.b32.xlu0 %v708, 105
  %v2326 = vpop.permute.xlu0 %2325
  %2327 = vrot.lane.b32.xlu0 %v710, 105
  %v2328 = vpop.permute.xlu0 %2327
  %2329 = vrot.lane.b32.xlu0 %v712, 105
  %v2330 = vpop.permute.xlu0 %2329
  %2331 = vrot.lane.b32.xlu0 %v714, 105
  %v2332 = vpop.permute.xlu0 %2331
  %2333 = vrot.lane.b32.xlu0 %v770, 105
  %v2334 = vpop.permute.xlu0 %2333
  %2335 = vrot.lane.b32.xlu0 %v772, 105
  %v2336 = vpop.permute.xlu0 %2335
  %v2337 = vsel %vm814, %v2326, 0
  %v2339 = vsel %vm814, %v2328, 0
  %v2341 = vsel %vm814, %v2330, 0
  %v2343 = vsel %vm814, %v2332, 0
  %v2345 = vsel %vm814, %v2334, 0
  %v2347 = vsel %vm814, %v2336, 0
  %2349 = vmatpush.msra.mxu0 0.0
  %2350 = vmatpush.msra.mxu0 0.0
  %2351 = vmatpush.msra.mxu0 0.0
  %2352 = vmatpush.msra.mxu0 0.0
  %2353 = vmatpush.msra.mxu0 0.0
  %2354 = vmatpush.msra.mxu0 0.0
  %2355 = vmatpush.msra.mxu0 0.0
  %2356 = vmatpush.msra.mxu0 0.0
  %2357 = vmatpush.msra.mxu0 0.0
  %2358 = vmatpush.msra.mxu0 0.0
  %2359 = vmatpush.msra.mxu0 0.0
  %2360 = vmatpush.msra.mxu0 0.0
  %2361 = vmatpush.msra.mxu0 0.0
  %2362 = vmatpush.msra.mxu0 0.0
  %2363 = vmatpush.msra.mxu0 0.0
  %2364 = vmatpush.msra.mxu0 %v795
  %2365 = vmatmul.f32.gmra.mxu0 %v2337
  %v2366 = vpop.f32.mrf.mxu0
  %v2367 = vadd.f32 0.0, %v2366
  %2368 = vmatmul.f32.gmra.mxu0 %v2339
  %v2369 = vpop.f32.mrf.mxu0
  %v2370 = vadd.f32 0.0, %v2369
  %2371 = vmatmul.f32.gmra.mxu0 %v2341
  %v2372 = vpop.f32.mrf.mxu0
  %v2373 = vadd.f32 0.0, %v2372
  %2374 = vmatmul.f32.gmra.mxu0 %v2343
  %v2375 = vpop.f32.mrf.mxu0
  %v2376 = vadd.f32 0.0, %v2375
  %2377 = vmatmul.f32.gmra.mxu0 %v2345
  %v2378 = vpop.f32.mrf.mxu0
  %v2379 = vadd.f32 0.0, %v2378
  %2380 = vmatmul.f32.gmra.mxu0 %v2347
  %v2381 = vpop.f32.mrf.mxu0
  %v2382 = vadd.f32 0.0, %v2381
  %2383 = vdwg.mxu0
  %v2384 = vpack.c.bf16 %v2367, %v2367
  %v2385 = vpack.c.bf16 %v2370, %v2370
  %v2386 = vpack.c.bf16 %v2373, %v2373
  %v2387 = vpack.c.bf16 %v2376, %v2376
  %v2388 = vpack.c.bf16 %v2379, %v2379
  %v2389 = vpack.c.bf16 %v2382, %v2382
  %2396 = vrot.lane.b32.xlu0 %v2384, 121
  %v2397 = vpop.permute.xlu0 %2396
  %2398 = vrot.lane.b32.xlu0 %v2385, 121
  %v2399 = vpop.permute.xlu0 %2398
  %2400 = vrot.lane.b32.xlu0 %v2386, 121
  %v2401 = vpop.permute.xlu0 %2400
  %2402 = vrot.lane.b32.xlu0 %v2387, 121
  %v2403 = vpop.permute.xlu0 %2402
  %2404 = vrot.lane.b32.xlu0 %v2388, 121
  %v2405 = vpop.permute.xlu0 %2404
  %2406 = vrot.lane.b32.xlu0 %v2389, 121
  %v2407 = vpop.permute.xlu0 %2406
  %v2408 = vrot.slane %v2397, 4
  %v2409 = vrot.slane %v2399, 4
  %v2410 = vrot.slane %v2401, 4
  %v2411 = vrot.slane %v2403, 4
  %v2412 = vrot.slane %v2405, 4
  %v2413 = vrot.slane %v2407, 4
  %vm2414 = vcmask 990208
  %v2415 = vsel %vm2414, %v2408, %v2397
  %v2416 = vsel %vm2414, %v2409, %v2399
  %v2417 = vsel %vm2414, %v2410, %v2401
  %v2418 = vsel %vm2414, %v2411, %v2403
  %v2419 = vsel %vm2414, %v2412, %v2405
  %v2420 = vsel %vm2414, %v2413, %v2407
  %vm2427 = vcmask 1044424
  %vm2428 = vcmask 89092
  %vm2429 = vmor %vm2428, %vm2427
  %2430 = vst.msk [vmem:[#allocation2 + $0xc] sm:$0xff] %vm2429, %v2415
  %2431 = vst.msk [vmem:[#allocation2 + $0x24] sm:$0xff] %vm2429, %v2416
  %2432 = vst.msk [vmem:[#allocation2 + $0x3c] sm:$0xff] %vm2429, %v2417
  %2433 = vst.msk [vmem:[#allocation2 + $0x54] sm:$0xff] %vm2429, %v2418
  %2434 = vst.msk [vmem:[#allocation2 + $0x6c] sm:$0xff] %vm2429, %v2419
  %2435 = vst.msk [vmem:[#allocation2 + $0x84] sm:$0xff] %vm2429, %v2420
  %2436 = vrot.lane.b32.xlu0 %v2384, 11
  %v2437 = vpop.permute.xlu0 %2436
  %2438 = vrot.lane.b32.xlu0 %v2385, 11
  %v2439 = vpop.permute.xlu0 %2438
  %2440 = vrot.lane.b32.xlu0 %v2386, 11
  %v2441 = vpop.permute.xlu0 %2440
  %2442 = vrot.lane.b32.xlu0 %v2387, 11
  %v2443 = vpop.permute.xlu0 %2442
  %2444 = vrot.lane.b32.xlu0 %v2388, 11
  %v2445 = vpop.permute.xlu0 %2444
  %2446 = vrot.lane.b32.xlu0 %v2389, 11
  %v2447 = vpop.permute.xlu0 %2446
  %vm2454 = vcmask 232536
  %2455 = vst.msk [vmem:[#allocation2 + $0x10] sm:$0xf] %vm2454, %v2437
  %2456 = vst.msk [vmem:[#allocation2 + $0x28] sm:$0xf] %vm2454, %v2439
  %2457 = vst.msk [vmem:[#allocation2 + $0x40] sm:$0xf] %vm2454, %v2441
  %2458 = vst.msk [vmem:[#allocation2 + $0x58] sm:$0xf] %vm2454, %v2443
  %2459 = vst.msk [vmem:[#allocation2 + $0x70] sm:$0xf] %vm2454, %v2445
  %2460 = vst.msk [vmem:[#allocation2 + $0x88] sm:$0xf] %vm2454, %v2447
  %2461 = vrot.lane.b32.xlu0 %v708, 95
  %v2462 = vpop.permute.xlu0 %2461
  %2463 = vrot.lane.b32.xlu0 %v710, 95
  %v2464 = vpop.permute.xlu0 %2463
  %2465 = vrot.lane.b32.xlu0 %v712, 95
  %v2466 = vpop.permute.xlu0 %2465
  %2467 = vrot.lane.b32.xlu0 %v714, 95
  %v2468 = vpop.permute.xlu0 %2467
  %2469 = vrot.lane.b32.xlu0 %v770, 95
  %v2470 = vpop.permute.xlu0 %2469
  %2471 = vrot.lane.b32.xlu0 %v772, 95
  %v2472 = vpop.permute.xlu0 %2471
  %v2473 = vsel %vm814, %v2462, 0
  %v2475 = vsel %vm814, %v2464, 0
  %v2477 = vsel %vm814, %v2466, 0
  %v2479 = vsel %vm814, %v2468, 0
  %v2481 = vsel %vm814, %v2470, 0
  %v2483 = vsel %vm814, %v2472, 0
  %2485 = vmatpush.msra.mxu0 0.0
  %2486 = vmatpush.msra.mxu0 0.0
  %2487 = vmatpush.msra.mxu0 0.0
  %2488 = vmatpush.msra.mxu0 0.0
  %2489 = vmatpush.msra.mxu0 0.0
  %2490 = vmatpush.msra.mxu0 0.0
  %2491 = vmatpush.msra.mxu0 0.0
  %2492 = vmatpush.msra.mxu0 0.0
  %2493 = vmatpush.msra.mxu0 0.0
  %2494 = vmatpush.msra.mxu0 0.0
  %2495 = vmatpush.msra.mxu0 0.0
  %2496 = vmatpush.msra.mxu0 0.0
  %2497 = vmatpush.msra.mxu0 0.0
  %2498 = vmatpush.msra.mxu0 0.0
  %2499 = vmatpush.msra.mxu0 0.0
  %2500 = vmatpush.msra.mxu0 %v795
  %2501 = vmatmul.f32.gmra.mxu0 %v2473
  %v2502 = vpop.f32.mrf.mxu0
  %v2503 = vadd.f32 0.0, %v2502
  %2504 = vmatmul.f32.gmra.mxu0 %v2475
  %v2505 = vpop.f32.mrf.mxu0
  %v2506 = vadd.f32 0.0, %v2505
  %2507 = vmatmul.f32.gmra.mxu0 %v2477
  %v2508 = vpop.f32.mrf.mxu0
  %v2509 = vadd.f32 0.0, %v2508
  %2510 = vmatmul.f32.gmra.mxu0 %v2479
  %v2511 = vpop.f32.mrf.mxu0
  %v2512 = vadd.f32 0.0, %v2511
  %2513 = vmatmul.f32.gmra.mxu0 %v2481
  %v2514 = vpop.f32.mrf.mxu0
  %v2515 = vadd.f32 0.0, %v2514
  %2516 = vmatmul.f32.gmra.mxu0 %v2483
  %v2517 = vpop.f32.mrf.mxu0
  %v2518 = vadd.f32 0.0, %v2517
  %2519 = vdwg.mxu0
  %v2520 = vpack.c.bf16 %v2503, %v2503
  %v2521 = vpack.c.bf16 %v2506, %v2506
  %v2522 = vpack.c.bf16 %v2509, %v2509
  %v2523 = vpack.c.bf16 %v2512, %v2512
  %v2524 = vpack.c.bf16 %v2515, %v2515
  %v2525 = vpack.c.bf16 %v2518, %v2518
  %2532 = vrot.lane.b32.xlu0 %v2520, 29
  %v2533 = vpop.permute.xlu0 %2532
  %2534 = vrot.lane.b32.xlu0 %v2521, 29
  %v2535 = vpop.permute.xlu0 %2534
  %2536 = vrot.lane.b32.xlu0 %v2522, 29
  %v2537 = vpop.permute.xlu0 %2536
  %2538 = vrot.lane.b32.xlu0 %v2523, 29
  %v2539 = vpop.permute.xlu0 %2538
  %2540 = vrot.lane.b32.xlu0 %v2524, 29
  %v2541 = vpop.permute.xlu0 %2540
  %2542 = vrot.lane.b32.xlu0 %v2525, 29
  %v2543 = vpop.permute.xlu0 %2542
  %vm2550 = vcmask 380136
  %2551 = vst.msk [vmem:[#allocation2 + $0x10] sm:$0xf] %vm2550, %v2533
  %2552 = vst.msk [vmem:[#allocation2 + $0x28] sm:$0xf] %vm2550, %v2535
  %2553 = vst.msk [vmem:[#allocation2 + $0x40] sm:$0xf] %vm2550, %v2537
  %2554 = vst.msk [vmem:[#allocation2 + $0x58] sm:$0xf] %vm2550, %v2539
  %2555 = vst.msk [vmem:[#allocation2 + $0x70] sm:$0xf] %vm2550, %v2541
  %2556 = vst.msk [vmem:[#allocation2 + $0x88] sm:$0xf] %vm2550, %v2543
  %2557 = vrot.lane.b32.xlu0 %v2520, 47
  %v2558 = vpop.permute.xlu0 %2557
  %2559 = vrot.lane.b32.xlu0 %v2521, 47
  %v2560 = vpop.permute.xlu0 %2559
  %2561 = vrot.lane.b32.xlu0 %v2522, 47
  %v2562 = vpop.permute.xlu0 %2561
  %2563 = vrot.lane.b32.xlu0 %v2523, 47
  %v2564 = vpop.permute.xlu0 %2563
  %2565 = vrot.lane.b32.xlu0 %v2524, 47
  %v2566 = vpop.permute.xlu0 %2565
  %2567 = vrot.lane.b32.xlu0 %v2525, 47
  %v2568 = vpop.permute.xlu0 %2567
  %vm2575 = vcmask 527736
  %2576 = vst.msk [vmem:[#allocation2 + $0x10] sm:$0xf] %vm2575, %v2558
  %2577 = vst.msk [vmem:[#allocation2 + $0x28] sm:$0xf] %vm2575, %v2560
  %2578 = vst.msk [vmem:[#allocation2 + $0x40] sm:$0xf] %vm2575, %v2562
  %2579 = vst.msk [vmem:[#allocation2 + $0x58] sm:$0xf] %vm2575, %v2564
  %2580 = vst.msk [vmem:[#allocation2 + $0x70] sm:$0xf] %vm2575, %v2566
  %2581 = vst.msk [vmem:[#allocation2 + $0x88] sm:$0xf] %vm2575, %v2568
  %2582 = vrot.lane.b32.xlu0 %v708, 85
  %v2583 = vpop.permute.xlu0 %2582
  %2584 = vrot.lane.b32.xlu0 %v710, 85
  %v2585 = vpop.permute.xlu0 %2584
  %2586 = vrot.lane.b32.xlu0 %v712, 85
  %v2587 = vpop.permute.xlu0 %2586
  %2588 = vrot.lane.b32.xlu0 %v714, 85
  %v2589 = vpop.permute.xlu0 %2588
  %2590 = vrot.lane.b32.xlu0 %v770, 85
  %v2591 = vpop.permute.xlu0 %2590
  %2592 = vrot.lane.b32.xlu0 %v772, 85
  %v2593 = vpop.permute.xlu0 %2592
  %v2594 = vsel %vm814, %v2583, 0
  %v2596 = vsel %vm814, %v2585, 0
  %v2598 = vsel %vm814, %v2587, 0
  %v2600 = vsel %vm814, %v2589, 0
  %v2602 = vsel %vm814, %v2591, 0
  %v2604 = vsel %vm814, %v2593, 0
  %2606 = vmatpush.msra.mxu0 0.0
  %2607 = vmatpush.msra.mxu0 0.0
  %2608 = vmatpush.msra.mxu0 0.0
  %2609 = vmatpush.msra.mxu0 0.0
  %2610 = vmatpush.msra.mxu0 0.0
  %2611 = vmatpush.msra.mxu0 0.0
  %2612 = vmatpush.msra.mxu0 0.0
  %2613 = vmatpush.msra.mxu0 0.0
  %2614 = vmatpush.msra.mxu0 0.0
  %2615 = vmatpush.msra.mxu0 0.0
  %2616 = vmatpush.msra.mxu0 0.0
  %2617 = vmatpush.msra.mxu0 0.0
  %2618 = vmatpush.msra.mxu0 0.0
  %2619 = vmatpush.msra.mxu0 0.0
  %2620 = vmatpush.msra.mxu0 0.0
  %2621 = vmatpush.msra.mxu0 %v795
  %2622 = vmatmul.f32.gmra.mxu0 %v2594
  %v2623 = vpop.f32.mrf.mxu0
  %v2624 = vadd.f32 0.0, %v2623
  %2625 = vmatmul.f32.gmra.mxu0 %v2596
  %v2626 = vpop.f32.mrf.mxu0
  %v2627 = vadd.f32 0.0, %v2626
  %2628 = vmatmul.f32.gmra.mxu0 %v2598
  %v2629 = vpop.f32.mrf.mxu0
  %v2630 = vadd.f32 0.0, %v2629
  %2631 = vmatmul.f32.gmra.mxu0 %v2600
  %v2632 = vpop.f32.mrf.mxu0
  %v2633 = vadd.f32 0.0, %v2632
  %2634 = vmatmul.f32.gmra.mxu0 %v2602
  %v2635 = vpop.f32.mrf.mxu0
  %v2636 = vadd.f32 0.0, %v2635
  %2637 = vmatmul.f32.gmra.mxu0 %v2604
  %v2638 = vpop.f32.mrf.mxu0
  %v2639 = vadd.f32 0.0, %v2638
  %2640 = vdwg.mxu0
  %v2641 = vpack.c.bf16 %v2624, %v2624
  %v2642 = vpack.c.bf16 %v2627, %v2627
  %v2643 = vpack.c.bf16 %v2630, %v2630
  %v2644 = vpack.c.bf16 %v2633, %v2633
  %v2645 = vpack.c.bf16 %v2636, %v2636
  %v2646 = vpack.c.bf16 %v2639, %v2639
  %2653 = vrot.lane.b32.xlu0 %v2641, 65
  %v2654 = vpop.permute.xlu0 %2653
  %2655 = vrot.lane.b32.xlu0 %v2642, 65
  %v2656 = vpop.permute.xlu0 %2655
  %2657 = vrot.lane.b32.xlu0 %v2643, 65
  %v2658 = vpop.permute.xlu0 %2657
  %2659 = vrot.lane.b32.xlu0 %v2644, 65
  %v2660 = vpop.permute.xlu0 %2659
  %2661 = vrot.lane.b32.xlu0 %v2645, 65
  %v2662 = vpop.permute.xlu0 %2661
  %2663 = vrot.lane.b32.xlu0 %v2646, 65
  %v2664 = vpop.permute.xlu0 %2663
  %vm2671 = vcmask 675336
  %2672 = vst.msk [vmem:[#allocation2 + $0x10] sm:$0xf] %vm2671, %v2654
  %2673 = vst.msk [vmem:[#allocation2 + $0x28] sm:$0xf] %vm2671, %v2656
  %2674 = vst.msk [vmem:[#allocation2 + $0x40] sm:$0xf] %vm2671, %v2658
  %2675 = vst.msk [vmem:[#allocation2 + $0x58] sm:$0xf] %vm2671, %v2660
  %2676 = vst.msk [vmem:[#allocation2 + $0x70] sm:$0xf] %vm2671, %v2662
  %2677 = vst.msk [vmem:[#allocation2 + $0x88] sm:$0xf] %vm2671, %v2664
  %2678 = vrot.lane.b32.xlu0 %v2641, 83
  %v2679 = vpop.permute.xlu0 %2678
  %2680 = vrot.lane.b32.xlu0 %v2642, 83
  %v2681 = vpop.permute.xlu0 %2680
  %2682 = vrot.lane.b32.xlu0 %v2643, 83
  %v2683 = vpop.permute.xlu0 %2682
  %2684 = vrot.lane.b32.xlu0 %v2644, 83
  %v2685 = vpop.permute.xlu0 %2684
  %2686 = vrot.lane.b32.xlu0 %v2645, 83
  %v2687 = vpop.permute.xlu0 %2686
  %2688 = vrot.lane.b32.xlu0 %v2646, 83
  %v2689 = vpop.permute.xlu0 %2688
  %vm2696 = vcmask 822936
  %2697 = vst.msk [vmem:[#allocation2 + $0x10] sm:$0xf] %vm2696, %v2679
  %2698 = vst.msk [vmem:[#allocation2 + $0x28] sm:$0xf] %vm2696, %v2681
  %2699 = vst.msk [vmem:[#allocation2 + $0x40] sm:$0xf] %vm2696, %v2683
  %2700 = vst.msk [vmem:[#allocation2 + $0x58] sm:$0xf] %vm2696, %v2685
  %2701 = vst.msk [vmem:[#allocation2 + $0x70] sm:$0xf] %vm2696, %v2687
  %2702 = vst.msk [vmem:[#allocation2 + $0x88] sm:$0xf] %vm2696, %v2689
  %2703 = vrot.lane.b32.xlu0 %v708, 75
  %v2704 = vpop.permute.xlu0 %2703
  %2705 = vrot.lane.b32.xlu0 %v710, 75
  %v2706 = vpop.permute.xlu0 %2705
  %2707 = vrot.lane.b32.xlu0 %v712, 75
  %v2708 = vpop.permute.xlu0 %2707
  %2709 = vrot.lane.b32.xlu0 %v714, 75
  %v2710 = vpop.permute.xlu0 %2709
  %2711 = vrot.lane.b32.xlu0 %v770, 75
  %v2712 = vpop.permute.xlu0 %2711
  %2713 = vrot.lane.b32.xlu0 %v772, 75
  %v2714 = vpop.permute.xlu0 %2713
  %v2715 = vsel %vm814, %v2704, 0
  %v2717 = vsel %vm814, %v2706, 0
  %v2719 = vsel %vm814, %v2708, 0
  %v2721 = vsel %vm814, %v2710, 0
  %v2723 = vsel %vm814, %v2712, 0
  %v2725 = vsel %vm814, %v2714, 0
  %2727 = vmatpush.msra.mxu0 0.0
  %2728 = vmatpush.msra.mxu0 0.0
  %2729 = vmatpush.msra.mxu0 0.0
  %2730 = vmatpush.msra.mxu0 0.0
  %2731 = vmatpush.msra.mxu0 0.0
  %2732 = vmatpush.msra.mxu0 0.0
  %2733 = vmatpush.msra.mxu0 0.0
  %2734 = vmatpush.msra.mxu0 0.0
  %2735 = vmatpush.msra.mxu0 0.0
  %2736 = vmatpush.msra.mxu0 0.0
  %2737 = vmatpush.msra.mxu0 0.0
  %2738 = vmatpush.msra.mxu0 0.0
  %2739 = vmatpush.msra.mxu0 0.0
  %2740 = vmatpush.msra.mxu0 0.0
  %2741 = vmatpush.msra.mxu0 0.0
  %2742 = vmatpush.msra.mxu0 %v795
  %2743 = vmatmul.f32.gmra.mxu0 %v2715
  %v2744 = vpop.f32.mrf.mxu0
  %v2745 = vadd.f32 0.0, %v2744
  %2746 = vmatmul.f32.gmra.mxu0 %v2717
  %v2747 = vpop.f32.mrf.mxu0
  %v2748 = vadd.f32 0.0, %v2747
  %2749 = vmatmul.f32.gmra.mxu0 %v2719
  %v2750 = vpop.f32.mrf.mxu0
  %v2751 = vadd.f32 0.0, %v2750
  %2752 = vmatmul.f32.gmra.mxu0 %v2721
  %v2753 = vpop.f32.mrf.mxu0
  %v2754 = vadd.f32 0.0, %v2753
  %2755 = vmatmul.f32.gmra.mxu0 %v2723
  %v2756 = vpop.f32.mrf.mxu0
  %v2757 = vadd.f32 0.0, %v2756
  %2758 = vmatmul.f32.gmra.mxu0 %v2725
  %v2759 = vpop.f32.mrf.mxu0
  %v2760 = vadd.f32 0.0, %v2759
  %2761 = vdwg.mxu0
  %v2762 = vpack.c.bf16 %v2745, %v2745
  %v2763 = vpack.c.bf16 %v2748, %v2748
  %v2764 = vpack.c.bf16 %v2751, %v2751
  %v2765 = vpack.c.bf16 %v2754, %v2754
  %v2766 = vpack.c.bf16 %v2757, %v2757
  %v2767 = vpack.c.bf16 %v2760, %v2760
  %2774 = vrot.lane.b32.xlu0 %v2762, 101
  %v2775 = vpop.permute.xlu0 %2774
  %2776 = vrot.lane.b32.xlu0 %v2763, 101
  %v2777 = vpop.permute.xlu0 %2776
  %2778 = vrot.lane.b32.xlu0 %v2764, 101
  %v2779 = vpop.permute.xlu0 %2778
  %2780 = vrot.lane.b32.xlu0 %v2765, 101
  %v2781 = vpop.permute.xlu0 %2780
  %2782 = vrot.lane.b32.xlu0 %v2766, 101
  %v2783 = vpop.permute.xlu0 %2782
  %2784 = vrot.lane.b32.xlu0 %v2767, 101
  %v2785 = vpop.permute.xlu0 %2784
  %vm2792 = vcmask 970536
  %2793 = vst.msk [vmem:[#allocation2 + $0x10] sm:$0xf] %vm2792, %v2775
  %2794 = vst.msk [vmem:[#allocation2 + $0x28] sm:$0xf] %vm2792, %v2777
  %2795 = vst.msk [vmem:[#allocation2 + $0x40] sm:$0xf] %vm2792, %v2779
  %2796 = vst.msk [vmem:[#allocation2 + $0x58] sm:$0xf] %vm2792, %v2781
  %2797 = vst.msk [vmem:[#allocation2 + $0x70] sm:$0xf] %vm2792, %v2783
  %2798 = vst.msk [vmem:[#allocation2 + $0x88] sm:$0xf] %vm2792, %v2785
  %2799 = vrot.lane.b32.xlu0 %v2762, 119
  %v2800 = vpop.permute.xlu0 %2799
  %2801 = vrot.lane.b32.xlu0 %v2763, 119
  %v2802 = vpop.permute.xlu0 %2801
  %2803 = vrot.lane.b32.xlu0 %v2764, 119
  %v2804 = vpop.permute.xlu0 %2803
  %2805 = vrot.lane.b32.xlu0 %v2765, 119
  %v2806 = vpop.permute.xlu0 %2805
  %2807 = vrot.lane.b32.xlu0 %v2766, 119
  %v2808 = vpop.permute.xlu0 %2807
  %2809 = vrot.lane.b32.xlu0 %v2767, 119
  %v2810 = vpop.permute.xlu0 %2809
  %v2811 = vrot.slane %v2800, 4
  %v2812 = vrot.slane %v2802, 4
  %v2813 = vrot.slane %v2804, 4
  %v2814 = vrot.slane %v2806, 4
  %v2815 = vrot.slane %v2808, 4
  %v2816 = vrot.slane %v2810, 4
  %vm2817 = vcmask 973824
  %v2818 = vsel %vm2817, %v2811, %v2800
  %v2819 = vsel %vm2817, %v2812, %v2802
  %v2820 = vsel %vm2817, %v2813, %v2804
  %v2821 = vsel %vm2817, %v2814, %v2806
  %v2822 = vsel %vm2817, %v2815, %v2808
  %v2823 = vsel %vm2817, %v2816, %v2810
  %vm2830 = vcmask 1044408
  %vm2831 = vcmask 72708
  %vm2832 = vmor %vm2831, %vm2830
  %2833 = vst.msk [vmem:[#allocation2 + $0x10] sm:$0xff] %vm2832, %v2818
  %2834 = vst.msk [vmem:[#allocation2 + $0x28] sm:$0xff] %vm2832, %v2819
  %2835 = vst.msk [vmem:[#allocation2 + $0x40] sm:$0xff] %vm2832, %v2820
  %2836 = vst.msk [vmem:[#allocation2 + $0x58] sm:$0xff] %vm2832, %v2821
  %2837 = vst.msk [vmem:[#allocation2 + $0x70] sm:$0xff] %vm2832, %v2822
  %2838 = vst.msk [vmem:[#allocation2 + $0x88] sm:$0xff] %vm2832, %v2823
  %v2839 = vld [vmem:[#allocation2] sm:$0xff]
  %v2840 = vld [vmem:[#allocation2 + $0x8] sm:$0xff]
  %v2841 = vld [vmem:[#allocation2 + $0x10] sm:$0xff]
  %v2842 = vld [vmem:[#allocation2 + $0x18] sm:$0xff]
  %v2843 = vld [vmem:[#allocation2 + $0x20] sm:$0xff]
  %v2844 = vld [vmem:[#allocation2 + $0x28] sm:$0xff]
  %v2845 = vld [vmem:[#allocation2 + $0x30] sm:$0xff]
  %v2846 = vld [vmem:[#allocation2 + $0x38] sm:$0xff]
  %v2847 = vld [vmem:[#allocation2 + $0x40] sm:$0xff]
  %v2848 = vld [vmem:[#allocation2 + $0x48] sm:$0xff]
  %v2849 = vld [vmem:[#allocation2 + $0x50] sm:$0xff]
  %v2850 = vld [vmem:[#allocation2 + $0x58] sm:$0xff]
  %v2863 = vunpack.c.l.b16 %v2839
  %v2864 = vunpack.c.h.b16 %v2839
  %v2865 = vunpack.c.l.b16 %v2840
  %v2866 = vunpack.c.h.b16 %v2840
  %v2867 = vunpack.c.l.b16 %v2841
  %v2868 = vunpack.c.h.b16 %v2841
  %v2869 = vunpack.c.l.b16 %v2842
  %v2870 = vunpack.c.h.b16 %v2842
  %v2871 = vunpack.c.l.b16 %v2843
  %v2872 = vunpack.c.h.b16 %v2843
  %v2873 = vunpack.c.l.b16 %v2844
  %v2874 = vunpack.c.h.b16 %v2844
  %v2875 = vunpack.c.l.b16 %v2845
  %v2876 = vunpack.c.h.b16 %v2845
  %v2877 = vunpack.c.l.b16 %v2846
  %v2878 = vunpack.c.h.b16 %v2846
  %v2879 = vunpack.c.l.b16 %v2847
  %v2880 = vunpack.c.h.b16 %v2847
  %v2881 = vunpack.c.l.b16 %v2848
  %v2882 = vunpack.c.h.b16 %v2848
  %v2883 = vunpack.c.l.b16 %v2849
  %v2884 = vunpack.c.h.b16 %v2849
  %v2885 = vunpack.c.l.b16 %v2850
  %v2886 = vunpack.c.h.b16 %v2850
  %v2887 = vpack.c.b16 %v2869, %v2863
  %v2888 = vpack.c.b16 %v2870, %v2864
  %v2889 = vpack.c.b16 %v2871, %v2865
  %v2890 = vpack.c.b16 %v2872, %v2866
  %v2891 = vpack.c.b16 %v2873, %v2867
  %v2892 = vpack.c.b16 %v2874, %v2868
  %v2893 = vpack.c.b16 %v2881, %v2875
  %v2894 = vpack.c.b16 %v2882, %v2876
  %v2895 = vpack.c.b16 %v2883, %v2877
  %v2896 = vpack.c.b16 %v2884, %v2878
  %v2897 = vpack.c.b16 %v2885, %v2879
  %v2898 = vpack.c.b16 %v2886, %v2880
  %2911 = vrot.lane.b32.xlu0 %v2887, 127
  %v2912 = vpop.permute.xlu0 %2911
  %2913 = vrot.lane.b32.xlu0 %v2888, 127
  %v2914 = vpop.permute.xlu0 %2913
  %2915 = vrot.lane.b32.xlu0 %v2889, 127
  %v2916 = vpop.permute.xlu0 %2915
  %2917 = vrot.lane.b32.xlu0 %v2890, 127
  %v2918 = vpop.permute.xlu0 %2917
  %2919 = vrot.lane.b32.xlu0 %v2891, 127
  %v2920 = vpop.permute.xlu0 %2919
  %2921 = vrot.lane.b32.xlu0 %v2892, 127
  %v2922 = vpop.permute.xlu0 %2921
  %2923 = vrot.lane.b32.xlu0 %v2893, 127
  %v2924 = vpop.permute.xlu0 %2923
  %2925 = vrot.lane.b32.xlu0 %v2894, 127
  %v2926 = vpop.permute.xlu0 %2925
  %2927 = vrot.lane.b32.xlu0 %v2895, 127
  %v2928 = vpop.permute.xlu0 %2927
  %2929 = vrot.lane.b32.xlu0 %v2896, 127
  %v2930 = vpop.permute.xlu0 %2929
  %2931 = vrot.lane.b32.xlu0 %v2897, 127
  %v2932 = vpop.permute.xlu0 %2931
  %2933 = vrot.lane.b32.xlu0 %v2898, 127
  %v2934 = vpop.permute.xlu0 %2933
  %v2935 = vsel %vm1159, %v2912, %v2914
  %v2936 = vsel %vm1159, %v2914, %v2916
  %v2937 = vsel %vm1159, %v2916, %v2918
  %v2938 = vsel %vm1159, %v2918, %v2920
  %v2939 = vsel %vm1159, %v2920, %v2922
  %v2940 = vsel %vm1159, %v2924, %v2926
  %v2941 = vsel %vm1159, %v2926, %v2928
  %v2942 = vsel %vm1159, %v2928, %v2930
  %v2943 = vsel %vm1159, %v2930, %v2932
  %v2944 = vsel %vm1159, %v2932, %v2934
  %2957 = vrot.lane.b32.xlu0 %v2887, 126
  %v2958 = vpop.permute.xlu0 %2957
  %2959 = vrot.lane.b32.xlu0 %v2888, 126
  %v2960 = vpop.permute.xlu0 %2959
  %2961 = vrot.lane.b32.xlu0 %v2889, 126
  %v2962 = vpop.permute.xlu0 %2961
  %2963 = vrot.lane.b32.xlu0 %v2890, 126
  %v2964 = vpop.permute.xlu0 %2963
  %2965 = vrot.lane.b32.xlu0 %v2891, 126
  %v2966 = vpop.permute.xlu0 %2965
  %2967 = vrot.lane.b32.xlu0 %v2892, 126
  %v2968 = vpop.permute.xlu0 %2967
  %2969 = vrot.lane.b32.xlu0 %v2893, 126
  %v2970 = vpop.permute.xlu0 %2969
  %2971 = vrot.lane.b32.xlu0 %v2894, 126
  %v2972 = vpop.permute.xlu0 %2971
  %2973 = vrot.lane.b32.xlu0 %v2895, 126
  %v2974 = vpop.permute.xlu0 %2973
  %2975 = vrot.lane.b32.xlu0 %v2896, 126
  %v2976 = vpop.permute.xlu0 %2975
  %2977 = vrot.lane.b32.xlu0 %v2897, 126
  %v2978 = vpop.permute.xlu0 %2977
  %2979 = vrot.lane.b32.xlu0 %v2898, 126
  %v2980 = vpop.permute.xlu0 %2979
  %vm2981 = vcmask 1031168
  %v2982 = vsel %vm2981, %v2958, %v2960
  %v2983 = vsel %vm2981, %v2960, %v2962
  %v2984 = vsel %vm2981, %v2962, %v2964
  %v2985 = vsel %vm2981, %v2964, %v2966
  %v2986 = vsel %vm2981, %v2966, %v2968
  %v2987 = vsel %vm2981, %v2970, %v2972
  %v2988 = vsel %vm2981, %v2972, %v2974
  %v2989 = vsel %vm2981, %v2974, %v2976
  %v2990 = vsel %vm2981, %v2976, %v2978
  %v2991 = vsel %vm2981, %v2978, %v2980
  %v3004 = vld [vmem:[%s4] sm:$0xf]
  %v3005 = vld [vmem:[%s4 + $0x4] sm:$0xf]
  %s3006 = scalar_lea.vmem %s4, 8
  %v3007 = vld [vmem:[%s3006] sm:$0xf]
  %v3008 = vld [vmem:[%s3006 + $0x4] sm:$0xf]
  %v3011 = vunpack.c.l.b16 %v3007
  %v3012 = vunpack.c.l.b16 %v3008
  %v3013 = vpack.c.b16 %v3012, %v3011
  %3014 = vrot.lane.b32.xlu0 %v2887, 110
  %v3015 = vpop.permute.xlu0 %3014
  %3016 = vrot.lane.b32.xlu0 %v2888, 110
  %v3017 = vpop.permute.xlu0 %3016
  %3018 = vrot.lane.b32.xlu0 %v2889, 110
  %v3019 = vpop.permute.xlu0 %3018
  %3020 = vrot.lane.b32.xlu0 %v2890, 110
  %v3021 = vpop.permute.xlu0 %3020
  %3022 = vrot.lane.b32.xlu0 %v2891, 110
  %v3023 = vpop.permute.xlu0 %3022
  %3024 = vrot.lane.b32.xlu0 %v2892, 110
  %v3025 = vpop.permute.xlu0 %3024
  %3026 = vrot.lane.b32.xlu0 %v2893, 110
  %v3027 = vpop.permute.xlu0 %3026
  %3028 = vrot.lane.b32.xlu0 %v2894, 110
  %v3029 = vpop.permute.xlu0 %3028
  %3030 = vrot.lane.b32.xlu0 %v2895, 110
  %v3031 = vpop.permute.xlu0 %3030
  %3032 = vrot.lane.b32.xlu0 %v2896, 110
  %v3033 = vpop.permute.xlu0 %3032
  %3034 = vrot.lane.b32.xlu0 %v2897, 110
  %v3035 = vpop.permute.xlu0 %3034
  %3036 = vrot.lane.b32.xlu0 %v2898, 110
  %v3037 = vpop.permute.xlu0 %3036
  %3038 = vrot.lane.b32.xlu0 %v2935, 110
  %v3039 = vpop.permute.xlu0 %3038
  %3040 = vrot.lane.b32.xlu0 %v2936, 110
  %v3041 = vpop.permute.xlu0 %3040
  %3042 = vrot.lane.b32.xlu0 %v2937, 110
  %v3043 = vpop.permute.xlu0 %3042
  %3044 = vrot.lane.b32.xlu0 %v2938, 110
  %v3045 = vpop.permute.xlu0 %3044
  %3046 = vrot.lane.b32.xlu0 %v2939, 110
  %v3047 = vpop.permute.xlu0 %3046
  %3048 = vrot.lane.b32.xlu0 %v2922, 110
  %v3049 = vpop.permute.xlu0 %3048
  %3050 = vrot.lane.b32.xlu0 %v2940, 110
  %v3051 = vpop.permute.xlu0 %3050
  %3052 = vrot.lane.b32.xlu0 %v2941, 110
  %v3053 = vpop.permute.xlu0 %3052
  %3054 = vrot.lane.b32.xlu0 %v2942, 110
  %v3055 = vpop.permute.xlu0 %3054
  %3056 = vrot.lane.b32.xlu0 %v2943, 110
  %v3057 = vpop.permute.xlu0 %3056
  %3058 = vrot.lane.b32.xlu0 %v2944, 110
  %v3059 = vpop.permute.xlu0 %3058
  %3060 = vrot.lane.b32.xlu0 %v2934, 110
  %v3061 = vpop.permute.xlu0 %3060
  %3062 = vrot.lane.b32.xlu0 %v2982, 110
  %v3063 = vpop.permute.xlu0 %3062
  %3064 = vrot.lane.b32.xlu0 %v2983, 110
  %v3065 = vpop.permute.xlu0 %3064
  %3066 = vrot.lane.b32.xlu0 %v2984, 110
  %v3067 = vpop.permute.xlu0 %3066
  %3068 = vrot.lane.b32.xlu0 %v2985, 110
  %v3069 = vpop.permute.xlu0 %3068
  %3070 = vrot.lane.b32.xlu0 %v2986, 110
  %v3071 = vpop.permute.xlu0 %3070
  %3072 = vrot.lane.b32.xlu0 %v2968, 110
  %v3073 = vpop.permute.xlu0 %3072
  %3074 = vrot.lane.b32.xlu0 %v2987, 110
  %v3075 = vpop.permute.xlu0 %3074
  %3076 = vrot.lane.b32.xlu0 %v2988, 110
  %v3077 = vpop.permute.xlu0 %3076
  %3078 = vrot.lane.b32.xlu0 %v2989, 110
  %v3079 = vpop.permute.xlu0 %3078
  %3080 = vrot.lane.b32.xlu0 %v2990, 110
  %v3081 = vpop.permute.xlu0 %3080
  %3082 = vrot.lane.b32.xlu0 %v2991, 110
  %v3083 = vpop.permute.xlu0 %3082
  %3084 = vrot.lane.b32.xlu0 %v2980, 110
  %v3085 = vpop.permute.xlu0 %3084
  %vm3086 = vcmask 900096
  %v3087 = vsel %vm3086, %v3015, %v3017
  %v3088 = vsel %vm3086, %v3017, %v3019
  %v3089 = vsel %vm3086, %v3019, %v3021
  %v3090 = vsel %vm3086, %v3021, %v3023
  %v3091 = vsel %vm3086, %v3023, %v3025
  %v3092 = vsel %vm3086, %v3027, %v3029
  %v3093 = vsel %vm3086, %v3029, %v3031
  %v3094 = vsel %vm3086, %v3031, %v3033
  %v3095 = vsel %vm3086, %v3033, %v3035
  %v3096 = vsel %vm3086, %v3035, %v3037
  %v3097 = vsel %vm3086, %v3039, %v3041
  %v3098 = vsel %vm3086, %v3041, %v3043
  %v3099 = vsel %vm3086, %v3043, %v3045
  %v3100 = vsel %vm3086, %v3045, %v3047
  %v3101 = vsel %vm3086, %v3047, %v3049
  %v3102 = vsel %vm3086, %v3051, %v3053
  %v3103 = vsel %vm3086, %v3053, %v3055
  %v3104 = vsel %vm3086, %v3055, %v3057
  %v3105 = vsel %vm3086, %v3057, %v3059
  %v3106 = vsel %vm3086, %v3059, %v3061
  %v3107 = vsel %vm3086, %v3063, %v3065
  %v3108 = vsel %vm3086, %v3065, %v3067
  %v3109 = vsel %vm3086, %v3067, %v3069
  %v3110 = vsel %vm3086, %v3069, %v3071
  %v3111 = vsel %vm3086, %v3071, %v3073
  %v3112 = vsel %vm3086, %v3075, %v3077
  %v3113 = vsel %vm3086, %v3077, %v3079
  %v3114 = vsel %vm3086, %v3079, %v3081
  %v3115 = vsel %vm3086, %v3081, %v3083
  %v3116 = vsel %vm3086, %v3083, %v3085
  %vm3153 = vcmask 785408
  %v3155 = vsel %vm3153, %v3013, 0
  %3157 = vmatpush.bf16.msra.mxu0 0
  %3158 = vmatpush.bf16.msra.mxu0 0
  %3159 = vmatpush.bf16.msra.mxu0 %v3112
  %3160 = vmatpush.bf16.msra.mxu0 %v3107
  %3161 = vmatpush.bf16.msra.mxu0 %v3102
  %3162 = vmatpush.bf16.msra.mxu0 %v3097
  %3163 = vmatpush.bf16.msra.mxu0 %v3092
  %3164 = vmatpush.bf16.msra.mxu0 %v3087
  %3165 = vmatmul.bf16.gmra.mxu0 %v3155
  %v3166 = vpop.f32.mrf.mxu0
  %v3167 = vadd.f32 0.0, %v3166
  %v3168 = vpop.f32.mrf.mxu0
  %v3169 = vadd.f32 0.0, %v3168
  %3170 = vdwg.mxu0
  %3171 = vmatpush.bf16.msra.mxu0 0
  %3172 = vmatpush.bf16.msra.mxu0 0
  %3173 = vmatpush.bf16.msra.mxu0 %v3113
  %3174 = vmatpush.bf16.msra.mxu0 %v3108
  %3175 = vmatpush.bf16.msra.mxu0 %v3103
  %3176 = vmatpush.bf16.msra.mxu0 %v3098
  %3177 = vmatpush.bf16.msra.mxu0 %v3093
  %3178 = vmatpush.bf16.msra.mxu0 %v3088
  %3179 = vmatmul.bf16.gmra.mxu0 %v3155
  %v3180 = vpop.f32.mrf.mxu0
  %v3181 = vadd.f32 0.0, %v3180
  %v3182 = vpop.f32.mrf.mxu0
  %v3183 = vadd.f32 0.0, %v3182
  %3184 = vdwg.mxu0
  %3185 = vmatpush.bf16.msra.mxu0 0
  %3186 = vmatpush.bf16.msra.mxu0 0
  %3187 = vmatpush.bf16.msra.mxu0 %v3114
  %3188 = vmatpush.bf16.msra.mxu0 %v3109
  %3189 = vmatpush.bf16.msra.mxu0 %v3104
  %3190 = vmatpush.bf16.msra.mxu0 %v3099
  %3191 = vmatpush.bf16.msra.mxu0 %v3094
  %3192 = vmatpush.bf16.msra.mxu0 %v3089
  %3193 = vmatmul.bf16.gmra.mxu0 %v3155
  %v3194 = vpop.f32.mrf.mxu0
  %v3195 = vadd.f32 0.0, %v3194
  %v3196 = vpop.f32.mrf.mxu0
  %v3197 = vadd.f32 0.0, %v3196
  %3198 = vdwg.mxu0
  %3199 = vmatpush.bf16.msra.mxu0 0
  %3200 = vmatpush.bf16.msra.mxu0 0
  %3201 = vmatpush.bf16.msra.mxu0 %v3115
  %3202 = vmatpush.bf16.msra.mxu0 %v3110
  %3203 = vmatpush.bf16.msra.mxu0 %v3105
  %3204 = vmatpush.bf16.msra.mxu0 %v3100
  %3205 = vmatpush.bf16.msra.mxu0 %v3095
  %3206 = vmatpush.bf16.msra.mxu0 %v3090
  %3207 = vmatmul.bf16.gmra.mxu0 %v3155
  %v3208 = vpop.f32.mrf.mxu0
  %v3209 = vadd.f32 0.0, %v3208
  %v3210 = vpop.f32.mrf.mxu0
  %v3211 = vadd.f32 0.0, %v3210
  %3212 = vdwg.mxu0
  %3213 = vmatpush.bf16.msra.mxu0 0
  %3214 = vmatpush.bf16.msra.mxu0 0
  %3215 = vmatpush.bf16.msra.mxu0 %v3116
  %3216 = vmatpush.bf16.msra.mxu0 %v3111
  %3217 = vmatpush.bf16.msra.mxu0 %v3106
  %3218 = vmatpush.bf16.msra.mxu0 %v3101
  %3219 = vmatpush.bf16.msra.mxu0 %v3096
  %3220 = vmatpush.bf16.msra.mxu0 %v3091
  %3221 = vmatmul.bf16.gmra.mxu0 %v3155
  %v3222 = vpop.f32.mrf.mxu0
  %v3223 = vadd.f32 0.0, %v3222
  %v3224 = vpop.f32.mrf.mxu0
  %v3225 = vadd.f32 0.0, %v3224
  %3226 = vdwg.mxu0
  %3227 = vmatpush.bf16.msra.mxu0 0
  %3228 = vmatpush.bf16.msra.mxu0 0
  %3229 = vmatpush.bf16.msra.mxu0 %v3085
  %3230 = vmatpush.bf16.msra.mxu0 %v3073
  %3231 = vmatpush.bf16.msra.mxu0 %v3061
  %3232 = vmatpush.bf16.msra.mxu0 %v3049
  %3233 = vmatpush.bf16.msra.mxu0 %v3037
  %3234 = vmatpush.bf16.msra.mxu0 %v3025
  %3235 = vmatmul.bf16.gmra.mxu0 %v3155
  %v3236 = vpop.f32.mrf.mxu0
  %v3237 = vadd.f32 0.0, %v3236
  %v3238 = vpop.f32.mrf.mxu0
  %v3239 = vadd.f32 0.0, %v3238
  %3240 = vdwg.mxu0
  %v3243 = vunpack.c.l.b16 %v3004
  %v3244 = vunpack.c.l.b16 %v3005
  %v3245 = vpack.c.b16 %v3244, %v3243
  %v3247 = vsel %vm3153, %v3245, 0
  %3249 = vmatpush.bf16.msra.mxu0 0
  %3250 = vmatpush.bf16.msra.mxu0 0
  %3251 = vmatpush.bf16.msra.mxu0 %v2987
  %3252 = vmatpush.bf16.msra.mxu0 %v2982
  %3253 = vmatpush.bf16.msra.mxu0 %v2940
  %3254 = vmatpush.bf16.msra.mxu0 %v2935
  %3255 = vmatpush.bf16.msra.mxu0 %v2893
  %3256 = vmatpush.bf16.msra.mxu0 %v2887
  %3257 = vmatmul.bf16.gmra.mxu0 %v3247
  %v3258 = vpop.f32.mrf.mxu0
  %v3259 = vadd.f32 %v3167, %v3258
  %v3260 = vpop.f32.mrf.mxu0
  %v3261 = vadd.f32 %v3169, %v3260
  %3262 = vdwg.mxu0
  %3263 = vmatpush.bf16.msra.mxu0 0
  %3264 = vmatpush.bf16.msra.mxu0 0
  %3265 = vmatpush.bf16.msra.mxu0 %v2988
  %3266 = vmatpush.bf16.msra.mxu0 %v2983
  %3267 = vmatpush.bf16.msra.mxu0 %v2941
  %3268 = vmatpush.bf16.msra.mxu0 %v2936
  %3269 = vmatpush.bf16.msra.mxu0 %v2894
  %3270 = vmatpush.bf16.msra.mxu0 %v2888
  %3271 = vmatmul.bf16.gmra.mxu0 %v3247
  %v3272 = vpop.f32.mrf.mxu0
  %v3273 = vadd.f32 %v3181, %v3272
  %v3274 = vpop.f32.mrf.mxu0
  %v3275 = vadd.f32 %v3183, %v3274
  %3276 = vdwg.mxu0
  %3277 = vmatpush.bf16.msra.mxu0 0
  %3278 = vmatpush.bf16.msra.mxu0 0
  %3279 = vmatpush.bf16.msra.mxu0 %v2989
  %3280 = vmatpush.bf16.msra.mxu0 %v2984
  %3281 = vmatpush.bf16.msra.mxu0 %v2942
  %3282 = vmatpush.bf16.msra.mxu0 %v2937
  %3283 = vmatpush.bf16.msra.mxu0 %v2895
  %3284 = vmatpush.bf16.msra.mxu0 %v2889
  %3285 = vmatmul.bf16.gmra.mxu0 %v3247
  %v3286 = vpop.f32.mrf.mxu0
  %v3287 = vadd.f32 %v3195, %v3286
  %v3288 = vpop.f32.mrf.mxu0
  %v3289 = vadd.f32 %v3197, %v3288
  %3290 = vdwg.mxu0
  %3291 = vmatpush.bf16.msra.mxu0 0
  %3292 = vmatpush.bf16.msra.mxu0 0
  %3293 = vmatpush.bf16.msra.mxu0 %v2990
  %3294 = vmatpush.bf16.msra.mxu0 %v2985
  %3295 = vmatpush.bf16.msra.mxu0 %v2943
  %3296 = vmatpush.bf16.msra.mxu0 %v2938
  %3297 = vmatpush.bf16.msra.mxu0 %v2896
  %3298 = vmatpush.bf16.msra.mxu0 %v2890
  %3299 = vmatmul.bf16.gmra.mxu0 %v3247
  %v3300 = vpop.f32.mrf.mxu0
  %v3301 = vadd.f32 %v3209, %v3300
  %v3302 = vpop.f32.mrf.mxu0
  %v3303 = vadd.f32 %v3211, %v3302
  %3304 = vdwg.mxu0
  %3305 = vmatpush.bf16.msra.mxu0 0
  %3306 = vmatpush.bf16.msra.mxu0 0
  %3307 = vmatpush.bf16.msra.mxu0 %v2991
  %3308 = vmatpush.bf16.msra.mxu0 %v2986
  %3309 = vmatpush.bf16.msra.mxu0 %v2944
  %3310 = vmatpush.bf16.msra.mxu0 %v2939
  %3311 = vmatpush.bf16.msra.mxu0 %v2897
  %3312 = vmatpush.bf16.msra.mxu0 %v2891
  %3313 = vmatmul.bf16.gmra.mxu0 %v3247
  %v3314 = vpop.f32.mrf.mxu0
  %v3315 = vadd.f32 %v3223, %v3314
  %v3316 = vpop.f32.mrf.mxu0
  %v3317 = vadd.f32 %v3225, %v3316
  %3318 = vdwg.mxu0
  %3319 = vmatpush.bf16.msra.mxu0 0
  %3320 = vmatpush.bf16.msra.mxu0 0
  %3321 = vmatpush.bf16.msra.mxu0 %v2980
  %3322 = vmatpush.bf16.msra.mxu0 %v2968
  %3323 = vmatpush.bf16.msra.mxu0 %v2934
  %3324 = vmatpush.bf16.msra.mxu0 %v2922
  %3325 = vmatpush.bf16.msra.mxu0 %v2898
  %3326 = vmatpush.bf16.msra.mxu0 %v2892
  %3327 = vmatmul.bf16.gmra.mxu0 %v3247
  %v3328 = vpop.f32.mrf.mxu0
  %v3329 = vadd.f32 %v3237, %v3328
  %v3330 = vpop.f32.mrf.mxu0
  %v3331 = vadd.f32 %v3239, %v3330
  %3332 = vdwg.mxu0
  %s3333 = scalar_lea.vmem %s4, 16
  %v3334 = vld [vmem:[%s3333] sm:$0xf]
  %v3335 = vld [vmem:[%s3333 + $0x4] sm:$0xf]
  %v3338 = vunpack.c.l.b16 %v3334
  %v3339 = vunpack.c.l.b16 %v3335
  %v3340 = vpack.c.b16 %v3339, %v3338
  %3341 = vrot.lane.b32.xlu0 %v2887, 92
  %v3342 = vpop.permute.xlu0 %3341
  %3343 = vrot.lane.b32.xlu0 %v2888, 92
  %v3344 = vpop.permute.xlu0 %3343
  %3345 = vrot.lane.b32.xlu0 %v2889, 92
  %v3346 = vpop.permute.xlu0 %3345
  %3347 = vrot.lane.b32.xlu0 %v2890, 92
  %v3348 = vpop.permute.xlu0 %3347
  %3349 = vrot.lane.b32.xlu0 %v2891, 92
  %v3350 = vpop.permute.xlu0 %3349
  %3351 = vrot.lane.b32.xlu0 %v2892, 92
  %v3352 = vpop.permute.xlu0 %3351
  %3353 = vrot.lane.b32.xlu0 %v2893, 92
  %v3354 = vpop.permute.xlu0 %3353
  %3355 = vrot.lane.b32.xlu0 %v2894, 92
  %v3356 = vpop.permute.xlu0 %3355
  %3357 = vrot.lane.b32.xlu0 %v2895, 92
  %v3358 = vpop.permute.xlu0 %3357
  %3359 = vrot.lane.b32.xlu0 %v2896, 92
  %v3360 = vpop.permute.xlu0 %3359
  %3361 = vrot.lane.b32.xlu0 %v2897, 92
  %v3362 = vpop.permute.xlu0 %3361
  %3363 = vrot.lane.b32.xlu0 %v2898, 92
  %v3364 = vpop.permute.xlu0 %3363
  %3365 = vrot.lane.b32.xlu0 %v2935, 92
  %v3366 = vpop.permute.xlu0 %3365
  %3367 = vrot.lane.b32.xlu0 %v2936, 92
  %v3368 = vpop.permute.xlu0 %3367
  %3369 = vrot.lane.b32.xlu0 %v2937, 92
  %v3370 = vpop.permute.xlu0 %3369
  %3371 = vrot.lane.b32.xlu0 %v2938, 92
  %v3372 = vpop.permute.xlu0 %3371
  %3373 = vrot.lane.b32.xlu0 %v2939, 92
  %v3374 = vpop.permute.xlu0 %3373
  %3375 = vrot.lane.b32.xlu0 %v2922, 92
  %v3376 = vpop.permute.xlu0 %3375
  %3377 = vrot.lane.b32.xlu0 %v2940, 92
  %v3378 = vpop.permute.xlu0 %3377
  %3379 = vrot.lane.b32.xlu0 %v2941, 92
  %v3380 = vpop.permute.xlu0 %3379
  %3381 = vrot.lane.b32.xlu0 %v2942, 92
  %v3382 = vpop.permute.xlu0 %3381
  %3383 = vrot.lane.b32.xlu0 %v2943, 92
  %v3384 = vpop.permute.xlu0 %3383
  %3385 = vrot.lane.b32.xlu0 %v2944, 92
  %v3386 = vpop.permute.xlu0 %3385
  %3387 = vrot.lane.b32.xlu0 %v2934, 92
  %v3388 = vpop.permute.xlu0 %3387
  %3389 = vrot.lane.b32.xlu0 %v2982, 92
  %v3390 = vpop.permute.xlu0 %3389
  %3391 = vrot.lane.b32.xlu0 %v2983, 92
  %v3392 = vpop.permute.xlu0 %3391
  %3393 = vrot.lane.b32.xlu0 %v2984, 92
  %v3394 = vpop.permute.xlu0 %3393
  %3395 = vrot.lane.b32.xlu0 %v2985, 92
  %v3396 = vpop.permute.xlu0 %3395
  %3397 = vrot.lane.b32.xlu0 %v2986, 92
  %v3398 = vpop.permute.xlu0 %3397
  %3399 = vrot.lane.b32.xlu0 %v2968, 92
  %v3400 = vpop.permute.xlu0 %3399
  %3401 = vrot.lane.b32.xlu0 %v2987, 92
  %v3402 = vpop.permute.xlu0 %3401
  %3403 = vrot.lane.b32.xlu0 %v2988, 92
  %v3404 = vpop.permute.xlu0 %3403
  %3405 = vrot.lane.b32.xlu0 %v2989, 92
  %v3406 = vpop.permute.xlu0 %3405
  %3407 = vrot.lane.b32.xlu0 %v2990, 92
  %v3408 = vpop.permute.xlu0 %3407
  %3409 = vrot.lane.b32.xlu0 %v2991, 92
  %v3410 = vpop.permute.xlu0 %3409
  %3411 = vrot.lane.b32.xlu0 %v2980, 92
  %v3412 = vpop.permute.xlu0 %3411
  %vm3413 = vcmask 752640
  %v3414 = vsel %vm3413, %v3342, %v3344
  %v3415 = vsel %vm3413, %v3344, %v3346
  %v3416 = vsel %vm3413, %v3346, %v3348
  %v3417 = vsel %vm3413, %v3348, %v3350
  %v3418 = vsel %vm3413, %v3350, %v3352
  %v3419 = vsel %vm3413, %v3354, %v3356
  %v3420 = vsel %vm3413, %v3356, %v3358
  %v3421 = vsel %vm3413, %v3358, %v3360
  %v3422 = vsel %vm3413, %v3360, %v3362
  %v3423 = vsel %vm3413, %v3362, %v3364
  %v3424 = vsel %vm3413, %v3366, %v3368
  %v3425 = vsel %vm3413, %v3368, %v3370
  %v3426 = vsel %vm3413, %v3370, %v3372
  %v3427 = vsel %vm3413, %v3372, %v3374
  %v3428 = vsel %vm3413, %v3374, %v3376
  %v3429 = vsel %vm3413, %v3378, %v3380
  %v3430 = vsel %vm3413, %v3380, %v3382
  %v3431 = vsel %vm3413, %v3382, %v3384
  %v3432 = vsel %vm3413, %v3384, %v3386
  %v3433 = vsel %vm3413, %v3386, %v3388
  %v3434 = vsel %vm3413, %v3390, %v3392
  %v3435 = vsel %vm3413, %v3392, %v3394
  %v3436 = vsel %vm3413, %v3394, %v3396
  %v3437 = vsel %vm3413, %v3396, %v3398
  %v3438 = vsel %vm3413, %v3398, %v3400
  %v3439 = vsel %vm3413, %v3402, %v3404
  %v3440 = vsel %vm3413, %v3404, %v3406
  %v3441 = vsel %vm3413, %v3406, %v3408
  %v3442 = vsel %vm3413, %v3408, %v3410
  %v3443 = vsel %vm3413, %v3410, %v3412
  %v3481 = vsel %vm3153, %v3340, 0
  %3483 = vmatpush.bf16.msra.mxu0 0
  %3484 = vmatpush.bf16.msra.mxu0 0
  %3485 = vmatpush.bf16.msra.mxu0 %v3439
  %3486 = vmatpush.bf16.msra.mxu0 %v3434
  %3487 = vmatpush.bf16.msra.mxu0 %v3429
  %3488 = vmatpush.bf16.msra.mxu0 %v3424
  %3489 = vmatpush.bf16.msra.mxu0 %v3419
  %3490 = vmatpush.bf16.msra.mxu0 %v3414
  %3491 = vmatmul.bf16.gmra.mxu0 %v3481
  %v3492 = vpop.f32.mrf.mxu0
  %v3493 = vadd.f32 0.0, %v3492
  %v3494 = vpop.f32.mrf.mxu0
  %v3495 = vadd.f32 0.0, %v3494
  %3496 = vdwg.mxu0
  %3497 = vmatpush.bf16.msra.mxu0 0
  %3498 = vmatpush.bf16.msra.mxu0 0
  %3499 = vmatpush.bf16.msra.mxu0 %v3440
  %3500 = vmatpush.bf16.msra.mxu0 %v3435
  %3501 = vmatpush.bf16.msra.mxu0 %v3430
  %3502 = vmatpush.bf16.msra.mxu0 %v3425
  %3503 = vmatpush.bf16.msra.mxu0 %v3420
  %3504 = vmatpush.bf16.msra.mxu0 %v3415
  %3505 = vmatmul.bf16.gmra.mxu0 %v3481
  %v3506 = vpop.f32.mrf.mxu0
  %v3507 = vadd.f32 0.0, %v3506
  %v3508 = vpop.f32.mrf.mxu0
  %v3509 = vadd.f32 0.0, %v3508
  %3510 = vdwg.mxu0
  %3511 = vmatpush.bf16.msra.mxu0 0
  %3512 = vmatpush.bf16.msra.mxu0 0
  %3513 = vmatpush.bf16.msra.mxu0 %v3441
  %3514 = vmatpush.bf16.msra.mxu0 %v3436
  %3515 = vmatpush.bf16.msra.mxu0 %v3431
  %3516 = vmatpush.bf16.msra.mxu0 %v3426
  %3517 = vmatpush.bf16.msra.mxu0 %v3421
  %3518 = vmatpush.bf16.msra.mxu0 %v3416
  %3519 = vmatmul.bf16.gmra.mxu0 %v3481
  %v3520 = vpop.f32.mrf.mxu0
  %v3521 = vadd.f32 0.0, %v3520
  %v3522 = vpop.f32.mrf.mxu0
  %v3523 = vadd.f32 0.0, %v3522
  %3524 = vdwg.mxu0
  %3525 = vmatpush.bf16.msra.mxu0 0
  %3526 = vmatpush.bf16.msra.mxu0 0
  %3527 = vmatpush.bf16.msra.mxu0 %v3442
  %3528 = vmatpush.bf16.msra.mxu0 %v3437
  %3529 = vmatpush.bf16.msra.mxu0 %v3432
  %3530 = vmatpush.bf16.msra.mxu0 %v3427
  %3531 = vmatpush.bf16.msra.mxu0 %v3422
  %3532 = vmatpush.bf16.msra.mxu0 %v3417
  %3533 = vmatmul.bf16.gmra.mxu0 %v3481
  %v3534 = vpop.f32.mrf.mxu0
  %v3535 = vadd.f32 0.0, %v3534
  %v3536 = vpop.f32.mrf.mxu0
  %v3537 = vadd.f32 0.0, %v3536
  %3538 = vdwg.mxu0
  %3539 = vmatpush.bf16.msra.mxu0 0
  %3540 = vmatpush.bf16.msra.mxu0 0
  %3541 = vmatpush.bf16.msra.mxu0 %v3443
  %3542 = vmatpush.bf16.msra.mxu0 %v3438
  %3543 = vmatpush.bf16.msra.mxu0 %v3433
  %3544 = vmatpush.bf16.msra.mxu0 %v3428
  %3545 = vmatpush.bf16.msra.mxu0 %v3423
  %3546 = vmatpush.bf16.msra.mxu0 %v3418
  %3547 = vmatmul.bf16.gmra.mxu0 %v3481
  %v3548 = vpop.f32.mrf.mxu0
  %v3549 = vadd.f32 0.0, %v3548
  %v3550 = vpop.f32.mrf.mxu0
  %v3551 = vadd.f32 0.0, %v3550
  %3552 = vdwg.mxu0
  %3553 = vmatpush.bf16.msra.mxu0 0
  %3554 = vmatpush.bf16.msra.mxu0 0
  %3555 = vmatpush.bf16.msra.mxu0 %v3412
  %3556 = vmatpush.bf16.msra.mxu0 %v3400
  %3557 = vmatpush.bf16.msra.mxu0 %v3388
  %3558 = vmatpush.bf16.msra.mxu0 %v3376
  %3559 = vmatpush.bf16.msra.mxu0 %v3364
  %3560 = vmatpush.bf16.msra.mxu0 %v3352
  %3561 = vmatmul.bf16.gmra.mxu0 %v3481
  %v3562 = vpop.f32.mrf.mxu0
  %v3563 = vadd.f32 0.0, %v3562
  %v3564 = vpop.f32.mrf.mxu0
  %v3565 = vadd.f32 0.0, %v3564
  %3566 = vdwg.mxu0
  %v3567 = vadd.f32 %v3259, %v3493
  %v3568 = vadd.f32 %v3273, %v3507
  %v3569 = vadd.f32 %v3287, %v3521
  %v3570 = vadd.f32 %v3301, %v3535
  %v3571 = vadd.f32 %v3315, %v3549
  %v3572 = vadd.f32 %v3329, %v3563
  %v3573 = vadd.f32 %v3261, %v3495
  %v3574 = vadd.f32 %v3275, %v3509
  %v3575 = vadd.f32 %v3289, %v3523
  %v3576 = vadd.f32 %v3303, %v3537
  %v3577 = vadd.f32 %v3317, %v3551
  %v3578 = vadd.f32 %v3331, %v3565
  %v3579 = vld [vmem:[%s11] sm:$0x3f]
  %v3580 = vld [vmem:[%s7] sm:$0xff]
  %v3581 = vld [vmem:[%s7 + $0x8] sm:$0xff]
  %3583 = vset.pattern.permute.xlu0 0
  %3584 = vperm.xlu0 %3583, %v3580
  %v3585 = vpop.permute.xlu0 %3584
  %3588 = vset.pattern.permute.xlu0 0
  %3589 = vperm.xlu0 %3588, %v3581
  %v3590 = vpop.permute.xlu0 %3589
  %v3592 = vadd.f32 %v3567, %v3585
  %v3593 = vadd.f32 %v3568, %v3585
  %v3594 = vadd.f32 %v3569, %v3585
  %v3595 = vadd.f32 %v3570, %v3585
  %v3596 = vadd.f32 %v3571, %v3585
  %v3597 = vadd.f32 %v3572, %v3585
  %v3598 = vadd.f32 %v3573, %v3590
  %v3599 = vadd.f32 %v3574, %v3590
  %v3600 = vadd.f32 %v3575, %v3590
  %v3601 = vadd.f32 %v3576, %v3590
  %v3602 = vadd.f32 %v3577, %v3590
  %v3603 = vadd.f32 %v3578, %v3590
  %v3605 = vperm.slane %v3579, 0
  %v3606 = vperm.slane %v3579, 1
  %v3607 = vperm.slane %v3579, 2
  %v3608 = vperm.slane %v3579, 3
  %v3609 = vperm.slane %v3579, 4
  %v3610 = vperm.slane %v3579, 5
  %v3617 = vmul.f32 %v3592, %v3605
  %v3618 = vmul.f32 %v3593, %v3606
  %v3619 = vmul.f32 %v3594, %v3607
  %v3620 = vmul.f32 %v3595, %v3608
  %v3621 = vmul.f32 %v3596, %v3609
  %v3622 = vmul.f32 %v3597, %v3610
  %v3623 = vmul.f32 %v3598, %v3605
  %v3624 = vmul.f32 %v3599, %v3606
  %v3625 = vmul.f32 %v3600, %v3607
  %v3626 = vmul.f32 %v3601, %v3608
  %v3627 = vmul.f32 %v3602, %v3609
  %v3628 = vmul.f32 %v3603, %v3610
  %v3629 = vadd.f32 %v3617, %v3618
  %v3630 = vadd.f32 %v3629, %v3619
  %v3631 = vadd.f32 %v3630, %v3620
  %v3632 = vadd.f32 %v3631, %v3621
  %v3633 = vsel %vm814, %v3622, 0.0
  %v3634 = vadd.f32 %v3632, %v3633
  %3635 = vadd.xlane.f32.xlu0 %v3634
  %v3636 = vpop.xlane.xlu0 %3635
  %v3637 = vadd.f32 %v3623, %v3624
  %v3638 = vadd.f32 %v3637, %v3625
  %v3639 = vadd.f32 %v3638, %v3626
  %v3640 = vadd.f32 %v3639, %v3627
  %v3641 = vsel %vm814, %v3628, 0.0
  %v3642 = vadd.f32 %v3640, %v3641
  %3643 = vadd.xlane.f32.xlu0 %v3642
  %v3644 = vpop.xlane.xlu0 %3643
  %v3645 = vrcp.pop 512.0
  %v3646 = vmul.f32 512.0, %v3645
  %v3647 = vsub.f32 1.0, %v3646
  %v3648 = vmul.f32 %v3645, %v3647
  %v3649 = vadd.f32 %v3645, %v3648
  %vm3650 = vweird.f32 %v3645
  %v3651 = vsel %vm3650, %v3645, %v3649
  %v3652 = vmul.f32 %v3636, %v3651
  %v3653 = vmul.f32 %v3644, %v3651
  %v3654 = vmul.f32 %v3617, %v3617
  %v3655 = vmul.f32 %v3618, %v3618
  %v3656 = vmul.f32 %v3619, %v3619
  %v3657 = vmul.f32 %v3620, %v3620
  %v3658 = vmul.f32 %v3621, %v3621
  %v3659 = vmul.f32 %v3622, %v3622
  %v3660 = vmul.f32 %v3623, %v3623
  %v3661 = vmul.f32 %v3624, %v3624
  %v3662 = vmul.f32 %v3625, %v3625
  %v3663 = vmul.f32 %v3626, %v3626
  %v3664 = vmul.f32 %v3627, %v3627
  %v3665 = vmul.f32 %v3628, %v3628
  %v3666 = vadd.f32 %v3654, %v3655
  %v3667 = vadd.f32 %v3666, %v3656
  %v3668 = vadd.f32 %v3667, %v3657
  %v3669 = vadd.f32 %v3668, %v3658
  %v3670 = vsel %vm814, %v3659, 0.0
  %v3671 = vadd.f32 %v3669, %v3670
  %3672 = vadd.xlane.f32.xlu0 %v3671
  %v3673 = vpop.xlane.xlu0 %3672
  %v3674 = vadd.f32 %v3660, %v3661
  %v3675 = vadd.f32 %v3674, %v3662
  %v3676 = vadd.f32 %v3675, %v3663
  %v3677 = vadd.f32 %v3676, %v3664
  %v3678 = vsel %vm814, %v3665, 0.0
  %v3679 = vadd.f32 %v3677, %v3678
  %3680 = vadd.xlane.f32.xlu0 %v3679
  %v3681 = vpop.xlane.xlu0 %3680
  %v3682 = vmul.f32 %v3673, %v3651
  %v3683 = vmul.f32 %v3681, %v3651
  %v3684 = vmul.f32 %v3652, %v3652
  %v3685 = vmul.f32 %v3653, %v3653
  %v3686 = vsub.f32 %v3682, %v3684
  %v3687 = vsub.f32 %v3683, %v3685
  %v3688 = vmax.f32 %v3686, 0.0
  %v3689 = vmax.f32 %v3687, 0.0
  %v3690 = vadd.f32 %v3688, 1e-05
  %v3691 = vadd.f32 %v3689, 1e-05
  %v3692 = vrsqrt.pop %v3690
  %v3693 = vmul.f32 %v3692, %v3690
  %v3694 = vmul.f32 %v3693, %v3692
  %v3695 = vmul.f32 0.5, %v3694
  %v3696 = vsub.f32 1.5, %v3695
  %v3697 = vmul.f32 %v3692, %v3696
  %vm3698 = vweird.f32 %v3690
  %vm3699 = vweird.f32 %v3692
  %vm3700 = vmor %vm3698, %vm3699
  %v3701 = vsel %vm3700, %v3692, %v3697
  %v3702 = vrsqrt.pop %v3691
  %v3703 = vmul.f32 %v3702, %v3691
  %v3704 = vmul.f32 %v3703, %v3702
  %v3705 = vmul.f32 0.5, %v3704
  %v3706 = vsub.f32 1.5, %v3705
  %v3707 = vmul.f32 %v3702, %v3706
  %vm3708 = vweird.f32 %v3691
  %vm3709 = vweird.f32 %v3702
  %vm3710 = vmor %vm3708, %vm3709
  %v3711 = vsel %vm3710, %v3702, %v3707
  %v3712 = vmul.f32 %v3701, %v387
  %v3713 = vmul.f32 %v3711, %v388
  %v3714 = vld [vmem:[%s10] sm:$0xff]
  %v3715 = vld [vmem:[%s10 + $0x8] sm:$0xf]
  %3718 = vst [vmem:[#allocation1] ss:$4 sm:$0xff] %v3714
  %s3719 = scalar_lea.vmem [#allocation1], 32
  %3720 = vst [vmem:[%s3719] ss:$4 sm:$0xff] %v3715
  %v3721 = vld.sshfl [vmem:[#allocation1] sm:$0xff pattern:$0x73625140]
  %v3722 = vld.sshfl [vmem:[#allocation1 + $0x8] sm:$0xff pattern:$0x73625140]
  %v3723 = vld.sshfl [vmem:[#allocation1 + $0x10] sm:$0xff pattern:$0x73625140]
  %v3724 = vld.sshfl [vmem:[#allocation1 + $0x18] sm:$0xff pattern:$0x73625140]
  %v3725 = vld.sshfl [vmem:[#allocation1 + $0x20] sm:$0xff pattern:$0x73625140]
  %v3726 = vld.sshfl [vmem:[#allocation1 + $0x28] sm:$0xff pattern:$0x73625140]
  %v3728 = vsel %vm526, %v3712, 0
  %v3731 = vsel %vm526, %v3713, 0
  %v3733 = vsel %vm539, %v3721, 0
  %v3735 = vsel %vm539, %v3722, 0
  %v3737 = vsel %vm539, %v3723, 0
  %v3739 = vsel %vm539, %v3724, 0
  %v3741 = vsel %vm539, %v3725, 0
  %v3743 = vsel %vm539, %v3726, 0
  %3745 = vmatpush.msra.mxu0 0.0
  %3746 = vmatpush.msra.mxu0 0.0
  %3747 = vmatpush.msra.mxu0 0.0
  %3748 = vmatpush.msra.mxu0 0.0
  %3749 = vmatpush.msra.mxu0 0.0
  %3750 = vmatpush.msra.mxu0 0.0
  %3751 = vmatpush.msra.mxu0 0.0
  %3752 = vmatpush.msra.mxu0 0.0
  %3753 = vmatpush.msra.mxu0 0.0
  %3754 = vmatpush.msra.mxu0 0.0
  %3755 = vmatpush.msra.mxu0 0.0
  %3756 = vmatpush.msra.mxu0 0.0
  %3757 = vmatpush.msra.mxu0 0.0
  %3758 = vmatpush.msra.mxu0 0.0
  %3759 = vmatpush.msra.mxu0 0.0
  %3760 = vmatpush.msra.mxu0 %v3733
  %3761 = vmatmul.f32.gmra.mxu0 %v3728
  %v3762 = vpop.f32.mrf.mxu0
  %v3763 = vadd.f32 0.0, %v3762
  %3764 = vmatmul.f32.gmra.mxu0 %v3731
  %v3765 = vpop.f32.mrf.mxu0
  %v3766 = vadd.f32 0.0, %v3765
  %3767 = vdwg.mxu0
  %3768 = vmatpush.msra.mxu0 0.0
  %3769 = vmatpush.msra.mxu0 0.0
  %3770 = vmatpush.msra.mxu0 0.0
  %3771 = vmatpush.msra.mxu0 0.0
  %3772 = vmatpush.msra.mxu0 0.0
  %3773 = vmatpush.msra.mxu0 0.0
  %3774 = vmatpush.msra.mxu0 0.0
  %3775 = vmatpush.msra.mxu0 0.0
  %3776 = vmatpush.msra.mxu0 0.0
  %3777 = vmatpush.msra.mxu0 0.0
  %3778 = vmatpush.msra.mxu0 0.0
  %3779 = vmatpush.msra.mxu0 0.0
  %3780 = vmatpush.msra.mxu0 0.0
  %3781 = vmatpush.msra.mxu0 0.0
  %3782 = vmatpush.msra.mxu0 0.0
  %3783 = vmatpush.msra.mxu0 %v3735
  %3784 = vmatmul.f32.gmra.mxu0 %v3728
  %v3785 = vpop.f32.mrf.mxu0
  %v3786 = vadd.f32 0.0, %v3785
  %3787 = vmatmul.f32.gmra.mxu0 %v3731
  %v3788 = vpop.f32.mrf.mxu0
  %v3789 = vadd.f32 0.0, %v3788
  %3790 = vdwg.mxu0
  %3791 = vmatpush.msra.mxu0 0.0
  %3792 = vmatpush.msra.mxu0 0.0
  %3793 = vmatpush.msra.mxu0 0.0
  %3794 = vmatpush.msra.mxu0 0.0
  %3795 = vmatpush.msra.mxu0 0.0
  %3796 = vmatpush.msra.mxu0 0.0
  %3797 = vmatpush.msra.mxu0 0.0
  %3798 = vmatpush.msra.mxu0 0.0
  %3799 = vmatpush.msra.mxu0 0.0
  %3800 = vmatpush.msra.mxu0 0.0
  %3801 = vmatpush.msra.mxu0 0.0
  %3802 = vmatpush.msra.mxu0 0.0
  %3803 = vmatpush.msra.mxu0 0.0
  %3804 = vmatpush.msra.mxu0 0.0
  %3805 = vmatpush.msra.mxu0 0.0
  %3806 = vmatpush.msra.mxu0 %v3737
  %3807 = vmatmul.f32.gmra.mxu0 %v3728
  %v3808 = vpop.f32.mrf.mxu0
  %v3809 = vadd.f32 0.0, %v3808
  %3810 = vmatmul.f32.gmra.mxu0 %v3731
  %v3811 = vpop.f32.mrf.mxu0
  %v3812 = vadd.f32 0.0, %v3811
  %3813 = vdwg.mxu0
  %3814 = vmatpush.msra.mxu0 0.0
  %3815 = vmatpush.msra.mxu0 0.0
  %3816 = vmatpush.msra.mxu0 0.0
  %3817 = vmatpush.msra.mxu0 0.0
  %3818 = vmatpush.msra.mxu0 0.0
  %3819 = vmatpush.msra.mxu0 0.0
  %3820 = vmatpush.msra.mxu0 0.0
  %3821 = vmatpush.msra.mxu0 0.0
  %3822 = vmatpush.msra.mxu0 0.0
  %3823 = vmatpush.msra.mxu0 0.0
  %3824 = vmatpush.msra.mxu0 0.0
  %3825 = vmatpush.msra.mxu0 0.0
  %3826 = vmatpush.msra.mxu0 0.0
  %3827 = vmatpush.msra.mxu0 0.0
  %3828 = vmatpush.msra.mxu0 0.0
  %3829 = vmatpush.msra.mxu0 %v3739
  %3830 = vmatmul.f32.gmra.mxu0 %v3728
  %v3831 = vpop.f32.mrf.mxu0
  %v3832 = vadd.f32 0.0, %v3831
  %3833 = vmatmul.f32.gmra.mxu0 %v3731
  %v3834 = vpop.f32.mrf.mxu0
  %v3835 = vadd.f32 0.0, %v3834
  %3836 = vdwg.mxu0
  %3837 = vmatpush.msra.mxu0 0.0
  %3838 = vmatpush.msra.mxu0 0.0
  %3839 = vmatpush.msra.mxu0 0.0
  %3840 = vmatpush.msra.mxu0 0.0
  %3841 = vmatpush.msra.mxu0 0.0
  %3842 = vmatpush.msra.mxu0 0.0
  %3843 = vmatpush.msra.mxu0 0.0
  %3844 = vmatpush.msra.mxu0 0.0
  %3845 = vmatpush.msra.mxu0 0.0
  %3846 = vmatpush.msra.mxu0 0.0
  %3847 = vmatpush.msra.mxu0 0.0
  %3848 = vmatpush.msra.mxu0 0.0
  %3849 = vmatpush.msra.mxu0 0.0
  %3850 = vmatpush.msra.mxu0 0.0
  %3851 = vmatpush.msra.mxu0 0.0
  %3852 = vmatpush.msra.mxu0 %v3741
  %3853 = vmatmul.f32.gmra.mxu0 %v3728
  %v3854 = vpop.f32.mrf.mxu0
  %v3855 = vadd.f32 0.0, %v3854
  %3856 = vmatmul.f32.gmra.mxu0 %v3731
  %v3857 = vpop.f32.mrf.mxu0
  %v3858 = vadd.f32 0.0, %v3857
  %3859 = vdwg.mxu0
  %3860 = vmatpush.msra.mxu0 0.0
  %3861 = vmatpush.msra.mxu0 0.0
  %3862 = vmatpush.msra.mxu0 0.0
  %3863 = vmatpush.msra.mxu0 0.0
  %3864 = vmatpush.msra.mxu0 0.0
  %3865 = vmatpush.msra.mxu0 0.0
  %3866 = vmatpush.msra.mxu0 0.0
  %3867 = vmatpush.msra.mxu0 0.0
  %3868 = vmatpush.msra.mxu0 0.0
  %3869 = vmatpush.msra.mxu0 0.0
  %3870 = vmatpush.msra.mxu0 0.0
  %3871 = vmatpush.msra.mxu0 0.0
  %3872 = vmatpush.msra.mxu0 0.0
  %3873 = vmatpush.msra.mxu0 0.0
  %3874 = vmatpush.msra.mxu0 0.0
  %3875 = vmatpush.msra.mxu0 %v3743
  %3876 = vmatmul.f32.gmra.mxu0 %v3728
  %v3877 = vpop.f32.mrf.mxu0
  %v3878 = vadd.f32 0.0, %v3877
  %3879 = vmatmul.f32.gmra.mxu0 %v3731
  %v3880 = vpop.f32.mrf.mxu0
  %v3881 = vadd.f32 0.0, %v3880
  %3882 = vdwg.mxu0
  %v3883 = vmul.f32 %v3652, %v3701
  %v3884 = vmul.f32 %v3653, %v3711
  %v3885 = vmul.f32 %v3883, %v387
  %v3886 = vmul.f32 %v3884, %v388
  %v3887 = vsub.f32 %v391, %v3885
  %v3888 = vsub.f32 %v392, %v3886
  %3889 = vst [vmem:[#allocation1] ss:$4 sm:$0xff] %v3714
  %s3890 = scalar_lea.vmem [#allocation1], 32
  %3891 = vst [vmem:[%s3890] ss:$4 sm:$0xff] %v3715
  %v3892 = vld.sshfl [vmem:[#allocation1] sm:$0xff pattern:$0x73625140]
  %v3893 = vld.sshfl [vmem:[#allocation1 + $0x8] sm:$0xff pattern:$0x73625140]
  %v3894 = vld.sshfl [vmem:[#allocation1 + $0x10] sm:$0xff pattern:$0x73625140]
  %v3895 = vld.sshfl [vmem:[#allocation1 + $0x18] sm:$0xff pattern:$0x73625140]
  %v3896 = vld.sshfl [vmem:[#allocation1 + $0x20] sm:$0xff pattern:$0x73625140]
  %v3897 = vld.sshfl [vmem:[#allocation1 + $0x28] sm:$0xff pattern:$0x73625140]
  %v3899 = vsel %vm526, %v3887, 0
  %v3902 = vsel %vm526, %v3888, 0
  %v3904 = vsel %vm539, %v3892, 0
  %v3906 = vsel %vm539, %v3893, 0
  %v3908 = vsel %vm539, %v3894, 0
  %v3910 = vsel %vm539, %v3895, 0
  %v3912 = vsel %vm539, %v3896, 0
  %v3914 = vsel %vm539, %v3897, 0
  %3916 = vmatpush.msra.mxu0 0.0
  %3917 = vmatpush.msra.mxu0 0.0
  %3918 = vmatpush.msra.mxu0 0.0
  %3919 = vmatpush.msra.mxu0 0.0
  %3920 = vmatpush.msra.mxu0 0.0
  %3921 = vmatpush.msra.mxu0 0.0
  %3922 = vmatpush.msra.mxu0 0.0
  %3923 = vmatpush.msra.mxu0 0.0
  %3924 = vmatpush.msra.mxu0 0.0
  %3925 = vmatpush.msra.mxu0 0.0
  %3926 = vmatpush.msra.mxu0 0.0
  %3927 = vmatpush.msra.mxu0 0.0
  %3928 = vmatpush.msra.mxu0 0.0
  %3929 = vmatpush.msra.mxu0 0.0
  %3930 = vmatpush.msra.mxu0 0.0
  %3931 = vmatpush.msra.mxu0 %v3904
  %3932 = vmatmul.f32.gmra.mxu0 %v3899
  %v3933 = vpop.f32.mrf.mxu0
  %v3934 = vadd.f32 0.0, %v3933
  %3935 = vmatmul.f32.gmra.mxu0 %v3902
  %v3936 = vpop.f32.mrf.mxu0
  %v3937 = vadd.f32 0.0, %v3936
  %3938 = vdwg.mxu0
  %3939 = vmatpush.msra.mxu0 0.0
  %3940 = vmatpush.msra.mxu0 0.0
  %3941 = vmatpush.msra.mxu0 0.0
  %3942 = vmatpush.msra.mxu0 0.0
  %3943 = vmatpush.msra.mxu0 0.0
  %3944 = vmatpush.msra.mxu0 0.0
  %3945 = vmatpush.msra.mxu0 0.0
  %3946 = vmatpush.msra.mxu0 0.0
  %3947 = vmatpush.msra.mxu0 0.0
  %3948 = vmatpush.msra.mxu0 0.0
  %3949 = vmatpush.msra.mxu0 0.0
  %3950 = vmatpush.msra.mxu0 0.0
  %3951 = vmatpush.msra.mxu0 0.0
  %3952 = vmatpush.msra.mxu0 0.0
  %3953 = vmatpush.msra.mxu0 0.0
  %3954 = vmatpush.msra.mxu0 %v3906
  %3955 = vmatmul.f32.gmra.mxu0 %v3899
  %v3956 = vpop.f32.mrf.mxu0
  %v3957 = vadd.f32 0.0, %v3956
  %3958 = vmatmul.f32.gmra.mxu0 %v3902
  %v3959 = vpop.f32.mrf.mxu0
  %v3960 = vadd.f32 0.0, %v3959
  %3961 = vdwg.mxu0
  %3962 = vmatpush.msra.mxu0 0.0
  %3963 = vmatpush.msra.mxu0 0.0
  %3964 = vmatpush.msra.mxu0 0.0
  %3965 = vmatpush.msra.mxu0 0.0
  %3966 = vmatpush.msra.mxu0 0.0
  %3967 = vmatpush.msra.mxu0 0.0
  %3968 = vmatpush.msra.mxu0 0.0
  %3969 = vmatpush.msra.mxu0 0.0
  %3970 = vmatpush.msra.mxu0 0.0
  %3971 = vmatpush.msra.mxu0 0.0
  %3972 = vmatpush.msra.mxu0 0.0
  %3973 = vmatpush.msra.mxu0 0.0
  %3974 = vmatpush.msra.mxu0 0.0
  %3975 = vmatpush.msra.mxu0 0.0
  %3976 = vmatpush.msra.mxu0 0.0
  %3977 = vmatpush.msra.mxu0 %v3908
  %3978 = vmatmul.f32.gmra.mxu0 %v3899
  %v3979 = vpop.f32.mrf.mxu0
  %v3980 = vadd.f32 0.0, %v3979
  %3981 = vmatmul.f32.gmra.mxu0 %v3902
  %v3982 = vpop.f32.mrf.mxu0
  %v3983 = vadd.f32 0.0, %v3982
  %3984 = vdwg.mxu0
  %3985 = vmatpush.msra.mxu0 0.0
  %3986 = vmatpush.msra.mxu0 0.0
  %3987 = vmatpush.msra.mxu0 0.0
  %3988 = vmatpush.msra.mxu0 0.0
  %3989 = vmatpush.msra.mxu0 0.0
  %3990 = vmatpush.msra.mxu0 0.0
  %3991 = vmatpush.msra.mxu0 0.0
  %3992 = vmatpush.msra.mxu0 0.0
  %3993 = vmatpush.msra.mxu0 0.0
  %3994 = vmatpush.msra.mxu0 0.0
  %3995 = vmatpush.msra.mxu0 0.0
  %3996 = vmatpush.msra.mxu0 0.0
  %3997 = vmatpush.msra.mxu0 0.0
  %3998 = vmatpush.msra.mxu0 0.0
  %3999 = vmatpush.msra.mxu0 0.0
  %4000 = vmatpush.msra.mxu0 %v3910
  %4001 = vmatmul.f32.gmra.mxu0 %v3899
  %v4002 = vpop.f32.mrf.mxu0
  %v4003 = vadd.f32 0.0, %v4002
  %4004 = vmatmul.f32.gmra.mxu0 %v3902
  %v4005 = vpop.f32.mrf.mxu0
  %v4006 = vadd.f32 0.0, %v4005
  %4007 = vdwg.mxu0
  %4008 = vmatpush.msra.mxu0 0.0
  %4009 = vmatpush.msra.mxu0 0.0
  %4010 = vmatpush.msra.mxu0 0.0
  %4011 = vmatpush.msra.mxu0 0.0
  %4012 = vmatpush.msra.mxu0 0.0
  %4013 = vmatpush.msra.mxu0 0.0
  %4014 = vmatpush.msra.mxu0 0.0
  %4015 = vmatpush.msra.mxu0 0.0
  %4016 = vmatpush.msra.mxu0 0.0
  %4017 = vmatpush.msra.mxu0 0.0
  %4018 = vmatpush.msra.mxu0 0.0
  %4019 = vmatpush.msra.mxu0 0.0
  %4020 = vmatpush.msra.mxu0 0.0
  %4021 = vmatpush.msra.mxu0 0.0
  %4022 = vmatpush.msra.mxu0 0.0
  %4023 = vmatpush.msra.mxu0 %v3912
  %4024 = vmatmul.f32.gmra.mxu0 %v3899
  %v4025 = vpop.f32.mrf.mxu0
  %v4026 = vadd.f32 0.0, %v4025
  %4027 = vmatmul.f32.gmra.mxu0 %v3902
  %v4028 = vpop.f32.mrf.mxu0
  %v4029 = vadd.f32 0.0, %v4028
  %4030 = vdwg.mxu0
  %4031 = vmatpush.msra.mxu0 0.0
  %4032 = vmatpush.msra.mxu0 0.0
  %4033 = vmatpush.msra.mxu0 0.0
  %4034 = vmatpush.msra.mxu0 0.0
  %4035 = vmatpush.msra.mxu0 0.0
  %4036 = vmatpush.msra.mxu0 0.0
  %4037 = vmatpush.msra.mxu0 0.0
  %4038 = vmatpush.msra.mxu0 0.0
  %4039 = vmatpush.msra.mxu0 0.0
  %4040 = vmatpush.msra.mxu0 0.0
  %4041 = vmatpush.msra.mxu0 0.0
  %4042 = vmatpush.msra.mxu0 0.0
  %4043 = vmatpush.msra.mxu0 0.0
  %4044 = vmatpush.msra.mxu0 0.0
  %4045 = vmatpush.msra.mxu0 0.0
  %4046 = vmatpush.msra.mxu0 %v3914
  %4047 = vmatmul.f32.gmra.mxu0 %v3899
  %v4048 = vpop.f32.mrf.mxu0
  %v4049 = vadd.f32 0.0, %v4048
  %4050 = vmatmul.f32.gmra.mxu0 %v3902
  %v4051 = vpop.f32.mrf.mxu0
  %v4052 = vadd.f32 0.0, %v4051
  %4053 = vdwg.mxu0
  %v4054 = vmul.f32 %v3617, %v3763
  %v4055 = vmul.f32 %v3618, %v3786
  %v4056 = vmul.f32 %v3619, %v3809
  %v4057 = vmul.f32 %v3620, %v3832
  %v4058 = vmul.f32 %v3621, %v3855
  %v4059 = vmul.f32 %v3622, %v3878
  %v4060 = vmul.f32 %v3623, %v3766
  %v4061 = vmul.f32 %v3624, %v3789
  %v4062 = vmul.f32 %v3625, %v3812
  %v4063 = vmul.f32 %v3626, %v3835
  %v4064 = vmul.f32 %v3627, %v3858
  %v4065 = vmul.f32 %v3628, %v3881
  %v4066 = vadd.f32 %v4054, %v3934
  %v4067 = vadd.f32 %v4055, %v3957
  %v4068 = vadd.f32 %v4056, %v3980
  %v4069 = vadd.f32 %v4057, %v4003
  %v4070 = vadd.f32 %v4058, %v4026
  %v4071 = vadd.f32 %v4059, %v4049
  %v4072 = vadd.f32 %v4060, %v3937
  %v4073 = vadd.f32 %v4061, %v3960
  %v4074 = vadd.f32 %v4062, %v3983
  %v4075 = vadd.f32 %v4063, %v4006
  %v4076 = vadd.f32 %v4064, %v4029
  %v4077 = vadd.f32 %v4065, %v4052
  %v4078 = vmax.f32 %v4066, 0.0
  %v4079 = vmax.f32 %v4067, 0.0
  %v4080 = vmax.f32 %v4068, 0.0
  %v4081 = vmax.f32 %v4069, 0.0
  %v4082 = vmax.f32 %v4070, 0.0
  %v4083 = vmax.f32 %v4071, 0.0
  %v4084 = vmax.f32 %v4072, 0.0
  %v4085 = vmax.f32 %v4073, 0.0
  %v4086 = vmax.f32 %v4074, 0.0
  %v4087 = vmax.f32 %v4075, 0.0
  %v4088 = vmax.f32 %v4076, 0.0
  %v4089 = vmax.f32 %v4077, 0.0
  %vm4090 = vcmask 150528
  %4091 = vst.msk [vmem:[#allocation3] sm:$0xf] %vm4090, 0
  %4092 = vst.msk [vmem:[#allocation3 + $0x18] sm:$0xf] %vm4090, 0
  %vm4093 = vcmask 371928
  %4094 = vst.msk [vmem:[#allocation3 + $0x14] sm:$0xf] %vm4093, 0
  %4095 = vst.msk [vmem:[#allocation3 + $0x2c] sm:$0xf] %vm4093, 0
  %v4096 = vpack.c.bf16 %v4079, %v4078
  %v4097 = vpack.c.bf16 %v4081, %v4080
  %v4098 = vpack.c.bf16 %v4083, %v4082
  %v4099 = vpack.c.bf16 %v4085, %v4084
  %v4100 = vpack.c.bf16 %v4087, %v4086
  %v4101 = vpack.c.bf16 %v4089, %v4088
  %4108 = vrot.lane.b32.xlu0 %v4096, 19
  %v4109 = vpop.permute.xlu0 %4108
  %4110 = vrot.lane.b32.xlu0 %v4097, 19
  %v4111 = vpop.permute.xlu0 %4110
  %4112 = vrot.lane.b32.xlu0 %v4098, 19
  %v4113 = vpop.permute.xlu0 %4112
  %4114 = vrot.lane.b32.xlu0 %v4099, 19
  %v4115 = vpop.permute.xlu0 %4114
  %4116 = vrot.lane.b32.xlu0 %v4100, 19
  %v4117 = vpop.permute.xlu0 %4116
  %4118 = vrot.lane.b32.xlu0 %v4101, 19
  %v4119 = vpop.permute.xlu0 %4118
  %v4120 = vrot.slane %v4109, 4
  %v4121 = vrot.slane %v4111, 4
  %v4122 = vrot.slane %v4113, 4
  %v4123 = vrot.slane %v4115, 4
  %v4124 = vrot.slane %v4117, 4
  %v4125 = vrot.slane %v4119, 4
  %vm4126 = vcmask 154624
  %v4127 = vsel %vm4126, %v4120, %v4109
  %vm4128 = vcmask 1043456
  %v4129 = vsel %vm4128, %v4120, %v4121
  %v4130 = vsel %vm4126, %v4129, %v4111
  %v4131 = vsel %vm4128, %v4121, %v4122
  %v4132 = vsel %vm4126, %v4131, %v4113
  %v4133 = vsel %vm4126, %v4123, %v4115
  %v4134 = vsel %vm4128, %v4123, %v4124
  %v4135 = vsel %vm4126, %v4134, %v4117
  %v4136 = vsel %vm4128, %v4124, %v4125
  %v4137 = vsel %vm4126, %v4136, %v4119
  %vm4144 = vcmask 1043608
  %vm4145 = vcmask 1047556
  %vm4146 = vmor %vm4145, %vm4144
  %4147 = vst.msk [vmem:[#allocation3] sm:$0xff] %vm4146, %v4127
  %4148 = vst [vmem:[#allocation3 + $0x8] sm:$0xff] %v4130
  %vm4149 = vcmask 1043456
  %vm4150 = vcmask 220164
  %vm4151 = vmor %vm4150, %vm4149
  %4152 = vst.msk [vmem:[#allocation3 + $0x10] sm:$0xff] %vm4151, %v4132
  %4153 = vst.msk [vmem:[#allocation3 + $0x18] sm:$0xff] %vm4146, %v4133
  %4154 = vst [vmem:[#allocation3 + $0x20] sm:$0xff] %v4135
  %4155 = vst.msk [vmem:[#allocation3 + $0x28] sm:$0xff] %vm4151, %v4137
  %v4156 = vld [vmem:[#allocation3] sm:$0xff]
  %v4157 = vld [vmem:[#allocation3 + $0x8] sm:$0xff]
  %v4158 = vld [vmem:[#allocation3 + $0x10] sm:$0xff]
  %v4159 = vld [vmem:[#allocation3 + $0x18] sm:$0xff]
  %v4160 = vld [vmem:[#allocation3 + $0x20] sm:$0xff]
  %v4161 = vld [vmem:[#allocation3 + $0x28] sm:$0xff]
  %v4168 = vunpack.c.l.b16 %v4156
  %v4169 = vunpack.c.h.b16 %v4156
  %v4170 = vunpack.c.l.b16 %v4157
  %v4171 = vunpack.c.h.b16 %v4157
  %v4172 = vunpack.c.l.b16 %v4158
  %v4173 = vunpack.c.h.b16 %v4158
  %v4174 = vunpack.c.l.b16 %v4159
  %v4175 = vunpack.c.h.b16 %v4159
  %v4176 = vunpack.c.l.b16 %v4160
  %v4177 = vunpack.c.h.b16 %v4160
  %v4178 = vunpack.c.l.b16 %v4161
  %v4179 = vunpack.c.h.b16 %v4161
  %v4180 = vpack.c.b16 %v4174, %v4168
  %v4181 = vpack.c.b16 %v4175, %v4169
  %v4182 = vpack.c.b16 %v4176, %v4170
  %v4183 = vpack.c.b16 %v4177, %v4171
  %v4184 = vpack.c.b16 %v4178, %v4172
  %v4185 = vpack.c.b16 %v4179, %v4173
  %4192 = vrot.lane.b32.xlu0 %v4180, 127
  %v4193 = vpop.permute.xlu0 %4192
  %4194 = vrot.lane.b32.xlu0 %v4181, 127
  %v4195 = vpop.permute.xlu0 %4194
  %4196 = vrot.lane.b32.xlu0 %v4182, 127
  %v4197 = vpop.permute.xlu0 %4196
  %4198 = vrot.lane.b32.xlu0 %v4183, 127
  %v4199 = vpop.permute.xlu0 %4198
  %4200 = vrot.lane.b32.xlu0 %v4184, 127
  %v4201 = vpop.permute.xlu0 %4200
  %4202 = vrot.lane.b32.xlu0 %v4185, 127
  %v4203 = vpop.permute.xlu0 %4202
  %v4204 = vsel %vm1159, %v4193, %v4195
  %v4205 = vsel %vm1159, %v4195, %v4197
  %v4206 = vsel %vm1159, %v4197, %v4199
  %v4207 = vsel %vm1159, %v4199, %v4201
  %v4208 = vsel %vm1159, %v4201, %v4203
  %4215 = vrot.lane.b32.xlu0 %v4180, 126
  %v4216 = vpop.permute.xlu0 %4215
  %4217 = vrot.lane.b32.xlu0 %v4181, 126
  %v4218 = vpop.permute.xlu0 %4217
  %4219 = vrot.lane.b32.xlu0 %v4182, 126
  %v4220 = vpop.permute.xlu0 %4219
  %4221 = vrot.lane.b32.xlu0 %v4183, 126
  %v4222 = vpop.permute.xlu0 %4221
  %4223 = vrot.lane.b32.xlu0 %v4184, 126
  %v4224 = vpop.permute.xlu0 %4223
  %4225 = vrot.lane.b32.xlu0 %v4185, 126
  %v4226 = vpop.permute.xlu0 %4225
  %v4227 = vsel %vm2981, %v4216, %v4218
  %v4228 = vsel %vm2981, %v4218, %v4220
  %v4229 = vsel %vm2981, %v4220, %v4222
  %v4230 = vsel %vm2981, %v4222, %v4224
  %v4231 = vsel %vm2981, %v4224, %v4226
  %v4238 = vld [vmem:[%s5] sm:$0xf]
  %v4239 = vld [vmem:[%s5 + $0x4] sm:$0xf]
  %s4240 = scalar_lea.vmem %s5, 8
  %v4241 = vld [vmem:[%s4240] sm:$0xf]
  %v4242 = vld [vmem:[%s4240 + $0x4] sm:$0xf]
  %v4245 = vunpack.c.l.b16 %v4241
  %v4246 = vunpack.c.l.b16 %v4242
  %v4247 = vpack.c.b16 %v4246, %v4245
  %4248 = vrot.lane.b32.xlu0 %v4180, 110
  %v4249 = vpop.permute.xlu0 %4248
  %4250 = vrot.lane.b32.xlu0 %v4181, 110
  %v4251 = vpop.permute.xlu0 %4250
  %4252 = vrot.lane.b32.xlu0 %v4182, 110
  %v4253 = vpop.permute.xlu0 %4252
  %4254 = vrot.lane.b32.xlu0 %v4183, 110
  %v4255 = vpop.permute.xlu0 %4254
  %4256 = vrot.lane.b32.xlu0 %v4184, 110
  %v4257 = vpop.permute.xlu0 %4256
  %4258 = vrot.lane.b32.xlu0 %v4185, 110
  %v4259 = vpop.permute.xlu0 %4258
  %4260 = vrot.lane.b32.xlu0 %v4204, 110
  %v4261 = vpop.permute.xlu0 %4260
  %4262 = vrot.lane.b32.xlu0 %v4205, 110
  %v4263 = vpop.permute.xlu0 %4262
  %4264 = vrot.lane.b32.xlu0 %v4206, 110
  %v4265 = vpop.permute.xlu0 %4264
  %4266 = vrot.lane.b32.xlu0 %v4207, 110
  %v4267 = vpop.permute.xlu0 %4266
  %4268 = vrot.lane.b32.xlu0 %v4208, 110
  %v4269 = vpop.permute.xlu0 %4268
  %4270 = vrot.lane.b32.xlu0 %v4203, 110
  %v4271 = vpop.permute.xlu0 %4270
  %4272 = vrot.lane.b32.xlu0 %v4227, 110
  %v4273 = vpop.permute.xlu0 %4272
  %4274 = vrot.lane.b32.xlu0 %v4228, 110
  %v4275 = vpop.permute.xlu0 %4274
  %4276 = vrot.lane.b32.xlu0 %v4229, 110
  %v4277 = vpop.permute.xlu0 %4276
  %4278 = vrot.lane.b32.xlu0 %v4230, 110
  %v4279 = vpop.permute.xlu0 %4278
  %4280 = vrot.lane.b32.xlu0 %v4231, 110
  %v4281 = vpop.permute.xlu0 %4280
  %4282 = vrot.lane.b32.xlu0 %v4226, 110
  %v4283 = vpop.permute.xlu0 %4282
  %v4284 = vsel %vm3086, %v4249, %v4251
  %v4285 = vsel %vm3086, %v4251, %v4253
  %v4286 = vsel %vm3086, %v4253, %v4255
  %v4287 = vsel %vm3086, %v4255, %v4257
  %v4288 = vsel %vm3086, %v4257, %v4259
  %v4289 = vsel %vm3086, %v4261, %v4263
  %v4290 = vsel %vm3086, %v4263, %v4265
  %v4291 = vsel %vm3086, %v4265, %v4267
  %v4292 = vsel %vm3086, %v4267, %v4269
  %v4293 = vsel %vm3086, %v4269, %v4271
  %v4294 = vsel %vm3086, %v4273, %v4275
  %v4295 = vsel %vm3086, %v4275, %v4277
  %v4296 = vsel %vm3086, %v4277, %v4279
  %v4297 = vsel %vm3086, %v4279, %v4281
  %v4298 = vsel %vm3086, %v4281, %v4283
  %vm4317 = vcmask 392192
  %v4319 = vsel %vm4317, %v4247, 0
  %4321 = vmatpush.bf16.msra.mxu0 0
  %4322 = vmatpush.bf16.msra.mxu0 0
  %4323 = vmatpush.bf16.msra.mxu0 0
  %4324 = vmatpush.bf16.msra.mxu0 0
  %4325 = vmatpush.bf16.msra.mxu0 0
  %4326 = vmatpush.bf16.msra.mxu0 %v4294
  %4327 = vmatpush.bf16.msra.mxu0 %v4289
  %4328 = vmatpush.bf16.msra.mxu0 %v4284
  %4329 = vmatmul.bf16.gmra.mxu0 %v4319
  %v4330 = vpop.f32.mrf.mxu0
  %v4331 = vadd.f32 0.0, %v4330
  %v4332 = vpop.f32.mrf.mxu0
  %v4333 = vadd.f32 0.0, %v4332
  %4334 = vdwg.mxu0
  %4335 = vmatpush.bf16.msra.mxu0 0
  %4336 = vmatpush.bf16.msra.mxu0 0
  %4337 = vmatpush.bf16.msra.mxu0 0
  %4338 = vmatpush.bf16.msra.mxu0 0
  %4339 = vmatpush.bf16.msra.mxu0 0
  %4340 = vmatpush.bf16.msra.mxu0 %v4295
  %4341 = vmatpush.bf16.msra.mxu0 %v4290
  %4342 = vmatpush.bf16.msra.mxu0 %v4285
  %4343 = vmatmul.bf16.gmra.mxu0 %v4319
  %v4344 = vpop.f32.mrf.mxu0
  %v4345 = vadd.f32 0.0, %v4344
  %v4346 = vpop.f32.mrf.mxu0
  %v4347 = vadd.f32 0.0, %v4346
  %4348 = vdwg.mxu0
  %4349 = vmatpush.bf16.msra.mxu0 0
  %4350 = vmatpush.bf16.msra.mxu0 0
  %4351 = vmatpush.bf16.msra.mxu0 0
  %4352 = vmatpush.bf16.msra.mxu0 0
  %4353 = vmatpush.bf16.msra.mxu0 0
  %4354 = vmatpush.bf16.msra.mxu0 %v4296
  %4355 = vmatpush.bf16.msra.mxu0 %v4291
  %4356 = vmatpush.bf16.msra.mxu0 %v4286
  %4357 = vmatmul.bf16.gmra.mxu0 %v4319
  %v4358 = vpop.f32.mrf.mxu0
  %v4359 = vadd.f32 0.0, %v4358
  %v4360 = vpop.f32.mrf.mxu0
  %v4361 = vadd.f32 0.0, %v4360
  %4362 = vdwg.mxu0
  %4363 = vmatpush.bf16.msra.mxu0 0
  %4364 = vmatpush.bf16.msra.mxu0 0
  %4365 = vmatpush.bf16.msra.mxu0 0
  %4366 = vmatpush.bf16.msra.mxu0 0
  %4367 = vmatpush.bf16.msra.mxu0 0
  %4368 = vmatpush.bf16.msra.mxu0 %v4297
  %4369 = vmatpush.bf16.msra.mxu0 %v4292
  %4370 = vmatpush.bf16.msra.mxu0 %v4287
  %4371 = vmatmul.bf16.gmra.mxu0 %v4319
  %v4372 = vpop.f32.mrf.mxu0
  %v4373 = vadd.f32 0.0, %v4372
  %v4374 = vpop.f32.mrf.mxu0
  %v4375 = vadd.f32 0.0, %v4374
  %4376 = vdwg.mxu0
  %4377 = vmatpush.bf16.msra.mxu0 0
  %4378 = vmatpush.bf16.msra.mxu0 0
  %4379 = vmatpush.bf16.msra.mxu0 0
  %4380 = vmatpush.bf16.msra.mxu0 0
  %4381 = vmatpush.bf16.msra.mxu0 0
  %4382 = vmatpush.bf16.msra.mxu0 %v4298
  %4383 = vmatpush.bf16.msra.mxu0 %v4293
  %4384 = vmatpush.bf16.msra.mxu0 %v4288
  %4385 = vmatmul.bf16.gmra.mxu0 %v4319
  %v4386 = vpop.f32.mrf.mxu0
  %v4387 = vadd.f32 0.0, %v4386
  %v4388 = vpop.f32.mrf.mxu0
  %v4389 = vadd.f32 0.0, %v4388
  %4390 = vdwg.mxu0
  %4391 = vmatpush.bf16.msra.mxu0 0
  %4392 = vmatpush.bf16.msra.mxu0 0
  %4393 = vmatpush.bf16.msra.mxu0 0
  %4394 = vmatpush.bf16.msra.mxu0 0
  %4395 = vmatpush.bf16.msra.mxu0 0
  %4396 = vmatpush.bf16.msra.mxu0 %v4283
  %4397 = vmatpush.bf16.msra.mxu0 %v4271
  %4398 = vmatpush.bf16.msra.mxu0 %v4259
  %4399 = vmatmul.bf16.gmra.mxu0 %v4319
  %v4400 = vpop.f32.mrf.mxu0
  %v4401 = vadd.f32 0.0, %v4400
  %v4402 = vpop.f32.mrf.mxu0
  %v4403 = vadd.f32 0.0, %v4402
  %4404 = vdwg.mxu0
  %v4407 = vunpack.c.l.b16 %v4238
  %v4408 = vunpack.c.l.b16 %v4239
  %v4409 = vpack.c.b16 %v4408, %v4407
  %v4411 = vsel %vm4317, %v4409, 0
  %4413 = vmatpush.bf16.msra.mxu0 0
  %4414 = vmatpush.bf16.msra.mxu0 0
  %4415 = vmatpush.bf16.msra.mxu0 0
  %4416 = vmatpush.bf16.msra.mxu0 0
  %4417 = vmatpush.bf16.msra.mxu0 0
  %4418 = vmatpush.bf16.msra.mxu0 %v4227
  %4419 = vmatpush.bf16.msra.mxu0 %v4204
  %4420 = vmatpush.bf16.msra.mxu0 %v4180
  %4421 = vmatmul.bf16.gmra.mxu0 %v4411
  %v4422 = vpop.f32.mrf.mxu0
  %v4423 = vadd.f32 %v4331, %v4422
  %v4424 = vpop.f32.mrf.mxu0
  %v4425 = vadd.f32 %v4333, %v4424
  %4426 = vdwg.mxu0
  %4427 = vmatpush.bf16.msra.mxu0 0
  %4428 = vmatpush.bf16.msra.mxu0 0
  %4429 = vmatpush.bf16.msra.mxu0 0
  %4430 = vmatpush.bf16.msra.mxu0 0
  %4431 = vmatpush.bf16.msra.mxu0 0
  %4432 = vmatpush.bf16.msra.mxu0 %v4228
  %4433 = vmatpush.bf16.msra.mxu0 %v4205
  %4434 = vmatpush.bf16.msra.mxu0 %v4181
  %4435 = vmatmul.bf16.gmra.mxu0 %v4411
  %v4436 = vpop.f32.mrf.mxu0
  %v4437 = vadd.f32 %v4345, %v4436
  %v4438 = vpop.f32.mrf.mxu0
  %v4439 = vadd.f32 %v4347, %v4438
  %4440 = vdwg.mxu0
  %4441 = vmatpush.bf16.msra.mxu0 0
  %4442 = vmatpush.bf16.msra.mxu0 0
  %4443 = vmatpush.bf16.msra.mxu0 0
  %4444 = vmatpush.bf16.msra.mxu0 0
  %4445 = vmatpush.bf16.msra.mxu0 0
  %4446 = vmatpush.bf16.msra.mxu0 %v4229
  %4447 = vmatpush.bf16.msra.mxu0 %v4206
  %4448 = vmatpush.bf16.msra.mxu0 %v4182
  %4449 = vmatmul.bf16.gmra.mxu0 %v4411
  %v4450 = vpop.f32.mrf.mxu0
  %v4451 = vadd.f32 %v4359, %v4450
  %v4452 = vpop.f32.mrf.mxu0
  %v4453 = vadd.f32 %v4361, %v4452
  %4454 = vdwg.mxu0
  %4455 = vmatpush.bf16.msra.mxu0 0
  %4456 = vmatpush.bf16.msra.mxu0 0
  %4457 = vmatpush.bf16.msra.mxu0 0
  %4458 = vmatpush.bf16.msra.mxu0 0
  %4459 = vmatpush.bf16.msra.mxu0 0
  %4460 = vmatpush.bf16.msra.mxu0 %v4230
  %4461 = vmatpush.bf16.msra.mxu0 %v4207
  %4462 = vmatpush.bf16.msra.mxu0 %v4183
  %4463 = vmatmul.bf16.gmra.mxu0 %v4411
  %v4464 = vpop.f32.mrf.mxu0
  %v4465 = vadd.f32 %v4373, %v4464
  %v4466 = vpop.f32.mrf.mxu0
  %v4467 = vadd.f32 %v4375, %v4466
  %4468 = vdwg.mxu0
  %4469 = vmatpush.bf16.msra.mxu0 0
  %4470 = vmatpush.bf16.msra.mxu0 0
  %4471 = vmatpush.bf16.msra.mxu0 0
  %4472 = vmatpush.bf16.msra.mxu0 0
  %4473 = vmatpush.bf16.msra.mxu0 0
  %4474 = vmatpush.bf16.msra.mxu0 %v4231
  %4475 = vmatpush.bf16.msra.mxu0 %v4208
  %4476 = vmatpush.bf16.msra.mxu0 %v4184
  %4477 = vmatmul.bf16.gmra.mxu0 %v4411
  %v4478 = vpop.f32.mrf.mxu0
  %v4479 = vadd.f32 %v4387, %v4478
  %v4480 = vpop.f32.mrf.mxu0
  %v4481 = vadd.f32 %v4389, %v4480
  %4482 = vdwg.mxu0
  %4483 = vmatpush.bf16.msra.mxu0 0
  %4484 = vmatpush.bf16.msra.mxu0 0
  %4485 = vmatpush.bf16.msra.mxu0 0
  %4486 = vmatpush.bf16.msra.mxu0 0
  %4487 = vmatpush.bf16.msra.mxu0 0
  %4488 = vmatpush.bf16.msra.mxu0 %v4226
  %4489 = vmatpush.bf16.msra.mxu0 %v4203
  %4490 = vmatpush.bf16.msra.mxu0 %v4185
  %4491 = vmatmul.bf16.gmra.mxu0 %v4411
  %v4492 = vpop.f32.mrf.mxu0
  %v4493 = vadd.f32 %v4401, %v4492
  %v4494 = vpop.f32.mrf.mxu0
  %v4495 = vadd.f32 %v4403, %v4494
  %4496 = vdwg.mxu0
  %s4497 = scalar_lea.vmem %s5, 16
  %v4498 = vld [vmem:[%s4497] sm:$0xf]
  %v4499 = vld [vmem:[%s4497 + $0x4] sm:$0xf]
  %v4502 = vunpack.c.l.b16 %v4498
  %v4503 = vunpack.c.l.b16 %v4499
  %v4504 = vpack.c.b16 %v4503, %v4502
  %4505 = vrot.lane.b32.xlu0 %v4180, 92
  %v4506 = vpop.permute.xlu0 %4505
  %4507 = vrot.lane.b32.xlu0 %v4181, 92
  %v4508 = vpop.permute.xlu0 %4507
  %4509 = vrot.lane.b32.xlu0 %v4182, 92
  %v4510 = vpop.permute.xlu0 %4509
  %4511 = vrot.lane.b32.xlu0 %v4183, 92
  %v4512 = vpop.permute.xlu0 %4511
  %4513 = vrot.lane.b32.xlu0 %v4184, 92
  %v4514 = vpop.permute.xlu0 %4513
  %4515 = vrot.lane.b32.xlu0 %v4185, 92
  %v4516 = vpop.permute.xlu0 %4515
  %4517 = vrot.lane.b32.xlu0 %v4204, 92
  %v4518 = vpop.permute.xlu0 %4517
  %4519 = vrot.lane.b32.xlu0 %v4205, 92
  %v4520 = vpop.permute.xlu0 %4519
  %4521 = vrot.lane.b32.xlu0 %v4206, 92
  %v4522 = vpop.permute.xlu0 %4521
  %4523 = vrot.lane.b32.xlu0 %v4207, 92
  %v4524 = vpop.permute.xlu0 %4523
  %4525 = vrot.lane.b32.xlu0 %v4208, 92
  %v4526 = vpop.permute.xlu0 %4525
  %4527 = vrot.lane.b32.xlu0 %v4203, 92
  %v4528 = vpop.permute.xlu0 %4527
  %4529 = vrot.lane.b32.xlu0 %v4227, 92
  %v4530 = vpop.permute.xlu0 %4529
  %4531 = vrot.lane.b32.xlu0 %v4228, 92
  %v4532 = vpop.permute.xlu0 %4531
  %4533 = vrot.lane.b32.xlu0 %v4229, 92
  %v4534 = vpop.permute.xlu0 %4533
  %4535 = vrot.lane.b32.xlu0 %v4230, 92
  %v4536 = vpop.permute.xlu0 %4535
  %4537 = vrot.lane.b32.xlu0 %v4231, 92
  %v4538 = vpop.permute.xlu0 %4537
  %4539 = vrot.lane.b32.xlu0 %v4226, 92
  %v4540 = vpop.permute.xlu0 %4539
  %v4541 = vsel %vm3413, %v4506, %v4508
  %v4542 = vsel %vm3413, %v4508, %v4510
  %v4543 = vsel %vm3413, %v4510, %v4512
  %v4544 = vsel %vm3413, %v4512, %v4514
  %v4545 = vsel %vm3413, %v4514, %v4516
  %v4546 = vsel %vm3413, %v4518, %v4520
  %v4547 = vsel %vm3413, %v4520, %v4522
  %v4548 = vsel %vm3413, %v4522, %v4524
  %v4549 = vsel %vm3413, %v4524, %v4526
  %v4550 = vsel %vm3413, %v4526, %v4528
  %v4551 = vsel %vm3413, %v4530, %v4532
  %v4552 = vsel %vm3413, %v4532, %v4534
  %v4553 = vsel %vm3413, %v4534, %v4536
  %v4554 = vsel %vm3413, %v4536, %v4538
  %v4555 = vsel %vm3413, %v4538, %v4540
  %v4575 = vsel %vm4317, %v4504, 0
  %4577 = vmatpush.bf16.msra.mxu0 0
  %4578 = vmatpush.bf16.msra.mxu0 0
  %4579 = vmatpush.bf16.msra.mxu0 0
  %4580 = vmatpush.bf16.msra.mxu0 0
  %4581 = vmatpush.bf16.msra.mxu0 0
  %4582 = vmatpush.bf16.msra.mxu0 %v4551
  %4583 = vmatpush.bf16.msra.mxu0 %v4546
  %4584 = vmatpush.bf16.msra.mxu0 %v4541
  %4585 = vmatmul.bf16.gmra.mxu0 %v4575
  %v4586 = vpop.f32.mrf.mxu0
  %v4587 = vadd.f32 0.0, %v4586
  %v4588 = vpop.f32.mrf.mxu0
  %v4589 = vadd.f32 0.0, %v4588
  %4590 = vdwg.mxu0
  %4591 = vmatpush.bf16.msra.mxu0 0
  %4592 = vmatpush.bf16.msra.mxu0 0
  %4593 = vmatpush.bf16.msra.mxu0 0
  %4594 = vmatpush.bf16.msra.mxu0 0
  %4595 = vmatpush.bf16.msra.mxu0 0
  %4596 = vmatpush.bf16.msra.mxu0 %v4552
  %4597 = vmatpush.bf16.msra.mxu0 %v4547
  %4598 = vmatpush.bf16.msra.mxu0 %v4542
  %4599 = vmatmul.bf16.gmra.mxu0 %v4575
  %v4600 = vpop.f32.mrf.mxu0
  %v4601 = vadd.f32 0.0, %v4600
  %v4602 = vpop.f32.mrf.mxu0
  %v4603 = vadd.f32 0.0, %v4602
  %4604 = vdwg.mxu0
  %4605 = vmatpush.bf16.msra.mxu0 0
  %4606 = vmatpush.bf16.msra.mxu0 0
  %4607 = vmatpush.bf16.msra.mxu0 0
  %4608 = vmatpush.bf16.msra.mxu0 0
  %4609 = vmatpush.bf16.msra.mxu0 0
  %4610 = vmatpush.bf16.msra.mxu0 %v4553
  %4611 = vmatpush.bf16.msra.mxu0 %v4548
  %4612 = vmatpush.bf16.msra.mxu0 %v4543
  %4613 = vmatmul.bf16.gmra.mxu0 %v4575
  %v4614 = vpop.f32.mrf.mxu0
  %v4615 = vadd.f32 0.0, %v4614
  %v4616 = vpop.f32.mrf.mxu0
  %v4617 = vadd.f32 0.0, %v4616
  %4618 = vdwg.mxu0
  %4619 = vmatpush.bf16.msra.mxu0 0
  %4620 = vmatpush.bf16.msra.mxu0 0
  %4621 = vmatpush.bf16.msra.mxu0 0
  %4622 = vmatpush.bf16.msra.mxu0 0
  %4623 = vmatpush.bf16.msra.mxu0 0
  %4624 = vmatpush.bf16.msra.mxu0 %v4554
  %4625 = vmatpush.bf16.msra.mxu0 %v4549
  %4626 = vmatpush.bf16.msra.mxu0 %v4544
  %4627 = vmatmul.bf16.gmra.mxu0 %v4575
  %v4628 = vpop.f32.mrf.mxu0
  %v4629 = vadd.f32 0.0, %v4628
  %v4630 = vpop.f32.mrf.mxu0
  %v4631 = vadd.f32 0.0, %v4630
  %4632 = vdwg.mxu0
  %4633 = vmatpush.bf16.msra.mxu0 0
  %4634 = vmatpush.bf16.msra.mxu0 0
  %4635 = vmatpush.bf16.msra.mxu0 0
  %4636 = vmatpush.bf16.msra.mxu0 0
  %4637 = vmatpush.bf16.msra.mxu0 0
  %4638 = vmatpush.bf16.msra.mxu0 %v4555
  %4639 = vmatpush.bf16.msra.mxu0 %v4550
  %4640 = vmatpush.bf16.msra.mxu0 %v4545
  %4641 = vmatmul.bf16.gmra.mxu0 %v4575
  %v4642 = vpop.f32.mrf.mxu0
  %v4643 = vadd.f32 0.0, %v4642
  %v4644 = vpop.f32.mrf.mxu0
  %v4645 = vadd.f32 0.0, %v4644
  %4646 = vdwg.mxu0
  %4647 = vmatpush.bf16.msra.mxu0 0
  %4648 = vmatpush.bf16.msra.mxu0 0
  %4649 = vmatpush.bf16.msra.mxu0 0
  %4650 = vmatpush.bf16.msra.mxu0 0
  %4651 = vmatpush.bf16.msra.mxu0 0
  %4652 = vmatpush.bf16.msra.mxu0 %v4540
  %4653 = vmatpush.bf16.msra.mxu0 %v4528
  %4654 = vmatpush.bf16.msra.mxu0 %v4516
  %4655 = vmatmul.bf16.gmra.mxu0 %v4575
  %v4656 = vpop.f32.mrf.mxu0
  %v4657 = vadd.f32 0.0, %v4656
  %v4658 = vpop.f32.mrf.mxu0
  %v4659 = vadd.f32 0.0, %v4658
  %4660 = vdwg.mxu0
  %v4661 = vadd.f32 %v4423, %v4587
  %v4662 = vadd.f32 %v4437, %v4601
  %v4663 = vadd.f32 %v4451, %v4615
  %v4664 = vadd.f32 %v4465, %v4629
  %v4665 = vadd.f32 %v4479, %v4643
  %v4666 = vadd.f32 %v4493, %v4657
  %v4667 = vadd.f32 %v4425, %v4589
  %v4668 = vadd.f32 %v4439, %v4603
  %v4669 = vadd.f32 %v4453, %v4617
  %v4670 = vadd.f32 %v4467, %v4631
  %v4671 = vadd.f32 %v4481, %v4645
  %v4672 = vadd.f32 %v4495, %v4659
  %v4673 = vld [vmem:[#allocation2 + $0x60] sm:$0xff]
  %v4674 = vld [vmem:[#allocation2 + $0x68] sm:$0xff]
  %v4675 = vld [vmem:[#allocation2 + $0x70] sm:$0xff]
  %v4676 = vld [vmem:[#allocation2 + $0x78] sm:$0xff]
  %v4677 = vld [vmem:[#allocation2 + $0x80] sm:$0xff]
  %v4678 = vld [vmem:[#allocation2 + $0x88] sm:$0xff]
  %v4679 = vunpack.c.l.bf16 %v4673
  %v4680 = vunpack.c.h.bf16 %v4673
  %v4681 = vunpack.c.l.bf16 %v4674
  %v4682 = vunpack.c.h.bf16 %v4674
  %v4683 = vunpack.c.l.bf16 %v4675
  %v4684 = vunpack.c.h.bf16 %v4675
  %v4685 = vunpack.c.l.bf16 %v4676
  %v4686 = vunpack.c.h.bf16 %v4676
  %v4687 = vunpack.c.l.bf16 %v4677
  %v4688 = vunpack.c.h.bf16 %v4677
  %v4689 = vunpack.c.l.bf16 %v4678
  %v4690 = vunpack.c.h.bf16 %v4678
  %v4691 = vld [vmem:[%s7] sm:$0xff]
  %v4692 = vld [vmem:[%s7 + $0x8] sm:$0xff]
  %4694 = vset.pattern.permute.xlu0 1
  %4695 = vperm.xlu0 %4694, %v4691
  %v4696 = vpop.permute.xlu0 %4695
  %4699 = vset.pattern.permute.xlu0 1
  %4700 = vperm.xlu0 %4699, %v4692
  %v4701 = vpop.permute.xlu0 %4700
  %v4703 = vadd.f32 %v4661, %v4696
  %v4704 = vadd.f32 %v4662, %v4696
  %v4705 = vadd.f32 %v4663, %v4696
  %v4706 = vadd.f32 %v4664, %v4696
  %v4707 = vadd.f32 %v4665, %v4696
  %v4708 = vadd.f32 %v4666, %v4696
  %v4709 = vadd.f32 %v4667, %v4701
  %v4710 = vadd.f32 %v4668, %v4701
  %v4711 = vadd.f32 %v4669, %v4701
  %v4712 = vadd.f32 %v4670, %v4701
  %v4713 = vadd.f32 %v4671, %v4701
  %v4714 = vadd.f32 %v4672, %v4701
  %4727 = vrot.lane.b32.xlu0 %v4679, 109
  %v4728 = vpop.permute.xlu0 %4727
  %4729 = vrot.lane.b32.xlu0 %v4680, 109
  %v4730 = vpop.permute.xlu0 %4729
  %4731 = vrot.lane.b32.xlu0 %v4681, 109
  %v4732 = vpop.permute.xlu0 %4731
  %4733 = vrot.lane.b32.xlu0 %v4682, 109
  %v4734 = vpop.permute.xlu0 %4733
  %4735 = vrot.lane.b32.xlu0 %v4683, 109
  %v4736 = vpop.permute.xlu0 %4735
  %4737 = vrot.lane.b32.xlu0 %v4684, 109
  %v4738 = vpop.permute.xlu0 %4737
  %4739 = vrot.lane.b32.xlu0 %v4685, 109
  %v4740 = vpop.permute.xlu0 %4739
  %4741 = vrot.lane.b32.xlu0 %v4686, 109
  %v4742 = vpop.permute.xlu0 %4741
  %4743 = vrot.lane.b32.xlu0 %v4687, 109
  %v4744 = vpop.permute.xlu0 %4743
  %4745 = vrot.lane.b32.xlu0 %v4688, 109
  %v4746 = vpop.permute.xlu0 %4745
  %4747 = vrot.lane.b32.xlu0 %v4689, 109
  %v4748 = vpop.permute.xlu0 %4747
  %4749 = vrot.lane.b32.xlu0 %v4690, 109
  %v4750 = vpop.permute.xlu0 %4749
  %vm4751 = vcmask 891904
  %v4752 = vsel %vm4751, %v4728, %v4730
  %v4753 = vsel %vm4751, %v4730, %v4732
  %v4754 = vsel %vm4751, %v4732, %v4734
  %v4755 = vsel %vm4751, %v4734, %v4736
  %v4756 = vsel %vm4751, %v4736, %v4738
  %v4757 = vsel %vm4751, %v4740, %v4742
  %v4758 = vsel %vm4751, %v4742, %v4744
  %v4759 = vsel %vm4751, %v4744, %v4746
  %v4760 = vsel %vm4751, %v4746, %v4748
  %v4761 = vsel %vm4751, %v4748, %v4750
  %v4774 = vadd.f32 %v4703, %v4752
  %v4775 = vadd.f32 %v4704, %v4753
  %v4776 = vadd.f32 %v4705, %v4754
  %v4777 = vadd.f32 %v4706, %v4755
  %v4778 = vadd.f32 %v4707, %v4756
  %v4779 = vadd.f32 %v4708, %v4738
  %v4780 = vadd.f32 %v4709, %v4757
  %v4781 = vadd.f32 %v4710, %v4758
  %v4782 = vadd.f32 %v4711, %v4759
  %v4783 = vadd.f32 %v4712, %v4760
  %v4784 = vadd.f32 %v4713, %v4761
  %v4785 = vadd.f32 %v4714, %v4750
  %4786 = vset.pattern.permute.xlu0 2
  %4787 = vperm.xlu0 %4786, %v4691
  %v4788 = vpop.permute.xlu0 %4787
  %4790 = vset.pattern.permute.xlu0 2
  %4791 = vperm.xlu0 %4790, %v4692
  %v4792 = vpop.permute.xlu0 %4791
  %v4794 = vadd.f32 %v4774, %v4788
  %v4795 = vadd.f32 %v4775, %v4788
  %v4796 = vadd.f32 %v4776, %v4788
  %v4797 = vadd.f32 %v4777, %v4788
  %v4798 = vadd.f32 %v4778, %v4788
  %v4799 = vadd.f32 %v4779, %v4788
  %v4800 = vadd.f32 %v4780, %v4792
  %v4801 = vadd.f32 %v4781, %v4792
  %v4802 = vadd.f32 %v4782, %v4792
  %v4803 = vadd.f32 %v4783, %v4792
  %v4804 = vadd.f32 %v4784, %v4792
  %v4805 = vadd.f32 %v4785, %v4792
  %v4806 = vmul.f32 %v4794, %v3605
  %v4807 = vmul.f32 %v4795, %v3606
  %v4808 = vmul.f32 %v4796, %v3607
  %v4809 = vmul.f32 %v4797, %v3608
  %v4810 = vmul.f32 %v4798, %v3609
  %v4811 = vmul.f32 %v4799, %v3610
  %v4812 = vmul.f32 %v4800, %v3605
  %v4813 = vmul.f32 %v4801, %v3606
  %v4814 = vmul.f32 %v4802, %v3607
  %v4815 = vmul.f32 %v4803, %v3608
  %v4816 = vmul.f32 %v4804, %v3609
  %v4817 = vmul.f32 %v4805, %v3610
  %v4818 = vpack.c.bf16 %v4807, %v4806
  %v4819 = vpack.c.bf16 %v4809, %v4808
  %v4820 = vpack.c.bf16 %v4811, %v4810
  %v4821 = vpack.c.bf16 %v4813, %v4812
  %v4822 = vpack.c.bf16 %v4815, %v4814
  %v4823 = vpack.c.bf16 %v4817, %v4816
  %4824 = vst [vmem:[%s12] sm:$0xff] %v4818
  %4825 = vst [vmem:[%s12 + $0x8] sm:$0xff] %v4819
  %vm4826 = vcmask 64516
  %vm4827 = vmor %vm4826, %vm4149
  %4828 = vst.msk [vmem:[%s12 + $0x10] sm:$0xff] %vm4827, %v4820
  %4829 = vst [vmem:[%s12 + $0x18] sm:$0xff] %v4821
  %4830 = vst [vmem:[%s12 + $0x20] sm:$0xff] %v4822
  %4831 = vst.msk [vmem:[%s12 + $0x28] sm:$0xff] %vm4827, %v4823
  // Predicated region
  $region50: #{adabiggan_forward.6} parent=0 // pred_check
    _
  $region51: #{adabiggan_forward.6} parent=0 // pred_check_branch
    %4833 = sbr.rel (0) target = $region53
  $region52: #{adabiggan_forward.6} parent=0 // pred_region
    _
  $region53: #{adabiggan_forward.6} parent=0 // pred_fallthru
    _
  // Predicated region
  $region54: #{adabiggan_forward.6} parent=0 // pred_check
    _
  $region55: #{adabiggan_forward.6} parent=0 // pred_check_branch
    %4835 = sbr.rel (0) target = $region57
  $region56: #{adabiggan_forward.6} parent=0 // pred_region
    _
  $region57: #{adabiggan_forward.6} parent=0 // pred_fallthru
    _

// kernel: adabiggan_forward.5
$region0: #{adabiggan_forward.5}
  #allocation0 [shape = 'u32[]', space=smem, size = 0x4, offset = 0x4, fixed_abs, tag = 'smem constant byte address 0x4 - core index']
  #allocation1 [shape = 'u32[72,128]{1,0:T(1,128)}', space=vmem, size = 0x9000, scoped, tag = 'internal scratch']
  #allocation2 [shape = 'bf16[96,222]{1,0:T(8,128)(2,1)}', space=vmem, size = 0xc000, scoped, tag = 'scratch operand']
  #allocation3 [shape = 'bf16[32,222]{1,0:T(8,128)(2,1)}', space=vmem, size = 0x4000, scoped, tag = 'scratch operand']
  %s0 = inlined_call_operand.vmem [shape: bf16[64,72], index: 0, kind: input, shape index: {}]
  %s1 = inlined_call_operand.vmem [shape: f32[24,2], index: 1, kind: input, shape index: {}]
  %s2 = inlined_call_operand.vmem [shape: f32[384,24], index: 2, kind: input, shape index: {}]
  %s3 = inlined_call_operand.vmem [shape: f32[384,1], index: 3, kind: input, shape index: {}]
  %s4 = inlined_call_operand.vmem [shape: bf16[3,32,192], index: 4, kind: input, shape index: {}]
  %s5 = inlined_call_operand.vmem [shape: bf16[3,32,96], index: 5, kind: input, shape index: {}]
  %s6 = inlined_call_operand.vmem [shape: bf16[32,64], index: 6, kind: input, shape index: {}]
  %s7 = inlined_call_operand.vmem [shape: f32[32,3], index: 7, kind: input, shape index: {}]
  %s8 = inlined_call_operand.vmem [shape: f32[4,10], index: 8, kind: input, shape index: {}]
  %s9 = inlined_call_operand.vmem [shape: f32[2,72], index: 9, kind: input, shape index: {}]
  %s10 = inlined_call_operand.vmem [shape: f32[2,200], index: 10, kind: input, shape index: {}]
  %s11 = inlined_call_operand.vmem [shape: f32[1,200], index: 11, kind: input, shape index: {}]
  %s12 = inlined_call_operand.vmem [shape: bf16[32,200], index: 12, kind: output, shape index: {}]
  %s13 = sld [smem:[#allocation0]]
  $region58: #{adabiggan_forward.5} parent=0
    _
  %s15 = ssub.s32 1, %s13
  %s16 = scalar_select 0, %s15, %s13
  // Predicated region
  $region2: #{adabiggan_forward.5} parent=0 // pred_check
    _
  $region3: #{adabiggan_forward.5} parent=0 // pred_check_branch
    %18 = sbr.rel (0) target = $region5
  $region4: #{adabiggan_forward.5} parent=0 // pred_region
    _
  $region5: #{adabiggan_forward.5} parent=0 // pred_fallthru
    _
  // Predicated region
  $region6: #{adabiggan_forward.5} parent=0 // pred_check
    _
  $region7: #{adabiggan_forward.5} parent=0 // pred_check_branch
    %20 = sbr.rel (0) target = $region9
  $region8: #{adabiggan_forward.5} parent=0 // pred_region
    _
  $region9: #{adabiggan_forward.5} parent=0 // pred_fallthru
    _
  // Predicated region
  $region10: #{adabiggan_forward.5} parent=0 // pred_check
    _
  $region11: #{adabiggan_forward.5} parent=0 // pred_check_branch
    %22 = sbr.rel (0) target = $region13
  $region12: #{adabiggan_forward.5} parent=0 // pred_region
    _
  $region13: #{adabiggan_forward.5} parent=0 // pred_fallthru
    _
  // Predicated region
  $region14: #{adabiggan_forward.5} parent=0 // pred_check
    _
  $region15: #{adabiggan_forward.5} parent=0 // pred_check_branch
    %24 = sbr.rel (0) target = $region17
  $region16: #{adabiggan_forward.5} parent=0 // pred_region
    _
  $region17: #{adabiggan_forward.5} parent=0 // pred_fallthru
    _
  // Predicated region
  $region18: #{adabiggan_forward.5} parent=0 // pred_check
    _
  $region19: #{adabiggan_forward.5} parent=0 // pred_check_branch
    %26 = sbr.rel (0) target = $region21
  $region20: #{adabiggan_forward.5} parent=0 // pred_region
    _
  $region21: #{adabiggan_forward.5} parent=0 // pred_fallthru
    _
  // Predicated region
  $region22: #{adabiggan_forward.5} parent=0 // pred_check
    _
  $region23: #{adabiggan_forward.5} parent=0 // pred_check_branch
    %28 = sbr.rel (0) target = $region25
  $region24: #{adabiggan_forward.5} parent=0 // pred_region
    _
  $region25: #{adabiggan_forward.5} parent=0 // pred_fallthru
    _
  // Predicated region
  $region26: #{adabiggan_forward.5} parent=0 // pred_check
    _
  $region27: #{adabiggan_forward.5} parent=0 // pred_check_branch
    %30 = sbr.rel (0) target = $region29
  $region28: #{adabiggan_forward.5} parent=0 // pred_region
    _
  $region29: #{adabiggan_forward.5} parent=0 // pred_fallthru
    _
  // Predicated region
  $region30: #{adabiggan_forward.5} parent=0 // pred_check
    _
  $region31: #{adabiggan_forward.5} parent=0 // pred_check_branch
    %32 = sbr.rel (0) target = $region33
  $region32: #{adabiggan_forward.5} parent=0 // pred_region
    _
  $region33: #{adabiggan_forward.5} parent=0 // pred_fallthru
    _
  // Predicated region
  $region34: #{adabiggan_forward.5} parent=0 // pred_check
    _
  $region35: #{adabiggan_forward.5} parent=0 // pred_check_branch
    %34 = sbr.rel (0) target = $region37
  $region36: #{adabiggan_forward.5} parent=0 // pred_region
    _
  $region37: #{adabiggan_forward.5} parent=0 // pred_fallthru
    _
  // Predicated region
  $region38: #{adabiggan_forward.5} parent=0 // pred_check
    _
  $region39: #{adabiggan_forward.5} parent=0 // pred_check_branch
    %36 = sbr.rel (0) target = $region41
  $region40: #{adabiggan_forward.5} parent=0 // pred_region
    _
  $region41: #{adabiggan_forward.5} parent=0 // pred_fallthru
    _
  // Predicated region
  $region42: #{adabiggan_forward.5} parent=0 // pred_check
    _
  $region43: #{adabiggan_forward.5} parent=0 // pred_check_branch
    %38 = sbr.rel (0) target = $region45
  $region44: #{adabiggan_forward.5} parent=0 // pred_region
    _
  $region45: #{adabiggan_forward.5} parent=0 // pred_fallthru
    _
  // Predicated region
  $region46: #{adabiggan_forward.5} parent=0 // pred_check
    _
  $region47: #{adabiggan_forward.5} parent=0 // pred_check_branch
    %40 = sbr.rel (0) target = $region49
  $region48: #{adabiggan_forward.5} parent=0 // pred_region
    _
  $region49: #{adabiggan_forward.5} parent=0 // pred_fallthru
    _
  %v42 = vld [vmem:[%s2] sm:$0xff]
  %v43 = vld [vmem:[%s2 + $0x8] sm:$0xff]
  %v44 = vld [vmem:[%s2 + $0x10] sm:$0xff]
  %v45 = vld [vmem:[%s2 + $0x18] sm:$0xff]
  %v46 = vld [vmem:[%s2 + $0x20] sm:$0xff]
  %v47 = vld [vmem:[%s2 + $0x28] sm:$0xff]
  %v48 = vld [vmem:[%s2 + $0x30] sm:$0xff]
  %v49 = vld [vmem:[%s2 + $0x38] sm:$0xff]
  %v50 = vld [vmem:[%s2 + $0x40] sm:$0xff]
  %v51 = vld [vmem:[%s2 + $0x48] sm:$0xff]
  %v52 = vld [vmem:[%s2 + $0x50] sm:$0xff]
  %v53 = vld [vmem:[%s2 + $0x58] sm:$0xff]
  %v54 = vld [vmem:[%s2 + $0x60] sm:$0xff]
  %v55 = vld [vmem:[%s2 + $0x68] sm:$0xff]
  %v56 = vld [vmem:[%s2 + $0x70] sm:$0xff]
  %v57 = vld [vmem:[%s2 + $0x78] sm:$0xff]
  %v58 = vld [vmem:[%s2 + $0x80] sm:$0xff]
  %v59 = vld [vmem:[%s2 + $0x88] sm:$0xff]
  %v60 = vld [vmem:[%s2 + $0x90] sm:$0xff]
  %v61 = vld [vmem:[%s2 + $0x98] sm:$0xff]
  %v62 = vld [vmem:[%s2 + $0xa0] sm:$0xff]
  %v63 = vld [vmem:[%s2 + $0xa8] sm:$0xff]
  %v64 = vld [vmem:[%s2 + $0xb0] sm:$0xff]
  %v65 = vld [vmem:[%s2 + $0xb8] sm:$0xff]
  %v66 = vld [vmem:[%s2 + $0xc0] sm:$0xff]
  %v67 = vld [vmem:[%s2 + $0xc8] sm:$0xff]
  %v68 = vld [vmem:[%s2 + $0xd0] sm:$0xff]
  %v69 = vld [vmem:[%s2 + $0xd8] sm:$0xff]
  %v70 = vld [vmem:[%s2 + $0xe0] sm:$0xff]
  %v71 = vld [vmem:[%s2 + $0xe8] sm:$0xff]
  %v72 = vld [vmem:[%s2 + $0xf0] sm:$0xff]
  %v73 = vld [vmem:[%s2 + $0xf8] sm:$0xff]
  %v74 = vld [vmem:[%s2 + $0x100] sm:$0xff]
  %v75 = vld [vmem:[%s2 + $0x108] sm:$0xff]
  %v76 = vld [vmem:[%s2 + $0x110] sm:$0xff]
  %v77 = vld [vmem:[%s2 + $0x118] sm:$0xff]
  %v78 = vld [vmem:[%s2 + $0x120] sm:$0xff]
  %v79 = vld [vmem:[%s2 + $0x128] sm:$0xff]
  %v80 = vld [vmem:[%s2 + $0x130] sm:$0xff]
  %v81 = vld [vmem:[%s2 + $0x138] sm:$0xff]
  %v82 = vld [vmem:[%s2 + $0x140] sm:$0xff]
  %v83 = vld [vmem:[%s2 + $0x148] sm:$0xff]
  %v84 = vld [vmem:[%s2 + $0x150] sm:$0xff]
  %v85 = vld [vmem:[%s2 + $0x158] sm:$0xff]
  %v86 = vld [vmem:[%s2 + $0x160] sm:$0xff]
  %v87 = vld [vmem:[%s2 + $0x168] sm:$0xff]
  %v88 = vld [vmem:[%s2 + $0x170] sm:$0xff]
  %v89 = vld [vmem:[%s2 + $0x178] sm:$0xff]
  %v90 = vld [vmem:[%s1] sm:$0xff]
  %v91 = vld [vmem:[%s1 + $0x8] sm:$0xff]
  %v92 = vld [vmem:[%s1 + $0x10] sm:$0xff]
  %v93 = vld [vmem:[%s3] sm:$0xff]
  %v94 = vld [vmem:[%s3 + $0x8] sm:$0xff]
  %v95 = vld [vmem:[%s3 + $0x10] sm:$0xff]
  %v96 = vld [vmem:[%s3 + $0x18] sm:$0xff]
  %v97 = vld [vmem:[%s3 + $0x20] sm:$0xff]
  %v98 = vld [vmem:[%s3 + $0x28] sm:$0xff]
  %v99 = vld [vmem:[%s3 + $0x30] sm:$0xff]
  %v100 = vld [vmem:[%s3 + $0x38] sm:$0xff]
  %v101 = vld [vmem:[%s3 + $0x40] sm:$0xff]
  %v102 = vld [vmem:[%s3 + $0x48] sm:$0xff]
  %v103 = vld [vmem:[%s3 + $0x50] sm:$0xff]
  %v104 = vld [vmem:[%s3 + $0x58] sm:$0xff]
  %v105 = vld [vmem:[%s3 + $0x60] sm:$0xff]
  %v106 = vld [vmem:[%s3 + $0x68] sm:$0xff]
  %v107 = vld [vmem:[%s3 + $0x70] sm:$0xff]
  %v108 = vld [vmem:[%s3 + $0x78] sm:$0xff]
  %v109 = vld [vmem:[%s3 + $0x80] sm:$0xff]
  %v110 = vld [vmem:[%s3 + $0x88] sm:$0xff]
  %v111 = vld [vmem:[%s3 + $0x90] sm:$0xff]
  %v112 = vld [vmem:[%s3 + $0x98] sm:$0xff]
  %v113 = vld [vmem:[%s3 + $0xa0] sm:$0xff]
  %v114 = vld [vmem:[%s3 + $0xa8] sm:$0xff]
  %v115 = vld [vmem:[%s3 + $0xb0] sm:$0xff]
  %v116 = vld [vmem:[%s3 + $0xb8] sm:$0xff]
  %v117 = vld [vmem:[%s3 + $0xc0] sm:$0xff]
  %v118 = vld [vmem:[%s3 + $0xc8] sm:$0xff]
  %v119 = vld [vmem:[%s3 + $0xd0] sm:$0xff]
  %v120 = vld [vmem:[%s3 + $0xd8] sm:$0xff]
  %v121 = vld [vmem:[%s3 + $0xe0] sm:$0xff]
  %v122 = vld [vmem:[%s3 + $0xe8] sm:$0xff]
  %v123 = vld [vmem:[%s3 + $0xf0] sm:$0xff]
  %v124 = vld [vmem:[%s3 + $0xf8] sm:$0xff]
  %v125 = vld [vmem:[%s3 + $0x100] sm:$0xff]
  %v126 = vld [vmem:[%s3 + $0x108] sm:$0xff]
  %v127 = vld [vmem:[%s3 + $0x110] sm:$0xff]
  %v128 = vld [vmem:[%s3 + $0x118] sm:$0xff]
  %v129 = vld [vmem:[%s3 + $0x120] sm:$0xff]
  %v130 = vld [vmem:[%s3 + $0x128] sm:$0xff]
  %v131 = vld [vmem:[%s3 + $0x130] sm:$0xff]
  %v132 = vld [vmem:[%s3 + $0x138] sm:$0xff]
  %v133 = vld [vmem:[%s3 + $0x140] sm:$0xff]
  %v134 = vld [vmem:[%s3 + $0x148] sm:$0xff]
  %v135 = vld [vmem:[%s3 + $0x150] sm:$0xff]
  %v136 = vld [vmem:[%s3 + $0x158] sm:$0xff]
  %v137 = vld [vmem:[%s3 + $0x160] sm:$0xff]
  %v138 = vld [vmem:[%s3 + $0x168] sm:$0xff]
  %v139 = vld [vmem:[%s3 + $0x170] sm:$0xff]
  %v140 = vld [vmem:[%s3 + $0x178] sm:$0xff]
  %142 = vset.pattern.permute.xlu0 0
  %143 = vperm.xlu0 %142, %v93
  %v144 = vpop.permute.xlu0 %143
  %147 = vset.pattern.permute.xlu0 0
  %148 = vperm.xlu0 %147, %v94
  %v149 = vpop.permute.xlu0 %148
  %152 = vset.pattern.permute.xlu0 0
  %153 = vperm.xlu0 %152, %v95
  %v154 = vpop.permute.xlu0 %153
  %157 = vset.pattern.permute.xlu0 0
  %158 = vperm.xlu0 %157, %v96
  %v159 = vpop.permute.xlu0 %158
  %162 = vset.pattern.permute.xlu0 0
  %163 = vperm.xlu0 %162, %v97
  %v164 = vpop.permute.xlu0 %163
  %167 = vset.pattern.permute.xlu0 0
  %168 = vperm.xlu0 %167, %v98
  %v169 = vpop.permute.xlu0 %168
  %172 = vset.pattern.permute.xlu0 0
  %173 = vperm.xlu0 %172, %v99
  %v174 = vpop.permute.xlu0 %173
  %177 = vset.pattern.permute.xlu0 0
  %178 = vperm.xlu0 %177, %v100
  %v179 = vpop.permute.xlu0 %178
  %182 = vset.pattern.permute.xlu0 0
  %183 = vperm.xlu0 %182, %v101
  %v184 = vpop.permute.xlu0 %183
  %187 = vset.pattern.permute.xlu0 0
  %188 = vperm.xlu0 %187, %v102
  %v189 = vpop.permute.xlu0 %188
  %192 = vset.pattern.permute.xlu0 0
  %193 = vperm.xlu0 %192, %v103
  %v194 = vpop.permute.xlu0 %193
  %197 = vset.pattern.permute.xlu0 0
  %198 = vperm.xlu0 %197, %v104
  %v199 = vpop.permute.xlu0 %198
  %202 = vset.pattern.permute.xlu0 0
  %203 = vperm.xlu0 %202, %v105
  %v204 = vpop.permute.xlu0 %203
  %207 = vset.pattern.permute.xlu0 0
  %208 = vperm.xlu0 %207, %v106
  %v209 = vpop.permute.xlu0 %208
  %212 = vset.pattern.permute.xlu0 0
  %213 = vperm.xlu0 %212, %v107
  %v214 = vpop.permute.xlu0 %213
  %217 = vset.pattern.permute.xlu0 0
  %218 = vperm.xlu0 %217, %v108
  %v219 = vpop.permute.xlu0 %218
  %222 = vset.pattern.permute.xlu0 0
  %223 = vperm.xlu0 %222, %v109
  %v224 = vpop.permute.xlu0 %223
  %227 = vset.pattern.permute.xlu0 0
  %228 = vperm.xlu0 %227, %v110
  %v229 = vpop.permute.xlu0 %228
  %232 = vset.pattern.permute.xlu0 0
  %233 = vperm.xlu0 %232, %v111
  %v234 = vpop.permute.xlu0 %233
  %237 = vset.pattern.permute.xlu0 0
  %238 = vperm.xlu0 %237, %v112
  %v239 = vpop.permute.xlu0 %238
  %242 = vset.pattern.permute.xlu0 0
  %243 = vperm.xlu0 %242, %v113
  %v244 = vpop.permute.xlu0 %243
  %247 = vset.pattern.permute.xlu0 0
  %248 = vperm.xlu0 %247, %v114
  %v249 = vpop.permute.xlu0 %248
  %252 = vset.pattern.permute.xlu0 0
  %253 = vperm.xlu0 %252, %v115
  %v254 = vpop.permute.xlu0 %253
  %257 = vset.pattern.permute.xlu0 0
  %258 = vperm.xlu0 %257, %v116
  %v259 = vpop.permute.xlu0 %258
  %262 = vset.pattern.permute.xlu0 0
  %263 = vperm.xlu0 %262, %v117
  %v264 = vpop.permute.xlu0 %263
  %267 = vset.pattern.permute.xlu0 0
  %268 = vperm.xlu0 %267, %v118
  %v269 = vpop.permute.xlu0 %268
  %272 = vset.pattern.permute.xlu0 0
  %273 = vperm.xlu0 %272, %v119
  %v274 = vpop.permute.xlu0 %273
  %277 = vset.pattern.permute.xlu0 0
  %278 = vperm.xlu0 %277, %v120
  %v279 = vpop.permute.xlu0 %278
  %282 = vset.pattern.permute.xlu0 0
  %283 = vperm.xlu0 %282, %v121
  %v284 = vpop.permute.xlu0 %283
  %287 = vset.pattern.permute.xlu0 0
  %288 = vperm.xlu0 %287, %v122
  %v289 = vpop.permute.xlu0 %288
  %292 = vset.pattern.permute.xlu0 0
  %293 = vperm.xlu0 %292, %v123
  %v294 = vpop.permute.xlu0 %293
  %297 = vset.pattern.permute.xlu0 0
  %298 = vperm.xlu0 %297, %v124
  %v299 = vpop.permute.xlu0 %298
  %302 = vset.pattern.permute.xlu0 0
  %303 = vperm.xlu0 %302, %v125
  %v304 = vpop.permute.xlu0 %303
  %307 = vset.pattern.permute.xlu0 0
  %308 = vperm.xlu0 %307, %v126
  %v309 = vpop.permute.xlu0 %308
  %312 = vset.pattern.permute.xlu0 0
  %313 = vperm.xlu0 %312, %v127
  %v314 = vpop.permute.xlu0 %313
  %317 = vset.pattern.permute.xlu0 0
  %318 = vperm.xlu0 %317, %v128
  %v319 = vpop.permute.xlu0 %318
  %322 = vset.pattern.permute.xlu0 0
  %323 = vperm.xlu0 %322, %v129
  %v324 = vpop.permute.xlu0 %323
  %327 = vset.pattern.permute.xlu0 0
  %328 = vperm.xlu0 %327, %v130
  %v329 = vpop.permute.xlu0 %328
  %332 = vset.pattern.permute.xlu0 0
  %333 = vperm.xlu0 %332, %v131
  %v334 = vpop.permute.xlu0 %333
  %337 = vset.pattern.permute.xlu0 0
  %338 = vperm.xlu0 %337, %v132
  %v339 = vpop.permute.xlu0 %338
  %342 = vset.pattern.permute.xlu0 0
  %343 = vperm.xlu0 %342, %v133
  %v344 = vpop.permute.xlu0 %343
  %347 = vset.pattern.permute.xlu0 0
  %348 = vperm.xlu0 %347, %v134
  %v349 = vpop.permute.xlu0 %348
  %352 = vset.pattern.permute.xlu0 0
  %353 = vperm.xlu0 %352, %v135
  %v354 = vpop.permute.xlu0 %353
  %357 = vset.pattern.permute.xlu0 0
  %358 = vperm.xlu0 %357, %v136
  %v359 = vpop.permute.xlu0 %358
  %362 = vset.pattern.permute.xlu0 0
  %363 = vperm.xlu0 %362, %v137
  %v364 = vpop.permute.xlu0 %363
  %367 = vset.pattern.permute.xlu0 0
  %368 = vperm.xlu0 %367, %v138
  %v369 = vpop.permute.xlu0 %368
  %372 = vset.pattern.permute.xlu0 0
  %373 = vperm.xlu0 %372, %v139
  %v374 = vpop.permute.xlu0 %373
  %377 = vset.pattern.permute.xlu0 0
  %378 = vperm.xlu0 %377, %v140
  %v379 = vpop.permute.xlu0 %378
  %vm381 = vcmask 195584
  %v383 = vsel %vm381, %v42, 0
  %v386 = vsel %vm381, %v43, 0
  %v389 = vsel %vm381, %v44, 0
  %v392 = vsel %vm381, %v45, 0
  %v395 = vsel %vm381, %v46, 0
  %v398 = vsel %vm381, %v47, 0
  %v401 = vsel %vm381, %v48, 0
  %v404 = vsel %vm381, %v49, 0
  %v407 = vsel %vm381, %v50, 0
  %v410 = vsel %vm381, %v51, 0
  %v413 = vsel %vm381, %v52, 0
  %v416 = vsel %vm381, %v53, 0
  %v419 = vsel %vm381, %v54, 0
  %v422 = vsel %vm381, %v55, 0
  %v425 = vsel %vm381, %v56, 0
  %v428 = vsel %vm381, %v57, 0
  %v431 = vsel %vm381, %v58, 0
  %v434 = vsel %vm381, %v59, 0
  %v437 = vsel %vm381, %v60, 0
  %v440 = vsel %vm381, %v61, 0
  %v443 = vsel %vm381, %v62, 0
  %v446 = vsel %vm381, %v63, 0
  %v449 = vsel %vm381, %v64, 0
  %v452 = vsel %vm381, %v65, 0
  %v455 = vsel %vm381, %v66, 0
  %v458 = vsel %vm381, %v67, 0
  %v461 = vsel %vm381, %v68, 0
  %v464 = vsel %vm381, %v69, 0
  %v467 = vsel %vm381, %v70, 0
  %v470 = vsel %vm381, %v71, 0
  %v473 = vsel %vm381, %v72, 0
  %v476 = vsel %vm381, %v73, 0
  %v479 = vsel %vm381, %v74, 0
  %v482 = vsel %vm381, %v75, 0
  %v485 = vsel %vm381, %v76, 0
  %v488 = vsel %vm381, %v77, 0
  %v491 = vsel %vm381, %v78, 0
  %v494 = vsel %vm381, %v79, 0
  %v497 = vsel %vm381, %v80, 0
  %v500 = vsel %vm381, %v81, 0
  %v503 = vsel %vm381, %v82, 0
  %v506 = vsel %vm381, %v83, 0
  %v509 = vsel %vm381, %v84, 0
  %v512 = vsel %vm381, %v85, 0
  %v515 = vsel %vm381, %v86, 0
  %v518 = vsel %vm381, %v87, 0
  %v521 = vsel %vm381, %v88, 0
  %v524 = vsel %vm381, %v89, 0
  %526 = vmatpush.msra.mxu0 0.0
  %527 = vmatpush.msra.mxu0 0.0
  %528 = vmatpush.msra.mxu0 0.0
  %529 = vmatpush.msra.mxu0 0.0
  %530 = vmatpush.msra.mxu0 0.0
  %531 = vmatpush.msra.mxu0 0.0
  %532 = vmatpush.msra.mxu0 0.0
  %533 = vmatpush.msra.mxu0 0.0
  %534 = vmatpush.msra.mxu0 0.0
  %535 = vmatpush.msra.mxu0 0.0
  %536 = vmatpush.msra.mxu0 0.0
  %537 = vmatpush.msra.mxu0 0.0
  %538 = vmatpush.msra.mxu0 0.0
  %539 = vmatpush.msra.mxu0 %v92
  %540 = vmatpush.msra.mxu0 %v91
  %541 = vmatpush.msra.mxu0 %v90
  %542 = vmatmul.f32.gmra.mxu0 %v383
  %v543 = vpop.f32.mrf.mxu0
  %v544 = vadd.f32 %v144, %v543
  %545 = vmatmul.f32.gmra.mxu0 %v386
  %v546 = vpop.f32.mrf.mxu0
  %v547 = vadd.f32 %v149, %v546
  %548 = vmatmul.f32.gmra.mxu0 %v389
  %v549 = vpop.f32.mrf.mxu0
  %v550 = vadd.f32 %v154, %v549
  %551 = vmatmul.f32.gmra.mxu0 %v392
  %v552 = vpop.f32.mrf.mxu0
  %v553 = vadd.f32 %v159, %v552
  %554 = vmatmul.f32.gmra.mxu0 %v395
  %v555 = vpop.f32.mrf.mxu0
  %v556 = vadd.f32 %v164, %v555
  %557 = vmatmul.f32.gmra.mxu0 %v398
  %v558 = vpop.f32.mrf.mxu0
  %v559 = vadd.f32 %v169, %v558
  %560 = vmatmul.f32.gmra.mxu0 %v401
  %v561 = vpop.f32.mrf.mxu0
  %v562 = vadd.f32 %v174, %v561
  %563 = vmatmul.f32.gmra.mxu0 %v404
  %v564 = vpop.f32.mrf.mxu0
  %v565 = vadd.f32 %v179, %v564
  %566 = vmatmul.f32.gmra.mxu0 %v407
  %v567 = vpop.f32.mrf.mxu0
  %v568 = vadd.f32 %v184, %v567
  %569 = vmatmul.f32.gmra.mxu0 %v410
  %v570 = vpop.f32.mrf.mxu0
  %v571 = vadd.f32 %v189, %v570
  %572 = vmatmul.f32.gmra.mxu0 %v413
  %v573 = vpop.f32.mrf.mxu0
  %v574 = vadd.f32 %v194, %v573
  %575 = vmatmul.f32.gmra.mxu0 %v416
  %v576 = vpop.f32.mrf.mxu0
  %v577 = vadd.f32 %v199, %v576
  %578 = vmatmul.f32.gmra.mxu0 %v419
  %v579 = vpop.f32.mrf.mxu0
  %v580 = vadd.f32 %v204, %v579
  %581 = vmatmul.f32.gmra.mxu0 %v422
  %v582 = vpop.f32.mrf.mxu0
  %v583 = vadd.f32 %v209, %v582
  %584 = vmatmul.f32.gmra.mxu0 %v425
  %v585 = vpop.f32.mrf.mxu0
  %v586 = vadd.f32 %v214, %v585
  %587 = vmatmul.f32.gmra.mxu0 %v428
  %v588 = vpop.f32.mrf.mxu0
  %v589 = vadd.f32 %v219, %v588
  %590 = vmatmul.f32.gmra.mxu0 %v431
  %v591 = vpop.f32.mrf.mxu0
  %v592 = vadd.f32 %v224, %v591
  %593 = vmatmul.f32.gmra.mxu0 %v434
  %v594 = vpop.f32.mrf.mxu0
  %v595 = vadd.f32 %v229, %v594
  %596 = vmatmul.f32.gmra.mxu0 %v437
  %v597 = vpop.f32.mrf.mxu0
  %v598 = vadd.f32 %v234, %v597
  %599 = vmatmul.f32.gmra.mxu0 %v440
  %v600 = vpop.f32.mrf.mxu0
  %v601 = vadd.f32 %v239, %v600
  %602 = vmatmul.f32.gmra.mxu0 %v443
  %v603 = vpop.f32.mrf.mxu0
  %v604 = vadd.f32 %v244, %v603
  %605 = vmatmul.f32.gmra.mxu0 %v446
  %v606 = vpop.f32.mrf.mxu0
  %v607 = vadd.f32 %v249, %v606
  %608 = vmatmul.f32.gmra.mxu0 %v449
  %v609 = vpop.f32.mrf.mxu0
  %v610 = vadd.f32 %v254, %v609
  %611 = vmatmul.f32.gmra.mxu0 %v452
  %v612 = vpop.f32.mrf.mxu0
  %v613 = vadd.f32 %v259, %v612
  %614 = vmatmul.f32.gmra.mxu0 %v455
  %v615 = vpop.f32.mrf.mxu0
  %v616 = vadd.f32 %v264, %v615
  %617 = vmatmul.f32.gmra.mxu0 %v458
  %v618 = vpop.f32.mrf.mxu0
  %v619 = vadd.f32 %v269, %v618
  %620 = vmatmul.f32.gmra.mxu0 %v461
  %v621 = vpop.f32.mrf.mxu0
  %v622 = vadd.f32 %v274, %v621
  %623 = vmatmul.f32.gmra.mxu0 %v464
  %v624 = vpop.f32.mrf.mxu0
  %v625 = vadd.f32 %v279, %v624
  %626 = vmatmul.f32.gmra.mxu0 %v467
  %v627 = vpop.f32.mrf.mxu0
  %v628 = vadd.f32 %v284, %v627
  %629 = vmatmul.f32.gmra.mxu0 %v470
  %v630 = vpop.f32.mrf.mxu0
  %v631 = vadd.f32 %v289, %v630
  %632 = vmatmul.f32.gmra.mxu0 %v473
  %v633 = vpop.f32.mrf.mxu0
  %v634 = vadd.f32 %v294, %v633
  %635 = vmatmul.f32.gmra.mxu0 %v476
  %v636 = vpop.f32.mrf.mxu0
  %v637 = vadd.f32 %v299, %v636
  %638 = vmatmul.f32.gmra.mxu0 %v479
  %v639 = vpop.f32.mrf.mxu0
  %v640 = vadd.f32 %v304, %v639
  %641 = vmatmul.f32.gmra.mxu0 %v482
  %v642 = vpop.f32.mrf.mxu0
  %v643 = vadd.f32 %v309, %v642
  %644 = vmatmul.f32.gmra.mxu0 %v485
  %v645 = vpop.f32.mrf.mxu0
  %v646 = vadd.f32 %v314, %v645
  %647 = vmatmul.f32.gmra.mxu0 %v488
  %v648 = vpop.f32.mrf.mxu0
  %v649 = vadd.f32 %v319, %v648
  %650 = vmatmul.f32.gmra.mxu0 %v491
  %v651 = vpop.f32.mrf.mxu0
  %v652 = vadd.f32 %v324, %v651
  %653 = vmatmul.f32.gmra.mxu0 %v494
  %v654 = vpop.f32.mrf.mxu0
  %v655 = vadd.f32 %v329, %v654
  %656 = vmatmul.f32.gmra.mxu0 %v497
  %v657 = vpop.f32.mrf.mxu0
  %v658 = vadd.f32 %v334, %v657
  %659 = vmatmul.f32.gmra.mxu0 %v500
  %v660 = vpop.f32.mrf.mxu0
  %v661 = vadd.f32 %v339, %v660
  %662 = vmatmul.f32.gmra.mxu0 %v503
  %v663 = vpop.f32.mrf.mxu0
  %v664 = vadd.f32 %v344, %v663
  %665 = vmatmul.f32.gmra.mxu0 %v506
  %v666 = vpop.f32.mrf.mxu0
  %v667 = vadd.f32 %v349, %v666
  %668 = vmatmul.f32.gmra.mxu0 %v509
  %v669 = vpop.f32.mrf.mxu0
  %v670 = vadd.f32 %v354, %v669
  %671 = vmatmul.f32.gmra.mxu0 %v512
  %v672 = vpop.f32.mrf.mxu0
  %v673 = vadd.f32 %v359, %v672
  %674 = vmatmul.f32.gmra.mxu0 %v515
  %v675 = vpop.f32.mrf.mxu0
  %v676 = vadd.f32 %v364, %v675
  %677 = vmatmul.f32.gmra.mxu0 %v518
  %v678 = vpop.f32.mrf.mxu0
  %v679 = vadd.f32 %v369, %v678
  %680 = vmatmul.f32.gmra.mxu0 %v521
  %v681 = vpop.f32.mrf.mxu0
  %v682 = vadd.f32 %v374, %v681
  %683 = vmatmul.f32.gmra.mxu0 %v524
  %v684 = vpop.f32.mrf.mxu0
  %v685 = vadd.f32 %v379, %v684
  %686 = vdwg.mxu0
  %v687 = vmul.f32 %v544, %v592
  %v688 = vmul.f32 %v547, %v595
  %v689 = vmul.f32 %v550, %v598
  %v690 = vmul.f32 %v553, %v601
  %v691 = vmul.f32 %v556, %v604
  %v692 = vmul.f32 %v559, %v607
  %v693 = vmul.f32 %v562, %v610
  %v694 = vmul.f32 %v565, %v613
  %v695 = vmul.f32 %v568, %v592
  %v696 = vmul.f32 %v571, %v595
  %v697 = vmul.f32 %v574, %v598
  %v698 = vmul.f32 %v577, %v601
  %v699 = vmul.f32 %v580, %v604
  %v700 = vmul.f32 %v583, %v607
  %v701 = vmul.f32 %v586, %v610
  %v702 = vmul.f32 %v589, %v613
  %v703 = vadd.f32 %v695, %v616
  %v704 = vadd.f32 %v696, %v619
  %v705 = vadd.f32 %v697, %v622
  %v706 = vadd.f32 %v698, %v625
  %v707 = vadd.f32 %v699, %v628
  %v708 = vadd.f32 %v700, %v631
  %v709 = vadd.f32 %v701, %v634
  %v710 = vadd.f32 %v702, %v637
  %v711 = vmul.f32 %v640, %v664
  %v712 = vmul.f32 %v643, %v667
  %v713 = vmul.f32 %v646, %v670
  %v714 = vmul.f32 %v649, %v673
  %v715 = vmul.f32 %v652, %v664
  %v716 = vmul.f32 %v655, %v667
  %v717 = vmul.f32 %v658, %v670
  %v718 = vmul.f32 %v661, %v673
  %v719 = vadd.f32 %v715, %v676
  %v720 = vadd.f32 %v716, %v679
  %v721 = vadd.f32 %v717, %v682
  %v722 = vadd.f32 %v718, %v685
  %v723 = vld [vmem:[%s0] sm:$0xf]
  %v724 = vld [vmem:[%s0 + $0x4] sm:$0xf]
  %v725 = vld [vmem:[%s0 + $0x8] sm:$0xf]
  %v726 = vld [vmem:[%s0 + $0xc] sm:$0xf]
  %v727 = vld [vmem:[%s0 + $0x10] sm:$0xf]
  %v728 = vld [vmem:[%s0 + $0x14] sm:$0xf]
  %v729 = vld [vmem:[%s0 + $0x18] sm:$0xf]
  %v730 = vld [vmem:[%s0 + $0x1c] sm:$0xf]
  %v731 = vunpack.c.l.bf16 %v723
  %v732 = vunpack.c.l.bf16 %v724
  %v733 = vunpack.c.l.bf16 %v725
  %v734 = vunpack.c.l.bf16 %v726
  %v735 = vunpack.c.l.bf16 %v727
  %v736 = vunpack.c.l.bf16 %v728
  %v737 = vunpack.c.l.bf16 %v729
  %v738 = vunpack.c.l.bf16 %v730
  %vm739 = vcmask 588800
  %v740 = vsel %vm739, %v731, 0.0
  %741 = vadd.xlane.f32.xlu0 %v740
  %v742 = vpop.xlane.xlu0 %741
  %v743 = vsel %vm739, %v732, 0.0
  %744 = vadd.xlane.f32.xlu0 %v743
  %v745 = vpop.xlane.xlu0 %744
  %v746 = vsel %vm739, %v733, 0.0
  %747 = vadd.xlane.f32.xlu0 %v746
  %v748 = vpop.xlane.xlu0 %747
  %v749 = vsel %vm739, %v734, 0.0
  %750 = vadd.xlane.f32.xlu0 %v749
  %v751 = vpop.xlane.xlu0 %750
  %v752 = vsel %vm739, %v735, 0.0
  %753 = vadd.xlane.f32.xlu0 %v752
  %v754 = vpop.xlane.xlu0 %753
  %v755 = vsel %vm739, %v736, 0.0
  %756 = vadd.xlane.f32.xlu0 %v755
  %v757 = vpop.xlane.xlu0 %756
  %v758 = vsel %vm739, %v737, 0.0
  %759 = vadd.xlane.f32.xlu0 %v758
  %v760 = vpop.xlane.xlu0 %759
  %v761 = vsel %vm739, %v738, 0.0
  %762 = vadd.xlane.f32.xlu0 %v761
  %v763 = vpop.xlane.xlu0 %762
  %v764 = vrcp.pop 32.0
  %v765 = vmul.f32 32.0, %v764
  %v766 = vsub.f32 1.0, %v765
  %v767 = vmul.f32 %v764, %v766
  %v768 = vadd.f32 %v764, %v767
  %vm769 = vweird.f32 %v764
  %v770 = vsel %vm769, %v764, %v768
  %v771 = vmul.f32 %v742, %v770
  %v772 = vmul.f32 %v745, %v770
  %v773 = vmul.f32 %v748, %v770
  %v774 = vmul.f32 %v751, %v770
  %v775 = vmul.f32 %v754, %v770
  %v776 = vmul.f32 %v757, %v770
  %v777 = vmul.f32 %v760, %v770
  %v778 = vmul.f32 %v763, %v770
  %v779 = vmul.f32 %v731, %v731
  %v780 = vmul.f32 %v732, %v732
  %v781 = vmul.f32 %v733, %v733
  %v782 = vmul.f32 %v734, %v734
  %v783 = vmul.f32 %v735, %v735
  %v784 = vmul.f32 %v736, %v736
  %v785 = vmul.f32 %v737, %v737
  %v786 = vmul.f32 %v738, %v738
  %v787 = vsel %vm739, %v779, 0.0
  %788 = vadd.xlane.f32.xlu0 %v787
  %v789 = vpop.xlane.xlu0 %788
  %v790 = vsel %vm739, %v780, 0.0
  %791 = vadd.xlane.f32.xlu0 %v790
  %v792 = vpop.xlane.xlu0 %791
  %v793 = vsel %vm739, %v781, 0.0
  %794 = vadd.xlane.f32.xlu0 %v793
  %v795 = vpop.xlane.xlu0 %794
  %v796 = vsel %vm739, %v782, 0.0
  %797 = vadd.xlane.f32.xlu0 %v796
  %v798 = vpop.xlane.xlu0 %797
  %v799 = vsel %vm739, %v783, 0.0
  %800 = vadd.xlane.f32.xlu0 %v799
  %v801 = vpop.xlane.xlu0 %800
  %v802 = vsel %vm739, %v784, 0.0
  %803 = vadd.xlane.f32.xlu0 %v802
  %v804 = vpop.xlane.xlu0 %803
  %v805 = vsel %vm739, %v785, 0.0
  %806 = vadd.xlane.f32.xlu0 %v805
  %v807 = vpop.xlane.xlu0 %806
  %v808 = vsel %vm739, %v786, 0.0
  %809 = vadd.xlane.f32.xlu0 %v808
  %v810 = vpop.xlane.xlu0 %809
  %v811 = vmul.f32 %v789, %v770
  %v812 = vmul.f32 %v792, %v770
  %v813 = vmul.f32 %v795, %v770
  %v814 = vmul.f32 %v798, %v770
  %v815 = vmul.f32 %v801, %v770
  %v816 = vmul.f32 %v804, %v770
  %v817 = vmul.f32 %v807, %v770
  %v818 = vmul.f32 %v810, %v770
  %v819 = vmul.f32 %v771, %v771
  %v820 = vmul.f32 %v772, %v772
  %v821 = vmul.f32 %v773, %v773
  %v822 = vmul.f32 %v774, %v774
  %v823 = vmul.f32 %v775, %v775
  %v824 = vmul.f32 %v776, %v776
  %v825 = vmul.f32 %v777, %v777
  %v826 = vmul.f32 %v778, %v778
  %v827 = vsub.f32 %v811, %v819
  %v828 = vsub.f32 %v812, %v820
  %v829 = vsub.f32 %v813, %v821
  %v830 = vsub.f32 %v814, %v822
  %v831 = vsub.f32 %v815, %v823
  %v832 = vsub.f32 %v816, %v824
  %v833 = vsub.f32 %v817, %v825
  %v834 = vsub.f32 %v818, %v826
  %v835 = vmax.f32 %v827, 0.0
  %v836 = vmax.f32 %v828, 0.0
  %v837 = vmax.f32 %v829, 0.0
  %v838 = vmax.f32 %v830, 0.0
  %v839 = vmax.f32 %v831, 0.0
  %v840 = vmax.f32 %v832, 0.0
  %v841 = vmax.f32 %v833, 0.0
  %v842 = vmax.f32 %v834, 0.0
  %v843 = vadd.f32 %v835, 1e-05
  %v844 = vadd.f32 %v836, 1e-05
  %v845 = vadd.f32 %v837, 1e-05
  %v846 = vadd.f32 %v838, 1e-05
  %v847 = vadd.f32 %v839, 1e-05
  %v848 = vadd.f32 %v840, 1e-05
  %v849 = vadd.f32 %v841, 1e-05
  %v850 = vadd.f32 %v842, 1e-05
  %v851 = vrsqrt.pop %v843
  %v852 = vmul.f32 %v851, %v843
  %v853 = vmul.f32 %v852, %v851
  %v854 = vmul.f32 0.5, %v853
  %v855 = vsub.f32 1.5, %v854
  %v856 = vmul.f32 %v851, %v855
  %vm857 = vweird.f32 %v843
  %vm858 = vweird.f32 %v851
  %vm859 = vmor %vm857, %vm858
  %v860 = vsel %vm859, %v851, %v856
  %v861 = vrsqrt.pop %v844
  %v862 = vmul.f32 %v861, %v844
  %v863 = vmul.f32 %v862, %v861
  %v864 = vmul.f32 0.5, %v863
  %v865 = vsub.f32 1.5, %v864
  %v866 = vmul.f32 %v861, %v865
  %vm867 = vweird.f32 %v844
  %vm868 = vweird.f32 %v861
  %vm869 = vmor %vm867, %vm868
  %v870 = vsel %vm869, %v861, %v866
  %v871 = vrsqrt.pop %v845
  %v872 = vmul.f32 %v871, %v845
  %v873 = vmul.f32 %v872, %v871
  %v874 = vmul.f32 0.5, %v873
  %v875 = vsub.f32 1.5, %v874
  %v876 = vmul.f32 %v871, %v875
  %vm877 = vweird.f32 %v845
  %vm878 = vweird.f32 %v871
  %vm879 = vmor %vm877, %vm878
  %v880 = vsel %vm879, %v871, %v876
  %v881 = vrsqrt.pop %v846
  %v882 = vmul.f32 %v881, %v846
  %v883 = vmul.f32 %v882, %v881
  %v884 = vmul.f32 0.5, %v883
  %v885 = vsub.f32 1.5, %v884
  %v886 = vmul.f32 %v881, %v885
  %vm887 = vweird.f32 %v846
  %vm888 = vweird.f32 %v881
  %vm889 = vmor %vm887, %vm888
  %v890 = vsel %vm889, %v881, %v886
  %v891 = vrsqrt.pop %v847
  %v892 = vmul.f32 %v891, %v847
  %v893 = vmul.f32 %v892, %v891
  %v894 = vmul.f32 0.5, %v893
  %v895 = vsub.f32 1.5, %v894
  %v896 = vmul.f32 %v891, %v895
  %vm897 = vweird.f32 %v847
  %vm898 = vweird.f32 %v891
  %vm899 = vmor %vm897, %vm898
  %v900 = vsel %vm899, %v891, %v896
  %v901 = vrsqrt.pop %v848
  %v902 = vmul.f32 %v901, %v848
  %v903 = vmul.f32 %v902, %v901
  %v904 = vmul.f32 0.5, %v903
  %v905 = vsub.f32 1.5, %v904
  %v906 = vmul.f32 %v901, %v905
  %vm907 = vweird.f32 %v848
  %vm908 = vweird.f32 %v901
  %vm909 = vmor %vm907, %vm908
  %v910 = vsel %vm909, %v901, %v906
  %v911 = vrsqrt.pop %v849
  %v912 = vmul.f32 %v911, %v849
  %v913 = vmul.f32 %v912, %v911
  %v914 = vmul.f32 0.5, %v913
  %v915 = vsub.f32 1.5, %v914
  %v916 = vmul.f32 %v911, %v915
  %vm917 = vweird.f32 %v849
  %vm918 = vweird.f32 %v911
  %vm919 = vmor %vm917, %vm918
  %v920 = vsel %vm919, %v911, %v916
  %v921 = vrsqrt.pop %v850
  %v922 = vmul.f32 %v921, %v850
  %v923 = vmul.f32 %v922, %v921
  %v924 = vmul.f32 0.5, %v923
  %v925 = vsub.f32 1.5, %v924
  %v926 = vmul.f32 %v921, %v925
  %vm927 = vweird.f32 %v850
  %vm928 = vweird.f32 %v921
  %vm929 = vmor %vm927, %vm928
  %v930 = vsel %vm929, %v921, %v926
  %v931 = vmul.f32 %v860, %v687
  %v932 = vmul.f32 %v870, %v688
  %v933 = vmul.f32 %v880, %v689
  %v934 = vmul.f32 %v890, %v690
  %v935 = vmul.f32 %v900, %v691
  %v936 = vmul.f32 %v910, %v692
  %v937 = vmul.f32 %v920, %v693
  %v938 = vmul.f32 %v930, %v694
  %v939 = vld [vmem:[%s9] sm:$0x3]
  %vm940 = vcmask 15360
  %v942 = vsel %vm940, %v931, 0
  %v945 = vsel %vm940, %v932, 0
  %v948 = vsel %vm940, %v933, 0
  %v951 = vsel %vm940, %v934, 0
  %v954 = vsel %vm940, %v935, 0
  %v957 = vsel %vm940, %v936, 0
  %v960 = vsel %vm940, %v937, 0
  %v963 = vsel %vm940, %v938, 0
  %vm965 = vcmask 1041408
  %v967 = vsel %vm965, %v939, 0
  %969 = vmatpush.msra.mxu0 0.0
  %970 = vmatpush.msra.mxu0 0.0
  %971 = vmatpush.msra.mxu0 0.0
  %972 = vmatpush.msra.mxu0 0.0
  %973 = vmatpush.msra.mxu0 0.0
  %974 = vmatpush.msra.mxu0 0.0
  %975 = vmatpush.msra.mxu0 0.0
  %976 = vmatpush.msra.mxu0 0.0
  %977 = vmatpush.msra.mxu0 0.0
  %978 = vmatpush.msra.mxu0 0.0
  %979 = vmatpush.msra.mxu0 0.0
  %980 = vmatpush.msra.mxu0 0.0
  %981 = vmatpush.msra.mxu0 0.0
  %982 = vmatpush.msra.mxu0 0.0
  %983 = vmatpush.msra.mxu0 0.0
  %984 = vmatpush.msra.mxu0 %v967
  %985 = vmatmul.f32.gmra.mxu0 %v942
  %v986 = vpop.f32.mrf.mxu0
  %v987 = vadd.f32 0.0, %v986
  %988 = vmatmul.f32.gmra.mxu0 %v945
  %v989 = vpop.f32.mrf.mxu0
  %v990 = vadd.f32 0.0, %v989
  %991 = vmatmul.f32.gmra.mxu0 %v948
  %v992 = vpop.f32.mrf.mxu0
  %v993 = vadd.f32 0.0, %v992
  %994 = vmatmul.f32.gmra.mxu0 %v951
  %v995 = vpop.f32.mrf.mxu0
  %v996 = vadd.f32 0.0, %v995
  %997 = vmatmul.f32.gmra.mxu0 %v954
  %v998 = vpop.f32.mrf.mxu0
  %v999 = vadd.f32 0.0, %v998
  %1000 = vmatmul.f32.gmra.mxu0 %v957
  %v1001 = vpop.f32.mrf.mxu0
  %v1002 = vadd.f32 0.0, %v1001
  %1003 = vmatmul.f32.gmra.mxu0 %v960
  %v1004 = vpop.f32.mrf.mxu0
  %v1005 = vadd.f32 0.0, %v1004
  %1006 = vmatmul.f32.gmra.mxu0 %v963
  %v1007 = vpop.f32.mrf.mxu0
  %v1008 = vadd.f32 0.0, %v1007
  %1009 = vdwg.mxu0
  %v1010 = vmul.f32 %v771, %v860
  %v1011 = vmul.f32 %v772, %v870
  %v1012 = vmul.f32 %v773, %v880
  %v1013 = vmul.f32 %v774, %v890
  %v1014 = vmul.f32 %v775, %v900
  %v1015 = vmul.f32 %v776, %v910
  %v1016 = vmul.f32 %v777, %v920
  %v1017 = vmul.f32 %v778, %v930
  %v1018 = vmul.f32 %v1010, %v687
  %v1019 = vmul.f32 %v1011, %v688
  %v1020 = vmul.f32 %v1012, %v689
  %v1021 = vmul.f32 %v1013, %v690
  %v1022 = vmul.f32 %v1014, %v691
  %v1023 = vmul.f32 %v1015, %v692
  %v1024 = vmul.f32 %v1016, %v693
  %v1025 = vmul.f32 %v1017, %v694
  %v1026 = vsub.f32 %v703, %v1018
  %v1027 = vsub.f32 %v704, %v1019
  %v1028 = vsub.f32 %v705, %v1020
  %v1029 = vsub.f32 %v706, %v1021
  %v1030 = vsub.f32 %v707, %v1022
  %v1031 = vsub.f32 %v708, %v1023
  %v1032 = vsub.f32 %v709, %v1024
  %v1033 = vsub.f32 %v710, %v1025
  %v1035 = vsel %vm940, %v1026, 0
  %v1038 = vsel %vm940, %v1027, 0
  %v1041 = vsel %vm940, %v1028, 0
  %v1044 = vsel %vm940, %v1029, 0
  %v1047 = vsel %vm940, %v1030, 0
  %v1050 = vsel %vm940, %v1031, 0
  %v1053 = vsel %vm940, %v1032, 0
  %v1056 = vsel %vm940, %v1033, 0
  %1058 = vmatpush.msra.mxu0 0.0
  %1059 = vmatpush.msra.mxu0 0.0
  %1060 = vmatpush.msra.mxu0 0.0
  %1061 = vmatpush.msra.mxu0 0.0
  %1062 = vmatpush.msra.mxu0 0.0
  %1063 = vmatpush.msra.mxu0 0.0
  %1064 = vmatpush.msra.mxu0 0.0
  %1065 = vmatpush.msra.mxu0 0.0
  %1066 = vmatpush.msra.mxu0 0.0
  %1067 = vmatpush.msra.mxu0 0.0
  %1068 = vmatpush.msra.mxu0 0.0
  %1069 = vmatpush.msra.mxu0 0.0
  %1070 = vmatpush.msra.mxu0 0.0
  %1071 = vmatpush.msra.mxu0 0.0
  %1072 = vmatpush.msra.mxu0 0.0
  %1073 = vmatpush.msra.mxu0 %v967
  %1074 = vmatmul.f32.gmra.mxu0 %v1035
  %v1075 = vpop.f32.mrf.mxu0
  %v1076 = vadd.f32 0.0, %v1075
  %1077 = vmatmul.f32.gmra.mxu0 %v1038
  %v1078 = vpop.f32.mrf.mxu0
  %v1079 = vadd.f32 0.0, %v1078
  %1080 = vmatmul.f32.gmra.mxu0 %v1041
  %v1081 = vpop.f32.mrf.mxu0
  %v1082 = vadd.f32 0.0, %v1081
  %1083 = vmatmul.f32.gmra.mxu0 %v1044
  %v1084 = vpop.f32.mrf.mxu0
  %v1085 = vadd.f32 0.0, %v1084
  %1086 = vmatmul.f32.gmra.mxu0 %v1047
  %v1087 = vpop.f32.mrf.mxu0
  %v1088 = vadd.f32 0.0, %v1087
  %1089 = vmatmul.f32.gmra.mxu0 %v1050
  %v1090 = vpop.f32.mrf.mxu0
  %v1091 = vadd.f32 0.0, %v1090
  %1092 = vmatmul.f32.gmra.mxu0 %v1053
  %v1093 = vpop.f32.mrf.mxu0
  %v1094 = vadd.f32 0.0, %v1093
  %1095 = vmatmul.f32.gmra.mxu0 %v1056
  %v1096 = vpop.f32.mrf.mxu0
  %v1097 = vadd.f32 0.0, %v1096
  %1098 = vdwg.mxu0
  %v1099 = vmul.f32 %v731, %v987
  %v1100 = vmul.f32 %v732, %v990
  %v1101 = vmul.f32 %v733, %v993
  %v1102 = vmul.f32 %v734, %v996
  %v1103 = vmul.f32 %v735, %v999
  %v1104 = vmul.f32 %v736, %v1002
  %v1105 = vmul.f32 %v737, %v1005
  %v1106 = vmul.f32 %v738, %v1008
  %v1107 = vadd.f32 %v1099, %v1076
  %v1108 = vadd.f32 %v1100, %v1079
  %v1109 = vadd.f32 %v1101, %v1082
  %v1110 = vadd.f32 %v1102, %v1085
  %v1111 = vadd.f32 %v1103, %v1088
  %v1112 = vadd.f32 %v1104, %v1091
  %v1113 = vadd.f32 %v1105, %v1094
  %v1114 = vadd.f32 %v1106, %v1097
  %v1115 = vmax.f32 %v1107, 0.0
  %v1116 = vmax.f32 %v1108, 0.0
  %v1117 = vmax.f32 %v1109, 0.0
  %v1118 = vmax.f32 %v1110, 0.0
  %v1119 = vmax.f32 %v1111, 0.0
  %v1120 = vmax.f32 %v1112, 0.0
  %v1121 = vmax.f32 %v1113, 0.0
  %v1122 = vmax.f32 %v1114, 0.0
  %v1123 = vld [vmem:[%s6] sm:$0xf]
  %v1124 = vld [vmem:[%s6 + $0x4] sm:$0xf]
  %v1125 = vld [vmem:[%s6 + $0x8] sm:$0xf]
  %v1126 = vld [vmem:[%s6 + $0xc] sm:$0xf]
  %v1131 = vunpack.c.l.b16 %v1123
  %v1132 = vunpack.c.l.b16 %v1124
  %v1133 = vunpack.c.l.b16 %v1125
  %v1134 = vunpack.c.l.b16 %v1126
  %v1135 = vpack.c.b16 %v1132, %v1131
  %v1136 = vpack.c.b16 %v1134, %v1133
  %v1145 = vunpack.c.l.b16 %v723
  %v1146 = vunpack.c.l.b16 %v724
  %v1147 = vunpack.c.l.b16 %v725
  %v1148 = vunpack.c.l.b16 %v726
  %v1149 = vunpack.c.l.b16 %v727
  %v1150 = vunpack.c.l.b16 %v728
  %v1151 = vunpack.c.l.b16 %v729
  %v1152 = vunpack.c.l.b16 %v730
  %v1153 = vpack.c.b16 %v1146, %v1145
  %v1154 = vpack.c.b16 %v1148, %v1147
  %v1155 = vpack.c.b16 %v1150, %v1149
  %v1156 = vpack.c.b16 %v1152, %v1151
  %vm1161 = vcmask 523264
  %v1163 = vsel %vm1161, %v1135, 0
  %v1166 = vsel %vm1161, %v1136, 0
  %1168 = vmatpush.bf16.msra.mxu0 0
  %1169 = vmatpush.bf16.msra.mxu0 0
  %1170 = vmatpush.bf16.msra.mxu0 0
  %1171 = vmatpush.bf16.msra.mxu0 0
  %1172 = vmatpush.bf16.msra.mxu0 %v1156
  %1173 = vmatpush.bf16.msra.mxu0 %v1155
  %1174 = vmatpush.bf16.msra.mxu0 %v1154
  %1175 = vmatpush.bf16.msra.mxu0 %v1153
  %1176 = vmatmul.bf16.gmra.mxu0 %v1163
  %v1177 = vpop.f32.mrf.mxu0
  %v1178 = vadd.f32 0.0, %v1177
  %v1179 = vpop.f32.mrf.mxu0
  %v1180 = vadd.f32 0.0, %v1179
  %1181 = vmatmul.bf16.gmra.mxu0 %v1166
  %v1182 = vpop.f32.mrf.mxu0
  %v1183 = vadd.f32 0.0, %v1182
  %v1184 = vpop.f32.mrf.mxu0
  %v1185 = vadd.f32 0.0, %v1184
  %1186 = vdwg.mxu0
  %vm1187 = vcmask 166912
  %1188 = vst.msk [vmem:[#allocation2] sm:$0xf] %vm1187, 0
  %1189 = vst.msk [vmem:[#allocation2 + $0x8] sm:$0xf] %vm1187, 0
  %1190 = vst.msk [vmem:[#allocation2 + $0x10] sm:$0xf] %vm1187, 0
  %1191 = vst.msk [vmem:[#allocation2 + $0x18] sm:$0xf] %vm1187, 0
  %1192 = vst.msk [vmem:[#allocation2 + $0x20] sm:$0xf] %vm1187, 0
  %1193 = vst.msk [vmem:[#allocation2 + $0x28] sm:$0xf] %vm1187, 0
  %1194 = vst.msk [vmem:[#allocation2 + $0x30] sm:$0xf] %vm1187, 0
  %1195 = vst.msk [vmem:[#allocation2 + $0x38] sm:$0xf] %vm1187, 0
  %1196 = vst.msk [vmem:[#allocation2 + $0x40] sm:$0xf] %vm1187, 0
  %1197 = vst.msk [vmem:[#allocation2 + $0x48] sm:$0xf] %vm1187, 0
  %1198 = vst.msk [vmem:[#allocation2 + $0x50] sm:$0xf] %vm1187, 0
  %1199 = vst.msk [vmem:[#allocation2 + $0x58] sm:$0xf] %vm1187, 0
  %vm1200 = vcmask 986920
  %1201 = vst.msk [vmem:[#allocation2] sm:$0xf] %vm1200, 0
  %1202 = vst.msk [vmem:[#allocation2 + $0x8] sm:$0xf] %vm1200, 0
  %1203 = vst.msk [vmem:[#allocation2 + $0x10] sm:$0xf] %vm1200, 0
  %1204 = vst.msk [vmem:[#allocation2 + $0x18] sm:$0xf] %vm1200, 0
  %1205 = vst.msk [vmem:[#allocation2 + $0x20] sm:$0xf] %vm1200, 0
  %1206 = vst.msk [vmem:[#allocation2 + $0x28] sm:$0xf] %vm1200, 0
  %1207 = vst.msk [vmem:[#allocation2 + $0x30] sm:$0xf] %vm1200, 0
  %1208 = vst.msk [vmem:[#allocation2 + $0x38] sm:$0xf] %vm1200, 0
  %1209 = vst.msk [vmem:[#allocation2 + $0x40] sm:$0xf] %vm1200, 0
  %1210 = vst.msk [vmem:[#allocation2 + $0x48] sm:$0xf] %vm1200, 0
  %1211 = vst.msk [vmem:[#allocation2 + $0x50] sm:$0xf] %vm1200, 0
  %1212 = vst.msk [vmem:[#allocation2 + $0x58] sm:$0xf] %vm1200, 0
  %vm1213 = vcmask 765512
  %1214 = vst.msk [vmem:[#allocation2 + $0x4] sm:$0xf] %vm1213, 0
  %1215 = vst.msk [vmem:[#allocation2 + $0xc] sm:$0xf] %vm1213, 0
  %1216 = vst.msk [vmem:[#allocation2 + $0x14] sm:$0xf] %vm1213, 0
  %1217 = vst.msk [vmem:[#allocation2 + $0x1c] sm:$0xf] %vm1213, 0
  %1218 = vst.msk [vmem:[#allocation2 + $0x24] sm:$0xf] %vm1213, 0
  %1219 = vst.msk [vmem:[#allocation2 + $0x2c] sm:$0xf] %vm1213, 0
  %1220 = vst.msk [vmem:[#allocation2 + $0x34] sm:$0xf] %vm1213, 0
  %1221 = vst.msk [vmem:[#allocation2 + $0x3c] sm:$0xf] %vm1213, 0
  %1222 = vst.msk [vmem:[#allocation2 + $0x44] sm:$0xf] %vm1213, 0
  %1223 = vst.msk [vmem:[#allocation2 + $0x4c] sm:$0xf] %vm1213, 0
  %1224 = vst.msk [vmem:[#allocation2 + $0x54] sm:$0xf] %vm1213, 0
  %1225 = vst.msk [vmem:[#allocation2 + $0x5c] sm:$0xf] %vm1213, 0
  %v1226 = vld [vmem:[%s8] sm:$0xf]
  %1239 = vrot.lane.b32.xlu0 %v1115, 121
  %v1240 = vpop.permute.xlu0 %1239
  %1241 = vrot.lane.b32.xlu0 %v1116, 121
  %v1242 = vpop.permute.xlu0 %1241
  %1243 = vrot.lane.b32.xlu0 %v1117, 121
  %v1244 = vpop.permute.xlu0 %1243
  %1245 = vrot.lane.b32.xlu0 %v1118, 121
  %v1246 = vpop.permute.xlu0 %1245
  %1247 = vrot.lane.b32.xlu0 %v1119, 121
  %v1248 = vpop.permute.xlu0 %1247
  %1249 = vrot.lane.b32.xlu0 %v1120, 121
  %v1250 = vpop.permute.xlu0 %1249
  %1251 = vrot.lane.b32.xlu0 %v1121, 121
  %v1252 = vpop.permute.xlu0 %1251
  %1253 = vrot.lane.b32.xlu0 %v1122, 121
  %v1254 = vpop.permute.xlu0 %1253
  %1255 = vrot.lane.b32.xlu0 %v1178, 121
  %v1256 = vpop.permute.xlu0 %1255
  %1257 = vrot.lane.b32.xlu0 %v1180, 121
  %v1258 = vpop.permute.xlu0 %1257
  %1259 = vrot.lane.b32.xlu0 %v1183, 121
  %v1260 = vpop.permute.xlu0 %1259
  %1261 = vrot.lane.b32.xlu0 %v1185, 121
  %v1262 = vpop.permute.xlu0 %1261
  %vm1263 = vcmask 31744
  %v1264 = vsel %vm1263, %v1240, 0
  %v1266 = vsel %vm1263, %v1242, 0
  %v1268 = vsel %vm1263, %v1244, 0
  %v1270 = vsel %vm1263, %v1246, 0
  %v1272 = vsel %vm1263, %v1248, 0
  %v1274 = vsel %vm1263, %v1250, 0
  %v1276 = vsel %vm1263, %v1252, 0
  %v1278 = vsel %vm1263, %v1254, 0
  %v1280 = vsel %vm1263, %v1256, 0
  %v1282 = vsel %vm1263, %v1258, 0
  %v1284 = vsel %vm1263, %v1260, 0
  %v1286 = vsel %vm1263, %v1262, 0
  %vm1288 = vcmask 1043456
  %v1290 = vsel %vm1288, %v1226, 0
  %1292 = vmatpush.msra.mxu0 0.0
  %1293 = vmatpush.msra.mxu0 0.0
  %1294 = vmatpush.msra.mxu0 0.0
  %1295 = vmatpush.msra.mxu0 0.0
  %1296 = vmatpush.msra.mxu0 0.0
  %1297 = vmatpush.msra.mxu0 0.0
  %1298 = vmatpush.msra.mxu0 0.0
  %1299 = vmatpush.msra.mxu0 0.0
  %1300 = vmatpush.msra.mxu0 0.0
  %1301 = vmatpush.msra.mxu0 0.0
  %1302 = vmatpush.msra.mxu0 0.0
  %1303 = vmatpush.msra.mxu0 0.0
  %1304 = vmatpush.msra.mxu0 0.0
  %1305 = vmatpush.msra.mxu0 0.0
  %1306 = vmatpush.msra.mxu0 0.0
  %1307 = vmatpush.msra.mxu0 %v1290
  %1308 = vmatmul.f32.gmra.mxu0 %v1264
  %v1309 = vpop.f32.mrf.mxu0
  %v1310 = vadd.f32 0.0, %v1309
  %1311 = vmatmul.f32.gmra.mxu0 %v1266
  %v1312 = vpop.f32.mrf.mxu0
  %v1313 = vadd.f32 0.0, %v1312
  %1314 = vmatmul.f32.gmra.mxu0 %v1268
  %v1315 = vpop.f32.mrf.mxu0
  %v1316 = vadd.f32 0.0, %v1315
  %1317 = vmatmul.f32.gmra.mxu0 %v1270
  %v1318 = vpop.f32.mrf.mxu0
  %v1319 = vadd.f32 0.0, %v1318
  %1320 = vmatmul.f32.gmra.mxu0 %v1272
  %v1321 = vpop.f32.mrf.mxu0
  %v1322 = vadd.f32 0.0, %v1321
  %1323 = vmatmul.f32.gmra.mxu0 %v1274
  %v1324 = vpop.f32.mrf.mxu0
  %v1325 = vadd.f32 0.0, %v1324
  %1326 = vmatmul.f32.gmra.mxu0 %v1276
  %v1327 = vpop.f32.mrf.mxu0
  %v1328 = vadd.f32 0.0, %v1327
  %1329 = vmatmul.f32.gmra.mxu0 %v1278
  %v1330 = vpop.f32.mrf.mxu0
  %v1331 = vadd.f32 0.0, %v1330
  %1332 = vmatmul.f32.gmra.mxu0 %v1280
  %v1333 = vpop.f32.mrf.mxu0
  %v1334 = vadd.f32 0.0, %v1333
  %1335 = vmatmul.f32.gmra.mxu0 %v1282
  %v1336 = vpop.f32.mrf.mxu0
  %v1337 = vadd.f32 0.0, %v1336
  %1338 = vmatmul.f32.gmra.mxu0 %v1284
  %v1339 = vpop.f32.mrf.mxu0
  %v1340 = vadd.f32 0.0, %v1339
  %1341 = vmatmul.f32.gmra.mxu0 %v1286
  %v1342 = vpop.f32.mrf.mxu0
  %v1343 = vadd.f32 0.0, %v1342
  %1344 = vdwg.mxu0
  %v1345 = vpack.c.bf16 %v1310, %v1310
  %v1346 = vpack.c.bf16 %v1313, %v1313
  %v1347 = vpack.c.bf16 %v1316, %v1316
  %v1348 = vpack.c.bf16 %v1319, %v1319
  %v1349 = vpack.c.bf16 %v1322, %v1322
  %v1350 = vpack.c.bf16 %v1325, %v1325
  %v1351 = vpack.c.bf16 %v1328, %v1328
  %v1352 = vpack.c.bf16 %v1331, %v1331
  %v1353 = vpack.c.bf16 %v1334, %v1334
  %v1354 = vpack.c.bf16 %v1337, %v1337
  %v1355 = vpack.c.bf16 %v1340, %v1340
  %v1356 = vpack.c.bf16 %v1343, %v1343
  %1369 = vrot.lane.b32.xlu0 %v1345, 21
  %v1370 = vpop.permute.xlu0 %1369
  %1371 = vrot.lane.b32.xlu0 %v1346, 21
  %v1372 = vpop.permute.xlu0 %1371
  %1373 = vrot.lane.b32.xlu0 %v1347, 21
  %v1374 = vpop.permute.xlu0 %1373
  %1375 = vrot.lane.b32.xlu0 %v1348, 21
  %v1376 = vpop.permute.xlu0 %1375
  %1377 = vrot.lane.b32.xlu0 %v1349, 21
  %v1378 = vpop.permute.xlu0 %1377
  %1379 = vrot.lane.b32.xlu0 %v1350, 21
  %v1380 = vpop.permute.xlu0 %1379
  %1381 = vrot.lane.b32.xlu0 %v1351, 21
  %v1382 = vpop.permute.xlu0 %1381
  %1383 = vrot.lane.b32.xlu0 %v1352, 21
  %v1384 = vpop.permute.xlu0 %1383
  %1385 = vrot.lane.b32.xlu0 %v1353, 21
  %v1386 = vpop.permute.xlu0 %1385
  %1387 = vrot.lane.b32.xlu0 %v1354, 21
  %v1388 = vpop.permute.xlu0 %1387
  %1389 = vrot.lane.b32.xlu0 %v1355, 21
  %v1390 = vpop.permute.xlu0 %1389
  %1391 = vrot.lane.b32.xlu0 %v1356, 21
  %v1392 = vpop.permute.xlu0 %1391
  %vm1405 = vcmask 249000
  %1406 = vst.msk [vmem:[#allocation2] sm:$0xf] %vm1405, %v1370
  %1407 = vst.msk [vmem:[#allocation2 + $0x8] sm:$0xf] %vm1405, %v1372
  %1408 = vst.msk [vmem:[#allocation2 + $0x10] sm:$0xf] %vm1405, %v1374
  %1409 = vst.msk [vmem:[#allocation2 + $0x18] sm:$0xf] %vm1405, %v1376
  %1410 = vst.msk [vmem:[#allocation2 + $0x20] sm:$0xf] %vm1405, %v1378
  %1411 = vst.msk [vmem:[#allocation2 + $0x28] sm:$0xf] %vm1405, %v1380
  %1412 = vst.msk [vmem:[#allocation2 + $0x30] sm:$0xf] %vm1405, %v1382
  %1413 = vst.msk [vmem:[#allocation2 + $0x38] sm:$0xf] %vm1405, %v1384
  %1414 = vst.msk [vmem:[#allocation2 + $0x40] sm:$0xf] %vm1405, %v1386
  %1415 = vst.msk [vmem:[#allocation2 + $0x48] sm:$0xf] %vm1405, %v1388
  %1416 = vst.msk [vmem:[#allocation2 + $0x50] sm:$0xf] %vm1405, %v1390
  %1417 = vst.msk [vmem:[#allocation2 + $0x58] sm:$0xf] %vm1405, %v1392
  %1418 = vrot.lane.b32.xlu0 %v1345, 31
  %v1419 = vpop.permute.xlu0 %1418
  %1420 = vrot.lane.b32.xlu0 %v1346, 31
  %v1421 = vpop.permute.xlu0 %1420
  %1422 = vrot.lane.b32.xlu0 %v1347, 31
  %v1423 = vpop.permute.xlu0 %1422
  %1424 = vrot.lane.b32.xlu0 %v1348, 31
  %v1425 = vpop.permute.xlu0 %1424
  %1426 = vrot.lane.b32.xlu0 %v1349, 31
  %v1427 = vpop.permute.xlu0 %1426
  %1428 = vrot.lane.b32.xlu0 %v1350, 31
  %v1429 = vpop.permute.xlu0 %1428
  %1430 = vrot.lane.b32.xlu0 %v1351, 31
  %v1431 = vpop.permute.xlu0 %1430
  %1432 = vrot.lane.b32.xlu0 %v1352, 31
  %v1433 = vpop.permute.xlu0 %1432
  %1434 = vrot.lane.b32.xlu0 %v1353, 31
  %v1435 = vpop.permute.xlu0 %1434
  %1436 = vrot.lane.b32.xlu0 %v1354, 31
  %v1437 = vpop.permute.xlu0 %1436
  %1438 = vrot.lane.b32.xlu0 %v1355, 31
  %v1439 = vpop.permute.xlu0 %1438
  %1440 = vrot.lane.b32.xlu0 %v1356, 31
  %v1441 = vpop.permute.xlu0 %1440
  %vm1454 = vcmask 331000
  %1455 = vst.msk [vmem:[#allocation2] sm:$0xf] %vm1454, %v1419
  %1456 = vst.msk [vmem:[#allocation2 + $0x8] sm:$0xf] %vm1454, %v1421
  %1457 = vst.msk [vmem:[#allocation2 + $0x10] sm:$0xf] %vm1454, %v1423
  %1458 = vst.msk [vmem:[#allocation2 + $0x18] sm:$0xf] %vm1454, %v1425
  %1459 = vst.msk [vmem:[#allocation2 + $0x20] sm:$0xf] %vm1454, %v1427
  %1460 = vst.msk [vmem:[#allocation2 + $0x28] sm:$0xf] %vm1454, %v1429
  %1461 = vst.msk [vmem:[#allocation2 + $0x30] sm:$0xf] %vm1454, %v1431
  %1462 = vst.msk [vmem:[#allocation2 + $0x38] sm:$0xf] %vm1454, %v1433
  %1463 = vst.msk [vmem:[#allocation2 + $0x40] sm:$0xf] %vm1454, %v1435
  %1464 = vst.msk [vmem:[#allocation2 + $0x48] sm:$0xf] %vm1454, %v1437
  %1465 = vst.msk [vmem:[#allocation2 + $0x50] sm:$0xf] %vm1454, %v1439
  %1466 = vst.msk [vmem:[#allocation2 + $0x58] sm:$0xf] %vm1454, %v1441
  %1467 = vrot.lane.b32.xlu0 %v1115, 115
  %v1468 = vpop.permute.xlu0 %1467
  %1469 = vrot.lane.b32.xlu0 %v1116, 115
  %v1470 = vpop.permute.xlu0 %1469
  %1471 = vrot.lane.b32.xlu0 %v1117, 115
  %v1472 = vpop.permute.xlu0 %1471
  %1473 = vrot.lane.b32.xlu0 %v1118, 115
  %v1474 = vpop.permute.xlu0 %1473
  %1475 = vrot.lane.b32.xlu0 %v1119, 115
  %v1476 = vpop.permute.xlu0 %1475
  %1477 = vrot.lane.b32.xlu0 %v1120, 115
  %v1478 = vpop.permute.xlu0 %1477
  %1479 = vrot.lane.b32.xlu0 %v1121, 115
  %v1480 = vpop.permute.xlu0 %1479
  %1481 = vrot.lane.b32.xlu0 %v1122, 115
  %v1482 = vpop.permute.xlu0 %1481
  %1483 = vrot.lane.b32.xlu0 %v1178, 115
  %v1484 = vpop.permute.xlu0 %1483
  %1485 = vrot.lane.b32.xlu0 %v1180, 115
  %v1486 = vpop.permute.xlu0 %1485
  %1487 = vrot.lane.b32.xlu0 %v1183, 115
  %v1488 = vpop.permute.xlu0 %1487
  %1489 = vrot.lane.b32.xlu0 %v1185, 115
  %v1490 = vpop.permute.xlu0 %1489
  %v1491 = vsel %vm1263, %v1468, 0
  %v1493 = vsel %vm1263, %v1470, 0
  %v1495 = vsel %vm1263, %v1472, 0
  %v1497 = vsel %vm1263, %v1474, 0
  %v1499 = vsel %vm1263, %v1476, 0
  %v1501 = vsel %vm1263, %v1478, 0
  %v1503 = vsel %vm1263, %v1480, 0
  %v1505 = vsel %vm1263, %v1482, 0
  %v1507 = vsel %vm1263, %v1484, 0
  %v1509 = vsel %vm1263, %v1486, 0
  %v1511 = vsel %vm1263, %v1488, 0
  %v1513 = vsel %vm1263, %v1490, 0
  %1515 = vmatpush.msra.mxu0 0.0
  %1516 = vmatpush.msra.mxu0 0.0
  %1517 = vmatpush.msra.mxu0 0.0
  %1518 = vmatpush.msra.mxu0 0.0
  %1519 = vmatpush.msra.mxu0 0.0
  %1520 = vmatpush.msra.mxu0 0.0
  %1521 = vmatpush.msra.mxu0 0.0
  %1522 = vmatpush.msra.mxu0 0.0
  %1523 = vmatpush.msra.mxu0 0.0
  %1524 = vmatpush.msra.mxu0 0.0
  %1525 = vmatpush.msra.mxu0 0.0
  %1526 = vmatpush.msra.mxu0 0.0
  %1527 = vmatpush.msra.mxu0 0.0
  %1528 = vmatpush.msra.mxu0 0.0
  %1529 = vmatpush.msra.mxu0 0.0
  %1530 = vmatpush.msra.mxu0 %v1290
  %1531 = vmatmul.f32.gmra.mxu0 %v1491
  %v1532 = vpop.f32.mrf.mxu0
  %v1533 = vadd.f32 0.0, %v1532
  %1534 = vmatmul.f32.gmra.mxu0 %v1493
  %v1535 = vpop.f32.mrf.mxu0
  %v1536 = vadd.f32 0.0, %v1535
  %1537 = vmatmul.f32.gmra.mxu0 %v1495
  %v1538 = vpop.f32.mrf.mxu0
  %v1539 = vadd.f32 0.0, %v1538
  %1540 = vmatmul.f32.gmra.mxu0 %v1497
  %v1541 = vpop.f32.mrf.mxu0
  %v1542 = vadd.f32 0.0, %v1541
  %1543 = vmatmul.f32.gmra.mxu0 %v1499
  %v1544 = vpop.f32.mrf.mxu0
  %v1545 = vadd.f32 0.0, %v1544
  %1546 = vmatmul.f32.gmra.mxu0 %v1501
  %v1547 = vpop.f32.mrf.mxu0
  %v1548 = vadd.f32 0.0, %v1547
  %1549 = vmatmul.f32.gmra.mxu0 %v1503
  %v1550 = vpop.f32.mrf.mxu0
  %v1551 = vadd.f32 0.0, %v1550
  %1552 = vmatmul.f32.gmra.mxu0 %v1505
  %v1553 = vpop.f32.mrf.mxu0
  %v1554 = vadd.f32 0.0, %v1553
  %1555 = vmatmul.f32.gmra.mxu0 %v1507
  %v1556 = vpop.f32.mrf.mxu0
  %v1557 = vadd.f32 0.0, %v1556
  %1558 = vmatmul.f32.gmra.mxu0 %v1509
  %v1559 = vpop.f32.mrf.mxu0
  %v1560 = vadd.f32 0.0, %v1559
  %1561 = vmatmul.f32.gmra.mxu0 %v1511
  %v1562 = vpop.f32.mrf.mxu0
  %v1563 = vadd.f32 0.0, %v1562
  %1564 = vmatmul.f32.gmra.mxu0 %v1513
  %v1565 = vpop.f32.mrf.mxu0
  %v1566 = vadd.f32 0.0, %v1565
  %1567 = vdwg.mxu0
  %v1568 = vpack.c.bf16 %v1533, %v1533
  %v1569 = vpack.c.bf16 %v1536, %v1536
  %v1570 = vpack.c.bf16 %v1539, %v1539
  %v1571 = vpack.c.bf16 %v1542, %v1542
  %v1572 = vpack.c.bf16 %v1545, %v1545
  %v1573 = vpack.c.bf16 %v1548, %v1548
  %v1574 = vpack.c.bf16 %v1551, %v1551
  %v1575 = vpack.c.bf16 %v1554, %v1554
  %v1576 = vpack.c.bf16 %v1557, %v1557
  %v1577 = vpack.c.bf16 %v1560, %v1560
  %v1578 = vpack.c.bf16 %v1563, %v1563
  %v1579 = vpack.c.bf16 %v1566, %v1566
  %1592 = vrot.lane.b32.xlu0 %v1568, 41
  %v1593 = vpop.permute.xlu0 %1592
  %1594 = vrot.lane.b32.xlu0 %v1569, 41
  %v1595 = vpop.permute.xlu0 %1594
  %1596 = vrot.lane.b32.xlu0 %v1570, 41
  %v1597 = vpop.permute.xlu0 %1596
  %1598 = vrot.lane.b32.xlu0 %v1571, 41
  %v1599 = vpop.permute.xlu0 %1598
  %1600 = vrot.lane.b32.xlu0 %v1572, 41
  %v1601 = vpop.permute.xlu0 %1600
  %1602 = vrot.lane.b32.xlu0 %v1573, 41
  %v1603 = vpop.permute.xlu0 %1602
  %1604 = vrot.lane.b32.xlu0 %v1574, 41
  %v1605 = vpop.permute.xlu0 %1604
  %1606 = vrot.lane.b32.xlu0 %v1575, 41
  %v1607 = vpop.permute.xlu0 %1606
  %1608 = vrot.lane.b32.xlu0 %v1576, 41
  %v1609 = vpop.permute.xlu0 %1608
  %1610 = vrot.lane.b32.xlu0 %v1577, 41
  %v1611 = vpop.permute.xlu0 %1610
  %1612 = vrot.lane.b32.xlu0 %v1578, 41
  %v1613 = vpop.permute.xlu0 %1612
  %1614 = vrot.lane.b32.xlu0 %v1579, 41
  %v1615 = vpop.permute.xlu0 %1614
  %vm1628 = vcmask 413000
  %1629 = vst.msk [vmem:[#allocation2] sm:$0xf] %vm1628, %v1593
  %1630 = vst.msk [vmem:[#allocation2 + $0x8] sm:$0xf] %vm1628, %v1595
  %1631 = vst.msk [vmem:[#allocation2 + $0x10] sm:$0xf] %vm1628, %v1597
  %1632 = vst.msk [vmem:[#allocation2 + $0x18] sm:$0xf] %vm1628, %v1599
  %1633 = vst.msk [vmem:[#allocation2 + $0x20] sm:$0xf] %vm1628, %v1601
  %1634 = vst.msk [vmem:[#allocation2 + $0x28] sm:$0xf] %vm1628, %v1603
  %1635 = vst.msk [vmem:[#allocation2 + $0x30] sm:$0xf] %vm1628, %v1605
  %1636 = vst.msk [vmem:[#allocation2 + $0x38] sm:$0xf] %vm1628, %v1607
  %1637 = vst.msk [vmem:[#allocation2 + $0x40] sm:$0xf] %vm1628, %v1609
  %1638 = vst.msk [vmem:[#allocation2 + $0x48] sm:$0xf] %vm1628, %v1611
  %1639 = vst.msk [vmem:[#allocation2 + $0x50] sm:$0xf] %vm1628, %v1613
  %1640 = vst.msk [vmem:[#allocation2 + $0x58] sm:$0xf] %vm1628, %v1615
  %1641 = vrot.lane.b32.xlu0 %v1568, 51
  %v1642 = vpop.permute.xlu0 %1641
  %1643 = vrot.lane.b32.xlu0 %v1569, 51
  %v1644 = vpop.permute.xlu0 %1643
  %1645 = vrot.lane.b32.xlu0 %v1570, 51
  %v1646 = vpop.permute.xlu0 %1645
  %1647 = vrot.lane.b32.xlu0 %v1571, 51
  %v1648 = vpop.permute.xlu0 %1647
  %1649 = vrot.lane.b32.xlu0 %v1572, 51
  %v1650 = vpop.permute.xlu0 %1649
  %1651 = vrot.lane.b32.xlu0 %v1573, 51
  %v1652 = vpop.permute.xlu0 %1651
  %1653 = vrot.lane.b32.xlu0 %v1574, 51
  %v1654 = vpop.permute.xlu0 %1653
  %1655 = vrot.lane.b32.xlu0 %v1575, 51
  %v1656 = vpop.permute.xlu0 %1655
  %1657 = vrot.lane.b32.xlu0 %v1576, 51
  %v1658 = vpop.permute.xlu0 %1657
  %1659 = vrot.lane.b32.xlu0 %v1577, 51
  %v1660 = vpop.permute.xlu0 %1659
  %1661 = vrot.lane.b32.xlu0 %v1578, 51
  %v1662 = vpop.permute.xlu0 %1661
  %1663 = vrot.lane.b32.xlu0 %v1579, 51
  %v1664 = vpop.permute.xlu0 %1663
  %vm1677 = vcmask 495000
  %1678 = vst.msk [vmem:[#allocation2] sm:$0xf] %vm1677, %v1642
  %1679 = vst.msk [vmem:[#allocation2 + $0x8] sm:$0xf] %vm1677, %v1644
  %1680 = vst.msk [vmem:[#allocation2 + $0x10] sm:$0xf] %vm1677, %v1646
  %1681 = vst.msk [vmem:[#allocation2 + $0x18] sm:$0xf] %vm1677, %v1648
  %1682 = vst.msk [vmem:[#allocation2 + $0x20] sm:$0xf] %vm1677, %v1650
  %1683 = vst.msk [vmem:[#allocation2 + $0x28] sm:$0xf] %vm1677, %v1652
  %1684 = vst.msk [vmem:[#allocation2 + $0x30] sm:$0xf] %vm1677, %v1654
  %1685 = vst.msk [vmem:[#allocation2 + $0x38] sm:$0xf] %vm1677, %v1656
  %1686 = vst.msk [vmem:[#allocation2 + $0x40] sm:$0xf] %vm1677, %v1658
  %1687 = vst.msk [vmem:[#allocation2 + $0x48] sm:$0xf] %vm1677, %v1660
  %1688 = vst.msk [vmem:[#allocation2 + $0x50] sm:$0xf] %vm1677, %v1662
  %1689 = vst.msk [vmem:[#allocation2 + $0x58] sm:$0xf] %vm1677, %v1664
  %1690 = vrot.lane.b32.xlu0 %v1115, 109
  %v1691 = vpop.permute.xlu0 %1690
  %1692 = vrot.lane.b32.xlu0 %v1116, 109
  %v1693 = vpop.permute.xlu0 %1692
  %1694 = vrot.lane.b32.xlu0 %v1117, 109
  %v1695 = vpop.permute.xlu0 %1694
  %1696 = vrot.lane.b32.xlu0 %v1118, 109
  %v1697 = vpop.permute.xlu0 %1696
  %1698 = vrot.lane.b32.xlu0 %v1119, 109
  %v1699 = vpop.permute.xlu0 %1698
  %1700 = vrot.lane.b32.xlu0 %v1120, 109
  %v1701 = vpop.permute.xlu0 %1700
  %1702 = vrot.lane.b32.xlu0 %v1121, 109
  %v1703 = vpop.permute.xlu0 %1702
  %1704 = vrot.lane.b32.xlu0 %v1122, 109
  %v1705 = vpop.permute.xlu0 %1704
  %1706 = vrot.lane.b32.xlu0 %v1178, 109
  %v1707 = vpop.permute.xlu0 %1706
  %1708 = vrot.lane.b32.xlu0 %v1180, 109
  %v1709 = vpop.permute.xlu0 %1708
  %1710 = vrot.lane.b32.xlu0 %v1183, 109
  %v1711 = vpop.permute.xlu0 %1710
  %1712 = vrot.lane.b32.xlu0 %v1185, 109
  %v1713 = vpop.permute.xlu0 %1712
  %v1714 = vsel %vm1263, %v1691, 0
  %v1716 = vsel %vm1263, %v1693, 0
  %v1718 = vsel %vm1263, %v1695, 0
  %v1720 = vsel %vm1263, %v1697, 0
  %v1722 = vsel %vm1263, %v1699, 0
  %v1724 = vsel %vm1263, %v1701, 0
  %v1726 = vsel %vm1263, %v1703, 0
  %v1728 = vsel %vm1263, %v1705, 0
  %v1730 = vsel %vm1263, %v1707, 0
  %v1732 = vsel %vm1263, %v1709, 0
  %v1734 = vsel %vm1263, %v1711, 0
  %v1736 = vsel %vm1263, %v1713, 0
  %1738 = vmatpush.msra.mxu0 0.0
  %1739 = vmatpush.msra.mxu0 0.0
  %1740 = vmatpush.msra.mxu0 0.0
  %1741 = vmatpush.msra.mxu0 0.0
  %1742 = vmatpush.msra.mxu0 0.0
  %1743 = vmatpush.msra.mxu0 0.0
  %1744 = vmatpush.msra.mxu0 0.0
  %1745 = vmatpush.msra.mxu0 0.0
  %1746 = vmatpush.msra.mxu0 0.0
  %1747 = vmatpush.msra.mxu0 0.0
  %1748 = vmatpush.msra.mxu0 0.0
  %1749 = vmatpush.msra.mxu0 0.0
  %1750 = vmatpush.msra.mxu0 0.0
  %1751 = vmatpush.msra.mxu0 0.0
  %1752 = vmatpush.msra.mxu0 0.0
  %1753 = vmatpush.msra.mxu0 %v1290
  %1754 = vmatmul.f32.gmra.mxu0 %v1714
  %v1755 = vpop.f32.mrf.mxu0
  %v1756 = vadd.f32 0.0, %v1755
  %1757 = vmatmul.f32.gmra.mxu0 %v1716
  %v1758 = vpop.f32.mrf.mxu0
  %v1759 = vadd.f32 0.0, %v1758
  %1760 = vmatmul.f32.gmra.mxu0 %v1718
  %v1761 = vpop.f32.mrf.mxu0
  %v1762 = vadd.f32 0.0, %v1761
  %1763 = vmatmul.f32.gmra.mxu0 %v1720
  %v1764 = vpop.f32.mrf.mxu0
  %v1765 = vadd.f32 0.0, %v1764
  %1766 = vmatmul.f32.gmra.mxu0 %v1722
  %v1767 = vpop.f32.mrf.mxu0
  %v1768 = vadd.f32 0.0, %v1767
  %1769 = vmatmul.f32.gmra.mxu0 %v1724
  %v1770 = vpop.f32.mrf.mxu0
  %v1771 = vadd.f32 0.0, %v1770
  %1772 = vmatmul.f32.gmra.mxu0 %v1726
  %v1773 = vpop.f32.mrf.mxu0
  %v1774 = vadd.f32 0.0, %v1773
  %1775 = vmatmul.f32.gmra.mxu0 %v1728
  %v1776 = vpop.f32.mrf.mxu0
  %v1777 = vadd.f32 0.0, %v1776
  %1778 = vmatmul.f32.gmra.mxu0 %v1730
  %v1779 = vpop.f32.mrf.mxu0
  %v1780 = vadd.f32 0.0, %v1779
  %1781 = vmatmul.f32.gmra.mxu0 %v1732
  %v1782 = vpop.f32.mrf.mxu0
  %v1783 = vadd.f32 0.0, %v1782
  %1784 = vmatmul.f32.gmra.mxu0 %v1734
  %v1785 = vpop.f32.mrf.mxu0
  %v1786 = vadd.f32 0.0, %v1785
  %1787 = vmatmul.f32.gmra.mxu0 %v1736
  %v1788 = vpop.f32.mrf.mxu0
  %v1789 = vadd.f32 0.0, %v1788
  %1790 = vdwg.mxu0
  %v1791 = vpack.c.bf16 %v1756, %v1756
  %v1792 = vpack.c.bf16 %v1759, %v1759
  %v1793 = vpack.c.bf16 %v1762, %v1762
  %v1794 = vpack.c.bf16 %v1765, %v1765
  %v1795 = vpack.c.bf16 %v1768, %v1768
  %v1796 = vpack.c.bf16 %v1771, %v1771
  %v1797 = vpack.c.bf16 %v1774, %v1774
  %v1798 = vpack.c.bf16 %v1777, %v1777
  %v1799 = vpack.c.bf16 %v1780, %v1780
  %v1800 = vpack.c.bf16 %v1783, %v1783
  %v1801 = vpack.c.bf16 %v1786, %v1786
  %v1802 = vpack.c.bf16 %v1789, %v1789
  %1815 = vrot.lane.b32.xlu0 %v1791, 61
  %v1816 = vpop.permute.xlu0 %1815
  %1817 = vrot.lane.b32.xlu0 %v1792, 61
  %v1818 = vpop.permute.xlu0 %1817
  %1819 = vrot.lane.b32.xlu0 %v1793, 61
  %v1820 = vpop.permute.xlu0 %1819
  %1821 = vrot.lane.b32.xlu0 %v1794, 61
  %v1822 = vpop.permute.xlu0 %1821
  %1823 = vrot.lane.b32.xlu0 %v1795, 61
  %v1824 = vpop.permute.xlu0 %1823
  %1825 = vrot.lane.b32.xlu0 %v1796, 61
  %v1826 = vpop.permute.xlu0 %1825
  %1827 = vrot.lane.b32.xlu0 %v1797, 61
  %v1828 = vpop.permute.xlu0 %1827
  %1829 = vrot.lane.b32.xlu0 %v1798, 61
  %v1830 = vpop.permute.xlu0 %1829
  %1831 = vrot.lane.b32.xlu0 %v1799, 61
  %v1832 = vpop.permute.xlu0 %1831
  %1833 = vrot.lane.b32.xlu0 %v1800, 61
  %v1834 = vpop.permute.xlu0 %1833
  %1835 = vrot.lane.b32.xlu0 %v1801, 61
  %v1836 = vpop.permute.xlu0 %1835
  %1837 = vrot.lane.b32.xlu0 %v1802, 61
  %v1838 = vpop.permute.xlu0 %1837
  %vm1851 = vcmask 577000
  %1852 = vst.msk [vmem:[#allocation2] sm:$0xf] %vm1851, %v1816
  %1853 = vst.msk [vmem:[#allocation2 + $0x8] sm:$0xf] %vm1851, %v1818
  %1854 = vst.msk [vmem:[#allocation2 + $0x10] sm:$0xf] %vm1851, %v1820
  %1855 = vst.msk [vmem:[#allocation2 + $0x18] sm:$0xf] %vm1851, %v1822
  %1856 = vst.msk [vmem:[#allocation2 + $0x20] sm:$0xf] %vm1851, %v1824
  %1857 = vst.msk [vmem:[#allocation2 + $0x28] sm:$0xf] %vm1851, %v1826
  %1858 = vst.msk [vmem:[#allocation2 + $0x30] sm:$0xf] %vm1851, %v1828
  %1859 = vst.msk [vmem:[#allocation2 + $0x38] sm:$0xf] %vm1851, %v1830
  %1860 = vst.msk [vmem:[#allocation2 + $0x40] sm:$0xf] %vm1851, %v1832
  %1861 = vst.msk [vmem:[#allocation2 + $0x48] sm:$0xf] %vm1851, %v1834
  %1862 = vst.msk [vmem:[#allocation2 + $0x50] sm:$0xf] %vm1851, %v1836
  %1863 = vst.msk [vmem:[#allocation2 + $0x58] sm:$0xf] %vm1851, %v1838
  %1864 = vrot.lane.b32.xlu0 %v1791, 71
  %v1865 = vpop.permute.xlu0 %1864
  %1866 = vrot.lane.b32.xlu0 %v1792, 71
  %v1867 = vpop.permute.xlu0 %1866
  %1868 = vrot.lane.b32.xlu0 %v1793, 71
  %v1869 = vpop.permute.xlu0 %1868
  %1870 = vrot.lane.b32.xlu0 %v1794, 71
  %v1871 = vpop.permute.xlu0 %1870
  %1872 = vrot.lane.b32.xlu0 %v1795, 71
  %v1873 = vpop.permute.xlu0 %1872
  %1874 = vrot.lane.b32.xlu0 %v1796, 71
  %v1875 = vpop.permute.xlu0 %1874
  %1876 = vrot.lane.b32.xlu0 %v1797, 71
  %v1877 = vpop.permute.xlu0 %1876
  %1878 = vrot.lane.b32.xlu0 %v1798, 71
  %v1879 = vpop.permute.xlu0 %1878
  %1880 = vrot.lane.b32.xlu0 %v1799, 71
  %v1881 = vpop.permute.xlu0 %1880
  %1882 = vrot.lane.b32.xlu0 %v1800, 71
  %v1883 = vpop.permute.xlu0 %1882
  %1884 = vrot.lane.b32.xlu0 %v1801, 71
  %v1885 = vpop.permute.xlu0 %1884
  %1886 = vrot.lane.b32.xlu0 %v1802, 71
  %v1887 = vpop.permute.xlu0 %1886
  %vm1900 = vcmask 659000
  %1901 = vst.msk [vmem:[#allocation2] sm:$0xf] %vm1900, %v1865
  %1902 = vst.msk [vmem:[#allocation2 + $0x8] sm:$0xf] %vm1900, %v1867
  %1903 = vst.msk [vmem:[#allocation2 + $0x10] sm:$0xf] %vm1900, %v1869
  %1904 = vst.msk [vmem:[#allocation2 + $0x18] sm:$0xf] %vm1900, %v1871
  %1905 = vst.msk [vmem:[#allocation2 + $0x20] sm:$0xf] %vm1900, %v1873
  %1906 = vst.msk [vmem:[#allocation2 + $0x28] sm:$0xf] %vm1900, %v1875
  %1907 = vst.msk [vmem:[#allocation2 + $0x30] sm:$0xf] %vm1900, %v1877
  %1908 = vst.msk [vmem:[#allocation2 + $0x38] sm:$0xf] %vm1900, %v1879
  %1909 = vst.msk [vmem:[#allocation2 + $0x40] sm:$0xf] %vm1900, %v1881
  %1910 = vst.msk [vmem:[#allocation2 + $0x48] sm:$0xf] %vm1900, %v1883
  %1911 = vst.msk [vmem:[#allocation2 + $0x50] sm:$0xf] %vm1900, %v1885
  %1912 = vst.msk [vmem:[#allocation2 + $0x58] sm:$0xf] %vm1900, %v1887
  %1913 = vrot.lane.b32.xlu0 %v1115, 103
  %v1914 = vpop.permute.xlu0 %1913
  %1915 = vrot.lane.b32.xlu0 %v1116, 103
  %v1916 = vpop.permute.xlu0 %1915
  %1917 = vrot.lane.b32.xlu0 %v1117, 103
  %v1918 = vpop.permute.xlu0 %1917
  %1919 = vrot.lane.b32.xlu0 %v1118, 103
  %v1920 = vpop.permute.xlu0 %1919
  %1921 = vrot.lane.b32.xlu0 %v1119, 103
  %v1922 = vpop.permute.xlu0 %1921
  %1923 = vrot.lane.b32.xlu0 %v1120, 103
  %v1924 = vpop.permute.xlu0 %1923
  %1925 = vrot.lane.b32.xlu0 %v1121, 103
  %v1926 = vpop.permute.xlu0 %1925
  %1927 = vrot.lane.b32.xlu0 %v1122, 103
  %v1928 = vpop.permute.xlu0 %1927
  %1929 = vrot.lane.b32.xlu0 %v1178, 103
  %v1930 = vpop.permute.xlu0 %1929
  %1931 = vrot.lane.b32.xlu0 %v1180, 103
  %v1932 = vpop.permute.xlu0 %1931
  %1933 = vrot.lane.b32.xlu0 %v1183, 103
  %v1934 = vpop.permute.xlu0 %1933
  %1935 = vrot.lane.b32.xlu0 %v1185, 103
  %v1936 = vpop.permute.xlu0 %1935
  %v1937 = vsel %vm1263, %v1914, 0
  %v1939 = vsel %vm1263, %v1916, 0
  %v1941 = vsel %vm1263, %v1918, 0
  %v1943 = vsel %vm1263, %v1920, 0
  %v1945 = vsel %vm1263, %v1922, 0
  %v1947 = vsel %vm1263, %v1924, 0
  %v1949 = vsel %vm1263, %v1926, 0
  %v1951 = vsel %vm1263, %v1928, 0
  %v1953 = vsel %vm1263, %v1930, 0
  %v1955 = vsel %vm1263, %v1932, 0
  %v1957 = vsel %vm1263, %v1934, 0
  %v1959 = vsel %vm1263, %v1936, 0
  %1961 = vmatpush.msra.mxu0 0.0
  %1962 = vmatpush.msra.mxu0 0.0
  %1963 = vmatpush.msra.mxu0 0.0
  %1964 = vmatpush.msra.mxu0 0.0
  %1965 = vmatpush.msra.mxu0 0.0
  %1966 = vmatpush.msra.mxu0 0.0
  %1967 = vmatpush.msra.mxu0 0.0
  %1968 = vmatpush.msra.mxu0 0.0
  %1969 = vmatpush.msra.mxu0 0.0
  %1970 = vmatpush.msra.mxu0 0.0
  %1971 = vmatpush.msra.mxu0 0.0
  %1972 = vmatpush.msra.mxu0 0.0
  %1973 = vmatpush.msra.mxu0 0.0
  %1974 = vmatpush.msra.mxu0 0.0
  %1975 = vmatpush.msra.mxu0 0.0
  %1976 = vmatpush.msra.mxu0 %v1290
  %1977 = vmatmul.f32.gmra.mxu0 %v1937
  %v1978 = vpop.f32.mrf.mxu0
  %v1979 = vadd.f32 0.0, %v1978
  %1980 = vmatmul.f32.gmra.mxu0 %v1939
  %v1981 = vpop.f32.mrf.mxu0
  %v1982 = vadd.f32 0.0, %v1981
  %1983 = vmatmul.f32.gmra.mxu0 %v1941
  %v1984 = vpop.f32.mrf.mxu0
  %v1985 = vadd.f32 0.0, %v1984
  %1986 = vmatmul.f32.gmra.mxu0 %v1943
  %v1987 = vpop.f32.mrf.mxu0
  %v1988 = vadd.f32 0.0, %v1987
  %1989 = vmatmul.f32.gmra.mxu0 %v1945
  %v1990 = vpop.f32.mrf.mxu0
  %v1991 = vadd.f32 0.0, %v1990
  %1992 = vmatmul.f32.gmra.mxu0 %v1947
  %v1993 = vpop.f32.mrf.mxu0
  %v1994 = vadd.f32 0.0, %v1993
  %1995 = vmatmul.f32.gmra.mxu0 %v1949
  %v1996 = vpop.f32.mrf.mxu0
  %v1997 = vadd.f32 0.0, %v1996
  %1998 = vmatmul.f32.gmra.mxu0 %v1951
  %v1999 = vpop.f32.mrf.mxu0
  %v2000 = vadd.f32 0.0, %v1999
  %2001 = vmatmul.f32.gmra.mxu0 %v1953
  %v2002 = vpop.f32.mrf.mxu0
  %v2003 = vadd.f32 0.0, %v2002
  %2004 = vmatmul.f32.gmra.mxu0 %v1955
  %v2005 = vpop.f32.mrf.mxu0
  %v2006 = vadd.f32 0.0, %v2005
  %2007 = vmatmul.f32.gmra.mxu0 %v1957
  %v2008 = vpop.f32.mrf.mxu0
  %v2009 = vadd.f32 0.0, %v2008
  %2010 = vmatmul.f32.gmra.mxu0 %v1959
  %v2011 = vpop.f32.mrf.mxu0
  %v2012 = vadd.f32 0.0, %v2011
  %2013 = vdwg.mxu0
  %v2014 = vpack.c.bf16 %v1979, %v1979
  %v2015 = vpack.c.bf16 %v1982, %v1982
  %v2016 = vpack.c.bf16 %v1985, %v1985
  %v2017 = vpack.c.bf16 %v1988, %v1988
  %v2018 = vpack.c.bf16 %v1991, %v1991
  %v2019 = vpack.c.bf16 %v1994, %v1994
  %v2020 = vpack.c.bf16 %v1997, %v1997
  %v2021 = vpack.c.bf16 %v2000, %v2000
  %v2022 = vpack.c.bf16 %v2003, %v2003
  %v2023 = vpack.c.bf16 %v2006, %v2006
  %v2024 = vpack.c.bf16 %v2009, %v2009
  %v2025 = vpack.c.bf16 %v2012, %v2012
  %2038 = vrot.lane.b32.xlu0 %v2014, 81
  %v2039 = vpop.permute.xlu0 %2038
  %2040 = vrot.lane.b32.xlu0 %v2015, 81
  %v2041 = vpop.permute.xlu0 %2040
  %2042 = vrot.lane.b32.xlu0 %v2016, 81
  %v2043 = vpop.permute.xlu0 %2042
  %2044 = vrot.lane.b32.xlu0 %v2017, 81
  %v2045 = vpop.permute.xlu0 %2044
  %2046 = vrot.lane.b32.xlu0 %v2018, 81
  %v2047 = vpop.permute.xlu0 %2046
  %2048 = vrot.lane.b32.xlu0 %v2019, 81
  %v2049 = vpop.permute.xlu0 %2048
  %2050 = vrot.lane.b32.xlu0 %v2020, 81
  %v2051 = vpop.permute.xlu0 %2050
  %2052 = vrot.lane.b32.xlu0 %v2021, 81
  %v2053 = vpop.permute.xlu0 %2052
  %2054 = vrot.lane.b32.xlu0 %v2022, 81
  %v2055 = vpop.permute.xlu0 %2054
  %2056 = vrot.lane.b32.xlu0 %v2023, 81
  %v2057 = vpop.permute.xlu0 %2056
  %2058 = vrot.lane.b32.xlu0 %v2024, 81
  %v2059 = vpop.permute.xlu0 %2058
  %2060 = vrot.lane.b32.xlu0 %v2025, 81
  %v2061 = vpop.permute.xlu0 %2060
  %vm2074 = vcmask 741000
  %2075 = vst.msk [vmem:[#allocation2] sm:$0xf] %vm2074, %v2039
  %2076 = vst.msk [vmem:[#allocation2 + $0x8] sm:$0xf] %vm2074, %v2041
  %2077 = vst.msk [vmem:[#allocation2 + $0x10] sm:$0xf] %vm2074, %v2043
  %2078 = vst.msk [vmem:[#allocation2 + $0x18] sm:$0xf] %vm2074, %v2045
  %2079 = vst.msk [vmem:[#allocation2 + $0x20] sm:$0xf] %vm2074, %v2047
  %2080 = vst.msk [vmem:[#allocation2 + $0x28] sm:$0xf] %vm2074, %v2049
  %2081 = vst.msk [vmem:[#allocation2 + $0x30] sm:$0xf] %vm2074, %v2051
  %2082 = vst.msk [vmem:[#allocation2 + $0x38] sm:$0xf] %vm2074, %v2053
  %2083 = vst.msk [vmem:[#allocation2 + $0x40] sm:$0xf] %vm2074, %v2055
  %2084 = vst.msk [vmem:[#allocation2 + $0x48] sm:$0xf] %vm2074, %v2057
  %2085 = vst.msk [vmem:[#allocation2 + $0x50] sm:$0xf] %vm2074, %v2059
  %2086 = vst.msk [vmem:[#allocation2 + $0x58] sm:$0xf] %vm2074, %v2061
  %2087 = vrot.lane.b32.xlu0 %v2014, 91
  %v2088 = vpop.permute.xlu0 %2087
  %2089 = vrot.lane.b32.xlu0 %v2015, 91
  %v2090 = vpop.permute.xlu0 %2089
  %2091 = vrot.lane.b32.xlu0 %v2016, 91
  %v2092 = vpop.permute.xlu0 %2091
  %2093 = vrot.lane.b32.xlu0 %v2017, 91
  %v2094 = vpop.permute.xlu0 %2093
  %2095 = vrot.lane.b32.xlu0 %v2018, 91
  %v2096 = vpop.permute.xlu0 %2095
  %2097 = vrot.lane.b32.xlu0 %v2019, 91
  %v2098 = vpop.permute.xlu0 %2097
  %2099 = vrot.lane.b32.xlu0 %v2020, 91
  %v2100 = vpop.permute.xlu0 %2099
  %2101 = vrot.lane.b32.xlu0 %v2021, 91
  %v2102 = vpop.permute.xlu0 %2101
  %2103 = vrot.lane.b32.xlu0 %v2022, 91
  %v2104 = vpop.permute.xlu0 %2103
  %2105 = vrot.lane.b32.xlu0 %v2023, 91
  %v2106 = vpop.permute.xlu0 %2105
  %2107 = vrot.lane.b32.xlu0 %v2024, 91
  %v2108 = vpop.permute.xlu0 %2107
  %2109 = vrot.lane.b32.xlu0 %v2025, 91
  %v2110 = vpop.permute.xlu0 %2109
  %vm2123 = vcmask 823000
  %2124 = vst.msk [vmem:[#allocation2] sm:$0xf] %vm2123, %v2088
  %2125 = vst.msk [vmem:[#allocation2 + $0x8] sm:$0xf] %vm2123, %v2090
  %2126 = vst.msk [vmem:[#allocation2 + $0x10] sm:$0xf] %vm2123, %v2092
  %2127 = vst.msk [vmem:[#allocation2 + $0x18] sm:$0xf] %vm2123, %v2094
  %2128 = vst.msk [vmem:[#allocation2 + $0x20] sm:$0xf] %vm2123, %v2096
  %2129 = vst.msk [vmem:[#allocation2 + $0x28] sm:$0xf] %vm2123, %v2098
  %2130 = vst.msk [vmem:[#allocation2 + $0x30] sm:$0xf] %vm2123, %v2100
  %2131 = vst.msk [vmem:[#allocation2 + $0x38] sm:$0xf] %vm2123, %v2102
  %2132 = vst.msk [vmem:[#allocation2 + $0x40] sm:$0xf] %vm2123, %v2104
  %2133 = vst.msk [vmem:[#allocation2 + $0x48] sm:$0xf] %vm2123, %v2106
  %2134 = vst.msk [vmem:[#allocation2 + $0x50] sm:$0xf] %vm2123, %v2108
  %2135 = vst.msk [vmem:[#allocation2 + $0x58] sm:$0xf] %vm2123, %v2110
  %2136 = vrot.lane.b32.xlu0 %v1115, 85
  %v2137 = vpop.permute.xlu0 %2136
  %2138 = vrot.lane.b32.xlu0 %v1116, 85
  %v2139 = vpop.permute.xlu0 %2138
  %2140 = vrot.lane.b32.xlu0 %v1117, 85
  %v2141 = vpop.permute.xlu0 %2140
  %2142 = vrot.lane.b32.xlu0 %v1118, 85
  %v2143 = vpop.permute.xlu0 %2142
  %2144 = vrot.lane.b32.xlu0 %v1119, 85
  %v2145 = vpop.permute.xlu0 %2144
  %2146 = vrot.lane.b32.xlu0 %v1120, 85
  %v2147 = vpop.permute.xlu0 %2146
  %2148 = vrot.lane.b32.xlu0 %v1121, 85
  %v2149 = vpop.permute.xlu0 %2148
  %2150 = vrot.lane.b32.xlu0 %v1122, 85
  %v2151 = vpop.permute.xlu0 %2150
  %2152 = vrot.lane.b32.xlu0 %v1178, 85
  %v2153 = vpop.permute.xlu0 %2152
  %2154 = vrot.lane.b32.xlu0 %v1180, 85
  %v2155 = vpop.permute.xlu0 %2154
  %2156 = vrot.lane.b32.xlu0 %v1183, 85
  %v2157 = vpop.permute.xlu0 %2156
  %2158 = vrot.lane.b32.xlu0 %v1185, 85
  %v2159 = vpop.permute.xlu0 %2158
  %v2160 = vsel %vm1263, %v2137, 0
  %v2162 = vsel %vm1263, %v2139, 0
  %v2164 = vsel %vm1263, %v2141, 0
  %v2166 = vsel %vm1263, %v2143, 0
  %v2168 = vsel %vm1263, %v2145, 0
  %v2170 = vsel %vm1263, %v2147, 0
  %v2172 = vsel %vm1263, %v2149, 0
  %v2174 = vsel %vm1263, %v2151, 0
  %v2176 = vsel %vm1263, %v2153, 0
  %v2178 = vsel %vm1263, %v2155, 0
  %v2180 = vsel %vm1263, %v2157, 0
  %v2182 = vsel %vm1263, %v2159, 0
  %2184 = vmatpush.msra.mxu0 0.0
  %2185 = vmatpush.msra.mxu0 0.0
  %2186 = vmatpush.msra.mxu0 0.0
  %2187 = vmatpush.msra.mxu0 0.0
  %2188 = vmatpush.msra.mxu0 0.0
  %2189 = vmatpush.msra.mxu0 0.0
  %2190 = vmatpush.msra.mxu0 0.0
  %2191 = vmatpush.msra.mxu0 0.0
  %2192 = vmatpush.msra.mxu0 0.0
  %2193 = vmatpush.msra.mxu0 0.0
  %2194 = vmatpush.msra.mxu0 0.0
  %2195 = vmatpush.msra.mxu0 0.0
  %2196 = vmatpush.msra.mxu0 0.0
  %2197 = vmatpush.msra.mxu0 0.0
  %2198 = vmatpush.msra.mxu0 0.0
  %2199 = vmatpush.msra.mxu0 %v1290
  %2200 = vmatmul.f32.gmra.mxu0 %v2160
  %v2201 = vpop.f32.mrf.mxu0
  %v2202 = vadd.f32 0.0, %v2201
  %2203 = vmatmul.f32.gmra.mxu0 %v2162
  %v2204 = vpop.f32.mrf.mxu0
  %v2205 = vadd.f32 0.0, %v2204
  %2206 = vmatmul.f32.gmra.mxu0 %v2164
  %v2207 = vpop.f32.mrf.mxu0
  %v2208 = vadd.f32 0.0, %v2207
  %2209 = vmatmul.f32.gmra.mxu0 %v2166
  %v2210 = vpop.f32.mrf.mxu0
  %v2211 = vadd.f32 0.0, %v2210
  %2212 = vmatmul.f32.gmra.mxu0 %v2168
  %v2213 = vpop.f32.mrf.mxu0
  %v2214 = vadd.f32 0.0, %v2213
  %2215 = vmatmul.f32.gmra.mxu0 %v2170
  %v2216 = vpop.f32.mrf.mxu0
  %v2217 = vadd.f32 0.0, %v2216
  %2218 = vmatmul.f32.gmra.mxu0 %v2172
  %v2219 = vpop.f32.mrf.mxu0
  %v2220 = vadd.f32 0.0, %v2219
  %2221 = vmatmul.f32.gmra.mxu0 %v2174
  %v2222 = vpop.f32.mrf.mxu0
  %v2223 = vadd.f32 0.0, %v2222
  %2224 = vmatmul.f32.gmra.mxu0 %v2176
  %v2225 = vpop.f32.mrf.mxu0
  %v2226 = vadd.f32 0.0, %v2225
  %2227 = vmatmul.f32.gmra.mxu0 %v2178
  %v2228 = vpop.f32.mrf.mxu0
  %v2229 = vadd.f32 0.0, %v2228
  %2230 = vmatmul.f32.gmra.mxu0 %v2180
  %v2231 = vpop.f32.mrf.mxu0
  %v2232 = vadd.f32 0.0, %v2231
  %2233 = vmatmul.f32.gmra.mxu0 %v2182
  %v2234 = vpop.f32.mrf.mxu0
  %v2235 = vadd.f32 0.0, %v2234
  %2236 = vdwg.mxu0
  %v2237 = vpack.c.bf16 %v2202, %v2202
  %v2238 = vpack.c.bf16 %v2205, %v2205
  %v2239 = vpack.c.bf16 %v2208, %v2208
  %v2240 = vpack.c.bf16 %v2211, %v2211
  %v2241 = vpack.c.bf16 %v2214, %v2214
  %v2242 = vpack.c.bf16 %v2217, %v2217
  %v2243 = vpack.c.bf16 %v2220, %v2220
  %v2244 = vpack.c.bf16 %v2223, %v2223
  %v2245 = vpack.c.bf16 %v2226, %v2226
  %v2246 = vpack.c.bf16 %v2229, %v2229
  %v2247 = vpack.c.bf16 %v2232, %v2232
  %v2248 = vpack.c.bf16 %v2235, %v2235
  %2261 = vrot.lane.b32.xlu0 %v2237, 121
  %v2262 = vpop.permute.xlu0 %2261
  %2263 = vrot.lane.b32.xlu0 %v2238, 121
  %v2264 = vpop.permute.xlu0 %2263
  %2265 = vrot.lane.b32.xlu0 %v2239, 121
  %v2266 = vpop.permute.xlu0 %2265
  %2267 = vrot.lane.b32.xlu0 %v2240, 121
  %v2268 = vpop.permute.xlu0 %2267
  %2269 = vrot.lane.b32.xlu0 %v2241, 121
  %v2270 = vpop.permute.xlu0 %2269
  %2271 = vrot.lane.b32.xlu0 %v2242, 121
  %v2272 = vpop.permute.xlu0 %2271
  %2273 = vrot.lane.b32.xlu0 %v2243, 121
  %v2274 = vpop.permute.xlu0 %2273
  %2275 = vrot.lane.b32.xlu0 %v2244, 121
  %v2276 = vpop.permute.xlu0 %2275
  %2277 = vrot.lane.b32.xlu0 %v2245, 121
  %v2278 = vpop.permute.xlu0 %2277
  %2279 = vrot.lane.b32.xlu0 %v2246, 121
  %v2280 = vpop.permute.xlu0 %2279
  %2281 = vrot.lane.b32.xlu0 %v2247, 121
  %v2282 = vpop.permute.xlu0 %2281
  %2283 = vrot.lane.b32.xlu0 %v2248, 121
  %v2284 = vpop.permute.xlu0 %2283
  %v2285 = vrot.slane %v2262, 4
  %v2286 = vrot.slane %v2264, 4
  %v2287 = vrot.slane %v2266, 4
  %v2288 = vrot.slane %v2268, 4
  %v2289 = vrot.slane %v2270, 4
  %v2290 = vrot.slane %v2272, 4
  %v2291 = vrot.slane %v2274, 4
  %v2292 = vrot.slane %v2276, 4
  %v2293 = vrot.slane %v2278, 4
  %v2294 = vrot.slane %v2280, 4
  %v2295 = vrot.slane %v2282, 4
  %v2296 = vrot.slane %v2284, 4
  %vm2297 = vcmask 990208
  %v2298 = vsel %vm2297, %v2285, %v2262
  %v2299 = vsel %vm2297, %v2286, %v2264
  %v2300 = vsel %vm2297, %v2287, %v2266
  %v2301 = vsel %vm2297, %v2288, %v2268
  %v2302 = vsel %vm2297, %v2289, %v2270
  %v2303 = vsel %vm2297, %v2290, %v2272
  %v2304 = vsel %vm2297, %v2291, %v2274
  %v2305 = vsel %vm2297, %v2292, %v2276
  %v2306 = vsel %vm2297, %v2293, %v2278
  %v2307 = vsel %vm2297, %v2294, %v2280
  %v2308 = vsel %vm2297, %v2295, %v2282
  %v2309 = vsel %vm2297, %v2296, %v2284
  %vm2322 = vcmask 1044424
  %vm2323 = vcmask 23556
  %vm2324 = vmor %vm2323, %vm2322
  %2325 = vst.msk [vmem:[#allocation2] sm:$0xff] %vm2324, %v2298
  %2326 = vst.msk [vmem:[#allocation2 + $0x8] sm:$0xff] %vm2324, %v2299
  %2327 = vst.msk [vmem:[#allocation2 + $0x10] sm:$0xff] %vm2324, %v2300
  %2328 = vst.msk [vmem:[#allocation2 + $0x18] sm:$0xff] %vm2324, %v2301
  %2329 = vst.msk [vmem:[#allocation2 + $0x20] sm:$0xff] %vm2324, %v2302
  %2330 = vst.msk [vmem:[#allocation2 + $0x28] sm:$0xff] %vm2324, %v2303
  %2331 = vst.msk [vmem:[#allocation2 + $0x30] sm:$0xff] %vm2324, %v2304
  %2332 = vst.msk [vmem:[#allocation2 + $0x38] sm:$0xff] %vm2324, %v2305
  %2333 = vst.msk [vmem:[#allocation2 + $0x40] sm:$0xff] %vm2324, %v2306
  %2334 = vst.msk [vmem:[#allocation2 + $0x48] sm:$0xff] %vm2324, %v2307
  %2335 = vst.msk [vmem:[#allocation2 + $0x50] sm:$0xff] %vm2324, %v2308
  %2336 = vst.msk [vmem:[#allocation2 + $0x58] sm:$0xff] %vm2324, %v2309
  %2337 = vrot.lane.b32.xlu0 %v2237, 3
  %v2338 = vpop.permute.xlu0 %2337
  %2339 = vrot.lane.b32.xlu0 %v2238, 3
  %v2340 = vpop.permute.xlu0 %2339
  %2341 = vrot.lane.b32.xlu0 %v2239, 3
  %v2342 = vpop.permute.xlu0 %2341
  %2343 = vrot.lane.b32.xlu0 %v2240, 3
  %v2344 = vpop.permute.xlu0 %2343
  %2345 = vrot.lane.b32.xlu0 %v2241, 3
  %v2346 = vpop.permute.xlu0 %2345
  %2347 = vrot.lane.b32.xlu0 %v2242, 3
  %v2348 = vpop.permute.xlu0 %2347
  %2349 = vrot.lane.b32.xlu0 %v2243, 3
  %v2350 = vpop.permute.xlu0 %2349
  %2351 = vrot.lane.b32.xlu0 %v2244, 3
  %v2352 = vpop.permute.xlu0 %2351
  %2353 = vrot.lane.b32.xlu0 %v2245, 3
  %v2354 = vpop.permute.xlu0 %2353
  %2355 = vrot.lane.b32.xlu0 %v2246, 3
  %v2356 = vpop.permute.xlu0 %2355
  %2357 = vrot.lane.b32.xlu0 %v2247, 3
  %v2358 = vpop.permute.xlu0 %2357
  %2359 = vrot.lane.b32.xlu0 %v2248, 3
  %v2360 = vpop.permute.xlu0 %2359
  %vm2373 = vcmask 101400
  %2374 = vst.msk [vmem:[#allocation2 + $0x4] sm:$0xf] %vm2373, %v2338
  %2375 = vst.msk [vmem:[#allocation2 + $0xc] sm:$0xf] %vm2373, %v2340
  %2376 = vst.msk [vmem:[#allocation2 + $0x14] sm:$0xf] %vm2373, %v2342
  %2377 = vst.msk [vmem:[#allocation2 + $0x1c] sm:$0xf] %vm2373, %v2344
  %2378 = vst.msk [vmem:[#allocation2 + $0x24] sm:$0xf] %vm2373, %v2346
  %2379 = vst.msk [vmem:[#allocation2 + $0x2c] sm:$0xf] %vm2373, %v2348
  %2380 = vst.msk [vmem:[#allocation2 + $0x34] sm:$0xf] %vm2373, %v2350
  %2381 = vst.msk [vmem:[#allocation2 + $0x3c] sm:$0xf] %vm2373, %v2352
  %2382 = vst.msk [vmem:[#allocation2 + $0x44] sm:$0xf] %vm2373, %v2354
  %2383 = vst.msk [vmem:[#allocation2 + $0x4c] sm:$0xf] %vm2373, %v2356
  %2384 = vst.msk [vmem:[#allocation2 + $0x54] sm:$0xf] %vm2373, %v2358
  %2385 = vst.msk [vmem:[#allocation2 + $0x5c] sm:$0xf] %vm2373, %v2360
  %2386 = vrot.lane.b32.xlu0 %v1115, 79
  %v2387 = vpop.permute.xlu0 %2386
  %2388 = vrot.lane.b32.xlu0 %v1116, 79
  %v2389 = vpop.permute.xlu0 %2388
  %2390 = vrot.lane.b32.xlu0 %v1117, 79
  %v2391 = vpop.permute.xlu0 %2390
  %2392 = vrot.lane.b32.xlu0 %v1118, 79
  %v2393 = vpop.permute.xlu0 %2392
  %2394 = vrot.lane.b32.xlu0 %v1119, 79
  %v2395 = vpop.permute.xlu0 %2394
  %2396 = vrot.lane.b32.xlu0 %v1120, 79
  %v2397 = vpop.permute.xlu0 %2396
  %2398 = vrot.lane.b32.xlu0 %v1121, 79
  %v2399 = vpop.permute.xlu0 %2398
  %2400 = vrot.lane.b32.xlu0 %v1122, 79
  %v2401 = vpop.permute.xlu0 %2400
  %2402 = vrot.lane.b32.xlu0 %v1178, 79
  %v2403 = vpop.permute.xlu0 %2402
  %2404 = vrot.lane.b32.xlu0 %v1180, 79
  %v2405 = vpop.permute.xlu0 %2404
  %2406 = vrot.lane.b32.xlu0 %v1183, 79
  %v2407 = vpop.permute.xlu0 %2406
  %2408 = vrot.lane.b32.xlu0 %v1185, 79
  %v2409 = vpop.permute.xlu0 %2408
  %v2410 = vsel %vm1263, %v2387, 0
  %v2412 = vsel %vm1263, %v2389, 0
  %v2414 = vsel %vm1263, %v2391, 0
  %v2416 = vsel %vm1263, %v2393, 0
  %v2418 = vsel %vm1263, %v2395, 0
  %v2420 = vsel %vm1263, %v2397, 0
  %v2422 = vsel %vm1263, %v2399, 0
  %v2424 = vsel %vm1263, %v2401, 0
  %v2426 = vsel %vm1263, %v2403, 0
  %v2428 = vsel %vm1263, %v2405, 0
  %v2430 = vsel %vm1263, %v2407, 0
  %v2432 = vsel %vm1263, %v2409, 0
  %2434 = vmatpush.msra.mxu0 0.0
  %2435 = vmatpush.msra.mxu0 0.0
  %2436 = vmatpush.msra.mxu0 0.0
  %2437 = vmatpush.msra.mxu0 0.0
  %2438 = vmatpush.msra.mxu0 0.0
  %2439 = vmatpush.msra.mxu0 0.0
  %2440 = vmatpush.msra.mxu0 0.0
  %2441 = vmatpush.msra.mxu0 0.0
  %2442 = vmatpush.msra.mxu0 0.0
  %2443 = vmatpush.msra.mxu0 0.0
  %2444 = vmatpush.msra.mxu0 0.0
  %2445 = vmatpush.msra.mxu0 0.0
  %2446 = vmatpush.msra.mxu0 0.0
  %2447 = vmatpush.msra.mxu0 0.0
  %2448 = vmatpush.msra.mxu0 0.0
  %2449 = vmatpush.msra.mxu0 %v1290
  %2450 = vmatmul.f32.gmra.mxu0 %v2410
  %v2451 = vpop.f32.mrf.mxu0
  %v2452 = vadd.f32 0.0, %v2451
  %2453 = vmatmul.f32.gmra.mxu0 %v2412
  %v2454 = vpop.f32.mrf.mxu0
  %v2455 = vadd.f32 0.0, %v2454
  %2456 = vmatmul.f32.gmra.mxu0 %v2414
  %v2457 = vpop.f32.mrf.mxu0
  %v2458 = vadd.f32 0.0, %v2457
  %2459 = vmatmul.f32.gmra.mxu0 %v2416
  %v2460 = vpop.f32.mrf.mxu0
  %v2461 = vadd.f32 0.0, %v2460
  %2462 = vmatmul.f32.gmra.mxu0 %v2418
  %v2463 = vpop.f32.mrf.mxu0
  %v2464 = vadd.f32 0.0, %v2463
  %2465 = vmatmul.f32.gmra.mxu0 %v2420
  %v2466 = vpop.f32.mrf.mxu0
  %v2467 = vadd.f32 0.0, %v2466
  %2468 = vmatmul.f32.gmra.mxu0 %v2422
  %v2469 = vpop.f32.mrf.mxu0
  %v2470 = vadd.f32 0.0, %v2469
  %2471 = vmatmul.f32.gmra.mxu0 %v2424
  %v2472 = vpop.f32.mrf.mxu0
  %v2473 = vadd.f32 0.0, %v2472
  %2474 = vmatmul.f32.gmra.mxu0 %v2426
  %v2475 = vpop.f32.mrf.mxu0
  %v2476 = vadd.f32 0.0, %v2475
  %2477 = vmatmul.f32.gmra.mxu0 %v2428
  %v2478 = vpop.f32.mrf.mxu0
  %v2479 = vadd.f32 0.0, %v2478
  %2480 = vmatmul.f32.gmra.mxu0 %v2430
  %v2481 = vpop.f32.mrf.mxu0
  %v2482 = vadd.f32 0.0, %v2481
  %2483 = vmatmul.f32.gmra.mxu0 %v2432
  %v2484 = vpop.f32.mrf.mxu0
  %v2485 = vadd.f32 0.0, %v2484
  %2486 = vdwg.mxu0
  %v2487 = vpack.c.bf16 %v2452, %v2452
  %v2488 = vpack.c.bf16 %v2455, %v2455
  %v2489 = vpack.c.bf16 %v2458, %v2458
  %v2490 = vpack.c.bf16 %v2461, %v2461
  %v2491 = vpack.c.bf16 %v2464, %v2464
  %v2492 = vpack.c.bf16 %v2467, %v2467
  %v2493 = vpack.c.bf16 %v2470, %v2470
  %v2494 = vpack.c.bf16 %v2473, %v2473
  %v2495 = vpack.c.bf16 %v2476, %v2476
  %v2496 = vpack.c.bf16 %v2479, %v2479
  %v2497 = vpack.c.bf16 %v2482, %v2482
  %v2498 = vpack.c.bf16 %v2485, %v2485
  %2511 = vrot.lane.b32.xlu0 %v2487, 13
  %v2512 = vpop.permute.xlu0 %2511
  %2513 = vrot.lane.b32.xlu0 %v2488, 13
  %v2514 = vpop.permute.xlu0 %2513
  %2515 = vrot.lane.b32.xlu0 %v2489, 13
  %v2516 = vpop.permute.xlu0 %2515
  %2517 = vrot.lane.b32.xlu0 %v2490, 13
  %v2518 = vpop.permute.xlu0 %2517
  %2519 = vrot.lane.b32.xlu0 %v2491, 13
  %v2520 = vpop.permute.xlu0 %2519
  %2521 = vrot.lane.b32.xlu0 %v2492, 13
  %v2522 = vpop.permute.xlu0 %2521
  %2523 = vrot.lane.b32.xlu0 %v2493, 13
  %v2524 = vpop.permute.xlu0 %2523
  %2525 = vrot.lane.b32.xlu0 %v2494, 13
  %v2526 = vpop.permute.xlu0 %2525
  %2527 = vrot.lane.b32.xlu0 %v2495, 13
  %v2528 = vpop.permute.xlu0 %2527
  %2529 = vrot.lane.b32.xlu0 %v2496, 13
  %v2530 = vpop.permute.xlu0 %2529
  %2531 = vrot.lane.b32.xlu0 %v2497, 13
  %v2532 = vpop.permute.xlu0 %2531
  %2533 = vrot.lane.b32.xlu0 %v2498, 13
  %v2534 = vpop.permute.xlu0 %2533
  %vm2547 = vcmask 183400
  %2548 = vst.msk [vmem:[#allocation2 + $0x4] sm:$0xf] %vm2547, %v2512
  %2549 = vst.msk [vmem:[#allocation2 + $0xc] sm:$0xf] %vm2547, %v2514
  %2550 = vst.msk [vmem:[#allocation2 + $0x14] sm:$0xf] %vm2547, %v2516
  %2551 = vst.msk [vmem:[#allocation2 + $0x1c] sm:$0xf] %vm2547, %v2518
  %2552 = vst.msk [vmem:[#allocation2 + $0x24] sm:$0xf] %vm2547, %v2520
  %2553 = vst.msk [vmem:[#allocation2 + $0x2c] sm:$0xf] %vm2547, %v2522
  %2554 = vst.msk [vmem:[#allocation2 + $0x34] sm:$0xf] %vm2547, %v2524
  %2555 = vst.msk [vmem:[#allocation2 + $0x3c] sm:$0xf] %vm2547, %v2526
  %2556 = vst.msk [vmem:[#allocation2 + $0x44] sm:$0xf] %vm2547, %v2528
  %2557 = vst.msk [vmem:[#allocation2 + $0x4c] sm:$0xf] %vm2547, %v2530
  %2558 = vst.msk [vmem:[#allocation2 + $0x54] sm:$0xf] %vm2547, %v2532
  %2559 = vst.msk [vmem:[#allocation2 + $0x5c] sm:$0xf] %vm2547, %v2534
  %2560 = vrot.lane.b32.xlu0 %v2487, 23
  %v2561 = vpop.permute.xlu0 %2560
  %2562 = vrot.lane.b32.xlu0 %v2488, 23
  %v2563 = vpop.permute.xlu0 %2562
  %2564 = vrot.lane.b32.xlu0 %v2489, 23
  %v2565 = vpop.permute.xlu0 %2564
  %2566 = vrot.lane.b32.xlu0 %v2490, 23
  %v2567 = vpop.permute.xlu0 %2566
  %2568 = vrot.lane.b32.xlu0 %v2491, 23
  %v2569 = vpop.permute.xlu0 %2568
  %2570 = vrot.lane.b32.xlu0 %v2492, 23
  %v2571 = vpop.permute.xlu0 %2570
  %2572 = vrot.lane.b32.xlu0 %v2493, 23
  %v2573 = vpop.permute.xlu0 %2572
  %2574 = vrot.lane.b32.xlu0 %v2494, 23
  %v2575 = vpop.permute.xlu0 %2574
  %2576 = vrot.lane.b32.xlu0 %v2495, 23
  %v2577 = vpop.permute.xlu0 %2576
  %2578 = vrot.lane.b32.xlu0 %v2496, 23
  %v2579 = vpop.permute.xlu0 %2578
  %2580 = vrot.lane.b32.xlu0 %v2497, 23
  %v2581 = vpop.permute.xlu0 %2580
  %2582 = vrot.lane.b32.xlu0 %v2498, 23
  %v2583 = vpop.permute.xlu0 %2582
  %vm2596 = vcmask 265400
  %2597 = vst.msk [vmem:[#allocation2 + $0x4] sm:$0xf] %vm2596, %v2561
  %2598 = vst.msk [vmem:[#allocation2 + $0xc] sm:$0xf] %vm2596, %v2563
  %2599 = vst.msk [vmem:[#allocation2 + $0x14] sm:$0xf] %vm2596, %v2565
  %2600 = vst.msk [vmem:[#allocation2 + $0x1c] sm:$0xf] %vm2596, %v2567
  %2601 = vst.msk [vmem:[#allocation2 + $0x24] sm:$0xf] %vm2596, %v2569
  %2602 = vst.msk [vmem:[#allocation2 + $0x2c] sm:$0xf] %vm2596, %v2571
  %2603 = vst.msk [vmem:[#allocation2 + $0x34] sm:$0xf] %vm2596, %v2573
  %2604 = vst.msk [vmem:[#allocation2 + $0x3c] sm:$0xf] %vm2596, %v2575
  %2605 = vst.msk [vmem:[#allocation2 + $0x44] sm:$0xf] %vm2596, %v2577
  %2606 = vst.msk [vmem:[#allocation2 + $0x4c] sm:$0xf] %vm2596, %v2579
  %2607 = vst.msk [vmem:[#allocation2 + $0x54] sm:$0xf] %vm2596, %v2581
  %2608 = vst.msk [vmem:[#allocation2 + $0x5c] sm:$0xf] %vm2596, %v2583
  %2609 = vrot.lane.b32.xlu0 %v1115, 73
  %v2610 = vpop.permute.xlu0 %2609
  %2611 = vrot.lane.b32.xlu0 %v1116, 73
  %v2612 = vpop.permute.xlu0 %2611
  %2613 = vrot.lane.b32.xlu0 %v1117, 73
  %v2614 = vpop.permute.xlu0 %2613
  %2615 = vrot.lane.b32.xlu0 %v1118, 73
  %v2616 = vpop.permute.xlu0 %2615
  %2617 = vrot.lane.b32.xlu0 %v1119, 73
  %v2618 = vpop.permute.xlu0 %2617
  %2619 = vrot.lane.b32.xlu0 %v1120, 73
  %v2620 = vpop.permute.xlu0 %2619
  %2621 = vrot.lane.b32.xlu0 %v1121, 73
  %v2622 = vpop.permute.xlu0 %2621
  %2623 = vrot.lane.b32.xlu0 %v1122, 73
  %v2624 = vpop.permute.xlu0 %2623
  %2625 = vrot.lane.b32.xlu0 %v1178, 73
  %v2626 = vpop.permute.xlu0 %2625
  %2627 = vrot.lane.b32.xlu0 %v1180, 73
  %v2628 = vpop.permute.xlu0 %2627
  %2629 = vrot.lane.b32.xlu0 %v1183, 73
  %v2630 = vpop.permute.xlu0 %2629
  %2631 = vrot.lane.b32.xlu0 %v1185, 73
  %v2632 = vpop.permute.xlu0 %2631
  %v2633 = vsel %vm1263, %v2610, 0
  %v2635 = vsel %vm1263, %v2612, 0
  %v2637 = vsel %vm1263, %v2614, 0
  %v2639 = vsel %vm1263, %v2616, 0
  %v2641 = vsel %vm1263, %v2618, 0
  %v2643 = vsel %vm1263, %v2620, 0
  %v2645 = vsel %vm1263, %v2622, 0
  %v2647 = vsel %vm1263, %v2624, 0
  %v2649 = vsel %vm1263, %v2626, 0
  %v2651 = vsel %vm1263, %v2628, 0
  %v2653 = vsel %vm1263, %v2630, 0
  %v2655 = vsel %vm1263, %v2632, 0
  %2657 = vmatpush.msra.mxu0 0.0
  %2658 = vmatpush.msra.mxu0 0.0
  %2659 = vmatpush.msra.mxu0 0.0
  %2660 = vmatpush.msra.mxu0 0.0
  %2661 = vmatpush.msra.mxu0 0.0
  %2662 = vmatpush.msra.mxu0 0.0
  %2663 = vmatpush.msra.mxu0 0.0
  %2664 = vmatpush.msra.mxu0 0.0
  %2665 = vmatpush.msra.mxu0 0.0
  %2666 = vmatpush.msra.mxu0 0.0
  %2667 = vmatpush.msra.mxu0 0.0
  %2668 = vmatpush.msra.mxu0 0.0
  %2669 = vmatpush.msra.mxu0 0.0
  %2670 = vmatpush.msra.mxu0 0.0
  %2671 = vmatpush.msra.mxu0 0.0
  %2672 = vmatpush.msra.mxu0 %v1290
  %2673 = vmatmul.f32.gmra.mxu0 %v2633
  %v2674 = vpop.f32.mrf.mxu0
  %v2675 = vadd.f32 0.0, %v2674
  %2676 = vmatmul.f32.gmra.mxu0 %v2635
  %v2677 = vpop.f32.mrf.mxu0
  %v2678 = vadd.f32 0.0, %v2677
  %2679 = vmatmul.f32.gmra.mxu0 %v2637
  %v2680 = vpop.f32.mrf.mxu0
  %v2681 = vadd.f32 0.0, %v2680
  %2682 = vmatmul.f32.gmra.mxu0 %v2639
  %v2683 = vpop.f32.mrf.mxu0
  %v2684 = vadd.f32 0.0, %v2683
  %2685 = vmatmul.f32.gmra.mxu0 %v2641
  %v2686 = vpop.f32.mrf.mxu0
  %v2687 = vadd.f32 0.0, %v2686
  %2688 = vmatmul.f32.gmra.mxu0 %v2643
  %v2689 = vpop.f32.mrf.mxu0
  %v2690 = vadd.f32 0.0, %v2689
  %2691 = vmatmul.f32.gmra.mxu0 %v2645
  %v2692 = vpop.f32.mrf.mxu0
  %v2693 = vadd.f32 0.0, %v2692
  %2694 = vmatmul.f32.gmra.mxu0 %v2647
  %v2695 = vpop.f32.mrf.mxu0
  %v2696 = vadd.f32 0.0, %v2695
  %2697 = vmatmul.f32.gmra.mxu0 %v2649
  %v2698 = vpop.f32.mrf.mxu0
  %v2699 = vadd.f32 0.0, %v2698
  %2700 = vmatmul.f32.gmra.mxu0 %v2651
  %v2701 = vpop.f32.mrf.mxu0
  %v2702 = vadd.f32 0.0, %v2701
  %2703 = vmatmul.f32.gmra.mxu0 %v2653
  %v2704 = vpop.f32.mrf.mxu0
  %v2705 = vadd.f32 0.0, %v2704
  %2706 = vmatmul.f32.gmra.mxu0 %v2655
  %v2707 = vpop.f32.mrf.mxu0
  %v2708 = vadd.f32 0.0, %v2707
  %2709 = vdwg.mxu0
  %v2710 = vpack.c.bf16 %v2675, %v2675
  %v2711 = vpack.c.bf16 %v2678, %v2678
  %v2712 = vpack.c.bf16 %v2681, %v2681
  %v2713 = vpack.c.bf16 %v2684, %v2684
  %v2714 = vpack.c.bf16 %v2687, %v2687
  %v2715 = vpack.c.bf16 %v2690, %v2690
  %v2716 = vpack.c.bf16 %v2693, %v2693
  %v2717 = vpack.c.bf16 %v2696, %v2696
  %v2718 = vpack.c.bf16 %v2699, %v2699
  %v2719 = vpack.c.bf16 %v2702, %v2702
  %v2720 = vpack.c.bf16 %v2705, %v2705
  %v2721 = vpack.c.bf16 %v2708, %v2708
  %2734 = vrot.lane.b32.xlu0 %v2710, 33
  %v2735 = vpop.permute.xlu0 %2734
  %2736 = vrot.lane.b32.xlu0 %v2711, 33
  %v2737 = vpop.permute.xlu0 %2736
  %2738 = vrot.lane.b32.xlu0 %v2712, 33
  %v2739 = vpop.permute.xlu0 %2738
  %2740 = vrot.lane.b32.xlu0 %v2713, 33
  %v2741 = vpop.permute.xlu0 %2740
  %2742 = vrot.lane.b32.xlu0 %v2714, 33
  %v2743 = vpop.permute.xlu0 %2742
  %2744 = vrot.lane.b32.xlu0 %v2715, 33
  %v2745 = vpop.permute.xlu0 %2744
  %2746 = vrot.lane.b32.xlu0 %v2716, 33
  %v2747 = vpop.permute.xlu0 %2746
  %2748 = vrot.lane.b32.xlu0 %v2717, 33
  %v2749 = vpop.permute.xlu0 %2748
  %2750 = vrot.lane.b32.xlu0 %v2718, 33
  %v2751 = vpop.permute.xlu0 %2750
  %2752 = vrot.lane.b32.xlu0 %v2719, 33
  %v2753 = vpop.permute.xlu0 %2752
  %2754 = vrot.lane.b32.xlu0 %v2720, 33
  %v2755 = vpop.permute.xlu0 %2754
  %2756 = vrot.lane.b32.xlu0 %v2721, 33
  %v2757 = vpop.permute.xlu0 %2756
  %vm2770 = vcmask 347400
  %2771 = vst.msk [vmem:[#allocation2 + $0x4] sm:$0xf] %vm2770, %v2735
  %2772 = vst.msk [vmem:[#allocation2 + $0xc] sm:$0xf] %vm2770, %v2737
  %2773 = vst.msk [vmem:[#allocation2 + $0x14] sm:$0xf] %vm2770, %v2739
  %2774 = vst.msk [vmem:[#allocation2 + $0x1c] sm:$0xf] %vm2770, %v2741
  %2775 = vst.msk [vmem:[#allocation2 + $0x24] sm:$0xf] %vm2770, %v2743
  %2776 = vst.msk [vmem:[#allocation2 + $0x2c] sm:$0xf] %vm2770, %v2745
  %2777 = vst.msk [vmem:[#allocation2 + $0x34] sm:$0xf] %vm2770, %v2747
  %2778 = vst.msk [vmem:[#allocation2 + $0x3c] sm:$0xf] %vm2770, %v2749
  %2779 = vst.msk [vmem:[#allocation2 + $0x44] sm:$0xf] %vm2770, %v2751
  %2780 = vst.msk [vmem:[#allocation2 + $0x4c] sm:$0xf] %vm2770, %v2753
  %2781 = vst.msk [vmem:[#allocation2 + $0x54] sm:$0xf] %vm2770, %v2755
  %2782 = vst.msk [vmem:[#allocation2 + $0x5c] sm:$0xf] %vm2770, %v2757
  %2783 = vrot.lane.b32.xlu0 %v2710, 43
  %v2784 = vpop.permute.xlu0 %2783
  %2785 = vrot.lane.b32.xlu0 %v2711, 43
  %v2786 = vpop.permute.xlu0 %2785
  %2787 = vrot.lane.b32.xlu0 %v2712, 43
  %v2788 = vpop.permute.xlu0 %2787
  %2789 = vrot.lane.b32.xlu0 %v2713, 43
  %v2790 = vpop.permute.xlu0 %2789
  %2791 = vrot.lane.b32.xlu0 %v2714, 43
  %v2792 = vpop.permute.xlu0 %2791
  %2793 = vrot.lane.b32.xlu0 %v2715, 43
  %v2794 = vpop.permute.xlu0 %2793
  %2795 = vrot.lane.b32.xlu0 %v2716, 43
  %v2796 = vpop.permute.xlu0 %2795
  %2797 = vrot.lane.b32.xlu0 %v2717, 43
  %v2798 = vpop.permute.xlu0 %2797
  %2799 = vrot.lane.b32.xlu0 %v2718, 43
  %v2800 = vpop.permute.xlu0 %2799
  %2801 = vrot.lane.b32.xlu0 %v2719, 43
  %v2802 = vpop.permute.xlu0 %2801
  %2803 = vrot.lane.b32.xlu0 %v2720, 43
  %v2804 = vpop.permute.xlu0 %2803
  %2805 = vrot.lane.b32.xlu0 %v2721, 43
  %v2806 = vpop.permute.xlu0 %2805
  %vm2819 = vcmask 429400
  %2820 = vst.msk [vmem:[#allocation2 + $0x4] sm:$0xf] %vm2819, %v2784
  %2821 = vst.msk [vmem:[#allocation2 + $0xc] sm:$0xf] %vm2819, %v2786
  %2822 = vst.msk [vmem:[#allocation2 + $0x14] sm:$0xf] %vm2819, %v2788
  %2823 = vst.msk [vmem:[#allocation2 + $0x1c] sm:$0xf] %vm2819, %v2790
  %2824 = vst.msk [vmem:[#allocation2 + $0x24] sm:$0xf] %vm2819, %v2792
  %2825 = vst.msk [vmem:[#allocation2 + $0x2c] sm:$0xf] %vm2819, %v2794
  %2826 = vst.msk [vmem:[#allocation2 + $0x34] sm:$0xf] %vm2819, %v2796
  %2827 = vst.msk [vmem:[#allocation2 + $0x3c] sm:$0xf] %vm2819, %v2798
  %2828 = vst.msk [vmem:[#allocation2 + $0x44] sm:$0xf] %vm2819, %v2800
  %2829 = vst.msk [vmem:[#allocation2 + $0x4c] sm:$0xf] %vm2819, %v2802
  %2830 = vst.msk [vmem:[#allocation2 + $0x54] sm:$0xf] %vm2819, %v2804
  %2831 = vst.msk [vmem:[#allocation2 + $0x5c] sm:$0xf] %vm2819, %v2806
  %2832 = vrot.lane.b32.xlu0 %v1115, 67
  %v2833 = vpop.permute.xlu0 %2832
  %2834 = vrot.lane.b32.xlu0 %v1116, 67
  %v2835 = vpop.permute.xlu0 %2834
  %2836 = vrot.lane.b32.xlu0 %v1117, 67
  %v2837 = vpop.permute.xlu0 %2836
  %2838 = vrot.lane.b32.xlu0 %v1118, 67
  %v2839 = vpop.permute.xlu0 %2838
  %2840 = vrot.lane.b32.xlu0 %v1119, 67
  %v2841 = vpop.permute.xlu0 %2840
  %2842 = vrot.lane.b32.xlu0 %v1120, 67
  %v2843 = vpop.permute.xlu0 %2842
  %2844 = vrot.lane.b32.xlu0 %v1121, 67
  %v2845 = vpop.permute.xlu0 %2844
  %2846 = vrot.lane.b32.xlu0 %v1122, 67
  %v2847 = vpop.permute.xlu0 %2846
  %2848 = vrot.lane.b32.xlu0 %v1178, 67
  %v2849 = vpop.permute.xlu0 %2848
  %2850 = vrot.lane.b32.xlu0 %v1180, 67
  %v2851 = vpop.permute.xlu0 %2850
  %2852 = vrot.lane.b32.xlu0 %v1183, 67
  %v2853 = vpop.permute.xlu0 %2852
  %2854 = vrot.lane.b32.xlu0 %v1185, 67
  %v2855 = vpop.permute.xlu0 %2854
  %v2856 = vsel %vm1263, %v2833, 0
  %v2858 = vsel %vm1263, %v2835, 0
  %v2860 = vsel %vm1263, %v2837, 0
  %v2862 = vsel %vm1263, %v2839, 0
  %v2864 = vsel %vm1263, %v2841, 0
  %v2866 = vsel %vm1263, %v2843, 0
  %v2868 = vsel %vm1263, %v2845, 0
  %v2870 = vsel %vm1263, %v2847, 0
  %v2872 = vsel %vm1263, %v2849, 0
  %v2874 = vsel %vm1263, %v2851, 0
  %v2876 = vsel %vm1263, %v2853, 0
  %v2878 = vsel %vm1263, %v2855, 0
  %2880 = vmatpush.msra.mxu0 0.0
  %2881 = vmatpush.msra.mxu0 0.0
  %2882 = vmatpush.msra.mxu0 0.0
  %2883 = vmatpush.msra.mxu0 0.0
  %2884 = vmatpush.msra.mxu0 0.0
  %2885 = vmatpush.msra.mxu0 0.0
  %2886 = vmatpush.msra.mxu0 0.0
  %2887 = vmatpush.msra.mxu0 0.0
  %2888 = vmatpush.msra.mxu0 0.0
  %2889 = vmatpush.msra.mxu0 0.0
  %2890 = vmatpush.msra.mxu0 0.0
  %2891 = vmatpush.msra.mxu0 0.0
  %2892 = vmatpush.msra.mxu0 0.0
  %2893 = vmatpush.msra.mxu0 0.0
  %2894 = vmatpush.msra.mxu0 0.0
  %2895 = vmatpush.msra.mxu0 %v1290
  %2896 = vmatmul.f32.gmra.mxu0 %v2856
  %v2897 = vpop.f32.mrf.mxu0
  %v2898 = vadd.f32 0.0, %v2897
  %2899 = vmatmul.f32.gmra.mxu0 %v2858
  %v2900 = vpop.f32.mrf.mxu0
  %v2901 = vadd.f32 0.0, %v2900
  %2902 = vmatmul.f32.gmra.mxu0 %v2860
  %v2903 = vpop.f32.mrf.mxu0
  %v2904 = vadd.f32 0.0, %v2903
  %2905 = vmatmul.f32.gmra.mxu0 %v2862
  %v2906 = vpop.f32.mrf.mxu0
  %v2907 = vadd.f32 0.0, %v2906
  %2908 = vmatmul.f32.gmra.mxu0 %v2864
  %v2909 = vpop.f32.mrf.mxu0
  %v2910 = vadd.f32 0.0, %v2909
  %2911 = vmatmul.f32.gmra.mxu0 %v2866
  %v2912 = vpop.f32.mrf.mxu0
  %v2913 = vadd.f32 0.0, %v2912
  %2914 = vmatmul.f32.gmra.mxu0 %v2868
  %v2915 = vpop.f32.mrf.mxu0
  %v2916 = vadd.f32 0.0, %v2915
  %2917 = vmatmul.f32.gmra.mxu0 %v2870
  %v2918 = vpop.f32.mrf.mxu0
  %v2919 = vadd.f32 0.0, %v2918
  %2920 = vmatmul.f32.gmra.mxu0 %v2872
  %v2921 = vpop.f32.mrf.mxu0
  %v2922 = vadd.f32 0.0, %v2921
  %2923 = vmatmul.f32.gmra.mxu0 %v2874
  %v2924 = vpop.f32.mrf.mxu0
  %v2925 = vadd.f32 0.0, %v2924
  %2926 = vmatmul.f32.gmra.mxu0 %v2876
  %v2927 = vpop.f32.mrf.mxu0
  %v2928 = vadd.f32 0.0, %v2927
  %2929 = vmatmul.f32.gmra.mxu0 %v2878
  %v2930 = vpop.f32.mrf.mxu0
  %v2931 = vadd.f32 0.0, %v2930
  %2932 = vdwg.mxu0
  %v2933 = vpack.c.bf16 %v2898, %v2898
  %v2934 = vpack.c.bf16 %v2901, %v2901
  %v2935 = vpack.c.bf16 %v2904, %v2904
  %v2936 = vpack.c.bf16 %v2907, %v2907
  %v2937 = vpack.c.bf16 %v2910, %v2910
  %v2938 = vpack.c.bf16 %v2913, %v2913
  %v2939 = vpack.c.bf16 %v2916, %v2916
  %v2940 = vpack.c.bf16 %v2919, %v2919
  %v2941 = vpack.c.bf16 %v2922, %v2922
  %v2942 = vpack.c.bf16 %v2925, %v2925
  %v2943 = vpack.c.bf16 %v2928, %v2928
  %v2944 = vpack.c.bf16 %v2931, %v2931
  %2957 = vrot.lane.b32.xlu0 %v2933, 53
  %v2958 = vpop.permute.xlu0 %2957
  %2959 = vrot.lane.b32.xlu0 %v2934, 53
  %v2960 = vpop.permute.xlu0 %2959
  %2961 = vrot.lane.b32.xlu0 %v2935, 53
  %v2962 = vpop.permute.xlu0 %2961
  %2963 = vrot.lane.b32.xlu0 %v2936, 53
  %v2964 = vpop.permute.xlu0 %2963
  %2965 = vrot.lane.b32.xlu0 %v2937, 53
  %v2966 = vpop.permute.xlu0 %2965
  %2967 = vrot.lane.b32.xlu0 %v2938, 53
  %v2968 = vpop.permute.xlu0 %2967
  %2969 = vrot.lane.b32.xlu0 %v2939, 53
  %v2970 = vpop.permute.xlu0 %2969
  %2971 = vrot.lane.b32.xlu0 %v2940, 53
  %v2972 = vpop.permute.xlu0 %2971
  %2973 = vrot.lane.b32.xlu0 %v2941, 53
  %v2974 = vpop.permute.xlu0 %2973
  %2975 = vrot.lane.b32.xlu0 %v2942, 53
  %v2976 = vpop.permute.xlu0 %2975
  %2977 = vrot.lane.b32.xlu0 %v2943, 53
  %v2978 = vpop.permute.xlu0 %2977
  %2979 = vrot.lane.b32.xlu0 %v2944, 53
  %v2980 = vpop.permute.xlu0 %2979
  %vm2993 = vcmask 511400
  %2994 = vst.msk [vmem:[#allocation2 + $0x4] sm:$0xf] %vm2993, %v2958
  %2995 = vst.msk [vmem:[#allocation2 + $0xc] sm:$0xf] %vm2993, %v2960
  %2996 = vst.msk [vmem:[#allocation2 + $0x14] sm:$0xf] %vm2993, %v2962
  %2997 = vst.msk [vmem:[#allocation2 + $0x1c] sm:$0xf] %vm2993, %v2964
  %2998 = vst.msk [vmem:[#allocation2 + $0x24] sm:$0xf] %vm2993, %v2966
  %2999 = vst.msk [vmem:[#allocation2 + $0x2c] sm:$0xf] %vm2993, %v2968
  %3000 = vst.msk [vmem:[#allocation2 + $0x34] sm:$0xf] %vm2993, %v2970
  %3001 = vst.msk [vmem:[#allocation2 + $0x3c] sm:$0xf] %vm2993, %v2972
  %3002 = vst.msk [vmem:[#allocation2 + $0x44] sm:$0xf] %vm2993, %v2974
  %3003 = vst.msk [vmem:[#allocation2 + $0x4c] sm:$0xf] %vm2993, %v2976
  %3004 = vst.msk [vmem:[#allocation2 + $0x54] sm:$0xf] %vm2993, %v2978
  %3005 = vst.msk [vmem:[#allocation2 + $0x5c] sm:$0xf] %vm2993, %v2980
  %3006 = vrot.lane.b32.xlu0 %v2933, 63
  %v3007 = vpop.permute.xlu0 %3006
  %3008 = vrot.lane.b32.xlu0 %v2934, 63
  %v3009 = vpop.permute.xlu0 %3008
  %3010 = vrot.lane.b32.xlu0 %v2935, 63
  %v3011 = vpop.permute.xlu0 %3010
  %3012 = vrot.lane.b32.xlu0 %v2936, 63
  %v3013 = vpop.permute.xlu0 %3012
  %3014 = vrot.lane.b32.xlu0 %v2937, 63
  %v3015 = vpop.permute.xlu0 %3014
  %3016 = vrot.lane.b32.xlu0 %v2938, 63
  %v3017 = vpop.permute.xlu0 %3016
  %3018 = vrot.lane.b32.xlu0 %v2939, 63
  %v3019 = vpop.permute.xlu0 %3018
  %3020 = vrot.lane.b32.xlu0 %v2940, 63
  %v3021 = vpop.permute.xlu0 %3020
  %3022 = vrot.lane.b32.xlu0 %v2941, 63
  %v3023 = vpop.permute.xlu0 %3022
  %3024 = vrot.lane.b32.xlu0 %v2942, 63
  %v3025 = vpop.permute.xlu0 %3024
  %3026 = vrot.lane.b32.xlu0 %v2943, 63
  %v3027 = vpop.permute.xlu0 %3026
  %3028 = vrot.lane.b32.xlu0 %v2944, 63
  %v3029 = vpop.permute.xlu0 %3028
  %vm3042 = vcmask 593400
  %3043 = vst.msk [vmem:[#allocation2 + $0x4] sm:$0xf] %vm3042, %v3007
  %3044 = vst.msk [vmem:[#allocation2 + $0xc] sm:$0xf] %vm3042, %v3009
  %3045 = vst.msk [vmem:[#allocation2 + $0x14] sm:$0xf] %vm3042, %v3011
  %3046 = vst.msk [vmem:[#allocation2 + $0x1c] sm:$0xf] %vm3042, %v3013
  %3047 = vst.msk [vmem:[#allocation2 + $0x24] sm:$0xf] %vm3042, %v3015
  %3048 = vst.msk [vmem:[#allocation2 + $0x2c] sm:$0xf] %vm3042, %v3017
  %3049 = vst.msk [vmem:[#allocation2 + $0x34] sm:$0xf] %vm3042, %v3019
  %3050 = vst.msk [vmem:[#allocation2 + $0x3c] sm:$0xf] %vm3042, %v3021
  %3051 = vst.msk [vmem:[#allocation2 + $0x44] sm:$0xf] %vm3042, %v3023
  %3052 = vst.msk [vmem:[#allocation2 + $0x4c] sm:$0xf] %vm3042, %v3025
  %3053 = vst.msk [vmem:[#allocation2 + $0x54] sm:$0xf] %vm3042, %v3027
  %3054 = vst.msk [vmem:[#allocation2 + $0x5c] sm:$0xf] %vm3042, %v3029
  %v3055 = vld [vmem:[#allocation2] sm:$0xff]
  %v3056 = vld [vmem:[#allocation2 + $0x8] sm:$0xff]
  %v3057 = vld [vmem:[#allocation2 + $0x10] sm:$0xff]
  %v3058 = vld [vmem:[#allocation2 + $0x18] sm:$0xff]
  %v3059 = vld [vmem:[#allocation2 + $0x20] sm:$0xff]
  %v3060 = vld [vmem:[#allocation2 + $0x28] sm:$0xff]
  %v3061 = vld [vmem:[#allocation2 + $0x30] sm:$0xff]
  %v3062 = vld [vmem:[#allocation2 + $0x38] sm:$0xff]
  %v3071 = vunpack.c.l.b16 %v3055
  %v3072 = vunpack.c.h.b16 %v3055
  %v3073 = vunpack.c.l.b16 %v3056
  %v3074 = vunpack.c.h.b16 %v3056
  %v3075 = vunpack.c.l.b16 %v3057
  %v3076 = vunpack.c.h.b16 %v3057
  %v3077 = vunpack.c.l.b16 %v3058
  %v3078 = vunpack.c.h.b16 %v3058
  %v3079 = vunpack.c.l.b16 %v3059
  %v3080 = vunpack.c.h.b16 %v3059
  %v3081 = vunpack.c.l.b16 %v3060
  %v3082 = vunpack.c.h.b16 %v3060
  %v3083 = vunpack.c.l.b16 %v3061
  %v3084 = vunpack.c.h.b16 %v3061
  %v3085 = vunpack.c.l.b16 %v3062
  %v3086 = vunpack.c.h.b16 %v3062
  %v3087 = vpack.c.b16 %v3073, %v3071
  %v3088 = vpack.c.b16 %v3074, %v3072
  %v3089 = vpack.c.b16 %v3077, %v3075
  %v3090 = vpack.c.b16 %v3078, %v3076
  %v3091 = vpack.c.b16 %v3081, %v3079
  %v3092 = vpack.c.b16 %v3082, %v3080
  %v3093 = vpack.c.b16 %v3085, %v3083
  %v3094 = vpack.c.b16 %v3086, %v3084
  %3103 = vrot.lane.b32.xlu0 %v3087, 127
  %v3104 = vpop.permute.xlu0 %3103
  %3105 = vrot.lane.b32.xlu0 %v3088, 127
  %v3106 = vpop.permute.xlu0 %3105
  %3107 = vrot.lane.b32.xlu0 %v3089, 127
  %v3108 = vpop.permute.xlu0 %3107
  %3109 = vrot.lane.b32.xlu0 %v3090, 127
  %v3110 = vpop.permute.xlu0 %3109
  %3111 = vrot.lane.b32.xlu0 %v3091, 127
  %v3112 = vpop.permute.xlu0 %3111
  %3113 = vrot.lane.b32.xlu0 %v3092, 127
  %v3114 = vpop.permute.xlu0 %3113
  %3115 = vrot.lane.b32.xlu0 %v3093, 127
  %v3116 = vpop.permute.xlu0 %3115
  %3117 = vrot.lane.b32.xlu0 %v3094, 127
  %v3118 = vpop.permute.xlu0 %3117
  %vm3119 = vcmask 1039360
  %v3120 = vsel %vm3119, %v3104, %v3106
  %v3121 = vsel %vm3119, %v3108, %v3110
  %v3122 = vsel %vm3119, %v3112, %v3114
  %v3123 = vsel %vm3119, %v3116, %v3118
  %3132 = vrot.lane.b32.xlu0 %v3087, 126
  %v3133 = vpop.permute.xlu0 %3132
  %3134 = vrot.lane.b32.xlu0 %v3088, 126
  %v3135 = vpop.permute.xlu0 %3134
  %3136 = vrot.lane.b32.xlu0 %v3089, 126
  %v3137 = vpop.permute.xlu0 %3136
  %3138 = vrot.lane.b32.xlu0 %v3090, 126
  %v3139 = vpop.permute.xlu0 %3138
  %3140 = vrot.lane.b32.xlu0 %v3091, 126
  %v3141 = vpop.permute.xlu0 %3140
  %3142 = vrot.lane.b32.xlu0 %v3092, 126
  %v3143 = vpop.permute.xlu0 %3142
  %3144 = vrot.lane.b32.xlu0 %v3093, 126
  %v3145 = vpop.permute.xlu0 %3144
  %3146 = vrot.lane.b32.xlu0 %v3094, 126
  %v3147 = vpop.permute.xlu0 %3146
  %vm3148 = vcmask 1031168
  %v3149 = vsel %vm3148, %v3133, %v3135
  %v3150 = vsel %vm3148, %v3137, %v3139
  %v3151 = vsel %vm3148, %v3141, %v3143
  %v3152 = vsel %vm3148, %v3145, %v3147
  %v3161 = vld [vmem:[%s4] sm:$0xff]
  %v3162 = vld [vmem:[%s4 + $0x8] sm:$0xff]
  %v3163 = vld [vmem:[%s4 + $0x10] sm:$0xff]
  %v3164 = vld [vmem:[%s4 + $0x18] sm:$0xff]
  %s3165 = scalar_lea.vmem %s4, 32
  %v3166 = vld [vmem:[%s3165] sm:$0xff]
  %v3167 = vld [vmem:[%s3165 + $0x8] sm:$0xff]
  %v3168 = vld [vmem:[%s3165 + $0x10] sm:$0xff]
  %v3169 = vld [vmem:[%s3165 + $0x18] sm:$0xff]
  %v3174 = vunpack.c.l.b16 %v3166
  %v3175 = vunpack.c.h.b16 %v3166
  %v3176 = vunpack.c.l.b16 %v3167
  %v3177 = vunpack.c.h.b16 %v3167
  %v3178 = vunpack.c.l.b16 %v3168
  %v3179 = vunpack.c.h.b16 %v3168
  %v3180 = vunpack.c.l.b16 %v3169
  %v3181 = vunpack.c.h.b16 %v3169
  %v3182 = vpack.c.b16 %v3176, %v3174
  %v3183 = vpack.c.b16 %v3177, %v3175
  %v3184 = vpack.c.b16 %v3180, %v3178
  %v3185 = vpack.c.b16 %v3181, %v3179
  %3188 = vrot.lane.b32.xlu0 %v3087, 118
  %v3189 = vpop.permute.xlu0 %3188
  %3190 = vrot.lane.b32.xlu0 %v3088, 118
  %v3191 = vpop.permute.xlu0 %3190
  %3192 = vrot.lane.b32.xlu0 %v3089, 118
  %v3193 = vpop.permute.xlu0 %3192
  %3194 = vrot.lane.b32.xlu0 %v3090, 118
  %v3195 = vpop.permute.xlu0 %3194
  %3196 = vrot.lane.b32.xlu0 %v3091, 118
  %v3197 = vpop.permute.xlu0 %3196
  %3198 = vrot.lane.b32.xlu0 %v3092, 118
  %v3199 = vpop.permute.xlu0 %3198
  %3200 = vrot.lane.b32.xlu0 %v3093, 118
  %v3201 = vpop.permute.xlu0 %3200
  %3202 = vrot.lane.b32.xlu0 %v3094, 118
  %v3203 = vpop.permute.xlu0 %3202
  %3204 = vrot.lane.b32.xlu0 %v3120, 118
  %v3205 = vpop.permute.xlu0 %3204
  %3206 = vrot.lane.b32.xlu0 %v3106, 118
  %v3207 = vpop.permute.xlu0 %3206
  %3208 = vrot.lane.b32.xlu0 %v3121, 118
  %v3209 = vpop.permute.xlu0 %3208
  %3210 = vrot.lane.b32.xlu0 %v3110, 118
  %v3211 = vpop.permute.xlu0 %3210
  %3212 = vrot.lane.b32.xlu0 %v3122, 118
  %v3213 = vpop.permute.xlu0 %3212
  %3214 = vrot.lane.b32.xlu0 %v3114, 118
  %v3215 = vpop.permute.xlu0 %3214
  %3216 = vrot.lane.b32.xlu0 %v3123, 118
  %v3217 = vpop.permute.xlu0 %3216
  %3218 = vrot.lane.b32.xlu0 %v3118, 118
  %v3219 = vpop.permute.xlu0 %3218
  %3220 = vrot.lane.b32.xlu0 %v3149, 118
  %v3221 = vpop.permute.xlu0 %3220
  %3222 = vrot.lane.b32.xlu0 %v3135, 118
  %v3223 = vpop.permute.xlu0 %3222
  %3224 = vrot.lane.b32.xlu0 %v3150, 118
  %v3225 = vpop.permute.xlu0 %3224
  %3226 = vrot.lane.b32.xlu0 %v3139, 118
  %v3227 = vpop.permute.xlu0 %3226
  %3228 = vrot.lane.b32.xlu0 %v3151, 118
  %v3229 = vpop.permute.xlu0 %3228
  %3230 = vrot.lane.b32.xlu0 %v3143, 118
  %v3231 = vpop.permute.xlu0 %3230
  %3232 = vrot.lane.b32.xlu0 %v3152, 118
  %v3233 = vpop.permute.xlu0 %3232
  %3234 = vrot.lane.b32.xlu0 %v3147, 118
  %v3235 = vpop.permute.xlu0 %3234
  %vm3236 = vcmask 965632
  %v3237 = vsel %vm3236, %v3189, %v3191
  %v3238 = vsel %vm3236, %v3193, %v3195
  %v3239 = vsel %vm3236, %v3197, %v3199
  %v3240 = vsel %vm3236, %v3201, %v3203
  %v3241 = vsel %vm3236, %v3205, %v3207
  %v3242 = vsel %vm3236, %v3209, %v3211
  %v3243 = vsel %vm3236, %v3213, %v3215
  %v3244 = vsel %vm3236, %v3217, %v3219
  %v3245 = vsel %vm3236, %v3221, %v3223
  %v3246 = vsel %vm3236, %v3225, %v3227
  %v3247 = vsel %vm3236, %v3229, %v3231
  %v3248 = vsel %vm3236, %v3233, %v3235
  %v3274 = vsel %vm1161, %v3183, 0
  %v3277 = vsel %vm1161, %v3185, 0
  %3279 = vmatpush.bf16.msra.mxu0 %v3244
  %3280 = vmatpush.bf16.msra.mxu0 %v3243
  %3281 = vmatpush.bf16.msra.mxu0 %v3242
  %3282 = vmatpush.bf16.msra.mxu0 %v3241
  %3283 = vmatpush.bf16.msra.mxu0 %v3240
  %3284 = vmatpush.bf16.msra.mxu0 %v3239
  %3285 = vmatpush.bf16.msra.mxu0 %v3238
  %3286 = vmatpush.bf16.msra.mxu0 %v3237
  %3287 = vmatmul.bf16.gmra.mxu0 %v3182
  %v3288 = vpop.f32.mrf.mxu0
  %v3289 = vadd.f32 0.0, %v3288
  %v3290 = vpop.f32.mrf.mxu0
  %v3291 = vadd.f32 0.0, %v3290
  %3292 = vmatmul.bf16.gmra.mxu0 %v3184
  %v3293 = vpop.f32.mrf.mxu0
  %v3294 = vadd.f32 0.0, %v3293
  %v3295 = vpop.f32.mrf.mxu0
  %v3296 = vadd.f32 0.0, %v3295
  %3297 = vdwg.mxu0
  %3298 = vmatpush.bf16.msra.mxu0 0
  %3299 = vmatpush.bf16.msra.mxu0 0
  %3300 = vmatpush.bf16.msra.mxu0 0
  %3301 = vmatpush.bf16.msra.mxu0 0
  %3302 = vmatpush.bf16.msra.mxu0 %v3248
  %3303 = vmatpush.bf16.msra.mxu0 %v3247
  %3304 = vmatpush.bf16.msra.mxu0 %v3246
  %3305 = vmatpush.bf16.msra.mxu0 %v3245
  %3306 = vmatmul.bf16.gmra.mxu0 %v3274
  %v3307 = vpop.f32.mrf.mxu0
  %v3308 = vadd.f32 %v3289, %v3307
  %v3309 = vpop.f32.mrf.mxu0
  %v3310 = vadd.f32 %v3291, %v3309
  %3311 = vmatmul.bf16.gmra.mxu0 %v3277
  %v3312 = vpop.f32.mrf.mxu0
  %v3313 = vadd.f32 %v3294, %v3312
  %v3314 = vpop.f32.mrf.mxu0
  %v3315 = vadd.f32 %v3296, %v3314
  %3316 = vdwg.mxu0
  %3317 = vmatpush.bf16.msra.mxu0 %v3219
  %3318 = vmatpush.bf16.msra.mxu0 %v3215
  %3319 = vmatpush.bf16.msra.mxu0 %v3211
  %3320 = vmatpush.bf16.msra.mxu0 %v3207
  %3321 = vmatpush.bf16.msra.mxu0 %v3203
  %3322 = vmatpush.bf16.msra.mxu0 %v3199
  %3323 = vmatpush.bf16.msra.mxu0 %v3195
  %3324 = vmatpush.bf16.msra.mxu0 %v3191
  %3325 = vmatmul.bf16.gmra.mxu0 %v3182
  %v3326 = vpop.f32.mrf.mxu0
  %v3327 = vadd.f32 0.0, %v3326
  %v3328 = vpop.f32.mrf.mxu0
  %v3329 = vadd.f32 0.0, %v3328
  %3330 = vmatmul.bf16.gmra.mxu0 %v3184
  %v3331 = vpop.f32.mrf.mxu0
  %v3332 = vadd.f32 0.0, %v3331
  %v3333 = vpop.f32.mrf.mxu0
  %v3334 = vadd.f32 0.0, %v3333
  %3335 = vdwg.mxu0
  %3336 = vmatpush.bf16.msra.mxu0 0
  %3337 = vmatpush.bf16.msra.mxu0 0
  %3338 = vmatpush.bf16.msra.mxu0 0
  %3339 = vmatpush.bf16.msra.mxu0 0
  %3340 = vmatpush.bf16.msra.mxu0 %v3235
  %3341 = vmatpush.bf16.msra.mxu0 %v3231
  %3342 = vmatpush.bf16.msra.mxu0 %v3227
  %3343 = vmatpush.bf16.msra.mxu0 %v3223
  %3344 = vmatmul.bf16.gmra.mxu0 %v3274
  %v3345 = vpop.f32.mrf.mxu0
  %v3346 = vadd.f32 %v3327, %v3345
  %v3347 = vpop.f32.mrf.mxu0
  %v3348 = vadd.f32 %v3329, %v3347
  %3349 = vmatmul.bf16.gmra.mxu0 %v3277
  %v3350 = vpop.f32.mrf.mxu0
  %v3351 = vadd.f32 %v3332, %v3350
  %v3352 = vpop.f32.mrf.mxu0
  %v3353 = vadd.f32 %v3334, %v3352
  %3354 = vdwg.mxu0
  %v3359 = vunpack.c.l.b16 %v3161
  %v3360 = vunpack.c.h.b16 %v3161
  %v3361 = vunpack.c.l.b16 %v3162
  %v3362 = vunpack.c.h.b16 %v3162
  %v3363 = vunpack.c.l.b16 %v3163
  %v3364 = vunpack.c.h.b16 %v3163
  %v3365 = vunpack.c.l.b16 %v3164
  %v3366 = vunpack.c.h.b16 %v3164
  %v3367 = vpack.c.b16 %v3361, %v3359
  %v3368 = vpack.c.b16 %v3362, %v3360
  %v3369 = vpack.c.b16 %v3365, %v3363
  %v3370 = vpack.c.b16 %v3366, %v3364
  %v3374 = vsel %vm1161, %v3368, 0
  %v3377 = vsel %vm1161, %v3370, 0
  %3379 = vmatpush.bf16.msra.mxu0 %v3123
  %3380 = vmatpush.bf16.msra.mxu0 %v3122
  %3381 = vmatpush.bf16.msra.mxu0 %v3121
  %3382 = vmatpush.bf16.msra.mxu0 %v3120
  %3383 = vmatpush.bf16.msra.mxu0 %v3093
  %3384 = vmatpush.bf16.msra.mxu0 %v3091
  %3385 = vmatpush.bf16.msra.mxu0 %v3089
  %3386 = vmatpush.bf16.msra.mxu0 %v3087
  %3387 = vmatmul.bf16.gmra.mxu0 %v3367
  %v3388 = vpop.f32.mrf.mxu0
  %v3389 = vadd.f32 %v3308, %v3388
  %v3390 = vpop.f32.mrf.mxu0
  %v3391 = vadd.f32 %v3310, %v3390
  %3392 = vmatmul.bf16.gmra.mxu0 %v3369
  %v3393 = vpop.f32.mrf.mxu0
  %v3394 = vadd.f32 %v3313, %v3393
  %v3395 = vpop.f32.mrf.mxu0
  %v3396 = vadd.f32 %v3315, %v3395
  %3397 = vdwg.mxu0
  %3398 = vmatpush.bf16.msra.mxu0 0
  %3399 = vmatpush.bf16.msra.mxu0 0
  %3400 = vmatpush.bf16.msra.mxu0 0
  %3401 = vmatpush.bf16.msra.mxu0 0
  %3402 = vmatpush.bf16.msra.mxu0 %v3152
  %3403 = vmatpush.bf16.msra.mxu0 %v3151
  %3404 = vmatpush.bf16.msra.mxu0 %v3150
  %3405 = vmatpush.bf16.msra.mxu0 %v3149
  %3406 = vmatmul.bf16.gmra.mxu0 %v3374
  %v3407 = vpop.f32.mrf.mxu0
  %v3408 = vadd.f32 %v3389, %v3407
  %v3409 = vpop.f32.mrf.mxu0
  %v3410 = vadd.f32 %v3391, %v3409
  %3411 = vmatmul.bf16.gmra.mxu0 %v3377
  %v3412 = vpop.f32.mrf.mxu0
  %v3413 = vadd.f32 %v3394, %v3412
  %v3414 = vpop.f32.mrf.mxu0
  %v3415 = vadd.f32 %v3396, %v3414
  %3416 = vdwg.mxu0
  %3417 = vmatpush.bf16.msra.mxu0 %v3118
  %3418 = vmatpush.bf16.msra.mxu0 %v3114
  %3419 = vmatpush.bf16.msra.mxu0 %v3110
  %3420 = vmatpush.bf16.msra.mxu0 %v3106
  %3421 = vmatpush.bf16.msra.mxu0 %v3094
  %3422 = vmatpush.bf16.msra.mxu0 %v3092
  %3423 = vmatpush.bf16.msra.mxu0 %v3090
  %3424 = vmatpush.bf16.msra.mxu0 %v3088
  %3425 = vmatmul.bf16.gmra.mxu0 %v3367
  %v3426 = vpop.f32.mrf.mxu0
  %v3427 = vadd.f32 %v3346, %v3426
  %v3428 = vpop.f32.mrf.mxu0
  %v3429 = vadd.f32 %v3348, %v3428
  %3430 = vmatmul.bf16.gmra.mxu0 %v3369
  %v3431 = vpop.f32.mrf.mxu0
  %v3432 = vadd.f32 %v3351, %v3431
  %v3433 = vpop.f32.mrf.mxu0
  %v3434 = vadd.f32 %v3353, %v3433
  %3435 = vdwg.mxu0
  %3436 = vmatpush.bf16.msra.mxu0 0
  %3437 = vmatpush.bf16.msra.mxu0 0
  %3438 = vmatpush.bf16.msra.mxu0 0
  %3439 = vmatpush.bf16.msra.mxu0 0
  %3440 = vmatpush.bf16.msra.mxu0 %v3147
  %3441 = vmatpush.bf16.msra.mxu0 %v3143
  %3442 = vmatpush.bf16.msra.mxu0 %v3139
  %3443 = vmatpush.bf16.msra.mxu0 %v3135
  %3444 = vmatmul.bf16.gmra.mxu0 %v3374
  %v3445 = vpop.f32.mrf.mxu0
  %v3446 = vadd.f32 %v3427, %v3445
  %v3447 = vpop.f32.mrf.mxu0
  %v3448 = vadd.f32 %v3429, %v3447
  %3449 = vmatmul.bf16.gmra.mxu0 %v3377
  %v3450 = vpop.f32.mrf.mxu0
  %v3451 = vadd.f32 %v3432, %v3450
  %v3452 = vpop.f32.mrf.mxu0
  %v3453 = vadd.f32 %v3434, %v3452
  %3454 = vdwg.mxu0
  %s3455 = scalar_lea.vmem %s4, 64
  %v3456 = vld [vmem:[%s3455] sm:$0xff]
  %v3457 = vld [vmem:[%s3455 + $0x8] sm:$0xff]
  %v3458 = vld [vmem:[%s3455 + $0x10] sm:$0xff]
  %v3459 = vld [vmem:[%s3455 + $0x18] sm:$0xff]
  %v3464 = vunpack.c.l.b16 %v3456
  %v3465 = vunpack.c.h.b16 %v3456
  %v3466 = vunpack.c.l.b16 %v3457
  %v3467 = vunpack.c.h.b16 %v3457
  %v3468 = vunpack.c.l.b16 %v3458
  %v3469 = vunpack.c.h.b16 %v3458
  %v3470 = vunpack.c.l.b16 %v3459
  %v3471 = vunpack.c.h.b16 %v3459
  %v3472 = vpack.c.b16 %v3466, %v3464
  %v3473 = vpack.c.b16 %v3467, %v3465
  %v3474 = vpack.c.b16 %v3470, %v3468
  %v3475 = vpack.c.b16 %v3471, %v3469
  %3478 = vrot.lane.b32.xlu0 %v3087, 108
  %v3479 = vpop.permute.xlu0 %3478
  %3480 = vrot.lane.b32.xlu0 %v3088, 108
  %v3481 = vpop.permute.xlu0 %3480
  %3482 = vrot.lane.b32.xlu0 %v3089, 108
  %v3483 = vpop.permute.xlu0 %3482
  %3484 = vrot.lane.b32.xlu0 %v3090, 108
  %v3485 = vpop.permute.xlu0 %3484
  %3486 = vrot.lane.b32.xlu0 %v3091, 108
  %v3487 = vpop.permute.xlu0 %3486
  %3488 = vrot.lane.b32.xlu0 %v3092, 108
  %v3489 = vpop.permute.xlu0 %3488
  %3490 = vrot.lane.b32.xlu0 %v3093, 108
  %v3491 = vpop.permute.xlu0 %3490
  %3492 = vrot.lane.b32.xlu0 %v3094, 108
  %v3493 = vpop.permute.xlu0 %3492
  %3494 = vrot.lane.b32.xlu0 %v3120, 108
  %v3495 = vpop.permute.xlu0 %3494
  %3496 = vrot.lane.b32.xlu0 %v3106, 108
  %v3497 = vpop.permute.xlu0 %3496
  %3498 = vrot.lane.b32.xlu0 %v3121, 108
  %v3499 = vpop.permute.xlu0 %3498
  %3500 = vrot.lane.b32.xlu0 %v3110, 108
  %v3501 = vpop.permute.xlu0 %3500
  %3502 = vrot.lane.b32.xlu0 %v3122, 108
  %v3503 = vpop.permute.xlu0 %3502
  %3504 = vrot.lane.b32.xlu0 %v3114, 108
  %v3505 = vpop.permute.xlu0 %3504
  %3506 = vrot.lane.b32.xlu0 %v3123, 108
  %v3507 = vpop.permute.xlu0 %3506
  %3508 = vrot.lane.b32.xlu0 %v3118, 108
  %v3509 = vpop.permute.xlu0 %3508
  %3510 = vrot.lane.b32.xlu0 %v3149, 108
  %v3511 = vpop.permute.xlu0 %3510
  %3512 = vrot.lane.b32.xlu0 %v3135, 108
  %v3513 = vpop.permute.xlu0 %3512
  %3514 = vrot.lane.b32.xlu0 %v3150, 108
  %v3515 = vpop.permute.xlu0 %3514
  %3516 = vrot.lane.b32.xlu0 %v3139, 108
  %v3517 = vpop.permute.xlu0 %3516
  %3518 = vrot.lane.b32.xlu0 %v3151, 108
  %v3519 = vpop.permute.xlu0 %3518
  %3520 = vrot.lane.b32.xlu0 %v3143, 108
  %v3521 = vpop.permute.xlu0 %3520
  %3522 = vrot.lane.b32.xlu0 %v3152, 108
  %v3523 = vpop.permute.xlu0 %3522
  %3524 = vrot.lane.b32.xlu0 %v3147, 108
  %v3525 = vpop.permute.xlu0 %3524
  %vm3526 = vcmask 883712
  %v3527 = vsel %vm3526, %v3479, %v3481
  %v3528 = vsel %vm3526, %v3483, %v3485
  %v3529 = vsel %vm3526, %v3487, %v3489
  %v3530 = vsel %vm3526, %v3491, %v3493
  %v3531 = vsel %vm3526, %v3495, %v3497
  %v3532 = vsel %vm3526, %v3499, %v3501
  %v3533 = vsel %vm3526, %v3503, %v3505
  %v3534 = vsel %vm3526, %v3507, %v3509
  %v3535 = vsel %vm3526, %v3511, %v3513
  %v3536 = vsel %vm3526, %v3515, %v3517
  %v3537 = vsel %vm3526, %v3519, %v3521
  %v3538 = vsel %vm3526, %v3523, %v3525
  %v3564 = vsel %vm1161, %v3473, 0
  %v3567 = vsel %vm1161, %v3475, 0
  %3569 = vmatpush.bf16.msra.mxu0 %v3534
  %3570 = vmatpush.bf16.msra.mxu0 %v3533
  %3571 = vmatpush.bf16.msra.mxu0 %v3532
  %3572 = vmatpush.bf16.msra.mxu0 %v3531
  %3573 = vmatpush.bf16.msra.mxu0 %v3530
  %3574 = vmatpush.bf16.msra.mxu0 %v3529
  %3575 = vmatpush.bf16.msra.mxu0 %v3528
  %3576 = vmatpush.bf16.msra.mxu0 %v3527
  %3577 = vmatmul.bf16.gmra.mxu0 %v3472
  %v3578 = vpop.f32.mrf.mxu0
  %v3579 = vadd.f32 0.0, %v3578
  %v3580 = vpop.f32.mrf.mxu0
  %v3581 = vadd.f32 0.0, %v3580
  %3582 = vmatmul.bf16.gmra.mxu0 %v3474
  %v3583 = vpop.f32.mrf.mxu0
  %v3584 = vadd.f32 0.0, %v3583
  %v3585 = vpop.f32.mrf.mxu0
  %v3586 = vadd.f32 0.0, %v3585
  %3587 = vdwg.mxu0
  %3588 = vmatpush.bf16.msra.mxu0 0
  %3589 = vmatpush.bf16.msra.mxu0 0
  %3590 = vmatpush.bf16.msra.mxu0 0
  %3591 = vmatpush.bf16.msra.mxu0 0
  %3592 = vmatpush.bf16.msra.mxu0 %v3538
  %3593 = vmatpush.bf16.msra.mxu0 %v3537
  %3594 = vmatpush.bf16.msra.mxu0 %v3536
  %3595 = vmatpush.bf16.msra.mxu0 %v3535
  %3596 = vmatmul.bf16.gmra.mxu0 %v3564
  %v3597 = vpop.f32.mrf.mxu0
  %v3598 = vadd.f32 %v3579, %v3597
  %v3599 = vpop.f32.mrf.mxu0
  %v3600 = vadd.f32 %v3581, %v3599
  %3601 = vmatmul.bf16.gmra.mxu0 %v3567
  %v3602 = vpop.f32.mrf.mxu0
  %v3603 = vadd.f32 %v3584, %v3602
  %v3604 = vpop.f32.mrf.mxu0
  %v3605 = vadd.f32 %v3586, %v3604
  %3606 = vdwg.mxu0
  %3607 = vmatpush.bf16.msra.mxu0 %v3509
  %3608 = vmatpush.bf16.msra.mxu0 %v3505
  %3609 = vmatpush.bf16.msra.mxu0 %v3501
  %3610 = vmatpush.bf16.msra.mxu0 %v3497
  %3611 = vmatpush.bf16.msra.mxu0 %v3493
  %3612 = vmatpush.bf16.msra.mxu0 %v3489
  %3613 = vmatpush.bf16.msra.mxu0 %v3485
  %3614 = vmatpush.bf16.msra.mxu0 %v3481
  %3615 = vmatmul.bf16.gmra.mxu0 %v3472
  %v3616 = vpop.f32.mrf.mxu0
  %v3617 = vadd.f32 0.0, %v3616
  %v3618 = vpop.f32.mrf.mxu0
  %v3619 = vadd.f32 0.0, %v3618
  %3620 = vmatmul.bf16.gmra.mxu0 %v3474
  %v3621 = vpop.f32.mrf.mxu0
  %v3622 = vadd.f32 0.0, %v3621
  %v3623 = vpop.f32.mrf.mxu0
  %v3624 = vadd.f32 0.0, %v3623
  %3625 = vdwg.mxu0
  %3626 = vmatpush.bf16.msra.mxu0 0
  %3627 = vmatpush.bf16.msra.mxu0 0
  %3628 = vmatpush.bf16.msra.mxu0 0
  %3629 = vmatpush.bf16.msra.mxu0 0
  %3630 = vmatpush.bf16.msra.mxu0 %v3525
  %3631 = vmatpush.bf16.msra.mxu0 %v3521
  %3632 = vmatpush.bf16.msra.mxu0 %v3517
  %3633 = vmatpush.bf16.msra.mxu0 %v3513
  %3634 = vmatmul.bf16.gmra.mxu0 %v3564
  %v3635 = vpop.f32.mrf.mxu0
  %v3636 = vadd.f32 %v3617, %v3635
  %v3637 = vpop.f32.mrf.mxu0
  %v3638 = vadd.f32 %v3619, %v3637
  %3639 = vmatmul.bf16.gmra.mxu0 %v3567
  %v3640 = vpop.f32.mrf.mxu0
  %v3641 = vadd.f32 %v3622, %v3640
  %v3642 = vpop.f32.mrf.mxu0
  %v3643 = vadd.f32 %v3624, %v3642
  %3644 = vdwg.mxu0
  %v3645 = vadd.f32 %v3408, %v3598
  %v3646 = vadd.f32 %v3446, %v3636
  %v3647 = vadd.f32 %v3410, %v3600
  %v3648 = vadd.f32 %v3448, %v3638
  %v3649 = vadd.f32 %v3413, %v3603
  %v3650 = vadd.f32 %v3451, %v3641
  %v3651 = vadd.f32 %v3415, %v3605
  %v3652 = vadd.f32 %v3453, %v3643
  %v3653 = vld [vmem:[%s11] sm:$0x3]
  %v3654 = vld [vmem:[%s7] sm:$0xff]
  %v3655 = vld [vmem:[%s7 + $0x8] sm:$0xff]
  %v3656 = vld [vmem:[%s7 + $0x10] sm:$0xff]
  %v3657 = vld [vmem:[%s7 + $0x18] sm:$0xff]
  %3659 = vset.pattern.permute.xlu0 0
  %3660 = vperm.xlu0 %3659, %v3654
  %v3661 = vpop.permute.xlu0 %3660
  %3664 = vset.pattern.permute.xlu0 0
  %3665 = vperm.xlu0 %3664, %v3655
  %v3666 = vpop.permute.xlu0 %3665
  %3669 = vset.pattern.permute.xlu0 0
  %3670 = vperm.xlu0 %3669, %v3656
  %v3671 = vpop.permute.xlu0 %3670
  %3674 = vset.pattern.permute.xlu0 0
  %3675 = vperm.xlu0 %3674, %v3657
  %v3676 = vpop.permute.xlu0 %3675
  %v3678 = vadd.f32 %v3645, %v3661
  %v3679 = vadd.f32 %v3646, %v3661
  %v3680 = vadd.f32 %v3647, %v3666
  %v3681 = vadd.f32 %v3648, %v3666
  %v3682 = vadd.f32 %v3649, %v3671
  %v3683 = vadd.f32 %v3650, %v3671
  %v3684 = vadd.f32 %v3651, %v3676
  %v3685 = vadd.f32 %v3652, %v3676
  %v3687 = vperm.slane %v3653, 0
  %v3688 = vperm.slane %v3653, 1
  %v3691 = vmul.f32 %v3678, %v3687
  %v3692 = vmul.f32 %v3679, %v3688
  %v3693 = vmul.f32 %v3680, %v3687
  %v3694 = vmul.f32 %v3681, %v3688
  %v3695 = vmul.f32 %v3682, %v3687
  %v3696 = vmul.f32 %v3683, %v3688
  %v3697 = vmul.f32 %v3684, %v3687
  %v3698 = vmul.f32 %v3685, %v3688
  %v3699 = vsel %vm739, %v3692, 0.0
  %v3700 = vadd.f32 %v3691, %v3699
  %3701 = vadd.xlane.f32.xlu0 %v3700
  %v3702 = vpop.xlane.xlu0 %3701
  %v3703 = vsel %vm739, %v3694, 0.0
  %v3704 = vadd.f32 %v3693, %v3703
  %3705 = vadd.xlane.f32.xlu0 %v3704
  %v3706 = vpop.xlane.xlu0 %3705
  %v3707 = vsel %vm739, %v3696, 0.0
  %v3708 = vadd.f32 %v3695, %v3707
  %3709 = vadd.xlane.f32.xlu0 %v3708
  %v3710 = vpop.xlane.xlu0 %3709
  %v3711 = vsel %vm739, %v3698, 0.0
  %v3712 = vadd.f32 %v3697, %v3711
  %3713 = vadd.xlane.f32.xlu0 %v3712
  %v3714 = vpop.xlane.xlu0 %3713
  %v3715 = vrcp.pop 128.0
  %v3716 = vmul.f32 128.0, %v3715
  %v3717 = vsub.f32 1.0, %v3716
  %v3718 = vmul.f32 %v3715, %v3717
  %v3719 = vadd.f32 %v3715, %v3718
  %vm3720 = vweird.f32 %v3715
  %v3721 = vsel %vm3720, %v3715, %v3719
  %v3722 = vmul.f32 %v3702, %v3721
  %v3723 = vmul.f32 %v3706, %v3721
  %v3724 = vmul.f32 %v3710, %v3721
  %v3725 = vmul.f32 %v3714, %v3721
  %v3726 = vmul.f32 %v3691, %v3691
  %v3727 = vmul.f32 %v3692, %v3692
  %v3728 = vmul.f32 %v3693, %v3693
  %v3729 = vmul.f32 %v3694, %v3694
  %v3730 = vmul.f32 %v3695, %v3695
  %v3731 = vmul.f32 %v3696, %v3696
  %v3732 = vmul.f32 %v3697, %v3697
  %v3733 = vmul.f32 %v3698, %v3698
  %v3734 = vsel %vm739, %v3727, 0.0
  %v3735 = vadd.f32 %v3726, %v3734
  %3736 = vadd.xlane.f32.xlu0 %v3735
  %v3737 = vpop.xlane.xlu0 %3736
  %v3738 = vsel %vm739, %v3729, 0.0
  %v3739 = vadd.f32 %v3728, %v3738
  %3740 = vadd.xlane.f32.xlu0 %v3739
  %v3741 = vpop.xlane.xlu0 %3740
  %v3742 = vsel %vm739, %v3731, 0.0
  %v3743 = vadd.f32 %v3730, %v3742
  %3744 = vadd.xlane.f32.xlu0 %v3743
  %v3745 = vpop.xlane.xlu0 %3744
  %v3746 = vsel %vm739, %v3733, 0.0
  %v3747 = vadd.f32 %v3732, %v3746
  %3748 = vadd.xlane.f32.xlu0 %v3747
  %v3749 = vpop.xlane.xlu0 %3748
  %v3750 = vmul.f32 %v3737, %v3721
  %v3751 = vmul.f32 %v3741, %v3721
  %v3752 = vmul.f32 %v3745, %v3721
  %v3753 = vmul.f32 %v3749, %v3721
  %v3754 = vmul.f32 %v3722, %v3722
  %v3755 = vmul.f32 %v3723, %v3723
  %v3756 = vmul.f32 %v3724, %v3724
  %v3757 = vmul.f32 %v3725, %v3725
  %v3758 = vsub.f32 %v3750, %v3754
  %v3759 = vsub.f32 %v3751, %v3755
  %v3760 = vsub.f32 %v3752, %v3756
  %v3761 = vsub.f32 %v3753, %v3757
  %v3762 = vmax.f32 %v3758, 0.0
  %v3763 = vmax.f32 %v3759, 0.0
  %v3764 = vmax.f32 %v3760, 0.0
  %v3765 = vmax.f32 %v3761, 0.0
  %v3766 = vadd.f32 %v3762, 1e-05
  %v3767 = vadd.f32 %v3763, 1e-05
  %v3768 = vadd.f32 %v3764, 1e-05
  %v3769 = vadd.f32 %v3765, 1e-05
  %v3770 = vrsqrt.pop %v3766
  %v3771 = vmul.f32 %v3770, %v3766
  %v3772 = vmul.f32 %v3771, %v3770
  %v3773 = vmul.f32 0.5, %v3772
  %v3774 = vsub.f32 1.5, %v3773
  %v3775 = vmul.f32 %v3770, %v3774
  %vm3776 = vweird.f32 %v3766
  %vm3777 = vweird.f32 %v3770
  %vm3778 = vmor %vm3776, %vm3777
  %v3779 = vsel %vm3778, %v3770, %v3775
  %v3780 = vrsqrt.pop %v3767
  %v3781 = vmul.f32 %v3780, %v3767
  %v3782 = vmul.f32 %v3781, %v3780
  %v3783 = vmul.f32 0.5, %v3782
  %v3784 = vsub.f32 1.5, %v3783
  %v3785 = vmul.f32 %v3780, %v3784
  %vm3786 = vweird.f32 %v3767
  %vm3787 = vweird.f32 %v3780
  %vm3788 = vmor %vm3786, %vm3787
  %v3789 = vsel %vm3788, %v3780, %v3785
  %v3790 = vrsqrt.pop %v3768
  %v3791 = vmul.f32 %v3790, %v3768
  %v3792 = vmul.f32 %v3791, %v3790
  %v3793 = vmul.f32 0.5, %v3792
  %v3794 = vsub.f32 1.5, %v3793
  %v3795 = vmul.f32 %v3790, %v3794
  %vm3796 = vweird.f32 %v3768
  %vm3797 = vweird.f32 %v3790
  %vm3798 = vmor %vm3796, %vm3797
  %v3799 = vsel %vm3798, %v3790, %v3795
  %v3800 = vrsqrt.pop %v3769
  %v3801 = vmul.f32 %v3800, %v3769
  %v3802 = vmul.f32 %v3801, %v3800
  %v3803 = vmul.f32 0.5, %v3802
  %v3804 = vsub.f32 1.5, %v3803
  %v3805 = vmul.f32 %v3800, %v3804
  %vm3806 = vweird.f32 %v3769
  %vm3807 = vweird.f32 %v3800
  %vm3808 = vmor %vm3806, %vm3807
  %v3809 = vsel %vm3808, %v3800, %v3805
  %v3810 = vmul.f32 %v3779, %v711
  %v3811 = vmul.f32 %v3789, %v712
  %v3812 = vmul.f32 %v3799, %v713
  %v3813 = vmul.f32 %v3809, %v714
  %v3814 = vld [vmem:[%s10] sm:$0xf]
  %3816 = vst [vmem:[#allocation1] ss:$4 sm:$0xff] %v3814
  %v3817 = vld.sshfl [vmem:[#allocation1] sm:$0xff pattern:$0x73625140]
  %v3818 = vld.sshfl [vmem:[#allocation1 + $0x8] sm:$0xff pattern:$0x73625140]
  %v3820 = vsel %vm940, %v3810, 0
  %v3823 = vsel %vm940, %v3811, 0
  %v3826 = vsel %vm940, %v3812, 0
  %v3829 = vsel %vm940, %v3813, 0
  %v3831 = vsel %vm965, %v3817, 0
  %v3833 = vsel %vm965, %v3818, 0
  %3835 = vmatpush.msra.mxu0 0.0
  %3836 = vmatpush.msra.mxu0 0.0
  %3837 = vmatpush.msra.mxu0 0.0
  %3838 = vmatpush.msra.mxu0 0.0
  %3839 = vmatpush.msra.mxu0 0.0
  %3840 = vmatpush.msra.mxu0 0.0
  %3841 = vmatpush.msra.mxu0 0.0
  %3842 = vmatpush.msra.mxu0 0.0
  %3843 = vmatpush.msra.mxu0 0.0
  %3844 = vmatpush.msra.mxu0 0.0
  %3845 = vmatpush.msra.mxu0 0.0
  %3846 = vmatpush.msra.mxu0 0.0
  %3847 = vmatpush.msra.mxu0 0.0
  %3848 = vmatpush.msra.mxu0 0.0
  %3849 = vmatpush.msra.mxu0 0.0
  %3850 = vmatpush.msra.mxu0 %v3831
  %3851 = vmatmul.f32.gmra.mxu0 %v3820
  %v3852 = vpop.f32.mrf.mxu0
  %v3853 = vadd.f32 0.0, %v3852
  %3854 = vmatmul.f32.gmra.mxu0 %v3823
  %v3855 = vpop.f32.mrf.mxu0
  %v3856 = vadd.f32 0.0, %v3855
  %3857 = vmatmul.f32.gmra.mxu0 %v3826
  %v3858 = vpop.f32.mrf.mxu0
  %v3859 = vadd.f32 0.0, %v3858
  %3860 = vmatmul.f32.gmra.mxu0 %v3829
  %v3861 = vpop.f32.mrf.mxu0
  %v3862 = vadd.f32 0.0, %v3861
  %3863 = vdwg.mxu0
  %3864 = vmatpush.msra.mxu0 0.0
  %3865 = vmatpush.msra.mxu0 0.0
  %3866 = vmatpush.msra.mxu0 0.0
  %3867 = vmatpush.msra.mxu0 0.0
  %3868 = vmatpush.msra.mxu0 0.0
  %3869 = vmatpush.msra.mxu0 0.0
  %3870 = vmatpush.msra.mxu0 0.0
  %3871 = vmatpush.msra.mxu0 0.0
  %3872 = vmatpush.msra.mxu0 0.0
  %3873 = vmatpush.msra.mxu0 0.0
  %3874 = vmatpush.msra.mxu0 0.0
  %3875 = vmatpush.msra.mxu0 0.0
  %3876 = vmatpush.msra.mxu0 0.0
  %3877 = vmatpush.msra.mxu0 0.0
  %3878 = vmatpush.msra.mxu0 0.0
  %3879 = vmatpush.msra.mxu0 %v3833
  %3880 = vmatmul.f32.gmra.mxu0 %v3820
  %v3881 = vpop.f32.mrf.mxu0
  %v3882 = vadd.f32 0.0, %v3881
  %3883 = vmatmul.f32.gmra.mxu0 %v3823
  %v3884 = vpop.f32.mrf.mxu0
  %v3885 = vadd.f32 0.0, %v3884
  %3886 = vmatmul.f32.gmra.mxu0 %v3826
  %v3887 = vpop.f32.mrf.mxu0
  %v3888 = vadd.f32 0.0, %v3887
  %3889 = vmatmul.f32.gmra.mxu0 %v3829
  %v3890 = vpop.f32.mrf.mxu0
  %v3891 = vadd.f32 0.0, %v3890
  %3892 = vdwg.mxu0
  %v3893 = vmul.f32 %v3722, %v3779
  %v3894 = vmul.f32 %v3723, %v3789
  %v3895 = vmul.f32 %v3724, %v3799
  %v3896 = vmul.f32 %v3725, %v3809
  %v3897 = vmul.f32 %v3893, %v711
  %v3898 = vmul.f32 %v3894, %v712
  %v3899 = vmul.f32 %v3895, %v713
  %v3900 = vmul.f32 %v3896, %v714
  %v3901 = vsub.f32 %v719, %v3897
  %v3902 = vsub.f32 %v720, %v3898
  %v3903 = vsub.f32 %v721, %v3899
  %v3904 = vsub.f32 %v722, %v3900
  %3905 = vst [vmem:[#allocation1] ss:$4 sm:$0xff] %v3814
  %v3906 = vld.sshfl [vmem:[#allocation1] sm:$0xff pattern:$0x73625140]
  %v3907 = vld.sshfl [vmem:[#allocation1 + $0x8] sm:$0xff pattern:$0x73625140]
  %v3909 = vsel %vm940, %v3901, 0
  %v3912 = vsel %vm940, %v3902, 0
  %v3915 = vsel %vm940, %v3903, 0
  %v3918 = vsel %vm940, %v3904, 0
  %v3920 = vsel %vm965, %v3906, 0
  %v3922 = vsel %vm965, %v3907, 0
  %3924 = vmatpush.msra.mxu0 0.0
  %3925 = vmatpush.msra.mxu0 0.0
  %3926 = vmatpush.msra.mxu0 0.0
  %3927 = vmatpush.msra.mxu0 0.0
  %3928 = vmatpush.msra.mxu0 0.0
  %3929 = vmatpush.msra.mxu0 0.0
  %3930 = vmatpush.msra.mxu0 0.0
  %3931 = vmatpush.msra.mxu0 0.0
  %3932 = vmatpush.msra.mxu0 0.0
  %3933 = vmatpush.msra.mxu0 0.0
  %3934 = vmatpush.msra.mxu0 0.0
  %3935 = vmatpush.msra.mxu0 0.0
  %3936 = vmatpush.msra.mxu0 0.0
  %3937 = vmatpush.msra.mxu0 0.0
  %3938 = vmatpush.msra.mxu0 0.0
  %3939 = vmatpush.msra.mxu0 %v3920
  %3940 = vmatmul.f32.gmra.mxu0 %v3909
  %v3941 = vpop.f32.mrf.mxu0
  %v3942 = vadd.f32 0.0, %v3941
  %3943 = vmatmul.f32.gmra.mxu0 %v3912
  %v3944 = vpop.f32.mrf.mxu0
  %v3945 = vadd.f32 0.0, %v3944
  %3946 = vmatmul.f32.gmra.mxu0 %v3915
  %v3947 = vpop.f32.mrf.mxu0
  %v3948 = vadd.f32 0.0, %v3947
  %3949 = vmatmul.f32.gmra.mxu0 %v3918
  %v3950 = vpop.f32.mrf.mxu0
  %v3951 = vadd.f32 0.0, %v3950
  %3952 = vdwg.mxu0
  %3953 = vmatpush.msra.mxu0 0.0
  %3954 = vmatpush.msra.mxu0 0.0
  %3955 = vmatpush.msra.mxu0 0.0
  %3956 = vmatpush.msra.mxu0 0.0
  %3957 = vmatpush.msra.mxu0 0.0
  %3958 = vmatpush.msra.mxu0 0.0
  %3959 = vmatpush.msra.mxu0 0.0
  %3960 = vmatpush.msra.mxu0 0.0
  %3961 = vmatpush.msra.mxu0 0.0
  %3962 = vmatpush.msra.mxu0 0.0
  %3963 = vmatpush.msra.mxu0 0.0
  %3964 = vmatpush.msra.mxu0 0.0
  %3965 = vmatpush.msra.mxu0 0.0
  %3966 = vmatpush.msra.mxu0 0.0
  %3967 = vmatpush.msra.mxu0 0.0
  %3968 = vmatpush.msra.mxu0 %v3922
  %3969 = vmatmul.f32.gmra.mxu0 %v3909
  %v3970 = vpop.f32.mrf.mxu0
  %v3971 = vadd.f32 0.0, %v3970
  %3972 = vmatmul.f32.gmra.mxu0 %v3912
  %v3973 = vpop.f32.mrf.mxu0
  %v3974 = vadd.f32 0.0, %v3973
  %3975 = vmatmul.f32.gmra.mxu0 %v3915
  %v3976 = vpop.f32.mrf.mxu0
  %v3977 = vadd.f32 0.0, %v3976
  %3978 = vmatmul.f32.gmra.mxu0 %v3918
  %v3979 = vpop.f32.mrf.mxu0
  %v3980 = vadd.f32 0.0, %v3979
  %3981 = vdwg.mxu0
  %v3982 = vmul.f32 %v3691, %v3853
  %v3983 = vmul.f32 %v3692, %v3882
  %v3984 = vmul.f32 %v3693, %v3856
  %v3985 = vmul.f32 %v3694, %v3885
  %v3986 = vmul.f32 %v3695, %v3859
  %v3987 = vmul.f32 %v3696, %v3888
  %v3988 = vmul.f32 %v3697, %v3862
  %v3989 = vmul.f32 %v3698, %v3891
  %v3990 = vadd.f32 %v3982, %v3942
  %v3991 = vadd.f32 %v3983, %v3971
  %v3992 = vadd.f32 %v3984, %v3945
  %v3993 = vadd.f32 %v3985, %v3974
  %v3994 = vadd.f32 %v3986, %v3948
  %v3995 = vadd.f32 %v3987, %v3977
  %v3996 = vadd.f32 %v3988, %v3951
  %v3997 = vadd.f32 %v3989, %v3980
  %v3998 = vmax.f32 %v3990, 0.0
  %v3999 = vmax.f32 %v3991, 0.0
  %v4000 = vmax.f32 %v3992, 0.0
  %v4001 = vmax.f32 %v3993, 0.0
  %v4002 = vmax.f32 %v3994, 0.0
  %v4003 = vmax.f32 %v3995, 0.0
  %v4004 = vmax.f32 %v3996, 0.0
  %v4005 = vmax.f32 %v3997, 0.0
  %vm4006 = vcmask 84992
  %4007 = vst.msk [vmem:[#allocation3] sm:$0xf] %vm4006, 0
  %4008 = vst.msk [vmem:[#allocation3 + $0x8] sm:$0xf] %vm4006, 0
  %4009 = vst.msk [vmem:[#allocation3 + $0x10] sm:$0xf] %vm4006, 0
  %4010 = vst.msk [vmem:[#allocation3 + $0x18] sm:$0xf] %vm4006, 0
  %vm4011 = vcmask 765592
  %4012 = vst.msk [vmem:[#allocation3 + $0x4] sm:$0xf] %vm4011, 0
  %4013 = vst.msk [vmem:[#allocation3 + $0xc] sm:$0xf] %vm4011, 0
  %4014 = vst.msk [vmem:[#allocation3 + $0x14] sm:$0xf] %vm4011, 0
  %4015 = vst.msk [vmem:[#allocation3 + $0x1c] sm:$0xf] %vm4011, 0
  %v4016 = vpack.c.bf16 %v3999, %v3998
  %v4017 = vpack.c.bf16 %v4001, %v4000
  %v4018 = vpack.c.bf16 %v4003, %v4002
  %v4019 = vpack.c.bf16 %v4005, %v4004
  %4024 = vrot.lane.b32.xlu0 %v4016, 11
  %v4025 = vpop.permute.xlu0 %4024
  %4026 = vrot.lane.b32.xlu0 %v4017, 11
  %v4027 = vpop.permute.xlu0 %4026
  %4028 = vrot.lane.b32.xlu0 %v4018, 11
  %v4029 = vpop.permute.xlu0 %4028
  %4030 = vrot.lane.b32.xlu0 %v4019, 11
  %v4031 = vpop.permute.xlu0 %4030
  %v4032 = vrot.slane %v4025, 4
  %v4033 = vrot.slane %v4027, 4
  %v4034 = vrot.slane %v4029, 4
  %v4035 = vrot.slane %v4031, 4
  %vm4036 = vcmask 89088
  %v4037 = vsel %vm4036, %v4032, %v4025
  %v4038 = vsel %vm4036, %v4033, %v4027
  %v4039 = vsel %vm4036, %v4034, %v4029
  %v4040 = vsel %vm4036, %v4035, %v4031
  %vm4045 = vcmask 1043544
  %vm4046 = vcmask 678916
  %vm4047 = vmor %vm4046, %vm4045
  %4048 = vst.msk [vmem:[#allocation3] sm:$0xff] %vm4047, %v4037
  %4049 = vst.msk [vmem:[#allocation3 + $0x8] sm:$0xff] %vm4047, %v4038
  %4050 = vst.msk [vmem:[#allocation3 + $0x10] sm:$0xff] %vm4047, %v4039
  %4051 = vst.msk [vmem:[#allocation3 + $0x18] sm:$0xff] %vm4047, %v4040
  %v4052 = vld [vmem:[#allocation3] sm:$0xff]
  %v4053 = vld [vmem:[#allocation3 + $0x8] sm:$0xff]
  %v4054 = vld [vmem:[#allocation3 + $0x10] sm:$0xff]
  %v4055 = vld [vmem:[#allocation3 + $0x18] sm:$0xff]
  %v4060 = vunpack.c.l.b16 %v4052
  %v4061 = vunpack.c.h.b16 %v4052
  %v4062 = vunpack.c.l.b16 %v4053
  %v4063 = vunpack.c.h.b16 %v4053
  %v4064 = vunpack.c.l.b16 %v4054
  %v4065 = vunpack.c.h.b16 %v4054
  %v4066 = vunpack.c.l.b16 %v4055
  %v4067 = vunpack.c.h.b16 %v4055
  %v4068 = vpack.c.b16 %v4062, %v4060
  %v4069 = vpack.c.b16 %v4063, %v4061
  %v4070 = vpack.c.b16 %v4066, %v4064
  %v4071 = vpack.c.b16 %v4067, %v4065
  %4076 = vrot.lane.b32.xlu0 %v4068, 127
  %v4077 = vpop.permute.xlu0 %4076
  %4078 = vrot.lane.b32.xlu0 %v4069, 127
  %v4079 = vpop.permute.xlu0 %4078
  %4080 = vrot.lane.b32.xlu0 %v4070, 127
  %v4081 = vpop.permute.xlu0 %4080
  %4082 = vrot.lane.b32.xlu0 %v4071, 127
  %v4083 = vpop.permute.xlu0 %4082
  %v4084 = vsel %vm3119, %v4077, %v4079
  %v4085 = vsel %vm3119, %v4081, %v4083
  %4090 = vrot.lane.b32.xlu0 %v4068, 126
  %v4091 = vpop.permute.xlu0 %4090
  %4092 = vrot.lane.b32.xlu0 %v4069, 126
  %v4093 = vpop.permute.xlu0 %4092
  %4094 = vrot.lane.b32.xlu0 %v4070, 126
  %v4095 = vpop.permute.xlu0 %4094
  %4096 = vrot.lane.b32.xlu0 %v4071, 126
  %v4097 = vpop.permute.xlu0 %4096
  %v4098 = vsel %vm3148, %v4091, %v4093
  %v4099 = vsel %vm3148, %v4095, %v4097
  %v4104 = vld [vmem:[%s5] sm:$0xf]
  %v4105 = vld [vmem:[%s5 + $0x4] sm:$0xf]
  %v4106 = vld [vmem:[%s5 + $0x8] sm:$0xf]
  %v4107 = vld [vmem:[%s5 + $0xc] sm:$0xf]
  %s4108 = scalar_lea.vmem %s5, 16
  %v4109 = vld [vmem:[%s4108] sm:$0xf]
  %v4110 = vld [vmem:[%s4108 + $0x4] sm:$0xf]
  %v4111 = vld [vmem:[%s4108 + $0x8] sm:$0xf]
  %v4112 = vld [vmem:[%s4108 + $0xc] sm:$0xf]
  %v4117 = vunpack.c.l.b16 %v4109
  %v4118 = vunpack.c.l.b16 %v4110
  %v4119 = vunpack.c.l.b16 %v4111
  %v4120 = vunpack.c.l.b16 %v4112
  %v4121 = vpack.c.b16 %v4118, %v4117
  %v4122 = vpack.c.b16 %v4120, %v4119
  %4123 = vrot.lane.b32.xlu0 %v4068, 118
  %v4124 = vpop.permute.xlu0 %4123
  %4125 = vrot.lane.b32.xlu0 %v4069, 118
  %v4126 = vpop.permute.xlu0 %4125
  %4127 = vrot.lane.b32.xlu0 %v4070, 118
  %v4128 = vpop.permute.xlu0 %4127
  %4129 = vrot.lane.b32.xlu0 %v4071, 118
  %v4130 = vpop.permute.xlu0 %4129
  %4131 = vrot.lane.b32.xlu0 %v4084, 118
  %v4132 = vpop.permute.xlu0 %4131
  %4133 = vrot.lane.b32.xlu0 %v4079, 118
  %v4134 = vpop.permute.xlu0 %4133
  %4135 = vrot.lane.b32.xlu0 %v4085, 118
  %v4136 = vpop.permute.xlu0 %4135
  %4137 = vrot.lane.b32.xlu0 %v4083, 118
  %v4138 = vpop.permute.xlu0 %4137
  %4139 = vrot.lane.b32.xlu0 %v4098, 118
  %v4140 = vpop.permute.xlu0 %4139
  %4141 = vrot.lane.b32.xlu0 %v4093, 118
  %v4142 = vpop.permute.xlu0 %4141
  %4143 = vrot.lane.b32.xlu0 %v4099, 118
  %v4144 = vpop.permute.xlu0 %4143
  %4145 = vrot.lane.b32.xlu0 %v4097, 118
  %v4146 = vpop.permute.xlu0 %4145
  %v4147 = vsel %vm3236, %v4124, %v4126
  %v4148 = vsel %vm3236, %v4128, %v4130
  %v4149 = vsel %vm3236, %v4132, %v4134
  %v4150 = vsel %vm3236, %v4136, %v4138
  %v4151 = vsel %vm3236, %v4140, %v4142
  %v4152 = vsel %vm3236, %v4144, %v4146
  %vm4165 = vcmask 785408
  %v4167 = vsel %vm4165, %v4121, 0
  %v4170 = vsel %vm4165, %v4122, 0
  %4172 = vmatpush.bf16.msra.mxu0 0
  %4173 = vmatpush.bf16.msra.mxu0 0
  %4174 = vmatpush.bf16.msra.mxu0 %v4152
  %4175 = vmatpush.bf16.msra.mxu0 %v4151
  %4176 = vmatpush.bf16.msra.mxu0 %v4150
  %4177 = vmatpush.bf16.msra.mxu0 %v4149
  %4178 = vmatpush.bf16.msra.mxu0 %v4148
  %4179 = vmatpush.bf16.msra.mxu0 %v4147
  %4180 = vmatmul.bf16.gmra.mxu0 %v4167
  %v4181 = vpop.f32.mrf.mxu0
  %v4182 = vadd.f32 0.0, %v4181
  %v4183 = vpop.f32.mrf.mxu0
  %v4184 = vadd.f32 0.0, %v4183
  %4185 = vmatmul.bf16.gmra.mxu0 %v4170
  %v4186 = vpop.f32.mrf.mxu0
  %v4187 = vadd.f32 0.0, %v4186
  %v4188 = vpop.f32.mrf.mxu0
  %v4189 = vadd.f32 0.0, %v4188
  %4190 = vdwg.mxu0
  %4191 = vmatpush.bf16.msra.mxu0 0
  %4192 = vmatpush.bf16.msra.mxu0 0
  %4193 = vmatpush.bf16.msra.mxu0 %v4146
  %4194 = vmatpush.bf16.msra.mxu0 %v4142
  %4195 = vmatpush.bf16.msra.mxu0 %v4138
  %4196 = vmatpush.bf16.msra.mxu0 %v4134
  %4197 = vmatpush.bf16.msra.mxu0 %v4130
  %4198 = vmatpush.bf16.msra.mxu0 %v4126
  %4199 = vmatmul.bf16.gmra.mxu0 %v4167
  %v4200 = vpop.f32.mrf.mxu0
  %v4201 = vadd.f32 0.0, %v4200
  %v4202 = vpop.f32.mrf.mxu0
  %v4203 = vadd.f32 0.0, %v4202
  %4204 = vmatmul.bf16.gmra.mxu0 %v4170
  %v4205 = vpop.f32.mrf.mxu0
  %v4206 = vadd.f32 0.0, %v4205
  %v4207 = vpop.f32.mrf.mxu0
  %v4208 = vadd.f32 0.0, %v4207
  %4209 = vdwg.mxu0
  %v4214 = vunpack.c.l.b16 %v4104
  %v4215 = vunpack.c.l.b16 %v4105
  %v4216 = vunpack.c.l.b16 %v4106
  %v4217 = vunpack.c.l.b16 %v4107
  %v4218 = vpack.c.b16 %v4215, %v4214
  %v4219 = vpack.c.b16 %v4217, %v4216
  %v4221 = vsel %vm4165, %v4218, 0
  %v4224 = vsel %vm4165, %v4219, 0
  %4226 = vmatpush.bf16.msra.mxu0 0
  %4227 = vmatpush.bf16.msra.mxu0 0
  %4228 = vmatpush.bf16.msra.mxu0 %v4099
  %4229 = vmatpush.bf16.msra.mxu0 %v4098
  %4230 = vmatpush.bf16.msra.mxu0 %v4085
  %4231 = vmatpush.bf16.msra.mxu0 %v4084
  %4232 = vmatpush.bf16.msra.mxu0 %v4070
  %4233 = vmatpush.bf16.msra.mxu0 %v4068
  %4234 = vmatmul.bf16.gmra.mxu0 %v4221
  %v4235 = vpop.f32.mrf.mxu0
  %v4236 = vadd.f32 %v4182, %v4235
  %v4237 = vpop.f32.mrf.mxu0
  %v4238 = vadd.f32 %v4184, %v4237
  %4239 = vmatmul.bf16.gmra.mxu0 %v4224
  %v4240 = vpop.f32.mrf.mxu0
  %v4241 = vadd.f32 %v4187, %v4240
  %v4242 = vpop.f32.mrf.mxu0
  %v4243 = vadd.f32 %v4189, %v4242
  %4244 = vdwg.mxu0
  %4245 = vmatpush.bf16.msra.mxu0 0
  %4246 = vmatpush.bf16.msra.mxu0 0
  %4247 = vmatpush.bf16.msra.mxu0 %v4097
  %4248 = vmatpush.bf16.msra.mxu0 %v4093
  %4249 = vmatpush.bf16.msra.mxu0 %v4083
  %4250 = vmatpush.bf16.msra.mxu0 %v4079
  %4251 = vmatpush.bf16.msra.mxu0 %v4071
  %4252 = vmatpush.bf16.msra.mxu0 %v4069
  %4253 = vmatmul.bf16.gmra.mxu0 %v4221
  %v4254 = vpop.f32.mrf.mxu0
  %v4255 = vadd.f32 %v4201, %v4254
  %v4256 = vpop.f32.mrf.mxu0
  %v4257 = vadd.f32 %v4203, %v4256
  %4258 = vmatmul.bf16.gmra.mxu0 %v4224
  %v4259 = vpop.f32.mrf.mxu0
  %v4260 = vadd.f32 %v4206, %v4259
  %v4261 = vpop.f32.mrf.mxu0
  %v4262 = vadd.f32 %v4208, %v4261
  %4263 = vdwg.mxu0
  %s4264 = scalar_lea.vmem %s5, 32
  %v4265 = vld [vmem:[%s4264] sm:$0xf]
  %v4266 = vld [vmem:[%s4264 + $0x4] sm:$0xf]
  %v4267 = vld [vmem:[%s4264 + $0x8] sm:$0xf]
  %v4268 = vld [vmem:[%s4264 + $0xc] sm:$0xf]
  %v4273 = vunpack.c.l.b16 %v4265
  %v4274 = vunpack.c.l.b16 %v4266
  %v4275 = vunpack.c.l.b16 %v4267
  %v4276 = vunpack.c.l.b16 %v4268
  %v4277 = vpack.c.b16 %v4274, %v4273
  %v4278 = vpack.c.b16 %v4276, %v4275
  %4279 = vrot.lane.b32.xlu0 %v4068, 108
  %v4280 = vpop.permute.xlu0 %4279
  %4281 = vrot.lane.b32.xlu0 %v4069, 108
  %v4282 = vpop.permute.xlu0 %4281
  %4283 = vrot.lane.b32.xlu0 %v4070, 108
  %v4284 = vpop.permute.xlu0 %4283
  %4285 = vrot.lane.b32.xlu0 %v4071, 108
  %v4286 = vpop.permute.xlu0 %4285
  %4287 = vrot.lane.b32.xlu0 %v4084, 108
  %v4288 = vpop.permute.xlu0 %4287
  %4289 = vrot.lane.b32.xlu0 %v4079, 108
  %v4290 = vpop.permute.xlu0 %4289
  %4291 = vrot.lane.b32.xlu0 %v4085, 108
  %v4292 = vpop.permute.xlu0 %4291
  %4293 = vrot.lane.b32.xlu0 %v4083, 108
  %v4294 = vpop.permute.xlu0 %4293
  %4295 = vrot.lane.b32.xlu0 %v4098, 108
  %v4296 = vpop.permute.xlu0 %4295
  %4297 = vrot.lane.b32.xlu0 %v4093, 108
  %v4298 = vpop.permute.xlu0 %4297
  %4299 = vrot.lane.b32.xlu0 %v4099, 108
  %v4300 = vpop.permute.xlu0 %4299
  %4301 = vrot.lane.b32.xlu0 %v4097, 108
  %v4302 = vpop.permute.xlu0 %4301
  %v4303 = vsel %vm3526, %v4280, %v4282
  %v4304 = vsel %vm3526, %v4284, %v4286
  %v4305 = vsel %vm3526, %v4288, %v4290
  %v4306 = vsel %vm3526, %v4292, %v4294
  %v4307 = vsel %vm3526, %v4296, %v4298
  %v4308 = vsel %vm3526, %v4300, %v4302
  %v4322 = vsel %vm4165, %v4277, 0
  %v4325 = vsel %vm4165, %v4278, 0
  %4327 = vmatpush.bf16.msra.mxu0 0
  %4328 = vmatpush.bf16.msra.mxu0 0
  %4329 = vmatpush.bf16.msra.mxu0 %v4308
  %4330 = vmatpush.bf16.msra.mxu0 %v4307
  %4331 = vmatpush.bf16.msra.mxu0 %v4306
  %4332 = vmatpush.bf16.msra.mxu0 %v4305
  %4333 = vmatpush.bf16.msra.mxu0 %v4304
  %4334 = vmatpush.bf16.msra.mxu0 %v4303
  %4335 = vmatmul.bf16.gmra.mxu0 %v4322
  %v4336 = vpop.f32.mrf.mxu0
  %v4337 = vadd.f32 0.0, %v4336
  %v4338 = vpop.f32.mrf.mxu0
  %v4339 = vadd.f32 0.0, %v4338
  %4340 = vmatmul.bf16.gmra.mxu0 %v4325
  %v4341 = vpop.f32.mrf.mxu0
  %v4342 = vadd.f32 0.0, %v4341
  %v4343 = vpop.f32.mrf.mxu0
  %v4344 = vadd.f32 0.0, %v4343
  %4345 = vdwg.mxu0
  %4346 = vmatpush.bf16.msra.mxu0 0
  %4347 = vmatpush.bf16.msra.mxu0 0
  %4348 = vmatpush.bf16.msra.mxu0 %v4302
  %4349 = vmatpush.bf16.msra.mxu0 %v4298
  %4350 = vmatpush.bf16.msra.mxu0 %v4294
  %4351 = vmatpush.bf16.msra.mxu0 %v4290
  %4352 = vmatpush.bf16.msra.mxu0 %v4286
  %4353 = vmatpush.bf16.msra.mxu0 %v4282
  %4354 = vmatmul.bf16.gmra.mxu0 %v4322
  %v4355 = vpop.f32.mrf.mxu0
  %v4356 = vadd.f32 0.0, %v4355
  %v4357 = vpop.f32.mrf.mxu0
  %v4358 = vadd.f32 0.0, %v4357
  %4359 = vmatmul.bf16.gmra.mxu0 %v4325
  %v4360 = vpop.f32.mrf.mxu0
  %v4361 = vadd.f32 0.0, %v4360
  %v4362 = vpop.f32.mrf.mxu0
  %v4363 = vadd.f32 0.0, %v4362
  %4364 = vdwg.mxu0
  %v4365 = vadd.f32 %v4236, %v4337
  %v4366 = vadd.f32 %v4255, %v4356
  %v4367 = vadd.f32 %v4238, %v4339
  %v4368 = vadd.f32 %v4257, %v4358
  %v4369 = vadd.f32 %v4241, %v4342
  %v4370 = vadd.f32 %v4260, %v4361
  %v4371 = vadd.f32 %v4243, %v4344
  %v4372 = vadd.f32 %v4262, %v4363
  %v4373 = vld [vmem:[#allocation2 + $0x40] sm:$0xff]
  %v4374 = vld [vmem:[#allocation2 + $0x48] sm:$0xff]
  %v4375 = vld [vmem:[#allocation2 + $0x50] sm:$0xff]
  %v4376 = vld [vmem:[#allocation2 + $0x58] sm:$0xff]
  %v4377 = vunpack.c.l.bf16 %v4373
  %v4378 = vunpack.c.h.bf16 %v4373
  %v4379 = vunpack.c.l.bf16 %v4374
  %v4380 = vunpack.c.h.bf16 %v4374
  %v4381 = vunpack.c.l.bf16 %v4375
  %v4382 = vunpack.c.h.bf16 %v4375
  %v4383 = vunpack.c.l.bf16 %v4376
  %v4384 = vunpack.c.h.bf16 %v4376
  %v4385 = vld [vmem:[%s7] sm:$0xff]
  %v4386 = vld [vmem:[%s7 + $0x8] sm:$0xff]
  %v4387 = vld [vmem:[%s7 + $0x10] sm:$0xff]
  %v4388 = vld [vmem:[%s7 + $0x18] sm:$0xff]
  %4390 = vset.pattern.permute.xlu0 1
  %4391 = vperm.xlu0 %4390, %v4385
  %v4392 = vpop.permute.xlu0 %4391
  %4395 = vset.pattern.permute.xlu0 1
  %4396 = vperm.xlu0 %4395, %v4386
  %v4397 = vpop.permute.xlu0 %4396
  %4400 = vset.pattern.permute.xlu0 1
  %4401 = vperm.xlu0 %4400, %v4387
  %v4402 = vpop.permute.xlu0 %4401
  %4405 = vset.pattern.permute.xlu0 1
  %4406 = vperm.xlu0 %4405, %v4388
  %v4407 = vpop.permute.xlu0 %4406
  %v4409 = vadd.f32 %v4365, %v4392
  %v4410 = vadd.f32 %v4366, %v4392
  %v4411 = vadd.f32 %v4367, %v4397
  %v4412 = vadd.f32 %v4368, %v4397
  %v4413 = vadd.f32 %v4369, %v4402
  %v4414 = vadd.f32 %v4370, %v4402
  %v4415 = vadd.f32 %v4371, %v4407
  %v4416 = vadd.f32 %v4372, %v4407
  %4425 = vrot.lane.b32.xlu0 %v4377, 117
  %v4426 = vpop.permute.xlu0 %4425
  %4427 = vrot.lane.b32.xlu0 %v4378, 117
  %v4428 = vpop.permute.xlu0 %4427
  %4429 = vrot.lane.b32.xlu0 %v4379, 117
  %v4430 = vpop.permute.xlu0 %4429
  %4431 = vrot.lane.b32.xlu0 %v4380, 117
  %v4432 = vpop.permute.xlu0 %4431
  %4433 = vrot.lane.b32.xlu0 %v4381, 117
  %v4434 = vpop.permute.xlu0 %4433
  %4435 = vrot.lane.b32.xlu0 %v4382, 117
  %v4436 = vpop.permute.xlu0 %4435
  %4437 = vrot.lane.b32.xlu0 %v4383, 117
  %v4438 = vpop.permute.xlu0 %4437
  %4439 = vrot.lane.b32.xlu0 %v4384, 117
  %v4440 = vpop.permute.xlu0 %4439
  %vm4441 = vcmask 957440
  %v4442 = vsel %vm4441, %v4426, %v4428
  %v4443 = vsel %vm4441, %v4430, %v4432
  %v4444 = vsel %vm4441, %v4434, %v4436
  %v4445 = vsel %vm4441, %v4438, %v4440
  %v4454 = vadd.f32 %v4409, %v4442
  %v4455 = vadd.f32 %v4410, %v4428
  %v4456 = vadd.f32 %v4411, %v4443
  %v4457 = vadd.f32 %v4412, %v4432
  %v4458 = vadd.f32 %v4413, %v4444
  %v4459 = vadd.f32 %v4414, %v4436
  %v4460 = vadd.f32 %v4415, %v4445
  %v4461 = vadd.f32 %v4416, %v4440
  %4462 = vset.pattern.permute.xlu0 2
  %4463 = vperm.xlu0 %4462, %v4385
  %v4464 = vpop.permute.xlu0 %4463
  %4466 = vset.pattern.permute.xlu0 2
  %4467 = vperm.xlu0 %4466, %v4386
  %v4468 = vpop.permute.xlu0 %4467
  %4470 = vset.pattern.permute.xlu0 2
  %4471 = vperm.xlu0 %4470, %v4387
  %v4472 = vpop.permute.xlu0 %4471
  %4474 = vset.pattern.permute.xlu0 2
  %4475 = vperm.xlu0 %4474, %v4388
  %v4476 = vpop.permute.xlu0 %4475
  %v4478 = vadd.f32 %v4454, %v4464
  %v4479 = vadd.f32 %v4455, %v4464
  %v4480 = vadd.f32 %v4456, %v4468
  %v4481 = vadd.f32 %v4457, %v4468
  %v4482 = vadd.f32 %v4458, %v4472
  %v4483 = vadd.f32 %v4459, %v4472
  %v4484 = vadd.f32 %v4460, %v4476
  %v4485 = vadd.f32 %v4461, %v4476
  %v4486 = vmul.f32 %v4478, %v3687
  %v4487 = vmul.f32 %v4479, %v3688
  %v4488 = vmul.f32 %v4480, %v3687
  %v4489 = vmul.f32 %v4481, %v3688
  %v4490 = vmul.f32 %v4482, %v3687
  %v4491 = vmul.f32 %v4483, %v3688
  %v4492 = vmul.f32 %v4484, %v3687
  %v4493 = vmul.f32 %v4485, %v3688
  %v4494 = vpack.c.bf16 %v4487, %v4486
  %v4495 = vpack.c.bf16 %v4489, %v4488
  %v4496 = vpack.c.bf16 %v4491, %v4490
  %v4497 = vpack.c.bf16 %v4493, %v4492
  %vm4498 = vcmask 588804
  %vm4499 = vmor %vm4498, %vm1288
  %4500 = vst.msk [vmem:[%s12] sm:$0xff] %vm4499, %v4494
  %4501 = vst.msk [vmem:[%s12 + $0x8] sm:$0xff] %vm4499, %v4495
  %4502 = vst.msk [vmem:[%s12 + $0x10] sm:$0xff] %vm4499, %v4496
  %4503 = vst.msk [vmem:[%s12 + $0x18] sm:$0xff] %vm4499, %v4497
  // Predicated region
  $region50: #{adabiggan_forward.5} parent=0 // pred_check
    _
  $region51: #{adabiggan_forward.5} parent=0 // pred_check_branch
    %4505 = sbr.rel (0) target = $region53
  $region52: #{adabiggan_forward.5} parent=0 // pred_region
    _
  $region53: #{adabiggan_forward.5} parent=0 // pred_fallthru
    _
  // Predicated region
  $region54: #{adabiggan_forward.5} parent=0 // pred_check
    _
  $region55: #{adabiggan_forward.5} parent=0 // pred_check_branch
    %4507 = sbr.rel (0) target = $region57
  $region56: #{adabiggan_forward.5} parent=0 // pred_region
    _
  $region57: #{adabiggan_forward.5} parent=0 // pred_fallthru
    _

</llo_original>
